<compile_context>
chip_gen: v7x
topology: tpu7x:2x2x1
jax: 0.10.0
libtpu: 0.0.40
codegen_flags: <defaults>
</compile_context>

<pallas_src>
import functools

import jax
import jax.numpy as jnp
from jax.experimental import pallas as pl
from jax.experimental.pallas import tpu as pltpu


def vae_kernel(x_ref, eps_ref,
               w1_ref, b1_ref, w2_ref, b2_ref, w34_ref, b34_ref,
               d1_ref, db1_ref, d2_ref, db2_ref, d3_ref, db3_ref,
               out_ref, *, latent_dims):
    # Dots take bf16 operands (MXU-native on v5e/v6e/v7x) with f32 accumulation.
    # ReLU / exp / reparam stay f32 (v5e VPU/EUP have no bf16 path).
    x = x_ref[...]

    # ----- Variational encoder -----
    h = jnp.dot(x.astype(jnp.bfloat16), w1_ref[...],
                preferred_element_type=jnp.float32) + b1_ref[...]
    h = jnp.maximum(h, 0.0)                                     # relu(linear1)
    h = jnp.dot(h.astype(jnp.bfloat16), w2_ref[...],
                preferred_element_type=jnp.float32) + b2_ref[...]
    h = jnp.maximum(h, 0.0)                                     # relu(linear2)

    # Fused mu / log-sigma head: one (64, 2*latent) matmul, then lane slices.
    y = jnp.dot(h.astype(jnp.bfloat16), w34_ref[...],
                preferred_element_type=jnp.float32) + b34_ref[...]
    mu = y[:, :latent_dims]                                     # linear3
    sigma = jnp.exp(y[:, latent_dims:])                         # exp(linear4), EUP slot

    # Reparameterization: z = mu + sigma * eps (eps ~ N(0,1) supplied as input,
    # since torch's self.N.sample is an external RNG draw).
    z = mu + sigma * eps_ref[...]

    # TODO(synk): encoder's self.kl side-effect attribute is not part of the
    # returned forward value; not materialized here (forward-only kernel).

    # ----- Decoder -----
    g = jnp.dot(z.astype(jnp.bfloat16), d1_ref[...],
                preferred_element_type=jnp.float32) + db1_ref[...]
    g = jnp.maximum(g, 0.0)
    g = jnp.dot(g.astype(jnp.bfloat16), d2_ref[...],
                preferred_element_type=jnp.float32) + db2_ref[...]
    g = jnp.maximum(g, 0.0)
    out = jnp.dot(g.astype(jnp.bfloat16), d3_ref[...],
                  preferred_element_type=jnp.float32) + db3_ref[...]

    out_ref[...] = out.astype(out_ref.dtype)


def prepare_weights(params):
    """One-time weight prep (hoisted out of the forward path):
    bf16 MXU operands, f32 biases, fused (64, 2*latent) mu/log-sigma head."""
    wb = lambda name: params[name].astype(jnp.bfloat16)
    bf = lambda name: params[name].astype(jnp.float32)
    w34 = jnp.concatenate([params["w3"], params["w4"]], axis=1).astype(jnp.bfloat16)
    b34 = jnp.concatenate([params["b3"], params["b4"]], axis=1).astype(jnp.float32)
    return (wb("w1"), bf("b1"), wb("w2"), bf("b2"),
            w34, b34,
            wb("d1"), bf("db1"), wb("d2"), bf("db2"),
            wb("d3"), bf("db3"))


def _choose_tile(B, block_b):
    """Pick a batch tile that avoids padding.  Returns (tb, grid, pad)."""
    if B <= block_b:
        return B, 1, 0                      # single full-extent block (no 8-align needed)
    tb = max(8, min(block_b, (B // 8) * 8))
    t = tb
    while t >= 8:                           # prefer a divisor of B -> zero padding
        if B % t == 0:
            return t, B // t, 0
        t -= 8
    pad = (-B) % tb                         # pathological B: minimal pad fallback
    return tb, (B + pad) // tb, pad


def vae_forward(x, eps, weights, *, block_b=1024, out_dtype=jnp.float32):
    """x: (B, 256) float32, eps: (B, latent) float32, weights from prepare_weights().
    Returns (B, 256) array of out_dtype."""
    B, in_dim = x.shape
    latent = eps.shape[1]
    out_dim = 256

    tb, grid_b, pad = _choose_tile(B, block_b)
    if pad:  # only hit when B > block_b and B has no multiple-of-8 divisor <= block_b
        x = jnp.pad(x, ((0, pad), (0, 0)))
        eps = jnp.pad(eps, ((0, pad), (0, 0)))
    Bp = B + pad

    const_map = lambda i: (0, 0)            # weights resident across grid steps
    batch_map = lambda i: (i, 0)
    in_specs = (
        [pl.BlockSpec((tb, in_dim), batch_map),        # x tile (double-buffered)
         pl.BlockSpec((tb, latent), batch_map)]        # eps tile
        + [pl.BlockSpec(w.shape, const_map) for w in weights])
    out_spec = pl.BlockSpec((tb, out_dim), batch_map)

    bytes_weights = int(sum(w.size * w.dtype.itemsize for w in weights))
    flops_per_row = 2 * (256 * 128 + 128 * 64 + 64 * 2 * latent
                         + latent * 64 + 64 * 128 + 128 * 256)
    out_itemsize = jnp.dtype(out_dtype).itemsize
    cost = pl.CostEstimate(
        flops=flops_per_row * Bp,
        transcendentals=Bp * latent,
        bytes_accessed=int(x.size * x.dtype.itemsize
                           + eps.size * eps.dtype.itemsize
                           + Bp * out_dim * out_itemsize
                           + bytes_weights))

    # VMEM budget: double-buffered activation tiles + resident weights + f32
    # intermediates, with 2x headroom.  Floor 32 MiB, cap below v7x physical.
    act_bytes = 2 * tb * (in_dim * x.dtype.itemsize
                          + latent * eps.dtype.itemsize
                          + out_dim * out_itemsize)
    scratch_bytes = tb * (128 + 64 + 2 * latent + 64 + 128 + 256) * 4
    vmem_limit = int(min(max(2 * (act_bytes + 2 * bytes_weights + scratch_bytes),
                             32 << 20), 48 << 20))

    out = pl.pallas_call(
        functools.partial(vae_kernel, latent_dims=latent),
        out_shape=jax.ShapeDtypeStruct((Bp, out_dim), out_dtype),
        grid=(grid_b,),
        in_specs=in_specs,
        out_specs=out_spec,
        compiler_params=pltpu.CompilerParams(
            dimension_semantics=("parallel",),   # megacore sharding on v7x
            vmem_limit_bytes=vmem_limit),
        cost_estimate=cost,
    )(x, eps, *weights)

    return out[:B] if pad else out


def init_params(key, latent_dims):
    """Deterministic synthetic parameters (PyTorch-Linear shapes, transposed)."""
    def lin(k, fan_in, fan_out):
        kw, kb = jax.random.split(k)
        bound = 1.0 / (fan_in ** 0.5)
        w = jax.random.uniform(kw, (fan_in, fan_out), jnp.float32, -bound, bound)
        b = jax.random.uniform(kb, (1, fan_out), jnp.float32, -bound, bound)
        return w, b

    ks = jax.random.split(key, 7)
    p = {}
    p["w1"], p["b1"] = lin(ks[0], 256, 128)           # encoder.linear1
    p["w2"], p["b2"] = lin(ks[1], 128, 64)            # encoder.linear2
    p["w3"], p["b3"] = lin(ks[2], 64, latent_dims)    # encoder.linear3 (mu)
    p["w4"], p["b4"] = lin(ks[3], 64, latent_dims)    # encoder.linear4 (log sigma)
    p["d1"], p["db1"] = lin(ks[4], latent_dims, 64)   # decoder.linear1
    p["d2"], p["db2"] = lin(ks[5], 64, 128)           # decoder.linear2
    p["d3"], p["db3"] = lin(ks[6], 128, 256)          # decoder.linear3
    return p


if __name__ == "__main__":
    latent_dims = 16
    B = 2048  # exercises a 2-step batch grid at TB=1024 (grid>=2 -> both v7x TCs busy)

    key = jax.random.PRNGKey(0)
    kx, keps, kp = jax.random.split(key, 3)

    x = jax.random.normal(kx, (B, 256), jnp.float32)
    eps = jax.random.normal(keps, (B, latent_dims), jnp.float32)  # N(0,1) sample
    params = init_params(kp, latent_dims)
    weights = prepare_weights(params)   # one-time bf16 cast + head fusion

    out = vae_forward(x, eps, weights)
    out = jax.block_until_ready(out)

    # Reference in plain JAX using the same bf16-operand / f32-accumulate dots.
    def ref(x, eps, p):
        def dot(a, w):
            return jnp.dot(a.astype(jnp.bfloat16), w.astype(jnp.bfloat16),
                           preferred_element_type=jnp.float32)
        h = jax.nn.relu(dot(x, p["w1"]) + p["b1"])
        h = jax.nn.relu(dot(h, p["w2"]) + p["b2"])
        mu = dot(h, p["w3"]) + p["b3"]
        sigma = jnp.exp(dot(h, p["w4"]) + p["b4"])
        z = mu + sigma * eps
        g = jax.nn.relu(dot(z, p["d1"]) + p["db1"])
        g = jax.nn.relu(dot(g, p["d2"]) + p["db2"])
        return dot(g, p["d3"]) + p["db3"]

    expected = ref(x, eps, params)
    assert out.shape == (B, 256)
    assert jnp.allclose(out, expected, atol=1e-2, rtol=1e-2)

    print("KERNEL_OK")
</pallas_src>

<mosaic_0001>
module attributes {stable_mosaic.version = 11 : i64} {
  func.func @vae_kernel(%arg0: i32, %arg1: memref<1024x256xf32, #tpu.memory_space<vmem>>, %arg2: memref<1024x16xf32, #tpu.memory_space<vmem>>, %arg3: memref<256x128xbf16, #tpu.memory_space<vmem>>, %arg4: memref<1x128xf32, #tpu.memory_space<vmem>>, %arg5: memref<128x64xbf16, #tpu.memory_space<vmem>>, %arg6: memref<1x64xf32, #tpu.memory_space<vmem>>, %arg7: memref<64x32xbf16, #tpu.memory_space<vmem>>, %arg8: memref<1x32xf32, #tpu.memory_space<vmem>>, %arg9: memref<16x64xbf16, #tpu.memory_space<vmem>>, %arg10: memref<1x64xf32, #tpu.memory_space<vmem>>, %arg11: memref<64x128xbf16, #tpu.memory_space<vmem>>, %arg12: memref<1x128xf32, #tpu.memory_space<vmem>>, %arg13: memref<128x256xbf16, #tpu.memory_space<vmem>>, %arg14: memref<1x256xf32, #tpu.memory_space<vmem>>, %arg15: memref<1024x256xf32, #tpu.memory_space<vmem>>) attributes {dimension_semantics = [#tpu.dimension_semantics<parallel>], iteration_bounds = array<i64: 2>, scalar_prefetch = 0 : i64, scratch_operands = 0 : i64, tpu.core_type = #tpu.core_type<tc>, window_params = [{transform_indices = @transform_0, window_bounds = array<i64: 1024, 256>}, {transform_indices = @transform_1, window_bounds = array<i64: 1024, 16>}, {pipeline_mode = #tpu.pipeline_mode<synchronous>, transform_indices = @transform_2, window_bounds = array<i64: 256, 128>}, {pipeline_mode = #tpu.pipeline_mode<synchronous>, transform_indices = @transform_3, window_bounds = array<i64: 1, 128>}, {pipeline_mode = #tpu.pipeline_mode<synchronous>, transform_indices = @transform_4, window_bounds = array<i64: 128, 64>}, {pipeline_mode = #tpu.pipeline_mode<synchronous>, transform_indices = @transform_5, window_bounds = array<i64: 1, 64>}, {pipeline_mode = #tpu.pipeline_mode<synchronous>, transform_indices = @transform_6, window_bounds = array<i64: 64, 32>}, {pipeline_mode = #tpu.pipeline_mode<synchronous>, transform_indices = @transform_7, window_bounds = array<i64: 1, 32>}, {pipeline_mode = #tpu.pipeline_mode<synchronous>, transform_indices = @transform_8, window_bounds = array<i64: 16, 64>}, {pipeline_mode = #tpu.pipeline_mode<synchronous>, transform_indices = @transform_9, window_bounds = array<i64: 1, 64>}, {pipeline_mode = #tpu.pipeline_mode<synchronous>, transform_indices = @transform_10, window_bounds = array<i64: 64, 128>}, {pipeline_mode = #tpu.pipeline_mode<synchronous>, transform_indices = @transform_11, window_bounds = array<i64: 1, 128>}, {pipeline_mode = #tpu.pipeline_mode<synchronous>, transform_indices = @transform_12, window_bounds = array<i64: 128, 256>}, {pipeline_mode = #tpu.pipeline_mode<synchronous>, transform_indices = @transform_13, window_bounds = array<i64: 1, 256>}, {transform_indices = @transform_14, window_bounds = array<i64: 1024, 256>}]} {
    %c0 = arith.constant 0 : index
    %c0_0 = arith.constant 0 : index
    %0 = vector.load %arg1[%c0, %c0_0] : memref<1024x256xf32, #tpu.memory_space<vmem>>, vector<1024x256xf32>
    %1 = arith.truncf %0 : vector<1024x256xf32> to vector<1024x256xbf16>
    %c0_1 = arith.constant 0 : index
    %c0_2 = arith.constant 0 : index
    %2 = vector.load %arg3[%c0_1, %c0_2] : memref<256x128xbf16, #tpu.memory_space<vmem>>, vector<256x128xbf16>
    %cst = arith.constant dense<0.000000e+00> : vector<1024x128xf32>
    %3 = tpu.matmul %1, %2, %cst {dimension_numbers = #tpu.dot_dimension_numbers<[1], [0], [0], [1], [0, 0, 1, 1], [], []>} : vector<1024x256xbf16>, vector<256x128xbf16>, vector<1024x128xf32> -> vector<1024x128xf32>
    %c0_3 = arith.constant 0 : index
    %c0_4 = arith.constant 0 : index
    %4 = vector.load %arg4[%c0_3, %c0_4] : memref<1x128xf32, #tpu.memory_space<vmem>>, vector<1x128xf32>
    %5 = vector.broadcast %4 : vector<1x128xf32> to vector<1024x128xf32>
    %6 = arith.addf %3, %5 : vector<1024x128xf32>
    %cst_5 = arith.constant 0.000000e+00 : f32
    %7 = vector.broadcast %cst_5 : f32 to vector<1024x128xf32>
    %8 = arith.maximumf %6, %7 : vector<1024x128xf32>
    %9 = arith.truncf %8 : vector<1024x128xf32> to vector<1024x128xbf16>
    %c0_6 = arith.constant 0 : index
    %c0_7 = arith.constant 0 : index
    %10 = vector.load %arg5[%c0_6, %c0_7] : memref<128x64xbf16, #tpu.memory_space<vmem>>, vector<128x64xbf16>
    %cst_8 = arith.constant dense<0.000000e+00> : vector<1024x64xf32>
    %11 = tpu.matmul %9, %10, %cst_8 {dimension_numbers = #tpu.dot_dimension_numbers<[1], [0], [0], [1], [0, 0, 1, 1], [], []>} : vector<1024x128xbf16>, vector<128x64xbf16>, vector<1024x64xf32> -> vector<1024x64xf32>
    %c0_9 = arith.constant 0 : index
    %c0_10 = arith.constant 0 : index
    %12 = vector.load %arg6[%c0_9, %c0_10] : memref<1x64xf32, #tpu.memory_space<vmem>>, vector<1x64xf32>
    %13 = vector.broadcast %12 : vector<1x64xf32> to vector<1024x64xf32>
    %14 = arith.addf %11, %13 : vector<1024x64xf32>
    %cst_11 = arith.constant 0.000000e+00 : f32
    %15 = vector.broadcast %cst_11 : f32 to vector<1024x64xf32>
    %16 = arith.maximumf %14, %15 : vector<1024x64xf32>
    %17 = arith.truncf %16 : vector<1024x64xf32> to vector<1024x64xbf16>
    %c0_12 = arith.constant 0 : index
    %c0_13 = arith.constant 0 : index
    %18 = vector.load %arg7[%c0_12, %c0_13] : memref<64x32xbf16, #tpu.memory_space<vmem>>, vector<64x32xbf16>
    %cst_14 = arith.constant dense<0.000000e+00> : vector<1024x32xf32>
    %19 = tpu.matmul %17, %18, %cst_14 {dimension_numbers = #tpu.dot_dimension_numbers<[1], [0], [0], [1], [0, 0, 1, 1], [], []>} : vector<1024x64xbf16>, vector<64x32xbf16>, vector<1024x32xf32> -> vector<1024x32xf32>
    %c0_15 = arith.constant 0 : index
    %c0_16 = arith.constant 0 : index
    %20 = vector.load %arg8[%c0_15, %c0_16] : memref<1x32xf32, #tpu.memory_space<vmem>>, vector<1x32xf32>
    %21 = vector.broadcast %20 : vector<1x32xf32> to vector<1024x32xf32>
    %22 = arith.addf %19, %21 : vector<1024x32xf32>
    %23 = vector.extract_strided_slice %22 {offsets = [0, 0], sizes = [1024, 16], strides = [1, 1]} : vector<1024x32xf32> to vector<1024x16xf32>
    %24 = vector.extract_strided_slice %22 {offsets = [0, 16], sizes = [1024, 16], strides = [1, 1]} : vector<1024x32xf32> to vector<1024x16xf32>
    %25 = math.exp %24 : vector<1024x16xf32>
    %c0_17 = arith.constant 0 : index
    %c0_18 = arith.constant 0 : index
    %26 = vector.load %arg2[%c0_17, %c0_18] : memref<1024x16xf32, #tpu.memory_space<vmem>>, vector<1024x16xf32>
    %27 = arith.mulf %25, %26 : vector<1024x16xf32>
    %28 = arith.addf %23, %27 : vector<1024x16xf32>
    %29 = arith.truncf %28 : vector<1024x16xf32> to vector<1024x16xbf16>
    %c0_19 = arith.constant 0 : index
    %c0_20 = arith.constant 0 : index
    %30 = vector.load %arg9[%c0_19, %c0_20] : memref<16x64xbf16, #tpu.memory_space<vmem>>, vector<16x64xbf16>
    %cst_21 = arith.constant dense<0.000000e+00> : vector<1024x64xf32>
    %31 = tpu.matmul %29, %30, %cst_21 {dimension_numbers = #tpu.dot_dimension_numbers<[1], [0], [0], [1], [0, 0, 1, 1], [], []>} : vector<1024x16xbf16>, vector<16x64xbf16>, vector<1024x64xf32> -> vector<1024x64xf32>
    %c0_22 = arith.constant 0 : index
    %c0_23 = arith.constant 0 : index
    %32 = vector.load %arg10[%c0_22, %c0_23] : memref<1x64xf32, #tpu.memory_space<vmem>>, vector<1x64xf32>
    %33 = vector.broadcast %32 : vector<1x64xf32> to vector<1024x64xf32>
    %34 = arith.addf %31, %33 : vector<1024x64xf32>
    %cst_24 = arith.constant 0.000000e+00 : f32
    %35 = vector.broadcast %cst_24 : f32 to vector<1024x64xf32>
    %36 = arith.maximumf %34, %35 : vector<1024x64xf32>
    %37 = arith.truncf %36 : vector<1024x64xf32> to vector<1024x64xbf16>
    %c0_25 = arith.constant 0 : index
    %c0_26 = arith.constant 0 : index
    %38 = vector.load %arg11[%c0_25, %c0_26] : memref<64x128xbf16, #tpu.memory_space<vmem>>, vector<64x128xbf16>
    %cst_27 = arith.constant dense<0.000000e+00> : vector<1024x128xf32>
    %39 = tpu.matmul %37, %38, %cst_27 {dimension_numbers = #tpu.dot_dimension_numbers<[1], [0], [0], [1], [0, 0, 1, 1], [], []>} : vector<1024x64xbf16>, vector<64x128xbf16>, vector<1024x128xf32> -> vector<1024x128xf32>
    %c0_28 = arith.constant 0 : index
    %c0_29 = arith.constant 0 : index
    %40 = vector.load %arg12[%c0_28, %c0_29] : memref<1x128xf32, #tpu.memory_space<vmem>>, vector<1x128xf32>
    %41 = vector.broadcast %40 : vector<1x128xf32> to vector<1024x128xf32>
    %42 = arith.addf %39, %41 : vector<1024x128xf32>
    %cst_30 = arith.constant 0.000000e+00 : f32
    %43 = vector.broadcast %cst_30 : f32 to vector<1024x128xf32>
    %44 = arith.maximumf %42, %43 : vector<1024x128xf32>
    %45 = arith.truncf %44 : vector<1024x128xf32> to vector<1024x128xbf16>
    %c0_31 = arith.constant 0 : index
    %c0_32 = arith.constant 0 : index
    %46 = vector.load %arg13[%c0_31, %c0_32] : memref<128x256xbf16, #tpu.memory_space<vmem>>, vector<128x256xbf16>
    %cst_33 = arith.constant dense<0.000000e+00> : vector<1024x256xf32>
    %47 = tpu.matmul %45, %46, %cst_33 {dimension_numbers = #tpu.dot_dimension_numbers<[1], [0], [0], [1], [0, 0, 1, 1], [], []>} : vector<1024x128xbf16>, vector<128x256xbf16>, vector<1024x256xf32> -> vector<1024x256xf32>
    %c0_34 = arith.constant 0 : index
    %c0_35 = arith.constant 0 : index
    %48 = vector.load %arg14[%c0_34, %c0_35] : memref<1x256xf32, #tpu.memory_space<vmem>>, vector<1x256xf32>
    %49 = vector.broadcast %48 : vector<1x256xf32> to vector<1024x256xf32>
    %50 = arith.addf %47, %49 : vector<1024x256xf32>
    %c0_36 = arith.constant 0 : index
    %c0_37 = arith.constant 0 : index
    %51 = vector.load %arg15[%c0_36, %c0_37] : memref<1024x256xf32, #tpu.memory_space<vmem>>, vector<1024x256xf32>
    tpu.vector_store %arg15[%c0_36, %c0_37], %50 {strides = array<i32>} : memref<1024x256xf32, #tpu.memory_space<vmem>>, vector<1024x256xf32>,
    return
  }
  func.func @transform_0(%arg0: i32) -> (i32, i32) {
    %c0_i32 = arith.constant 0 : i32
    %c0_i32_0 = arith.constant 0 : i32
    return %arg0, %c0_i32 : i32, i32
  }
  func.func @transform_1(%arg0: i32) -> (i32, i32) {
    %c0_i32 = arith.constant 0 : i32
    %c0_i32_0 = arith.constant 0 : i32
    return %arg0, %c0_i32 : i32, i32
  }
  func.func @transform_2(%arg0: i32) -> (i32, i32) {
    %c0_i32 = arith.constant 0 : i32
    %c0_i32_0 = arith.constant 0 : i32
    %c0_i32_1 = arith.constant 0 : i32
    return %c0_i32, %c0_i32_0 : i32, i32
  }
  func.func @transform_3(%arg0: i32) -> (i32, i32) {
    %c0_i32 = arith.constant 0 : i32
    %c0_i32_0 = arith.constant 0 : i32
    %c0_i32_1 = arith.constant 0 : i32
    return %c0_i32, %c0_i32_0 : i32, i32
  }
  func.func @transform_4(%arg0: i32) -> (i32, i32) {
    %c0_i32 = arith.constant 0 : i32
    %c0_i32_0 = arith.constant 0 : i32
    %c0_i32_1 = arith.constant 0 : i32
    return %c0_i32, %c0_i32_0 : i32, i32
  }
  func.func @transform_5(%arg0: i32) -> (i32, i32) {
    %c0_i32 = arith.constant 0 : i32
    %c0_i32_0 = arith.constant 0 : i32
    %c0_i32_1 = arith.constant 0 : i32
    return %c0_i32, %c0_i32_0 : i32, i32
  }
  func.func @transform_6(%arg0: i32) -> (i32, i32) {
    %c0_i32 = arith.constant 0 : i32
    %c0_i32_0 = arith.constant 0 : i32
    %c0_i32_1 = arith.constant 0 : i32
    return %c0_i32, %c0_i32_0 : i32, i32
  }
  func.func @transform_7(%arg0: i32) -> (i32, i32) {
    %c0_i32 = arith.constant 0 : i32
    %c0_i32_0 = arith.constant 0 : i32
    %c0_i32_1 = arith.constant 0 : i32
    return %c0_i32, %c0_i32_0 : i32, i32
  }
  func.func @transform_8(%arg0: i32) -> (i32, i32) {
    %c0_i32 = arith.constant 0 : i32
    %c0_i32_0 = arith.constant 0 : i32
    %c0_i32_1 = arith.constant 0 : i32
    return %c0_i32, %c0_i32_0 : i32, i32
  }
  func.func @transform_9(%arg0: i32) -> (i32, i32) {
    %c0_i32 = arith.constant 0 : i32
    %c0_i32_0 = arith.constant 0 : i32
    %c0_i32_1 = arith.constant 0 : i32
    return %c0_i32, %c0_i32_0 : i32, i32
  }
  func.func @transform_10(%arg0: i32) -> (i32, i32) {
    %c0_i32 = arith.constant 0 : i32
    %c0_i32_0 = arith.constant 0 : i32
    %c0_i32_1 = arith.constant 0 : i32
    return %c0_i32, %c0_i32_0 : i32, i32
  }
  func.func @transform_11(%arg0: i32) -> (i32, i32) {
    %c0_i32 = arith.constant 0 : i32
    %c0_i32_0 = arith.constant 0 : i32
    %c0_i32_1 = arith.constant 0 : i32
    return %c0_i32, %c0_i32_0 : i32, i32
  }
  func.func @transform_12(%arg0: i32) -> (i32, i32) {
    %c0_i32 = arith.constant 0 : i32
    %c0_i32_0 = arith.constant 0 : i32
    %c0_i32_1 = arith.constant 0 : i32
    return %c0_i32, %c0_i32_0 : i32, i32
  }
  func.func @transform_13(%arg0: i32) -> (i32, i32) {
    %c0_i32 = arith.constant 0 : i32
    %c0_i32_0 = arith.constant 0 : i32
    %c0_i32_1 = arith.constant 0 : i32
    return %c0_i32, %c0_i32_0 : i32, i32
  }
  func.func @transform_14(%arg0: i32) -> (i32, i32) {
    %c0_i32 = arith.constant 0 : i32
    %c0_i32_0 = arith.constant 0 : i32
    return %arg0, %c0_i32 : i32, i32
  }
}

</mosaic_0001>

<llo_original>
// kernel: tpu_custom_call.1
$region0: #{tpu_custom_call.1}
  #allocation0 [shape = 'u32[]', space=smem, size = 0x4, offset = 0x4, fixed_abs, tag = 'smem constant byte address 0x4 - core index']
  #allocation1 [shape = 'u32[144,128]{1,0:T(1,128)}', space=vmem, size = 0x12000, scoped, tag = 'internal scratch']
  %s0 = inlined_call_operand.hbm [shape: f32[2048,256], index: 0, kind: input, shape index: {}]
  %s1 = inlined_call_operand.vmem [shape: f32[2048,16], index: 1, kind: input, shape index: {}]
  %s2 = inlined_call_operand.hbm [shape: bf16[256,128], index: 2, kind: input, shape index: {}]
  %s3 = inlined_call_operand.hbm [shape: f32[1,128], index: 3, kind: input, shape index: {}]
  %s4 = inlined_call_operand.vmem [shape: bf16[128,64], index: 4, kind: input, shape index: {}]
  %s5 = inlined_call_operand.hbm [shape: f32[1,64], index: 5, kind: input, shape index: {}]
  %s6 = inlined_call_operand.vmem [shape: bf16[64,32], index: 6, kind: input, shape index: {}]
  %s7 = inlined_call_operand.hbm [shape: f32[1,32], index: 7, kind: input, shape index: {}]
  %s8 = inlined_call_operand.hbm [shape: bf16[16,64], index: 8, kind: input, shape index: {}]
  %s9 = inlined_call_operand.hbm [shape: f32[1,64], index: 9, kind: input, shape index: {}]
  %s10 = inlined_call_operand.hbm [shape: bf16[64,128], index: 10, kind: input, shape index: {}]
  %s11 = inlined_call_operand.hbm [shape: f32[1,128], index: 11, kind: input, shape index: {}]
  %s12 = inlined_call_operand.hbm [shape: bf16[128,256], index: 12, kind: input, shape index: {}]
  %s13 = inlined_call_operand.hbm [shape: f32[1,256], index: 13, kind: input, shape index: {}]
  %s14 = inlined_call_operand.hbm [shape: f32[2048,256], index: 14, kind: output, shape index: {}]
  %s15 = sld [smem:[#allocation0]]
  $region133: #{tpu_custom_call.1} parent=0
    _
  %s17 = ssub.s32 1, %s15
  %s18 = scalar_select 0, %s17, %s15
  $region1: #{tpu_custom_call.1} parent=0
    #allocation2 [shape = 'u8[2097152]{0}', space=vmem, size = 0x200000, scoped, tag = 'input window, operand 0']
    #allocation3 [shape = 's32[2]{0}', space=sflag, size = 0x8, scoped, tag = 'scoped memory for tpu_custom_call.1']
    #allocation4 [shape = 's32[2]{0}', space=sflag, size = 0x8, scoped, tag = 'scoped memory for tpu_custom_call.1']
    #allocation5 [shape = 'u8[65536]{0}', space=vmem, size = 0x10000, scoped, tag = 'input window, operand 2, single buffered']
    #allocation6 [shape = 's32[1]{0}', space=sflag, size = 0x4, scoped, tag = 'scoped memory for tpu_custom_call.1']
    #allocation7 [shape = 'u8[512]{0}', space=vmem, size = 0x400, scoped, tag = 'input window, operand 3, single buffered']
    #allocation8 [shape = 'u8[512]{0}', space=vmem, size = 0x400, scoped, tag = 'input window, operand 5, single buffered']
    #allocation9 [shape = 's32[1]{0}', space=sflag, size = 0x4, scoped, tag = 'scoped memory for tpu_custom_call.1']
    #allocation10 [shape = 'u8[512]{0}', space=vmem, size = 0x400, scoped, tag = 'input window, operand 7, single buffered']
    #allocation11 [shape = 'u8[4096]{0}', space=vmem, size = 0x1000, scoped, tag = 'input window, operand 8, single buffered']
    #allocation12 [shape = 's32[1]{0}', space=sflag, size = 0x4, scoped, tag = 'scoped memory for tpu_custom_call.1']
    #allocation13 [shape = 'u8[512]{0}', space=vmem, size = 0x400, scoped, tag = 'input window, operand 9, single buffered']
    #allocation14 [shape = 'u8[16384]{0}', space=vmem, size = 0x4000, scoped, tag = 'input window, operand 10, single buffered']
    #allocation15 [shape = 's32[1]{0}', space=sflag, size = 0x4, scoped, tag = 'scoped memory for tpu_custom_call.1']
    #allocation16 [shape = 'u8[512]{0}', space=vmem, size = 0x400, scoped, tag = 'input window, operand 11, single buffered']
    #allocation17 [shape = 'u8[65536]{0}', space=vmem, size = 0x10000, scoped, tag = 'input window, operand 12, single buffered']
    #allocation18 [shape = 's32[1]{0}', space=sflag, size = 0x4, scoped, tag = 'scoped memory for tpu_custom_call.1']
    #allocation19 [shape = 'u8[1024]{0}', space=vmem, size = 0x400, scoped, tag = 'input window, operand 13, single buffered']
    #allocation20 [shape = 'u8[2097152]{0}', space=vmem, size = 0x200000, scoped, tag = 'output window, operand 0']
    %19 = vsyncpa [#allocation3], 0
    %s20 = scalar_lea.sflag [#allocation3], 1
    %21 = vsyncpa %s20, 0
    %22 = vsyncpa [#allocation6], 0
    %23 = vsyncpa [#allocation9], 0
    %24 = vsyncpa [#allocation12], 0
    %25 = vsyncpa [#allocation15], 0
    %26 = vsyncpa [#allocation18], 0
    %27 = vsyncpa [#allocation4], 0
    %s28 = scalar_lea.sflag [#allocation4], 1
    %29 = vsyncpa %s28, 0
    loop: start=0, step=1, limit=4
    $region2: #{tpu_custom_call.1} parent=1 // loop_pre_header
      _
    $region3: #{tpu_custom_call.1} parent=1 // loop_header
      %s31 = sphi 0, %s35
      %p32 = scmp.ge.s32.totalorder %s31, 4
      %s41 = sphi 0, %s43
      %s44 = sphi 0, %s41
      %s45 = sphi 0, %s44
      %s61 = sphi 0, %s45
      %s67 = sphi 0, %s69
      %s70 = sphi 0, %s67
      %s71 = sphi 0, %s70
      %s87 = sphi 0, %s71
      %s91 = sphi 0, %s91
      %s93 = sphi 0, %s91
      %s94 = sphi 0, %s93
      %s108 = sphi 0, %s94
      %s112 = sphi 0, %s112
      %s114 = sphi 0, %s112
      %s115 = sphi 0, %s114
      %s129 = sphi 0, %s115
      %s133 = sphi 0, %s133
      %s135 = sphi 0, %s133
      %s136 = sphi 0, %s135
      %s150 = sphi 0, %s136
      %s154 = sphi 0, %s154
      %s156 = sphi 0, %s154
      %s157 = sphi 0, %s156
      %s171 = sphi 0, %s157
      %s175 = sphi 0, %s175
      %s177 = sphi 0, %s175
      %s178 = sphi 0, %s177
      %s192 = sphi 0, %s178
      %s196 = sphi 0, %s196
      %s198 = sphi 0, %s196
      %s199 = sphi 0, %s198
      %s213 = sphi 0, %s199
      %s217 = sphi 0, %s217
      %s219 = sphi 0, %s217
      %s220 = sphi 0, %s219
      %s234 = sphi 0, %s220
      %s238 = sphi 0, %s238
      %s240 = sphi 0, %s238
      %s241 = sphi 0, %s240
      %s255 = sphi 0, %s241
      %s259 = sphi 0, %s259
      %s261 = sphi 0, %s259
      %s262 = sphi 0, %s261
      %s276 = sphi 0, %s262
      %s280 = sphi 0, %s280
      %s282 = sphi 0, %s280
      %s283 = sphi 0, %s282
      %s297 = sphi 0, %s283
      %s301 = sphi 0, %s301
      %s303 = sphi 0, %s301
      %s304 = sphi 0, %s303
      %s318 = sphi 0, %s304
      %s322 = sphi 0, %s322
      %s324 = sphi 0, %s322
      %s325 = sphi 0, %s324
      %s339 = sphi 0, %s325
      %s345 = sphi 0, %s347
      %s348 = sphi 0, %s345
      %s349 = sphi 0, %s348
      %s365 = sphi 0, %s349
    $region4: #{tpu_custom_call.1} parent=1 // loop_header_branch
      %34 = sbr.rel (%p32) target = $region8
    $region5: #{tpu_custom_call.1} parent=1 // loop_body
      %s36 = ssub.s32 %s31, 1
      %s37 = ssub.s32 %s31, 2
      %s38 = sadd.s32 %s31, 1
      %s39 = ssub.s32 %s31, %s38
      %p40 = scmp.eq.s32.totalorder %s39, 0
      %s42 = sadd.s32 %s41, 1
      %s43 = scalar_select %p40, %s41, %s42
      %p46 = pneg %p40
      %p47 = scmp.eq.s32.totalorder %s31, 1
      %p48 = por %p46, %p47
      %p49 = scmp.ne.s32.totalorder %s41, %s44
      %p50 = scmp.eq.s32.totalorder %s31, 0
      %p51 = por %p49, %p50
      %p52 = scmp.ne.s32.totalorder %s41, %s44
      %p53 = scmp.eq.s32.totalorder %s36, 1
      %p54 = por %p52, %p53
      %p55 = scmp.ne.s32.totalorder %s44, %s45
      %p56 = scmp.eq.s32.totalorder %s36, 0
      %p57 = por %p55, %p56
      %p58 = scmp.ne.s32.totalorder %s44, %s45
      %p59 = scmp.eq.s32.totalorder %s37, 1
      %p60 = por %p58, %p59
      %p62 = scmp.ne.s32.totalorder %s45, %s61
      %p63 = scmp.eq.s32.totalorder %s37, 0
      %p64 = por %p62, %p63
      %s65 = ssub.s32 %s31, %s38
      %p66 = scmp.eq.s32.totalorder %s65, 0
      %s68 = sadd.s32 %s67, 1
      %s69 = scalar_select %p66, %s67, %s68
      %p72 = pneg %p66
      %p73 = scmp.eq.s32.totalorder %s31, 1
      %p74 = por %p72, %p73
      %p75 = scmp.ne.s32.totalorder %s67, %s70
      %p76 = scmp.eq.s32.totalorder %s31, 0
      %p77 = por %p75, %p76
      %p78 = scmp.ne.s32.totalorder %s67, %s70
      %p79 = scmp.eq.s32.totalorder %s36, 1
      %p80 = por %p78, %p79
      %p81 = scmp.ne.s32.totalorder %s70, %s71
      %p82 = scmp.eq.s32.totalorder %s36, 0
      %p83 = por %p81, %p82
      %p84 = scmp.ne.s32.totalorder %s70, %s71
      %p85 = scmp.eq.s32.totalorder %s37, 1
      %p86 = por %p84, %p85
      %p88 = scmp.ne.s32.totalorder %s71, %s87
      %p89 = scmp.eq.s32.totalorder %s37, 0
      %p90 = por %p88, %p89
      %s92 = sadd.s32 %s91, 1
      %p95 = scmp.eq.s32.totalorder %s31, 1
      %p96 = scmp.ne.s32.totalorder %s91, %s93
      %p97 = scmp.eq.s32.totalorder %s31, 0
      %p98 = por %p96, %p97
      %p99 = scmp.ne.s32.totalorder %s91, %s93
      %p100 = scmp.eq.s32.totalorder %s36, 1
      %p101 = por %p99, %p100
      %p102 = scmp.ne.s32.totalorder %s93, %s94
      %p103 = scmp.eq.s32.totalorder %s36, 0
      %p104 = por %p102, %p103
      %p105 = scmp.ne.s32.totalorder %s93, %s94
      %p106 = scmp.eq.s32.totalorder %s37, 1
      %p107 = por %p105, %p106
      %p109 = scmp.ne.s32.totalorder %s94, %s108
      %p110 = scmp.eq.s32.totalorder %s37, 0
      %p111 = por %p109, %p110
      %s113 = sadd.s32 %s112, 1
      %p116 = scmp.eq.s32.totalorder %s31, 1
      %p117 = scmp.ne.s32.totalorder %s112, %s114
      %p118 = scmp.eq.s32.totalorder %s31, 0
      %p119 = por %p117, %p118
      %p120 = scmp.ne.s32.totalorder %s112, %s114
      %p121 = scmp.eq.s32.totalorder %s36, 1
      %p122 = por %p120, %p121
      %p123 = scmp.ne.s32.totalorder %s114, %s115
      %p124 = scmp.eq.s32.totalorder %s36, 0
      %p125 = por %p123, %p124
      %p126 = scmp.ne.s32.totalorder %s114, %s115
      %p127 = scmp.eq.s32.totalorder %s37, 1
      %p128 = por %p126, %p127
      %p130 = scmp.ne.s32.totalorder %s115, %s129
      %p131 = scmp.eq.s32.totalorder %s37, 0
      %p132 = por %p130, %p131
      %s134 = sadd.s32 %s133, 1
      %p137 = scmp.eq.s32.totalorder %s31, 1
      %p138 = scmp.ne.s32.totalorder %s133, %s135
      %p139 = scmp.eq.s32.totalorder %s31, 0
      %p140 = por %p138, %p139
      %p141 = scmp.ne.s32.totalorder %s133, %s135
      %p142 = scmp.eq.s32.totalorder %s36, 1
      %p143 = por %p141, %p142
      %p144 = scmp.ne.s32.totalorder %s135, %s136
      %p145 = scmp.eq.s32.totalorder %s36, 0
      %p146 = por %p144, %p145
      %p147 = scmp.ne.s32.totalorder %s135, %s136
      %p148 = scmp.eq.s32.totalorder %s37, 1
      %p149 = por %p147, %p148
      %p151 = scmp.ne.s32.totalorder %s136, %s150
      %p152 = scmp.eq.s32.totalorder %s37, 0
      %p153 = por %p151, %p152
      %s155 = sadd.s32 %s154, 1
      %p158 = scmp.eq.s32.totalorder %s31, 1
      %p159 = scmp.ne.s32.totalorder %s154, %s156
      %p160 = scmp.eq.s32.totalorder %s31, 0
      %p161 = por %p159, %p160
      %p162 = scmp.ne.s32.totalorder %s154, %s156
      %p163 = scmp.eq.s32.totalorder %s36, 1
      %p164 = por %p162, %p163
      %p165 = scmp.ne.s32.totalorder %s156, %s157
      %p166 = scmp.eq.s32.totalorder %s36, 0
      %p167 = por %p165, %p166
      %p168 = scmp.ne.s32.totalorder %s156, %s157
      %p169 = scmp.eq.s32.totalorder %s37, 1
      %p170 = por %p168, %p169
      %p172 = scmp.ne.s32.totalorder %s157, %s171
      %p173 = scmp.eq.s32.totalorder %s37, 0
      %p174 = por %p172, %p173
      %s176 = sadd.s32 %s175, 1
      %p179 = scmp.eq.s32.totalorder %s31, 1
      %p180 = scmp.ne.s32.totalorder %s175, %s177
      %p181 = scmp.eq.s32.totalorder %s31, 0
      %p182 = por %p180, %p181
      %p183 = scmp.ne.s32.totalorder %s175, %s177
      %p184 = scmp.eq.s32.totalorder %s36, 1
      %p185 = por %p183, %p184
      %p186 = scmp.ne.s32.totalorder %s177, %s178
      %p187 = scmp.eq.s32.totalorder %s36, 0
      %p188 = por %p186, %p187
      %p189 = scmp.ne.s32.totalorder %s177, %s178
      %p190 = scmp.eq.s32.totalorder %s37, 1
      %p191 = por %p189, %p190
      %p193 = scmp.ne.s32.totalorder %s178, %s192
      %p194 = scmp.eq.s32.totalorder %s37, 0
      %p195 = por %p193, %p194
      %s197 = sadd.s32 %s196, 1
      %p200 = scmp.eq.s32.totalorder %s31, 1
      %p201 = scmp.ne.s32.totalorder %s196, %s198
      %p202 = scmp.eq.s32.totalorder %s31, 0
      %p203 = por %p201, %p202
      %p204 = scmp.ne.s32.totalorder %s196, %s198
      %p205 = scmp.eq.s32.totalorder %s36, 1
      %p206 = por %p204, %p205
      %p207 = scmp.ne.s32.totalorder %s198, %s199
      %p208 = scmp.eq.s32.totalorder %s36, 0
      %p209 = por %p207, %p208
      %p210 = scmp.ne.s32.totalorder %s198, %s199
      %p211 = scmp.eq.s32.totalorder %s37, 1
      %p212 = por %p210, %p211
      %p214 = scmp.ne.s32.totalorder %s199, %s213
      %p215 = scmp.eq.s32.totalorder %s37, 0
      %p216 = por %p214, %p215
      %s218 = sadd.s32 %s217, 1
      %p221 = scmp.eq.s32.totalorder %s31, 1
      %p222 = scmp.ne.s32.totalorder %s217, %s219
      %p223 = scmp.eq.s32.totalorder %s31, 0
      %p224 = por %p222, %p223
      %p225 = scmp.ne.s32.totalorder %s217, %s219
      %p226 = scmp.eq.s32.totalorder %s36, 1
      %p227 = por %p225, %p226
      %p228 = scmp.ne.s32.totalorder %s219, %s220
      %p229 = scmp.eq.s32.totalorder %s36, 0
      %p230 = por %p228, %p229
      %p231 = scmp.ne.s32.totalorder %s219, %s220
      %p232 = scmp.eq.s32.totalorder %s37, 1
      %p233 = por %p231, %p232
      %p235 = scmp.ne.s32.totalorder %s220, %s234
      %p236 = scmp.eq.s32.totalorder %s37, 0
      %p237 = por %p235, %p236
      %s239 = sadd.s32 %s238, 1
      %p242 = scmp.eq.s32.totalorder %s31, 1
      %p243 = scmp.ne.s32.totalorder %s238, %s240
      %p244 = scmp.eq.s32.totalorder %s31, 0
      %p245 = por %p243, %p244
      %p246 = scmp.ne.s32.totalorder %s238, %s240
      %p247 = scmp.eq.s32.totalorder %s36, 1
      %p248 = por %p246, %p247
      %p249 = scmp.ne.s32.totalorder %s240, %s241
      %p250 = scmp.eq.s32.totalorder %s36, 0
      %p251 = por %p249, %p250
      %p252 = scmp.ne.s32.totalorder %s240, %s241
      %p253 = scmp.eq.s32.totalorder %s37, 1
      %p254 = por %p252, %p253
      %p256 = scmp.ne.s32.totalorder %s241, %s255
      %p257 = scmp.eq.s32.totalorder %s37, 0
      %p258 = por %p256, %p257
      %s260 = sadd.s32 %s259, 1
      %p263 = scmp.eq.s32.totalorder %s31, 1
      %p264 = scmp.ne.s32.totalorder %s259, %s261
      %p265 = scmp.eq.s32.totalorder %s31, 0
      %p266 = por %p264, %p265
      %p267 = scmp.ne.s32.totalorder %s259, %s261
      %p268 = scmp.eq.s32.totalorder %s36, 1
      %p269 = por %p267, %p268
      %p270 = scmp.ne.s32.totalorder %s261, %s262
      %p271 = scmp.eq.s32.totalorder %s36, 0
      %p272 = por %p270, %p271
      %p273 = scmp.ne.s32.totalorder %s261, %s262
      %p274 = scmp.eq.s32.totalorder %s37, 1
      %p275 = por %p273, %p274
      %p277 = scmp.ne.s32.totalorder %s262, %s276
      %p278 = scmp.eq.s32.totalorder %s37, 0
      %p279 = por %p277, %p278
      %s281 = sadd.s32 %s280, 1
      %p284 = scmp.eq.s32.totalorder %s31, 1
      %p285 = scmp.ne.s32.totalorder %s280, %s282
      %p286 = scmp.eq.s32.totalorder %s31, 0
      %p287 = por %p285, %p286
      %p288 = scmp.ne.s32.totalorder %s280, %s282
      %p289 = scmp.eq.s32.totalorder %s36, 1
      %p290 = por %p288, %p289
      %p291 = scmp.ne.s32.totalorder %s282, %s283
      %p292 = scmp.eq.s32.totalorder %s36, 0
      %p293 = por %p291, %p292
      %p294 = scmp.ne.s32.totalorder %s282, %s283
      %p295 = scmp.eq.s32.totalorder %s37, 1
      %p296 = por %p294, %p295
      %p298 = scmp.ne.s32.totalorder %s283, %s297
      %p299 = scmp.eq.s32.totalorder %s37, 0
      %p300 = por %p298, %p299
      %s302 = sadd.s32 %s301, 1
      %p305 = scmp.eq.s32.totalorder %s31, 1
      %p306 = scmp.ne.s32.totalorder %s301, %s303
      %p307 = scmp.eq.s32.totalorder %s31, 0
      %p308 = por %p306, %p307
      %p309 = scmp.ne.s32.totalorder %s301, %s303
      %p310 = scmp.eq.s32.totalorder %s36, 1
      %p311 = por %p309, %p310
      %p312 = scmp.ne.s32.totalorder %s303, %s304
      %p313 = scmp.eq.s32.totalorder %s36, 0
      %p314 = por %p312, %p313
      %p315 = scmp.ne.s32.totalorder %s303, %s304
      %p316 = scmp.eq.s32.totalorder %s37, 1
      %p317 = por %p315, %p316
      %p319 = scmp.ne.s32.totalorder %s304, %s318
      %p320 = scmp.eq.s32.totalorder %s37, 0
      %p321 = por %p319, %p320
      %s323 = sadd.s32 %s322, 1
      %p326 = scmp.eq.s32.totalorder %s31, 1
      %p327 = scmp.ne.s32.totalorder %s322, %s324
      %p328 = scmp.eq.s32.totalorder %s31, 0
      %p329 = por %p327, %p328
      %p330 = scmp.ne.s32.totalorder %s322, %s324
      %p331 = scmp.eq.s32.totalorder %s36, 1
      %p332 = por %p330, %p331
      %p333 = scmp.ne.s32.totalorder %s324, %s325
      %p334 = scmp.eq.s32.totalorder %s36, 0
      %p335 = por %p333, %p334
      %p336 = scmp.ne.s32.totalorder %s324, %s325
      %p337 = scmp.eq.s32.totalorder %s37, 1
      %p338 = por %p336, %p337
      %p340 = scmp.ne.s32.totalorder %s325, %s339
      %p341 = scmp.eq.s32.totalorder %s37, 0
      %p342 = por %p340, %p341
      %s343 = ssub.s32 %s31, %s38
      %p344 = scmp.eq.s32.totalorder %s343, 0
      %s346 = sadd.s32 %s345, 1
      %s347 = scalar_select %p344, %s345, %s346
      %p350 = pneg %p344
      %p351 = scmp.eq.s32.totalorder %s31, 1
      %p352 = por %p350, %p351
      %p353 = scmp.ne.s32.totalorder %s345, %s348
      %p354 = scmp.eq.s32.totalorder %s31, 0
      %p355 = por %p353, %p354
      %p356 = scmp.ne.s32.totalorder %s345, %s348
      %p357 = scmp.eq.s32.totalorder %s36, 1
      %p358 = por %p356, %p357
      %p359 = scmp.ne.s32.totalorder %s348, %s349
      %p360 = scmp.eq.s32.totalorder %s36, 0
      %p361 = por %p359, %p360
      %p362 = scmp.ne.s32.totalorder %s348, %s349
      %p363 = scmp.eq.s32.totalorder %s37, 1
      %p364 = por %p362, %p363
      %p366 = scmp.ne.s32.totalorder %s349, %s365
      %p367 = scmp.eq.s32.totalorder %s37, 0
      %p368 = por %p366, %p367
      %p369 = scmp.le.s32.totalorder 1, %s31
      %p370 = scmp.lt.s32.totalorder %s31, 3
      %p371 = pnand %p369, %p370
      %p372 = pneg %p371
      // Predicated region
      $region9: #{tpu_custom_call.1} parent=5 // pred_check
        _
      $region10: #{tpu_custom_call.1} parent=5 // pred_check_branch
        %374 = sbr.rel (%p371) target = $region12
      $region11: #{tpu_custom_call.1} parent=5 // pred_region
        %s375 = ssub.s32 %s31, 1
        // Predicated region
        $region13: #{tpu_custom_call.1} parent=11 // pred_check
          %p376 = pneg %p104
        $region14: #{tpu_custom_call.1} parent=11 // pred_check_branch
          %378 = sbr.rel (%p376) target = $region16
        $region15: #{tpu_custom_call.1} parent=11 // pred_region
          %s380 = ssub.s32 2048, 2048
          %381 = vsyncadd [#allocation6], %s380
          %s382 = sshll.u32 [#allocation5], 4
          %s383 = int_to_ptr.vmem [resolvable:$true] %s382
          %388 = dma.hbm_to_vmem [thread:$0]  %s2, 2048, %s383, [#allocation6], 64, 64, 4
        $region16: #{tpu_custom_call.1} parent=11 // pred_fallthru
          _
        // Predicated region
        $region17: #{tpu_custom_call.1} parent=11 // pred_check
          %p389 = pneg %p125
        $region18: #{tpu_custom_call.1} parent=11 // pred_check_branch
          %391 = sbr.rel (%p389) target = $region20
        $region19: #{tpu_custom_call.1} parent=11 // pred_region
          %s393 = ssub.s32 16, 16
          %394 = vsyncadd [#allocation6], %s393
          %s396 = sshll.u32 [#allocation7], 4
          %s397 = int_to_ptr.vmem [resolvable:$true] %s396
          %399 = dma.hbm_to_vmem [thread:$0]  %s3, 16, %s397, [#allocation6]
        $region20: #{tpu_custom_call.1} parent=11 // pred_fallthru
          _
        // Predicated region
        $region21: #{tpu_custom_call.1} parent=11 // pred_check
          %p400 = pneg %p146
        $region22: #{tpu_custom_call.1} parent=11 // pred_check_branch
          %402 = sbr.rel (%p400) target = $region24
        $region23: #{tpu_custom_call.1} parent=11 // pred_region
          _
        $region24: #{tpu_custom_call.1} parent=11 // pred_fallthru
          _
        // Predicated region
        $region25: #{tpu_custom_call.1} parent=11 // pred_check
          %p403 = pneg %p167
        $region26: #{tpu_custom_call.1} parent=11 // pred_check_branch
          %405 = sbr.rel (%p403) target = $region28
        $region27: #{tpu_custom_call.1} parent=11 // pred_region
          %s407 = ssub.s32 16, 16
          %408 = vsyncadd [#allocation9], %s407
          %s410 = sshll.u32 [#allocation8], 4
          %s411 = int_to_ptr.vmem [resolvable:$true] %s410
          %413 = dma.hbm_to_vmem [thread:$0]  %s5, 16, %s411, [#allocation9]
        $region28: #{tpu_custom_call.1} parent=11 // pred_fallthru
          _
        // Predicated region
        $region29: #{tpu_custom_call.1} parent=11 // pred_check
          %p414 = pneg %p188
        $region30: #{tpu_custom_call.1} parent=11 // pred_check_branch
          %416 = sbr.rel (%p414) target = $region32
        $region31: #{tpu_custom_call.1} parent=11 // pred_region
          _
        $region32: #{tpu_custom_call.1} parent=11 // pred_fallthru
          _
        // Predicated region
        $region33: #{tpu_custom_call.1} parent=11 // pred_check
          %p417 = pneg %p209
        $region34: #{tpu_custom_call.1} parent=11 // pred_check_branch
          %419 = sbr.rel (%p417) target = $region36
        $region35: #{tpu_custom_call.1} parent=11 // pred_region
          %s421 = ssub.s32 16, 16
          %422 = vsyncadd [#allocation9], %s421
          %s424 = sshll.u32 [#allocation10], 4
          %s425 = int_to_ptr.vmem [resolvable:$true] %s424
          %427 = dma.hbm_to_vmem [thread:$0]  %s7, 16, %s425, [#allocation9]
        $region36: #{tpu_custom_call.1} parent=11 // pred_fallthru
          _
        // Predicated region
        $region37: #{tpu_custom_call.1} parent=11 // pred_check
          %p428 = pneg %p230
        $region38: #{tpu_custom_call.1} parent=11 // pred_check_branch
          %430 = sbr.rel (%p428) target = $region40
        $region39: #{tpu_custom_call.1} parent=11 // pred_region
          %s432 = ssub.s32 128, 128
          %433 = vsyncadd [#allocation12], %s432
          %s434 = sshll.u32 [#allocation11], 4
          %s435 = int_to_ptr.vmem [resolvable:$true] %s434
          %440 = dma.hbm_to_vmem [thread:$0]  %s8, 128, %s435, [#allocation12], 64, 64, 4
        $region40: #{tpu_custom_call.1} parent=11 // pred_fallthru
          _
        // Predicated region
        $region41: #{tpu_custom_call.1} parent=11 // pred_check
          %p441 = pneg %p251
        $region42: #{tpu_custom_call.1} parent=11 // pred_check_branch
          %443 = sbr.rel (%p441) target = $region44
        $region43: #{tpu_custom_call.1} parent=11 // pred_region
          %s445 = ssub.s32 16, 16
          %446 = vsyncadd [#allocation12], %s445
          %s448 = sshll.u32 [#allocation13], 4
          %s449 = int_to_ptr.vmem [resolvable:$true] %s448
          %451 = dma.hbm_to_vmem [thread:$0]  %s9, 16, %s449, [#allocation12]
        $region44: #{tpu_custom_call.1} parent=11 // pred_fallthru
          _
        // Predicated region
        $region45: #{tpu_custom_call.1} parent=11 // pred_check
          %p452 = pneg %p272
        $region46: #{tpu_custom_call.1} parent=11 // pred_check_branch
          %454 = sbr.rel (%p452) target = $region48
        $region47: #{tpu_custom_call.1} parent=11 // pred_region
          %s456 = ssub.s32 512, 512
          %457 = vsyncadd [#allocation15], %s456
          %s458 = sshll.u32 [#allocation14], 4
          %s459 = int_to_ptr.vmem [resolvable:$true] %s458
          %464 = dma.hbm_to_vmem [thread:$0]  %s10, 512, %s459, [#allocation15], 64, 64, 4
        $region48: #{tpu_custom_call.1} parent=11 // pred_fallthru
          _
        // Predicated region
        $region49: #{tpu_custom_call.1} parent=11 // pred_check
          %p465 = pneg %p293
        $region50: #{tpu_custom_call.1} parent=11 // pred_check_branch
          %467 = sbr.rel (%p465) target = $region52
        $region51: #{tpu_custom_call.1} parent=11 // pred_region
          %s469 = ssub.s32 16, 16
          %470 = vsyncadd [#allocation15], %s469
          %s472 = sshll.u32 [#allocation16], 4
          %s473 = int_to_ptr.vmem [resolvable:$true] %s472
          %475 = dma.hbm_to_vmem [thread:$0]  %s11, 16, %s473, [#allocation15]
        $region52: #{tpu_custom_call.1} parent=11 // pred_fallthru
          _
        // Predicated region
        $region53: #{tpu_custom_call.1} parent=11 // pred_check
          %p476 = pneg %p314
        $region54: #{tpu_custom_call.1} parent=11 // pred_check_branch
          %478 = sbr.rel (%p476) target = $region56
        $region55: #{tpu_custom_call.1} parent=11 // pred_region
          %s480 = ssub.s32 2048, 2048
          %481 = vsyncadd [#allocation18], %s480
          %s482 = sshll.u32 [#allocation17], 4
          %s483 = int_to_ptr.vmem [resolvable:$true] %s482
          %488 = dma.hbm_to_vmem [thread:$0]  %s12, 2048, %s483, [#allocation18], 128, 128, 8
        $region56: #{tpu_custom_call.1} parent=11 // pred_fallthru
          _
        // Predicated region
        $region57: #{tpu_custom_call.1} parent=11 // pred_check
          %p489 = pneg %p335
        $region58: #{tpu_custom_call.1} parent=11 // pred_check_branch
          %491 = sbr.rel (%p489) target = $region60
        $region59: #{tpu_custom_call.1} parent=11 // pred_region
          %s493 = ssub.s32 32, 32
          %494 = vsyncadd [#allocation18], %s493
          %s496 = sshll.u32 [#allocation19], 4
          %s497 = int_to_ptr.vmem [resolvable:$true] %s496
          %499 = dma.hbm_to_vmem [thread:$0]  %s13, 32, %s497, [#allocation18]
        $region60: #{tpu_custom_call.1} parent=11 // pred_fallthru
          _
      $region12: #{tpu_custom_call.1} parent=5 // pred_fallthru
        _
      %p500 = scmp.lt.s32.totalorder %s31, 2
      // Predicated region
      $region61: #{tpu_custom_call.1} parent=5 // pred_check
        %p501 = pneg %p500
      $region62: #{tpu_custom_call.1} parent=5 // pred_check_branch
        %503 = sbr.rel (%p501) target = $region64
      $region63: #{tpu_custom_call.1} parent=5 // pred_region
        // Predicated region
        $region65: #{tpu_custom_call.1} parent=63 // pred_check
          %p504 = pneg %p51
        $region66: #{tpu_custom_call.1} parent=63 // pred_check_branch
          %506 = sbr.rel (%p504) target = $region68
        $region67: #{tpu_custom_call.1} parent=63 // pred_region
          %s507 = sand.u32 %s41, 1
          %s508 = scalar_lea.sflag [#allocation3], %s507
          %s509 = sand.u32 %s41, 1
          %s510 = smul.addr %s509, 2048
          %s511 = scalar_lea.vmem [#allocation2], %s510
          %s512 = smul.u32 128, %s31
          %s514 = ssub.s32 32768, 32768
          %515 = vsyncadd %s508, %s514
          %s516 = smul.addr %s512, 2
          %s517 = smul.addr %s516, 128
          %s518 = scalar_lea.hbm %s0, %s517
          %s519 = sshll.u32 %s511, 4
          %s520 = int_to_ptr.vmem [resolvable:$true] %s519
          %525 = dma.hbm_to_vmem [thread:$0]  %s518, 32768, %s520, %s508, 256, 256, 16
        $region68: #{tpu_custom_call.1} parent=63 // pred_fallthru
          _
        // Predicated region
        $region69: #{tpu_custom_call.1} parent=63 // pred_check
          %p526 = pneg %p77
        $region70: #{tpu_custom_call.1} parent=63 // pred_check_branch
          %528 = sbr.rel (%p526) target = $region72
        $region71: #{tpu_custom_call.1} parent=63 // pred_region
          %s529 = smul.u32 128, %s31
          %p530 = scmp.lt.s32.totalorder %s529, 255
          %s531 = scalar_select %p530, %s529, 255
          %s532 = smul.addr %s531, 8
          %s533 = scalar_lea.vmem %s1, %s532
          %s534 = smul.u32 128, %s31
        $region72: #{tpu_custom_call.1} parent=63 // pred_fallthru
          _
      $region64: #{tpu_custom_call.1} parent=5 // pred_fallthru
        _
      %p535 = scmp.le.s32.totalorder 1, %s31
      %p536 = scmp.lt.s32.totalorder %s31, 3
      %p537 = pnand %p535, %p536
      %p538 = pneg %p537
      // Predicated region
      $region73: #{tpu_custom_call.1} parent=5 // pred_check
        _
      $region74: #{tpu_custom_call.1} parent=5 // pred_check_branch
        %540 = sbr.rel (%p537) target = $region76
      $region75: #{tpu_custom_call.1} parent=5 // pred_region
        %s541 = ssub.s32 %s31, 1
        %s542 = sand.u32 %s44, 1
        %s543 = scalar_lea.sflag [#allocation3], %s542
        %s544 = sand.u32 %s44, 1
        %s545 = smul.addr %s544, 2048
        %s546 = scalar_lea.vmem [#allocation2], %s545
        // Predicated region
        $region77: #{tpu_custom_call.1} parent=75 // pred_check
          %p547 = pneg %p57
        $region78: #{tpu_custom_call.1} parent=75 // pred_check_branch
          %549 = sbr.rel (%p547) target = $region80
        $region79: #{tpu_custom_call.1} parent=75 // pred_region
          %550 = dma.done %s543, 32768
        $region80: #{tpu_custom_call.1} parent=75 // pred_fallthru
          _
        // Predicated region
        $region81: #{tpu_custom_call.1} parent=75 // pred_check
          %p551 = pneg %p104
        $region82: #{tpu_custom_call.1} parent=75 // pred_check_branch
          %553 = sbr.rel (%p551) target = $region84
        $region83: #{tpu_custom_call.1} parent=75 // pred_region
          %554 = dma.done [#allocation6], 2048
        $region84: #{tpu_custom_call.1} parent=75 // pred_fallthru
          _
        // Predicated region
        $region85: #{tpu_custom_call.1} parent=75 // pred_check
          %p555 = pneg %p125
        $region86: #{tpu_custom_call.1} parent=75 // pred_check_branch
          %557 = sbr.rel (%p555) target = $region88
        $region87: #{tpu_custom_call.1} parent=75 // pred_region
          %558 = dma.done [#allocation6], 16
        $region88: #{tpu_custom_call.1} parent=75 // pred_fallthru
          _
        // Predicated region
        $region89: #{tpu_custom_call.1} parent=75 // pred_check
          %p559 = pneg %p167
        $region90: #{tpu_custom_call.1} parent=75 // pred_check_branch
          %561 = sbr.rel (%p559) target = $region92
        $region91: #{tpu_custom_call.1} parent=75 // pred_region
          %562 = dma.done [#allocation9], 16
        $region92: #{tpu_custom_call.1} parent=75 // pred_fallthru
          _
        // Predicated region
        $region93: #{tpu_custom_call.1} parent=75 // pred_check
          %p563 = pneg %p209
        $region94: #{tpu_custom_call.1} parent=75 // pred_check_branch
          %565 = sbr.rel (%p563) target = $region96
        $region95: #{tpu_custom_call.1} parent=75 // pred_region
          %566 = dma.done [#allocation9], 16
        $region96: #{tpu_custom_call.1} parent=75 // pred_fallthru
          _
        // Predicated region
        $region97: #{tpu_custom_call.1} parent=75 // pred_check
          %p567 = pneg %p230
        $region98: #{tpu_custom_call.1} parent=75 // pred_check_branch
          %569 = sbr.rel (%p567) target = $region100
        $region99: #{tpu_custom_call.1} parent=75 // pred_region
          %570 = dma.done [#allocation12], 128
        $region100: #{tpu_custom_call.1} parent=75 // pred_fallthru
          _
        // Predicated region
        $region101: #{tpu_custom_call.1} parent=75 // pred_check
          %p571 = pneg %p251
        $region102: #{tpu_custom_call.1} parent=75 // pred_check_branch
          %573 = sbr.rel (%p571) target = $region104
        $region103: #{tpu_custom_call.1} parent=75 // pred_region
          %574 = dma.done [#allocation12], 16
        $region104: #{tpu_custom_call.1} parent=75 // pred_fallthru
          _
        // Predicated region
        $region105: #{tpu_custom_call.1} parent=75 // pred_check
          %p575 = pneg %p272
        $region106: #{tpu_custom_call.1} parent=75 // pred_check_branch
          %577 = sbr.rel (%p575) target = $region108
        $region107: #{tpu_custom_call.1} parent=75 // pred_region
          %578 = dma.done [#allocation15], 512
        $region108: #{tpu_custom_call.1} parent=75 // pred_fallthru
          _
        // Predicated region
        $region109: #{tpu_custom_call.1} parent=75 // pred_check
          %p579 = pneg %p293
        $region110: #{tpu_custom_call.1} parent=75 // pred_check_branch
          %581 = sbr.rel (%p579) target = $region112
        $region111: #{tpu_custom_call.1} parent=75 // pred_region
          %582 = dma.done [#allocation15], 16
        $region112: #{tpu_custom_call.1} parent=75 // pred_fallthru
          _
        // Predicated region
        $region113: #{tpu_custom_call.1} parent=75 // pred_check
          %p583 = pneg %p314
        $region114: #{tpu_custom_call.1} parent=75 // pred_check_branch
          %585 = sbr.rel (%p583) target = $region116
        $region115: #{tpu_custom_call.1} parent=75 // pred_region
          %586 = dma.done [#allocation18], 2048
        $region116: #{tpu_custom_call.1} parent=75 // pred_fallthru
          _
        // Predicated region
        $region117: #{tpu_custom_call.1} parent=75 // pred_check
          %p587 = pneg %p335
        $region118: #{tpu_custom_call.1} parent=75 // pred_check_branch
          %589 = sbr.rel (%p587) target = $region120
        $region119: #{tpu_custom_call.1} parent=75 // pred_region
          %590 = dma.done [#allocation18], 32
        $region120: #{tpu_custom_call.1} parent=75 // pred_fallthru
          _
        %s591 = sand.u32 %s44, 1
        %s592 = scalar_lea.sflag [#allocation3], %s591
        %s593 = sand.u32 %s44, 1
        %s594 = smul.addr %s593, 2048
        %s595 = scalar_lea.vmem [#allocation2], %s594
        %p596 = pneg %p57
        %p597 = pneg %p54
        %s598 = smul.u32 128, %s36
        %p599 = scmp.lt.s32.totalorder %s598, 255
        %s600 = scalar_select %p599, %s598, 255
        %s601 = smul.addr %s600, 8
        %s602 = scalar_lea.vmem %s1, %s601
        %p603 = pneg %p83
        %p604 = pneg %p80
        %p605 = pneg %p104
        %p606 = pneg %p101
        %p607 = pneg %p125
        %p608 = pneg %p122
        %p609 = pneg %p146
        %p610 = pneg %p143
        %p611 = pneg %p167
        %p612 = pneg %p164
        %p613 = pneg %p188
        %p614 = pneg %p185
        %p615 = pneg %p209
        %p616 = pneg %p206
        %p617 = pneg %p230
        %p618 = pneg %p227
        %p619 = pneg %p251
        %p620 = pneg %p248
        %p621 = pneg %p272
        %p622 = pneg %p269
        %p623 = pneg %p293
        %p624 = pneg %p290
        %p625 = pneg %p314
        %p626 = pneg %p311
        %p627 = pneg %p335
        %p628 = pneg %p332
        %p629 = pneg %p361
        %p630 = pneg %p358
        %s631 = sand.u32 %s348, 1
        %s632 = scalar_lea.sflag [#allocation4], %s631
        %s633 = sand.u32 %s348, 1
        %s634 = smul.addr %s633, 2048
        %s635 = scalar_lea.vmem [#allocation20], %s634
        %s636 = smul.u32 128, %s36
        %s637 = smul.u32 128, %s36
        %p638 = scmp.lt.s32.totalorder %s637, 255
        %s639 = scalar_select %p638, %s637, 255
        %s640 = smul.addr %s639, 8
        %s641 = scalar_lea.vmem %s1, %s640
        %s642 = smul.u32 128, %s36
        %s643 = smul.u32 128, %s36
        %v645 = vld [vmem:[%s546] sm:$0xff]
        %v646 = vld [vmem:[%s546 + $0x8] sm:$0xff]
        %v647 = vld [vmem:[%s546 + $0x10] sm:$0xff]
        %v648 = vld [vmem:[%s546 + $0x18] sm:$0xff]
        %v649 = vld [vmem:[%s546 + $0x20] sm:$0xff]
        %v650 = vld [vmem:[%s546 + $0x28] sm:$0xff]
        %v651 = vld [vmem:[%s546 + $0x30] sm:$0xff]
        %v652 = vld [vmem:[%s546 + $0x38] sm:$0xff]
        %v653 = vld [vmem:[%s546 + $0x40] sm:$0xff]
        %v654 = vld [vmem:[%s546 + $0x48] sm:$0xff]
        %v655 = vld [vmem:[%s546 + $0x50] sm:$0xff]
        %v656 = vld [vmem:[%s546 + $0x58] sm:$0xff]
        %v657 = vld [vmem:[%s546 + $0x60] sm:$0xff]
        %v658 = vld [vmem:[%s546 + $0x68] sm:$0xff]
        %v659 = vld [vmem:[%s546 + $0x70] sm:$0xff]
        %v660 = vld [vmem:[%s546 + $0x78] sm:$0xff]
        %v661 = vld [vmem:[%s546 + $0x80] sm:$0xff]
        %v662 = vld [vmem:[%s546 + $0x88] sm:$0xff]
        %v663 = vld [vmem:[%s546 + $0x90] sm:$0xff]
        %v664 = vld [vmem:[%s546 + $0x98] sm:$0xff]
        %v665 = vld [vmem:[%s546 + $0xa0] sm:$0xff]
        %v666 = vld [vmem:[%s546 + $0xa8] sm:$0xff]
        %v667 = vld [vmem:[%s546 + $0xb0] sm:$0xff]
        %v668 = vld [vmem:[%s546 + $0xb8] sm:$0xff]
        %v669 = vld [vmem:[%s546 + $0xc0] sm:$0xff]
        %v670 = vld [vmem:[%s546 + $0xc8] sm:$0xff]
        %v671 = vld [vmem:[%s546 + $0xd0] sm:$0xff]
        %v672 = vld [vmem:[%s546 + $0xd8] sm:$0xff]
        %v673 = vld [vmem:[%s546 + $0xe0] sm:$0xff]
        %v674 = vld [vmem:[%s546 + $0xe8] sm:$0xff]
        %v675 = vld [vmem:[%s546 + $0xf0] sm:$0xff]
        %v676 = vld [vmem:[%s546 + $0xf8] sm:$0xff]
        %v677 = vld [vmem:[%s546 + $0x100] sm:$0xff]
        %v678 = vld [vmem:[%s546 + $0x108] sm:$0xff]
        %v679 = vld [vmem:[%s546 + $0x110] sm:$0xff]
        %v680 = vld [vmem:[%s546 + $0x118] sm:$0xff]
        %v681 = vld [vmem:[%s546 + $0x120] sm:$0xff]
        %v682 = vld [vmem:[%s546 + $0x128] sm:$0xff]
        %v683 = vld [vmem:[%s546 + $0x130] sm:$0xff]
        %v684 = vld [vmem:[%s546 + $0x138] sm:$0xff]
        %v685 = vld [vmem:[%s546 + $0x140] sm:$0xff]
        %v686 = vld [vmem:[%s546 + $0x148] sm:$0xff]
        %v687 = vld [vmem:[%s546 + $0x150] sm:$0xff]
        %v688 = vld [vmem:[%s546 + $0x158] sm:$0xff]
        %v689 = vld [vmem:[%s546 + $0x160] sm:$0xff]
        %v690 = vld [vmem:[%s546 + $0x168] sm:$0xff]
        %v691 = vld [vmem:[%s546 + $0x170] sm:$0xff]
        %v692 = vld [vmem:[%s546 + $0x178] sm:$0xff]
        %v693 = vld [vmem:[%s546 + $0x180] sm:$0xff]
        %v694 = vld [vmem:[%s546 + $0x188] sm:$0xff]
        %v695 = vld [vmem:[%s546 + $0x190] sm:$0xff]
        %v696 = vld [vmem:[%s546 + $0x198] sm:$0xff]
        %v697 = vld [vmem:[%s546 + $0x1a0] sm:$0xff]
        %v698 = vld [vmem:[%s546 + $0x1a8] sm:$0xff]
        %v699 = vld [vmem:[%s546 + $0x1b0] sm:$0xff]
        %v700 = vld [vmem:[%s546 + $0x1b8] sm:$0xff]
        %v701 = vld [vmem:[%s546 + $0x1c0] sm:$0xff]
        %v702 = vld [vmem:[%s546 + $0x1c8] sm:$0xff]
        %v703 = vld [vmem:[%s546 + $0x1d0] sm:$0xff]
        %v704 = vld [vmem:[%s546 + $0x1d8] sm:$0xff]
        %v705 = vld [vmem:[%s546 + $0x1e0] sm:$0xff]
        %v706 = vld [vmem:[%s546 + $0x1e8] sm:$0xff]
        %v707 = vld [vmem:[%s546 + $0x1f0] sm:$0xff]
        %v708 = vld [vmem:[%s546 + $0x1f8] sm:$0xff]
        %v709 = vld [vmem:[%s546 + $0x200] sm:$0xff]
        %v710 = vld [vmem:[%s546 + $0x208] sm:$0xff]
        %v711 = vld [vmem:[%s546 + $0x210] sm:$0xff]
        %v712 = vld [vmem:[%s546 + $0x218] sm:$0xff]
        %v713 = vld [vmem:[%s546 + $0x220] sm:$0xff]
        %v714 = vld [vmem:[%s546 + $0x228] sm:$0xff]
        %v715 = vld [vmem:[%s546 + $0x230] sm:$0xff]
        %v716 = vld [vmem:[%s546 + $0x238] sm:$0xff]
        %v717 = vld [vmem:[%s546 + $0x240] sm:$0xff]
        %v718 = vld [vmem:[%s546 + $0x248] sm:$0xff]
        %v719 = vld [vmem:[%s546 + $0x250] sm:$0xff]
        %v720 = vld [vmem:[%s546 + $0x258] sm:$0xff]
        %v721 = vld [vmem:[%s546 + $0x260] sm:$0xff]
        %v722 = vld [vmem:[%s546 + $0x268] sm:$0xff]
        %v723 = vld [vmem:[%s546 + $0x270] sm:$0xff]
        %v724 = vld [vmem:[%s546 + $0x278] sm:$0xff]
        %v725 = vld [vmem:[%s546 + $0x280] sm:$0xff]
        %v726 = vld [vmem:[%s546 + $0x288] sm:$0xff]
        %v727 = vld [vmem:[%s546 + $0x290] sm:$0xff]
        %v728 = vld [vmem:[%s546 + $0x298] sm:$0xff]
        %v729 = vld [vmem:[%s546 + $0x2a0] sm:$0xff]
        %v730 = vld [vmem:[%s546 + $0x2a8] sm:$0xff]
        %v731 = vld [vmem:[%s546 + $0x2b0] sm:$0xff]
        %v732 = vld [vmem:[%s546 + $0x2b8] sm:$0xff]
        %v733 = vld [vmem:[%s546 + $0x2c0] sm:$0xff]
        %v734 = vld [vmem:[%s546 + $0x2c8] sm:$0xff]
        %v735 = vld [vmem:[%s546 + $0x2d0] sm:$0xff]
        %v736 = vld [vmem:[%s546 + $0x2d8] sm:$0xff]
        %v737 = vld [vmem:[%s546 + $0x2e0] sm:$0xff]
        %v738 = vld [vmem:[%s546 + $0x2e8] sm:$0xff]
        %v739 = vld [vmem:[%s546 + $0x2f0] sm:$0xff]
        %v740 = vld [vmem:[%s546 + $0x2f8] sm:$0xff]
        %v741 = vld [vmem:[%s546 + $0x300] sm:$0xff]
        %v742 = vld [vmem:[%s546 + $0x308] sm:$0xff]
        %v743 = vld [vmem:[%s546 + $0x310] sm:$0xff]
        %v744 = vld [vmem:[%s546 + $0x318] sm:$0xff]
        %v745 = vld [vmem:[%s546 + $0x320] sm:$0xff]
        %v746 = vld [vmem:[%s546 + $0x328] sm:$0xff]
        %v747 = vld [vmem:[%s546 + $0x330] sm:$0xff]
        %v748 = vld [vmem:[%s546 + $0x338] sm:$0xff]
        %v749 = vld [vmem:[%s546 + $0x340] sm:$0xff]
        %v750 = vld [vmem:[%s546 + $0x348] sm:$0xff]
        %v751 = vld [vmem:[%s546 + $0x350] sm:$0xff]
        %v752 = vld [vmem:[%s546 + $0x358] sm:$0xff]
        %v753 = vld [vmem:[%s546 + $0x360] sm:$0xff]
        %v754 = vld [vmem:[%s546 + $0x368] sm:$0xff]
        %v755 = vld [vmem:[%s546 + $0x370] sm:$0xff]
        %v756 = vld [vmem:[%s546 + $0x378] sm:$0xff]
        %v757 = vld [vmem:[%s546 + $0x380] sm:$0xff]
        %v758 = vld [vmem:[%s546 + $0x388] sm:$0xff]
        %v759 = vld [vmem:[%s546 + $0x390] sm:$0xff]
        %v760 = vld [vmem:[%s546 + $0x398] sm:$0xff]
        %v761 = vld [vmem:[%s546 + $0x3a0] sm:$0xff]
        %v762 = vld [vmem:[%s546 + $0x3a8] sm:$0xff]
        %v763 = vld [vmem:[%s546 + $0x3b0] sm:$0xff]
        %v764 = vld [vmem:[%s546 + $0x3b8] sm:$0xff]
        %v765 = vld [vmem:[%s546 + $0x3c0] sm:$0xff]
        %v766 = vld [vmem:[%s546 + $0x3c8] sm:$0xff]
        %v767 = vld [vmem:[%s546 + $0x3d0] sm:$0xff]
        %v768 = vld [vmem:[%s546 + $0x3d8] sm:$0xff]
        %v769 = vld [vmem:[%s546 + $0x3e0] sm:$0xff]
        %v770 = vld [vmem:[%s546 + $0x3e8] sm:$0xff]
        %v771 = vld [vmem:[%s546 + $0x3f0] sm:$0xff]
        %v772 = vld [vmem:[%s546 + $0x3f8] sm:$0xff]
        %v773 = vld [vmem:[%s546 + $0x400] sm:$0xff]
        %v774 = vld [vmem:[%s546 + $0x408] sm:$0xff]
        %v775 = vld [vmem:[%s546 + $0x410] sm:$0xff]
        %v776 = vld [vmem:[%s546 + $0x418] sm:$0xff]
        %v777 = vld [vmem:[%s546 + $0x420] sm:$0xff]
        %v778 = vld [vmem:[%s546 + $0x428] sm:$0xff]
        %v779 = vld [vmem:[%s546 + $0x430] sm:$0xff]
        %v780 = vld [vmem:[%s546 + $0x438] sm:$0xff]
        %v781 = vld [vmem:[%s546 + $0x440] sm:$0xff]
        %v782 = vld [vmem:[%s546 + $0x448] sm:$0xff]
        %v783 = vld [vmem:[%s546 + $0x450] sm:$0xff]
        %v784 = vld [vmem:[%s546 + $0x458] sm:$0xff]
        %v785 = vld [vmem:[%s546 + $0x460] sm:$0xff]
        %v786 = vld [vmem:[%s546 + $0x468] sm:$0xff]
        %v787 = vld [vmem:[%s546 + $0x470] sm:$0xff]
        %v788 = vld [vmem:[%s546 + $0x478] sm:$0xff]
        %v789 = vld [vmem:[%s546 + $0x480] sm:$0xff]
        %v790 = vld [vmem:[%s546 + $0x488] sm:$0xff]
        %v791 = vld [vmem:[%s546 + $0x490] sm:$0xff]
        %v792 = vld [vmem:[%s546 + $0x498] sm:$0xff]
        %v793 = vld [vmem:[%s546 + $0x4a0] sm:$0xff]
        %v794 = vld [vmem:[%s546 + $0x4a8] sm:$0xff]
        %v795 = vld [vmem:[%s546 + $0x4b0] sm:$0xff]
        %v796 = vld [vmem:[%s546 + $0x4b8] sm:$0xff]
        %v797 = vld [vmem:[%s546 + $0x4c0] sm:$0xff]
        %v798 = vld [vmem:[%s546 + $0x4c8] sm:$0xff]
        %v799 = vld [vmem:[%s546 + $0x4d0] sm:$0xff]
        %v800 = vld [vmem:[%s546 + $0x4d8] sm:$0xff]
        %v801 = vld [vmem:[%s546 + $0x4e0] sm:$0xff]
        %v802 = vld [vmem:[%s546 + $0x4e8] sm:$0xff]
        %v803 = vld [vmem:[%s546 + $0x4f0] sm:$0xff]
        %v804 = vld [vmem:[%s546 + $0x4f8] sm:$0xff]
        %v805 = vld [vmem:[%s546 + $0x500] sm:$0xff]
        %v806 = vld [vmem:[%s546 + $0x508] sm:$0xff]
        %v807 = vld [vmem:[%s546 + $0x510] sm:$0xff]
        %v808 = vld [vmem:[%s546 + $0x518] sm:$0xff]
        %v809 = vld [vmem:[%s546 + $0x520] sm:$0xff]
        %v810 = vld [vmem:[%s546 + $0x528] sm:$0xff]
        %v811 = vld [vmem:[%s546 + $0x530] sm:$0xff]
        %v812 = vld [vmem:[%s546 + $0x538] sm:$0xff]
        %v813 = vld [vmem:[%s546 + $0x540] sm:$0xff]
        %v814 = vld [vmem:[%s546 + $0x548] sm:$0xff]
        %v815 = vld [vmem:[%s546 + $0x550] sm:$0xff]
        %v816 = vld [vmem:[%s546 + $0x558] sm:$0xff]
        %v817 = vld [vmem:[%s546 + $0x560] sm:$0xff]
        %v818 = vld [vmem:[%s546 + $0x568] sm:$0xff]
        %v819 = vld [vmem:[%s546 + $0x570] sm:$0xff]
        %v820 = vld [vmem:[%s546 + $0x578] sm:$0xff]
        %v821 = vld [vmem:[%s546 + $0x580] sm:$0xff]
        %v822 = vld [vmem:[%s546 + $0x588] sm:$0xff]
        %v823 = vld [vmem:[%s546 + $0x590] sm:$0xff]
        %v824 = vld [vmem:[%s546 + $0x598] sm:$0xff]
        %v825 = vld [vmem:[%s546 + $0x5a0] sm:$0xff]
        %v826 = vld [vmem:[%s546 + $0x5a8] sm:$0xff]
        %v827 = vld [vmem:[%s546 + $0x5b0] sm:$0xff]
        %v828 = vld [vmem:[%s546 + $0x5b8] sm:$0xff]
        %v829 = vld [vmem:[%s546 + $0x5c0] sm:$0xff]
        %v830 = vld [vmem:[%s546 + $0x5c8] sm:$0xff]
        %v831 = vld [vmem:[%s546 + $0x5d0] sm:$0xff]
        %v832 = vld [vmem:[%s546 + $0x5d8] sm:$0xff]
        %v833 = vld [vmem:[%s546 + $0x5e0] sm:$0xff]
        %v834 = vld [vmem:[%s546 + $0x5e8] sm:$0xff]
        %v835 = vld [vmem:[%s546 + $0x5f0] sm:$0xff]
        %v836 = vld [vmem:[%s546 + $0x5f8] sm:$0xff]
        %v837 = vld [vmem:[%s546 + $0x600] sm:$0xff]
        %v838 = vld [vmem:[%s546 + $0x608] sm:$0xff]
        %v839 = vld [vmem:[%s546 + $0x610] sm:$0xff]
        %v840 = vld [vmem:[%s546 + $0x618] sm:$0xff]
        %v841 = vld [vmem:[%s546 + $0x620] sm:$0xff]
        %v842 = vld [vmem:[%s546 + $0x628] sm:$0xff]
        %v843 = vld [vmem:[%s546 + $0x630] sm:$0xff]
        %v844 = vld [vmem:[%s546 + $0x638] sm:$0xff]
        %v845 = vld [vmem:[%s546 + $0x640] sm:$0xff]
        %v846 = vld [vmem:[%s546 + $0x648] sm:$0xff]
        %v847 = vld [vmem:[%s546 + $0x650] sm:$0xff]
        %v848 = vld [vmem:[%s546 + $0x658] sm:$0xff]
        %v849 = vld [vmem:[%s546 + $0x660] sm:$0xff]
        %v850 = vld [vmem:[%s546 + $0x668] sm:$0xff]
        %v851 = vld [vmem:[%s546 + $0x670] sm:$0xff]
        %v852 = vld [vmem:[%s546 + $0x678] sm:$0xff]
        %v853 = vld [vmem:[%s546 + $0x680] sm:$0xff]
        %v854 = vld [vmem:[%s546 + $0x688] sm:$0xff]
        %v855 = vld [vmem:[%s546 + $0x690] sm:$0xff]
        %v856 = vld [vmem:[%s546 + $0x698] sm:$0xff]
        %v857 = vld [vmem:[%s546 + $0x6a0] sm:$0xff]
        %v858 = vld [vmem:[%s546 + $0x6a8] sm:$0xff]
        %v859 = vld [vmem:[%s546 + $0x6b0] sm:$0xff]
        %v860 = vld [vmem:[%s546 + $0x6b8] sm:$0xff]
        %v861 = vld [vmem:[%s546 + $0x6c0] sm:$0xff]
        %v862 = vld [vmem:[%s546 + $0x6c8] sm:$0xff]
        %v863 = vld [vmem:[%s546 + $0x6d0] sm:$0xff]
        %v864 = vld [vmem:[%s546 + $0x6d8] sm:$0xff]
        %v865 = vld [vmem:[%s546 + $0x6e0] sm:$0xff]
        %v866 = vld [vmem:[%s546 + $0x6e8] sm:$0xff]
        %v867 = vld [vmem:[%s546 + $0x6f0] sm:$0xff]
        %v868 = vld [vmem:[%s546 + $0x6f8] sm:$0xff]
        %v869 = vld [vmem:[%s546 + $0x700] sm:$0xff]
        %v870 = vld [vmem:[%s546 + $0x708] sm:$0xff]
        %v871 = vld [vmem:[%s546 + $0x710] sm:$0xff]
        %v872 = vld [vmem:[%s546 + $0x718] sm:$0xff]
        %v873 = vld [vmem:[%s546 + $0x720] sm:$0xff]
        %v874 = vld [vmem:[%s546 + $0x728] sm:$0xff]
        %v875 = vld [vmem:[%s546 + $0x730] sm:$0xff]
        %v876 = vld [vmem:[%s546 + $0x738] sm:$0xff]
        %v877 = vld [vmem:[%s546 + $0x740] sm:$0xff]
        %v878 = vld [vmem:[%s546 + $0x748] sm:$0xff]
        %v879 = vld [vmem:[%s546 + $0x750] sm:$0xff]
        %v880 = vld [vmem:[%s546 + $0x758] sm:$0xff]
        %v881 = vld [vmem:[%s546 + $0x760] sm:$0xff]
        %v882 = vld [vmem:[%s546 + $0x768] sm:$0xff]
        %v883 = vld [vmem:[%s546 + $0x770] sm:$0xff]
        %v884 = vld [vmem:[%s546 + $0x778] sm:$0xff]
        %v885 = vld [vmem:[%s546 + $0x780] sm:$0xff]
        %v886 = vld [vmem:[%s546 + $0x788] sm:$0xff]
        %v887 = vld [vmem:[%s546 + $0x790] sm:$0xff]
        %v888 = vld [vmem:[%s546 + $0x798] sm:$0xff]
        %v889 = vld [vmem:[%s546 + $0x7a0] sm:$0xff]
        %v890 = vld [vmem:[%s546 + $0x7a8] sm:$0xff]
        %v891 = vld [vmem:[%s546 + $0x7b0] sm:$0xff]
        %v892 = vld [vmem:[%s546 + $0x7b8] sm:$0xff]
        %v893 = vld [vmem:[%s546 + $0x7c0] sm:$0xff]
        %v894 = vld [vmem:[%s546 + $0x7c8] sm:$0xff]
        %v895 = vld [vmem:[%s546 + $0x7d0] sm:$0xff]
        %v896 = vld [vmem:[%s546 + $0x7d8] sm:$0xff]
        %v897 = vld [vmem:[%s546 + $0x7e0] sm:$0xff]
        %v898 = vld [vmem:[%s546 + $0x7e8] sm:$0xff]
        %v899 = vld [vmem:[%s546 + $0x7f0] sm:$0xff]
        %v900 = vld [vmem:[%s546 + $0x7f8] sm:$0xff]
        %v901 = vpack.c.bf16 %v647, %v645
        %v902 = vpack.c.bf16 %v648, %v646
        %v903 = vpack.c.bf16 %v651, %v649
        %v904 = vpack.c.bf16 %v652, %v650
        %v905 = vpack.c.bf16 %v655, %v653
        %v906 = vpack.c.bf16 %v656, %v654
        %v907 = vpack.c.bf16 %v659, %v657
        %v908 = vpack.c.bf16 %v660, %v658
        %v909 = vpack.c.bf16 %v663, %v661
        %v910 = vpack.c.bf16 %v664, %v662
        %v911 = vpack.c.bf16 %v667, %v665
        %v912 = vpack.c.bf16 %v668, %v666
        %v913 = vpack.c.bf16 %v671, %v669
        %v914 = vpack.c.bf16 %v672, %v670
        %v915 = vpack.c.bf16 %v675, %v673
        %v916 = vpack.c.bf16 %v676, %v674
        %v917 = vpack.c.bf16 %v679, %v677
        %v918 = vpack.c.bf16 %v680, %v678
        %v919 = vpack.c.bf16 %v683, %v681
        %v920 = vpack.c.bf16 %v684, %v682
        %v921 = vpack.c.bf16 %v687, %v685
        %v922 = vpack.c.bf16 %v688, %v686
        %v923 = vpack.c.bf16 %v691, %v689
        %v924 = vpack.c.bf16 %v692, %v690
        %v925 = vpack.c.bf16 %v695, %v693
        %v926 = vpack.c.bf16 %v696, %v694
        %v927 = vpack.c.bf16 %v699, %v697
        %v928 = vpack.c.bf16 %v700, %v698
        %v929 = vpack.c.bf16 %v703, %v701
        %v930 = vpack.c.bf16 %v704, %v702
        %v931 = vpack.c.bf16 %v707, %v705
        %v932 = vpack.c.bf16 %v708, %v706
        %v933 = vpack.c.bf16 %v711, %v709
        %v934 = vpack.c.bf16 %v712, %v710
        %v935 = vpack.c.bf16 %v715, %v713
        %v936 = vpack.c.bf16 %v716, %v714
        %v937 = vpack.c.bf16 %v719, %v717
        %v938 = vpack.c.bf16 %v720, %v718
        %v939 = vpack.c.bf16 %v723, %v721
        %v940 = vpack.c.bf16 %v724, %v722
        %v941 = vpack.c.bf16 %v727, %v725
        %v942 = vpack.c.bf16 %v728, %v726
        %v943 = vpack.c.bf16 %v731, %v729
        %v944 = vpack.c.bf16 %v732, %v730
        %v945 = vpack.c.bf16 %v735, %v733
        %v946 = vpack.c.bf16 %v736, %v734
        %v947 = vpack.c.bf16 %v739, %v737
        %v948 = vpack.c.bf16 %v740, %v738
        %v949 = vpack.c.bf16 %v743, %v741
        %v950 = vpack.c.bf16 %v744, %v742
        %v951 = vpack.c.bf16 %v747, %v745
        %v952 = vpack.c.bf16 %v748, %v746
        %v953 = vpack.c.bf16 %v751, %v749
        %v954 = vpack.c.bf16 %v752, %v750
        %v955 = vpack.c.bf16 %v755, %v753
        %v956 = vpack.c.bf16 %v756, %v754
        %v957 = vpack.c.bf16 %v759, %v757
        %v958 = vpack.c.bf16 %v760, %v758
        %v959 = vpack.c.bf16 %v763, %v761
        %v960 = vpack.c.bf16 %v764, %v762
        %v961 = vpack.c.bf16 %v767, %v765
        %v962 = vpack.c.bf16 %v768, %v766
        %v963 = vpack.c.bf16 %v771, %v769
        %v964 = vpack.c.bf16 %v772, %v770
        %v965 = vpack.c.bf16 %v775, %v773
        %v966 = vpack.c.bf16 %v776, %v774
        %v967 = vpack.c.bf16 %v779, %v777
        %v968 = vpack.c.bf16 %v780, %v778
        %v969 = vpack.c.bf16 %v783, %v781
        %v970 = vpack.c.bf16 %v784, %v782
        %v971 = vpack.c.bf16 %v787, %v785
        %v972 = vpack.c.bf16 %v788, %v786
        %v973 = vpack.c.bf16 %v791, %v789
        %v974 = vpack.c.bf16 %v792, %v790
        %v975 = vpack.c.bf16 %v795, %v793
        %v976 = vpack.c.bf16 %v796, %v794
        %v977 = vpack.c.bf16 %v799, %v797
        %v978 = vpack.c.bf16 %v800, %v798
        %v979 = vpack.c.bf16 %v803, %v801
        %v980 = vpack.c.bf16 %v804, %v802
        %v981 = vpack.c.bf16 %v807, %v805
        %v982 = vpack.c.bf16 %v808, %v806
        %v983 = vpack.c.bf16 %v811, %v809
        %v984 = vpack.c.bf16 %v812, %v810
        %v985 = vpack.c.bf16 %v815, %v813
        %v986 = vpack.c.bf16 %v816, %v814
        %v987 = vpack.c.bf16 %v819, %v817
        %v988 = vpack.c.bf16 %v820, %v818
        %v989 = vpack.c.bf16 %v823, %v821
        %v990 = vpack.c.bf16 %v824, %v822
        %v991 = vpack.c.bf16 %v827, %v825
        %v992 = vpack.c.bf16 %v828, %v826
        %v993 = vpack.c.bf16 %v831, %v829
        %v994 = vpack.c.bf16 %v832, %v830
        %v995 = vpack.c.bf16 %v835, %v833
        %v996 = vpack.c.bf16 %v836, %v834
        %v997 = vpack.c.bf16 %v839, %v837
        %v998 = vpack.c.bf16 %v840, %v838
        %v999 = vpack.c.bf16 %v843, %v841
        %v1000 = vpack.c.bf16 %v844, %v842
        %v1001 = vpack.c.bf16 %v847, %v845
        %v1002 = vpack.c.bf16 %v848, %v846
        %v1003 = vpack.c.bf16 %v851, %v849
        %v1004 = vpack.c.bf16 %v852, %v850
        %v1005 = vpack.c.bf16 %v855, %v853
        %v1006 = vpack.c.bf16 %v856, %v854
        %v1007 = vpack.c.bf16 %v859, %v857
        %v1008 = vpack.c.bf16 %v860, %v858
        %v1009 = vpack.c.bf16 %v863, %v861
        %v1010 = vpack.c.bf16 %v864, %v862
        %v1011 = vpack.c.bf16 %v867, %v865
        %v1012 = vpack.c.bf16 %v868, %v866
        %v1013 = vpack.c.bf16 %v871, %v869
        %v1014 = vpack.c.bf16 %v872, %v870
        %v1015 = vpack.c.bf16 %v875, %v873
        %v1016 = vpack.c.bf16 %v876, %v874
        %v1017 = vpack.c.bf16 %v879, %v877
        %v1018 = vpack.c.bf16 %v880, %v878
        %v1019 = vpack.c.bf16 %v883, %v881
        %v1020 = vpack.c.bf16 %v884, %v882
        %v1021 = vpack.c.bf16 %v887, %v885
        %v1022 = vpack.c.bf16 %v888, %v886
        %v1023 = vpack.c.bf16 %v891, %v889
        %v1024 = vpack.c.bf16 %v892, %v890
        %v1025 = vpack.c.bf16 %v895, %v893
        %v1026 = vpack.c.bf16 %v896, %v894
        %v1027 = vpack.c.bf16 %v899, %v897
        %v1028 = vpack.c.bf16 %v900, %v898
        %v1029 = vld [vmem:[#allocation5] sm:$0xf]
        %v1030 = vld [vmem:[#allocation5 + $0x4] sm:$0xf]
        %v1031 = vld [vmem:[#allocation5 + $0x8] sm:$0xf]
        %v1032 = vld [vmem:[#allocation5 + $0xc] sm:$0xf]
        %v1033 = vld [vmem:[#allocation5 + $0x10] sm:$0xf]
        %v1034 = vld [vmem:[#allocation5 + $0x14] sm:$0xf]
        %v1035 = vld [vmem:[#allocation5 + $0x18] sm:$0xf]
        %v1036 = vld [vmem:[#allocation5 + $0x1c] sm:$0xf]
        %v1037 = vld [vmem:[#allocation5 + $0x20] sm:$0xf]
        %v1038 = vld [vmem:[#allocation5 + $0x24] sm:$0xf]
        %v1039 = vld [vmem:[#allocation5 + $0x28] sm:$0xf]
        %v1040 = vld [vmem:[#allocation5 + $0x2c] sm:$0xf]
        %v1041 = vld [vmem:[#allocation5 + $0x30] sm:$0xf]
        %v1042 = vld [vmem:[#allocation5 + $0x34] sm:$0xf]
        %v1043 = vld [vmem:[#allocation5 + $0x38] sm:$0xf]
        %v1044 = vld [vmem:[#allocation5 + $0x3c] sm:$0xf]
        %v1045 = vld [vmem:[#allocation5 + $0x40] sm:$0xf]
        %v1046 = vld [vmem:[#allocation5 + $0x44] sm:$0xf]
        %v1047 = vld [vmem:[#allocation5 + $0x48] sm:$0xf]
        %v1048 = vld [vmem:[#allocation5 + $0x4c] sm:$0xf]
        %v1049 = vld [vmem:[#allocation5 + $0x50] sm:$0xf]
        %v1050 = vld [vmem:[#allocation5 + $0x54] sm:$0xf]
        %v1051 = vld [vmem:[#allocation5 + $0x58] sm:$0xf]
        %v1052 = vld [vmem:[#allocation5 + $0x5c] sm:$0xf]
        %v1053 = vld [vmem:[#allocation5 + $0x60] sm:$0xf]
        %v1054 = vld [vmem:[#allocation5 + $0x64] sm:$0xf]
        %v1055 = vld [vmem:[#allocation5 + $0x68] sm:$0xf]
        %v1056 = vld [vmem:[#allocation5 + $0x6c] sm:$0xf]
        %v1057 = vld [vmem:[#allocation5 + $0x70] sm:$0xf]
        %v1058 = vld [vmem:[#allocation5 + $0x74] sm:$0xf]
        %v1059 = vld [vmem:[#allocation5 + $0x78] sm:$0xf]
        %v1060 = vld [vmem:[#allocation5 + $0x7c] sm:$0xf]
        %v1061 = vld [vmem:[#allocation7] sm:$0x1]
        %v1063 = vlaneseq
        %v1064 = vshrl.u32 %v1063, 7
        %v1065 = vsub.s32 0, %v1064
        %v1066 = vrot.slane %v1061, %v1065
        %v1100 = vunpack.c.l.b16 %v1029
        %v1101 = vunpack.c.l.b16 %v1030
        %v1102 = vunpack.c.l.b16 %v1031
        %v1103 = vunpack.c.l.b16 %v1032
        %v1104 = vunpack.c.l.b16 %v1033
        %v1105 = vunpack.c.l.b16 %v1034
        %v1106 = vunpack.c.l.b16 %v1035
        %v1107 = vunpack.c.l.b16 %v1036
        %v1108 = vunpack.c.l.b16 %v1037
        %v1109 = vunpack.c.l.b16 %v1038
        %v1110 = vunpack.c.l.b16 %v1039
        %v1111 = vunpack.c.l.b16 %v1040
        %v1112 = vunpack.c.l.b16 %v1041
        %v1113 = vunpack.c.l.b16 %v1042
        %v1114 = vunpack.c.l.b16 %v1043
        %v1115 = vunpack.c.l.b16 %v1044
        %v1116 = vunpack.c.l.b16 %v1045
        %v1117 = vunpack.c.l.b16 %v1046
        %v1118 = vunpack.c.l.b16 %v1047
        %v1119 = vunpack.c.l.b16 %v1048
        %v1120 = vunpack.c.l.b16 %v1049
        %v1121 = vunpack.c.l.b16 %v1050
        %v1122 = vunpack.c.l.b16 %v1051
        %v1123 = vunpack.c.l.b16 %v1052
        %v1124 = vunpack.c.l.b16 %v1053
        %v1125 = vunpack.c.l.b16 %v1054
        %v1126 = vunpack.c.l.b16 %v1055
        %v1127 = vunpack.c.l.b16 %v1056
        %v1128 = vunpack.c.l.b16 %v1057
        %v1129 = vunpack.c.l.b16 %v1058
        %v1130 = vunpack.c.l.b16 %v1059
        %v1131 = vunpack.c.l.b16 %v1060
        %v1132 = vpack.c.b16 %v1101, %v1100
        %v1133 = vpack.c.b16 %v1103, %v1102
        %v1134 = vpack.c.b16 %v1105, %v1104
        %v1135 = vpack.c.b16 %v1107, %v1106
        %v1136 = vpack.c.b16 %v1109, %v1108
        %v1137 = vpack.c.b16 %v1111, %v1110
        %v1138 = vpack.c.b16 %v1113, %v1112
        %v1139 = vpack.c.b16 %v1115, %v1114
        %v1140 = vpack.c.b16 %v1117, %v1116
        %v1141 = vpack.c.b16 %v1119, %v1118
        %v1142 = vpack.c.b16 %v1121, %v1120
        %v1143 = vpack.c.b16 %v1123, %v1122
        %v1144 = vpack.c.b16 %v1125, %v1124
        %v1145 = vpack.c.b16 %v1127, %v1126
        %v1146 = vpack.c.b16 %v1129, %v1128
        %v1147 = vpack.c.b16 %v1131, %v1130
        %1164 = vmatprep.subr.bf16.mxu0 0
        %1165 = vmatpush1.bf16.msra.mxu0 %v1132
        %1166 = vmatprep.subr.bf16.mxu0 0
        %1167 = vmatpush1.bf16.msra.mxu0 %v1133
        %1168 = vmatprep.subr.bf16.mxu0 0
        %1169 = vmatpush1.bf16.msra.mxu0 %v1134
        %1170 = vmatprep.subr.bf16.mxu0 0
        %1171 = vmatpush1.bf16.msra.mxu0 %v1135
        %1172 = vmatprep.subr.bf16.mxu0 0
        %1173 = vmatpush1.bf16.msra.mxu0 %v1136
        %1174 = vmatprep.subr.bf16.mxu0 0
        %1175 = vmatpush1.bf16.msra.mxu0 %v1137
        %1176 = vmatprep.subr.bf16.mxu0 0
        %1177 = vmatpush1.bf16.msra.mxu0 %v1138
        %1178 = vmatprep.subr.bf16.mxu0 0
        %1179 = vmatpush1.bf16.msra.mxu0 %v1139
        %1180 = vmatprep.subr.bf16.mxu0 0
        %1181 = vmatpush1.bf16.msra.mxu0 %v1140
        %1182 = vmatprep.subr.bf16.mxu0 0
        %1183 = vmatpush1.bf16.msra.mxu0 %v1141
        %1184 = vmatprep.subr.bf16.mxu0 0
        %1185 = vmatpush1.bf16.msra.mxu0 %v1142
        %1186 = vmatprep.subr.bf16.mxu0 0
        %1187 = vmatpush1.bf16.msra.mxu0 %v1143
        %1188 = vmatprep.subr.bf16.mxu0 0
        %1189 = vmatpush1.bf16.msra.mxu0 %v1144
        %1190 = vmatprep.subr.bf16.mxu0 0
        %1191 = vmatpush1.bf16.msra.mxu0 %v1145
        %1192 = vmatprep.subr.bf16.mxu0 0
        %1193 = vmatpush1.bf16.msra.mxu0 %v1146
        %1194 = vmatprep.subr.bf16.mxu0 0
        %1195 = vmatpush1.bf16.msra.mxu0 %v1147
        %1196 = vmatprep.mubr.bf16.mxu0 %v902
        %1197 = vmatmul.mubr.bf16.gmra.mrb[0].mxu0 %v901
        %v1198 = vpop.f32.mrb[0].mxu0
        %v1199 = vadd.f32 %v1066, %v1198
        %v1200 = vpop.f32.mrb[0].mxu0
        %v1201 = vpop.f32.mrb[0].mxu0
        %v1202 = vadd.f32 %v1066, %v1201
        %v1203 = vpop.f32.mrb[0].mxu0
        %1204 = vmatprep.mubr.bf16.mxu0 %v904
        %1205 = vmatmul.mubr.bf16.gmra.mrb[0].mxu0 %v903
        %v1206 = vpop.f32.mrb[0].mxu0
        %v1207 = vadd.f32 %v1066, %v1206
        %v1208 = vpop.f32.mrb[0].mxu0
        %v1209 = vpop.f32.mrb[0].mxu0
        %v1210 = vadd.f32 %v1066, %v1209
        %v1211 = vpop.f32.mrb[0].mxu0
        %1212 = vmatprep.mubr.bf16.mxu0 %v906
        %1213 = vmatmul.mubr.bf16.gmra.mrb[0].mxu0 %v905
        %v1214 = vpop.f32.mrb[0].mxu0
        %v1215 = vadd.f32 %v1066, %v1214
        %v1216 = vpop.f32.mrb[0].mxu0
        %v1217 = vpop.f32.mrb[0].mxu0
        %v1218 = vadd.f32 %v1066, %v1217
        %v1219 = vpop.f32.mrb[0].mxu0
        %1220 = vmatprep.mubr.bf16.mxu0 %v908
        %1221 = vmatmul.mubr.bf16.gmra.mrb[0].mxu0 %v907
        %v1222 = vpop.f32.mrb[0].mxu0
        %v1223 = vadd.f32 %v1066, %v1222
        %v1224 = vpop.f32.mrb[0].mxu0
        %v1225 = vpop.f32.mrb[0].mxu0
        %v1226 = vadd.f32 %v1066, %v1225
        %v1227 = vpop.f32.mrb[0].mxu0
        %1228 = vmatprep.mubr.bf16.mxu0 %v910
        %1229 = vmatmul.mubr.bf16.gmra.mrb[0].mxu0 %v909
        %v1230 = vpop.f32.mrb[0].mxu0
        %v1231 = vadd.f32 %v1066, %v1230
        %v1232 = vpop.f32.mrb[0].mxu0
        %v1233 = vpop.f32.mrb[0].mxu0
        %v1234 = vadd.f32 %v1066, %v1233
        %v1235 = vpop.f32.mrb[0].mxu0
        %1236 = vmatprep.mubr.bf16.mxu0 %v912
        %1237 = vmatmul.mubr.bf16.gmra.mrb[0].mxu0 %v911
        %v1238 = vpop.f32.mrb[0].mxu0
        %v1239 = vadd.f32 %v1066, %v1238
        %v1240 = vpop.f32.mrb[0].mxu0
        %v1241 = vpop.f32.mrb[0].mxu0
        %v1242 = vadd.f32 %v1066, %v1241
        %v1243 = vpop.f32.mrb[0].mxu0
        %1244 = vmatprep.mubr.bf16.mxu0 %v914
        %1245 = vmatmul.mubr.bf16.gmra.mrb[0].mxu0 %v913
        %v1246 = vpop.f32.mrb[0].mxu0
        %v1247 = vadd.f32 %v1066, %v1246
        %v1248 = vpop.f32.mrb[0].mxu0
        %v1249 = vpop.f32.mrb[0].mxu0
        %v1250 = vadd.f32 %v1066, %v1249
        %v1251 = vpop.f32.mrb[0].mxu0
        %1252 = vmatprep.mubr.bf16.mxu0 %v916
        %1253 = vmatmul.mubr.bf16.gmra.mrb[0].mxu0 %v915
        %v1254 = vpop.f32.mrb[0].mxu0
        %v1255 = vadd.f32 %v1066, %v1254
        %v1256 = vpop.f32.mrb[0].mxu0
        %v1257 = vpop.f32.mrb[0].mxu0
        %v1258 = vadd.f32 %v1066, %v1257
        %v1259 = vpop.f32.mrb[0].mxu0
        %1260 = vmatprep.mubr.bf16.mxu0 %v918
        %1261 = vmatmul.mubr.bf16.gmra.mrb[0].mxu0 %v917
        %v1262 = vpop.f32.mrb[0].mxu0
        %v1263 = vadd.f32 %v1066, %v1262
        %v1264 = vpop.f32.mrb[0].mxu0
        %v1265 = vpop.f32.mrb[0].mxu0
        %v1266 = vadd.f32 %v1066, %v1265
        %v1267 = vpop.f32.mrb[0].mxu0
        %1268 = vmatprep.mubr.bf16.mxu0 %v920
        %1269 = vmatmul.mubr.bf16.gmra.mrb[0].mxu0 %v919
        %v1270 = vpop.f32.mrb[0].mxu0
        %v1271 = vadd.f32 %v1066, %v1270
        %v1272 = vpop.f32.mrb[0].mxu0
        %v1273 = vpop.f32.mrb[0].mxu0
        %v1274 = vadd.f32 %v1066, %v1273
        %v1275 = vpop.f32.mrb[0].mxu0
        %1276 = vmatprep.mubr.bf16.mxu0 %v922
        %1277 = vmatmul.mubr.bf16.gmra.mrb[0].mxu0 %v921
        %v1278 = vpop.f32.mrb[0].mxu0
        %v1279 = vadd.f32 %v1066, %v1278
        %v1280 = vpop.f32.mrb[0].mxu0
        %v1281 = vpop.f32.mrb[0].mxu0
        %v1282 = vadd.f32 %v1066, %v1281
        %v1283 = vpop.f32.mrb[0].mxu0
        %1284 = vmatprep.mubr.bf16.mxu0 %v924
        %1285 = vmatmul.mubr.bf16.gmra.mrb[0].mxu0 %v923
        %v1286 = vpop.f32.mrb[0].mxu0
        %v1287 = vadd.f32 %v1066, %v1286
        %v1288 = vpop.f32.mrb[0].mxu0
        %v1289 = vpop.f32.mrb[0].mxu0
        %v1290 = vadd.f32 %v1066, %v1289
        %v1291 = vpop.f32.mrb[0].mxu0
        %1292 = vmatprep.mubr.bf16.mxu0 %v926
        %1293 = vmatmul.mubr.bf16.gmra.mrb[0].mxu0 %v925
        %v1294 = vpop.f32.mrb[0].mxu0
        %v1295 = vadd.f32 %v1066, %v1294
        %v1296 = vpop.f32.mrb[0].mxu0
        %v1297 = vpop.f32.mrb[0].mxu0
        %v1298 = vadd.f32 %v1066, %v1297
        %v1299 = vpop.f32.mrb[0].mxu0
        %1300 = vmatprep.mubr.bf16.mxu0 %v928
        %1301 = vmatmul.mubr.bf16.gmra.mrb[0].mxu0 %v927
        %v1302 = vpop.f32.mrb[0].mxu0
        %v1303 = vadd.f32 %v1066, %v1302
        %v1304 = vpop.f32.mrb[0].mxu0
        %v1305 = vpop.f32.mrb[0].mxu0
        %v1306 = vadd.f32 %v1066, %v1305
        %v1307 = vpop.f32.mrb[0].mxu0
        %1308 = vmatprep.mubr.bf16.mxu0 %v930
        %1309 = vmatmul.mubr.bf16.gmra.mrb[0].mxu0 %v929
        %v1310 = vpop.f32.mrb[0].mxu0
        %v1311 = vadd.f32 %v1066, %v1310
        %v1312 = vpop.f32.mrb[0].mxu0
        %v1313 = vpop.f32.mrb[0].mxu0
        %v1314 = vadd.f32 %v1066, %v1313
        %v1315 = vpop.f32.mrb[0].mxu0
        %1316 = vmatprep.mubr.bf16.mxu0 %v932
        %1317 = vmatmul.mubr.bf16.gmra.mrb[0].mxu0 %v931
        %v1318 = vpop.f32.mrb[0].mxu0
        %v1319 = vadd.f32 %v1066, %v1318
        %v1320 = vpop.f32.mrb[0].mxu0
        %v1321 = vpop.f32.mrb[0].mxu0
        %v1322 = vadd.f32 %v1066, %v1321
        %v1323 = vpop.f32.mrb[0].mxu0
        %1324 = vmatprep.mubr.bf16.mxu0 %v934
        %1325 = vmatmul.mubr.bf16.gmra.mrb[0].mxu0 %v933
        %v1326 = vpop.f32.mrb[0].mxu0
        %v1327 = vadd.f32 %v1066, %v1326
        %v1328 = vpop.f32.mrb[0].mxu0
        %v1329 = vpop.f32.mrb[0].mxu0
        %v1330 = vadd.f32 %v1066, %v1329
        %v1331 = vpop.f32.mrb[0].mxu0
        %1332 = vmatprep.mubr.bf16.mxu0 %v936
        %1333 = vmatmul.mubr.bf16.gmra.mrb[0].mxu0 %v935
        %v1334 = vpop.f32.mrb[0].mxu0
        %v1335 = vadd.f32 %v1066, %v1334
        %v1336 = vpop.f32.mrb[0].mxu0
        %v1337 = vpop.f32.mrb[0].mxu0
        %v1338 = vadd.f32 %v1066, %v1337
        %v1339 = vpop.f32.mrb[0].mxu0
        %1340 = vmatprep.mubr.bf16.mxu0 %v938
        %1341 = vmatmul.mubr.bf16.gmra.mrb[0].mxu0 %v937
        %v1342 = vpop.f32.mrb[0].mxu0
        %v1343 = vadd.f32 %v1066, %v1342
        %v1344 = vpop.f32.mrb[0].mxu0
        %v1345 = vpop.f32.mrb[0].mxu0
        %v1346 = vadd.f32 %v1066, %v1345
        %v1347 = vpop.f32.mrb[0].mxu0
        %1348 = vmatprep.mubr.bf16.mxu0 %v940
        %1349 = vmatmul.mubr.bf16.gmra.mrb[0].mxu0 %v939
        %v1350 = vpop.f32.mrb[0].mxu0
        %v1351 = vadd.f32 %v1066, %v1350
        %v1352 = vpop.f32.mrb[0].mxu0
        %v1353 = vpop.f32.mrb[0].mxu0
        %v1354 = vadd.f32 %v1066, %v1353
        %v1355 = vpop.f32.mrb[0].mxu0
        %1356 = vmatprep.mubr.bf16.mxu0 %v942
        %1357 = vmatmul.mubr.bf16.gmra.mrb[0].mxu0 %v941
        %v1358 = vpop.f32.mrb[0].mxu0
        %v1359 = vadd.f32 %v1066, %v1358
        %v1360 = vpop.f32.mrb[0].mxu0
        %v1361 = vpop.f32.mrb[0].mxu0
        %v1362 = vadd.f32 %v1066, %v1361
        %v1363 = vpop.f32.mrb[0].mxu0
        %1364 = vmatprep.mubr.bf16.mxu0 %v944
        %1365 = vmatmul.mubr.bf16.gmra.mrb[0].mxu0 %v943
        %v1366 = vpop.f32.mrb[0].mxu0
        %v1367 = vadd.f32 %v1066, %v1366
        %v1368 = vpop.f32.mrb[0].mxu0
        %v1369 = vpop.f32.mrb[0].mxu0
        %v1370 = vadd.f32 %v1066, %v1369
        %v1371 = vpop.f32.mrb[0].mxu0
        %1372 = vmatprep.mubr.bf16.mxu0 %v946
        %1373 = vmatmul.mubr.bf16.gmra.mrb[0].mxu0 %v945
        %v1374 = vpop.f32.mrb[0].mxu0
        %v1375 = vadd.f32 %v1066, %v1374
        %v1376 = vpop.f32.mrb[0].mxu0
        %v1377 = vpop.f32.mrb[0].mxu0
        %v1378 = vadd.f32 %v1066, %v1377
        %v1379 = vpop.f32.mrb[0].mxu0
        %1380 = vmatprep.mubr.bf16.mxu0 %v948
        %1381 = vmatmul.mubr.bf16.gmra.mrb[0].mxu0 %v947
        %v1382 = vpop.f32.mrb[0].mxu0
        %v1383 = vadd.f32 %v1066, %v1382
        %v1384 = vpop.f32.mrb[0].mxu0
        %v1385 = vpop.f32.mrb[0].mxu0
        %v1386 = vadd.f32 %v1066, %v1385
        %v1387 = vpop.f32.mrb[0].mxu0
        %1388 = vmatprep.mubr.bf16.mxu0 %v950
        %1389 = vmatmul.mubr.bf16.gmra.mrb[0].mxu0 %v949
        %v1390 = vpop.f32.mrb[0].mxu0
        %v1391 = vadd.f32 %v1066, %v1390
        %v1392 = vpop.f32.mrb[0].mxu0
        %v1393 = vpop.f32.mrb[0].mxu0
        %v1394 = vadd.f32 %v1066, %v1393
        %v1395 = vpop.f32.mrb[0].mxu0
        %1396 = vmatprep.mubr.bf16.mxu0 %v952
        %1397 = vmatmul.mubr.bf16.gmra.mrb[0].mxu0 %v951
        %v1398 = vpop.f32.mrb[0].mxu0
        %v1399 = vadd.f32 %v1066, %v1398
        %v1400 = vpop.f32.mrb[0].mxu0
        %v1401 = vpop.f32.mrb[0].mxu0
        %v1402 = vadd.f32 %v1066, %v1401
        %v1403 = vpop.f32.mrb[0].mxu0
        %1404 = vmatprep.mubr.bf16.mxu0 %v954
        %1405 = vmatmul.mubr.bf16.gmra.mrb[0].mxu0 %v953
        %v1406 = vpop.f32.mrb[0].mxu0
        %v1407 = vadd.f32 %v1066, %v1406
        %v1408 = vpop.f32.mrb[0].mxu0
        %v1409 = vpop.f32.mrb[0].mxu0
        %v1410 = vadd.f32 %v1066, %v1409
        %v1411 = vpop.f32.mrb[0].mxu0
        %1412 = vmatprep.mubr.bf16.mxu0 %v956
        %1413 = vmatmul.mubr.bf16.gmra.mrb[0].mxu0 %v955
        %v1414 = vpop.f32.mrb[0].mxu0
        %v1415 = vadd.f32 %v1066, %v1414
        %v1416 = vpop.f32.mrb[0].mxu0
        %v1417 = vpop.f32.mrb[0].mxu0
        %v1418 = vadd.f32 %v1066, %v1417
        %v1419 = vpop.f32.mrb[0].mxu0
        %1420 = vmatprep.mubr.bf16.mxu0 %v958
        %1421 = vmatmul.mubr.bf16.gmra.mrb[0].mxu0 %v957
        %v1422 = vpop.f32.mrb[0].mxu0
        %v1423 = vadd.f32 %v1066, %v1422
        %v1424 = vpop.f32.mrb[0].mxu0
        %v1425 = vpop.f32.mrb[0].mxu0
        %v1426 = vadd.f32 %v1066, %v1425
        %v1427 = vpop.f32.mrb[0].mxu0
        %1428 = vmatprep.mubr.bf16.mxu0 %v960
        %1429 = vmatmul.mubr.bf16.gmra.mrb[0].mxu0 %v959
        %v1430 = vpop.f32.mrb[0].mxu0
        %v1431 = vadd.f32 %v1066, %v1430
        %v1432 = vpop.f32.mrb[0].mxu0
        %v1433 = vpop.f32.mrb[0].mxu0
        %v1434 = vadd.f32 %v1066, %v1433
        %v1435 = vpop.f32.mrb[0].mxu0
        %1436 = vmatprep.mubr.bf16.mxu0 %v962
        %1437 = vmatmul.mubr.bf16.gmra.mrb[0].mxu0 %v961
        %v1438 = vpop.f32.mrb[0].mxu0
        %v1439 = vadd.f32 %v1066, %v1438
        %v1440 = vpop.f32.mrb[0].mxu0
        %v1441 = vpop.f32.mrb[0].mxu0
        %v1442 = vadd.f32 %v1066, %v1441
        %v1443 = vpop.f32.mrb[0].mxu0
        %1444 = vmatprep.mubr.bf16.mxu0 %v964
        %1445 = vmatmul.mubr.bf16.gmra.mrb[0].mxu0 %v963
        %v1446 = vpop.f32.mrb[0].mxu0
        %v1447 = vadd.f32 %v1066, %v1446
        %v1448 = vpop.f32.mrb[0].mxu0
        %v1449 = vpop.f32.mrb[0].mxu0
        %v1450 = vadd.f32 %v1066, %v1449
        %v1451 = vpop.f32.mrb[0].mxu0
        %1452 = vmatprep.mubr.bf16.mxu0 %v966
        %1453 = vmatmul.mubr.bf16.gmra.mrb[0].mxu0 %v965
        %v1454 = vpop.f32.mrb[0].mxu0
        %v1455 = vadd.f32 %v1066, %v1454
        %v1456 = vpop.f32.mrb[0].mxu0
        %v1457 = vpop.f32.mrb[0].mxu0
        %v1458 = vadd.f32 %v1066, %v1457
        %v1459 = vpop.f32.mrb[0].mxu0
        %1460 = vmatprep.mubr.bf16.mxu0 %v968
        %1461 = vmatmul.mubr.bf16.gmra.mrb[0].mxu0 %v967
        %v1462 = vpop.f32.mrb[0].mxu0
        %v1463 = vadd.f32 %v1066, %v1462
        %v1464 = vpop.f32.mrb[0].mxu0
        %v1465 = vpop.f32.mrb[0].mxu0
        %v1466 = vadd.f32 %v1066, %v1465
        %v1467 = vpop.f32.mrb[0].mxu0
        %1468 = vmatprep.mubr.bf16.mxu0 %v970
        %1469 = vmatmul.mubr.bf16.gmra.mrb[0].mxu0 %v969
        %v1470 = vpop.f32.mrb[0].mxu0
        %v1471 = vadd.f32 %v1066, %v1470
        %v1472 = vpop.f32.mrb[0].mxu0
        %v1473 = vpop.f32.mrb[0].mxu0
        %v1474 = vadd.f32 %v1066, %v1473
        %v1475 = vpop.f32.mrb[0].mxu0
        %1476 = vmatprep.mubr.bf16.mxu0 %v972
        %1477 = vmatmul.mubr.bf16.gmra.mrb[0].mxu0 %v971
        %v1478 = vpop.f32.mrb[0].mxu0
        %v1479 = vadd.f32 %v1066, %v1478
        %v1480 = vpop.f32.mrb[0].mxu0
        %v1481 = vpop.f32.mrb[0].mxu0
        %v1482 = vadd.f32 %v1066, %v1481
        %v1483 = vpop.f32.mrb[0].mxu0
        %1484 = vmatprep.mubr.bf16.mxu0 %v974
        %1485 = vmatmul.mubr.bf16.gmra.mrb[0].mxu0 %v973
        %v1486 = vpop.f32.mrb[0].mxu0
        %v1487 = vadd.f32 %v1066, %v1486
        %v1488 = vpop.f32.mrb[0].mxu0
        %v1489 = vpop.f32.mrb[0].mxu0
        %v1490 = vadd.f32 %v1066, %v1489
        %v1491 = vpop.f32.mrb[0].mxu0
        %1492 = vmatprep.mubr.bf16.mxu0 %v976
        %1493 = vmatmul.mubr.bf16.gmra.mrb[0].mxu0 %v975
        %v1494 = vpop.f32.mrb[0].mxu0
        %v1495 = vadd.f32 %v1066, %v1494
        %v1496 = vpop.f32.mrb[0].mxu0
        %v1497 = vpop.f32.mrb[0].mxu0
        %v1498 = vadd.f32 %v1066, %v1497
        %v1499 = vpop.f32.mrb[0].mxu0
        %1500 = vmatprep.mubr.bf16.mxu0 %v978
        %1501 = vmatmul.mubr.bf16.gmra.mrb[0].mxu0 %v977
        %v1502 = vpop.f32.mrb[0].mxu0
        %v1503 = vadd.f32 %v1066, %v1502
        %v1504 = vpop.f32.mrb[0].mxu0
        %v1505 = vpop.f32.mrb[0].mxu0
        %v1506 = vadd.f32 %v1066, %v1505
        %v1507 = vpop.f32.mrb[0].mxu0
        %1508 = vmatprep.mubr.bf16.mxu0 %v980
        %1509 = vmatmul.mubr.bf16.gmra.mrb[0].mxu0 %v979
        %v1510 = vpop.f32.mrb[0].mxu0
        %v1511 = vadd.f32 %v1066, %v1510
        %v1512 = vpop.f32.mrb[0].mxu0
        %v1513 = vpop.f32.mrb[0].mxu0
        %v1514 = vadd.f32 %v1066, %v1513
        %v1515 = vpop.f32.mrb[0].mxu0
        %1516 = vmatprep.mubr.bf16.mxu0 %v982
        %1517 = vmatmul.mubr.bf16.gmra.mrb[0].mxu0 %v981
        %v1518 = vpop.f32.mrb[0].mxu0
        %v1519 = vadd.f32 %v1066, %v1518
        %v1520 = vpop.f32.mrb[0].mxu0
        %v1521 = vpop.f32.mrb[0].mxu0
        %v1522 = vadd.f32 %v1066, %v1521
        %v1523 = vpop.f32.mrb[0].mxu0
        %1524 = vmatprep.mubr.bf16.mxu0 %v984
        %1525 = vmatmul.mubr.bf16.gmra.mrb[0].mxu0 %v983
        %v1526 = vpop.f32.mrb[0].mxu0
        %v1527 = vadd.f32 %v1066, %v1526
        %v1528 = vpop.f32.mrb[0].mxu0
        %v1529 = vpop.f32.mrb[0].mxu0
        %v1530 = vadd.f32 %v1066, %v1529
        %v1531 = vpop.f32.mrb[0].mxu0
        %1532 = vmatprep.mubr.bf16.mxu0 %v986
        %1533 = vmatmul.mubr.bf16.gmra.mrb[0].mxu0 %v985
        %v1534 = vpop.f32.mrb[0].mxu0
        %v1535 = vadd.f32 %v1066, %v1534
        %v1536 = vpop.f32.mrb[0].mxu0
        %v1537 = vpop.f32.mrb[0].mxu0
        %v1538 = vadd.f32 %v1066, %v1537
        %v1539 = vpop.f32.mrb[0].mxu0
        %1540 = vmatprep.mubr.bf16.mxu0 %v988
        %1541 = vmatmul.mubr.bf16.gmra.mrb[0].mxu0 %v987
        %v1542 = vpop.f32.mrb[0].mxu0
        %v1543 = vadd.f32 %v1066, %v1542
        %v1544 = vpop.f32.mrb[0].mxu0
        %v1545 = vpop.f32.mrb[0].mxu0
        %v1546 = vadd.f32 %v1066, %v1545
        %v1547 = vpop.f32.mrb[0].mxu0
        %1548 = vmatprep.mubr.bf16.mxu0 %v990
        %1549 = vmatmul.mubr.bf16.gmra.mrb[0].mxu0 %v989
        %v1550 = vpop.f32.mrb[0].mxu0
        %v1551 = vadd.f32 %v1066, %v1550
        %v1552 = vpop.f32.mrb[0].mxu0
        %v1553 = vpop.f32.mrb[0].mxu0
        %v1554 = vadd.f32 %v1066, %v1553
        %v1555 = vpop.f32.mrb[0].mxu0
        %1556 = vmatprep.mubr.bf16.mxu0 %v992
        %1557 = vmatmul.mubr.bf16.gmra.mrb[0].mxu0 %v991
        %v1558 = vpop.f32.mrb[0].mxu0
        %v1559 = vadd.f32 %v1066, %v1558
        %v1560 = vpop.f32.mrb[0].mxu0
        %v1561 = vpop.f32.mrb[0].mxu0
        %v1562 = vadd.f32 %v1066, %v1561
        %v1563 = vpop.f32.mrb[0].mxu0
        %1564 = vmatprep.mubr.bf16.mxu0 %v994
        %1565 = vmatmul.mubr.bf16.gmra.mrb[0].mxu0 %v993
        %v1566 = vpop.f32.mrb[0].mxu0
        %v1567 = vadd.f32 %v1066, %v1566
        %v1568 = vpop.f32.mrb[0].mxu0
        %v1569 = vpop.f32.mrb[0].mxu0
        %v1570 = vadd.f32 %v1066, %v1569
        %v1571 = vpop.f32.mrb[0].mxu0
        %1572 = vmatprep.mubr.bf16.mxu0 %v996
        %1573 = vmatmul.mubr.bf16.gmra.mrb[0].mxu0 %v995
        %v1574 = vpop.f32.mrb[0].mxu0
        %v1575 = vadd.f32 %v1066, %v1574
        %v1576 = vpop.f32.mrb[0].mxu0
        %v1577 = vpop.f32.mrb[0].mxu0
        %v1578 = vadd.f32 %v1066, %v1577
        %v1579 = vpop.f32.mrb[0].mxu0
        %1580 = vmatprep.mubr.bf16.mxu0 %v998
        %1581 = vmatmul.mubr.bf16.gmra.mrb[0].mxu0 %v997
        %v1582 = vpop.f32.mrb[0].mxu0
        %v1583 = vadd.f32 %v1066, %v1582
        %v1584 = vpop.f32.mrb[0].mxu0
        %v1585 = vpop.f32.mrb[0].mxu0
        %v1586 = vadd.f32 %v1066, %v1585
        %v1587 = vpop.f32.mrb[0].mxu0
        %1588 = vmatprep.mubr.bf16.mxu0 %v1000
        %1589 = vmatmul.mubr.bf16.gmra.mrb[0].mxu0 %v999
        %v1590 = vpop.f32.mrb[0].mxu0
        %v1591 = vadd.f32 %v1066, %v1590
        %v1592 = vpop.f32.mrb[0].mxu0
        %v1593 = vpop.f32.mrb[0].mxu0
        %v1594 = vadd.f32 %v1066, %v1593
        %v1595 = vpop.f32.mrb[0].mxu0
        %1596 = vmatprep.mubr.bf16.mxu0 %v1002
        %1597 = vmatmul.mubr.bf16.gmra.mrb[0].mxu0 %v1001
        %v1598 = vpop.f32.mrb[0].mxu0
        %v1599 = vadd.f32 %v1066, %v1598
        %v1600 = vpop.f32.mrb[0].mxu0
        %v1601 = vpop.f32.mrb[0].mxu0
        %v1602 = vadd.f32 %v1066, %v1601
        %v1603 = vpop.f32.mrb[0].mxu0
        %1604 = vmatprep.mubr.bf16.mxu0 %v1004
        %1605 = vmatmul.mubr.bf16.gmra.mrb[0].mxu0 %v1003
        %v1606 = vpop.f32.mrb[0].mxu0
        %v1607 = vadd.f32 %v1066, %v1606
        %v1608 = vpop.f32.mrb[0].mxu0
        %v1609 = vpop.f32.mrb[0].mxu0
        %v1610 = vadd.f32 %v1066, %v1609
        %v1611 = vpop.f32.mrb[0].mxu0
        %1612 = vmatprep.mubr.bf16.mxu0 %v1006
        %1613 = vmatmul.mubr.bf16.gmra.mrb[0].mxu0 %v1005
        %v1614 = vpop.f32.mrb[0].mxu0
        %v1615 = vadd.f32 %v1066, %v1614
        %v1616 = vpop.f32.mrb[0].mxu0
        %v1617 = vpop.f32.mrb[0].mxu0
        %v1618 = vadd.f32 %v1066, %v1617
        %v1619 = vpop.f32.mrb[0].mxu0
        %1620 = vmatprep.mubr.bf16.mxu0 %v1008
        %1621 = vmatmul.mubr.bf16.gmra.mrb[0].mxu0 %v1007
        %v1622 = vpop.f32.mrb[0].mxu0
        %v1623 = vadd.f32 %v1066, %v1622
        %v1624 = vpop.f32.mrb[0].mxu0
        %v1625 = vpop.f32.mrb[0].mxu0
        %v1626 = vadd.f32 %v1066, %v1625
        %v1627 = vpop.f32.mrb[0].mxu0
        %1628 = vmatprep.mubr.bf16.mxu0 %v1010
        %1629 = vmatmul.mubr.bf16.gmra.mrb[0].mxu0 %v1009
        %v1630 = vpop.f32.mrb[0].mxu0
        %v1631 = vadd.f32 %v1066, %v1630
        %v1632 = vpop.f32.mrb[0].mxu0
        %v1633 = vpop.f32.mrb[0].mxu0
        %v1634 = vadd.f32 %v1066, %v1633
        %v1635 = vpop.f32.mrb[0].mxu0
        %1636 = vmatprep.mubr.bf16.mxu0 %v1012
        %1637 = vmatmul.mubr.bf16.gmra.mrb[0].mxu0 %v1011
        %v1638 = vpop.f32.mrb[0].mxu0
        %v1639 = vadd.f32 %v1066, %v1638
        %v1640 = vpop.f32.mrb[0].mxu0
        %v1641 = vpop.f32.mrb[0].mxu0
        %v1642 = vadd.f32 %v1066, %v1641
        %v1643 = vpop.f32.mrb[0].mxu0
        %1644 = vmatprep.mubr.bf16.mxu0 %v1014
        %1645 = vmatmul.mubr.bf16.gmra.mrb[0].mxu0 %v1013
        %v1646 = vpop.f32.mrb[0].mxu0
        %v1647 = vadd.f32 %v1066, %v1646
        %v1648 = vpop.f32.mrb[0].mxu0
        %v1649 = vpop.f32.mrb[0].mxu0
        %v1650 = vadd.f32 %v1066, %v1649
        %v1651 = vpop.f32.mrb[0].mxu0
        %1652 = vmatprep.mubr.bf16.mxu0 %v1016
        %1653 = vmatmul.mubr.bf16.gmra.mrb[0].mxu0 %v1015
        %v1654 = vpop.f32.mrb[0].mxu0
        %v1655 = vadd.f32 %v1066, %v1654
        %v1656 = vpop.f32.mrb[0].mxu0
        %v1657 = vpop.f32.mrb[0].mxu0
        %v1658 = vadd.f32 %v1066, %v1657
        %v1659 = vpop.f32.mrb[0].mxu0
        %1660 = vmatprep.mubr.bf16.mxu0 %v1018
        %1661 = vmatmul.mubr.bf16.gmra.mrb[0].mxu0 %v1017
        %v1662 = vpop.f32.mrb[0].mxu0
        %v1663 = vadd.f32 %v1066, %v1662
        %v1664 = vpop.f32.mrb[0].mxu0
        %v1665 = vpop.f32.mrb[0].mxu0
        %v1666 = vadd.f32 %v1066, %v1665
        %v1667 = vpop.f32.mrb[0].mxu0
        %1668 = vmatprep.mubr.bf16.mxu0 %v1020
        %1669 = vmatmul.mubr.bf16.gmra.mrb[0].mxu0 %v1019
        %v1670 = vpop.f32.mrb[0].mxu0
        %v1671 = vadd.f32 %v1066, %v1670
        %v1672 = vpop.f32.mrb[0].mxu0
        %v1673 = vpop.f32.mrb[0].mxu0
        %v1674 = vadd.f32 %v1066, %v1673
        %v1675 = vpop.f32.mrb[0].mxu0
        %1676 = vmatprep.mubr.bf16.mxu0 %v1022
        %1677 = vmatmul.mubr.bf16.gmra.mrb[0].mxu0 %v1021
        %v1678 = vpop.f32.mrb[0].mxu0
        %v1679 = vadd.f32 %v1066, %v1678
        %v1680 = vpop.f32.mrb[0].mxu0
        %v1681 = vpop.f32.mrb[0].mxu0
        %v1682 = vadd.f32 %v1066, %v1681
        %v1683 = vpop.f32.mrb[0].mxu0
        %1684 = vmatprep.mubr.bf16.mxu0 %v1024
        %1685 = vmatmul.mubr.bf16.gmra.mrb[0].mxu0 %v1023
        %v1686 = vpop.f32.mrb[0].mxu0
        %v1687 = vadd.f32 %v1066, %v1686
        %v1688 = vpop.f32.mrb[0].mxu0
        %v1689 = vpop.f32.mrb[0].mxu0
        %v1690 = vadd.f32 %v1066, %v1689
        %v1691 = vpop.f32.mrb[0].mxu0
        %1692 = vmatprep.mubr.bf16.mxu0 %v1026
        %1693 = vmatmul.mubr.bf16.gmra.mrb[0].mxu0 %v1025
        %v1694 = vpop.f32.mrb[0].mxu0
        %v1695 = vadd.f32 %v1066, %v1694
        %v1696 = vpop.f32.mrb[0].mxu0
        %v1697 = vpop.f32.mrb[0].mxu0
        %v1698 = vadd.f32 %v1066, %v1697
        %v1699 = vpop.f32.mrb[0].mxu0
        %1700 = vmatprep.mubr.bf16.mxu0 %v1028
        %1701 = vmatmul.mubr.bf16.gmra.mrb[0].mxu0 %v1027
        %v1702 = vpop.f32.mrb[0].mxu0
        %v1703 = vadd.f32 %v1066, %v1702
        %v1704 = vpop.f32.mrb[0].mxu0
        %v1705 = vpop.f32.mrb[0].mxu0
        %v1706 = vadd.f32 %v1066, %v1705
        %v1707 = vpop.f32.mrb[0].mxu0
        %1708 = vdwg.mxu0
        %v1709 = vmax.f32 %v1199, 0.0
        %v1710 = vmax.f32 %v1202, 0.0
        %v1711 = vmax.f32 %v1207, 0.0
        %v1712 = vmax.f32 %v1210, 0.0
        %v1713 = vmax.f32 %v1215, 0.0
        %v1714 = vmax.f32 %v1218, 0.0
        %v1715 = vmax.f32 %v1223, 0.0
        %v1716 = vmax.f32 %v1226, 0.0
        %v1717 = vmax.f32 %v1231, 0.0
        %v1718 = vmax.f32 %v1234, 0.0
        %v1719 = vmax.f32 %v1239, 0.0
        %v1720 = vmax.f32 %v1242, 0.0
        %v1721 = vmax.f32 %v1247, 0.0
        %v1722 = vmax.f32 %v1250, 0.0
        %v1723 = vmax.f32 %v1255, 0.0
        %v1724 = vmax.f32 %v1258, 0.0
        %v1725 = vmax.f32 %v1263, 0.0
        %v1726 = vmax.f32 %v1266, 0.0
        %v1727 = vmax.f32 %v1271, 0.0
        %v1728 = vmax.f32 %v1274, 0.0
        %v1729 = vmax.f32 %v1279, 0.0
        %v1730 = vmax.f32 %v1282, 0.0
        %v1731 = vmax.f32 %v1287, 0.0
        %v1732 = vmax.f32 %v1290, 0.0
        %v1733 = vmax.f32 %v1295, 0.0
        %v1734 = vmax.f32 %v1298, 0.0
        %v1735 = vmax.f32 %v1303, 0.0
        %v1736 = vmax.f32 %v1306, 0.0
        %v1737 = vmax.f32 %v1311, 0.0
        %v1738 = vmax.f32 %v1314, 0.0
        %v1739 = vmax.f32 %v1319, 0.0
        %v1740 = vmax.f32 %v1322, 0.0
        %v1741 = vmax.f32 %v1327, 0.0
        %v1742 = vmax.f32 %v1330, 0.0
        %v1743 = vmax.f32 %v1335, 0.0
        %v1744 = vmax.f32 %v1338, 0.0
        %v1745 = vmax.f32 %v1343, 0.0
        %v1746 = vmax.f32 %v1346, 0.0
        %v1747 = vmax.f32 %v1351, 0.0
        %v1748 = vmax.f32 %v1354, 0.0
        %v1749 = vmax.f32 %v1359, 0.0
        %v1750 = vmax.f32 %v1362, 0.0
        %v1751 = vmax.f32 %v1367, 0.0
        %v1752 = vmax.f32 %v1370, 0.0
        %v1753 = vmax.f32 %v1375, 0.0
        %v1754 = vmax.f32 %v1378, 0.0
        %v1755 = vmax.f32 %v1383, 0.0
        %v1756 = vmax.f32 %v1386, 0.0
        %v1757 = vmax.f32 %v1391, 0.0
        %v1758 = vmax.f32 %v1394, 0.0
        %v1759 = vmax.f32 %v1399, 0.0
        %v1760 = vmax.f32 %v1402, 0.0
        %v1761 = vmax.f32 %v1407, 0.0
        %v1762 = vmax.f32 %v1410, 0.0
        %v1763 = vmax.f32 %v1415, 0.0
        %v1764 = vmax.f32 %v1418, 0.0
        %v1765 = vmax.f32 %v1423, 0.0
        %v1766 = vmax.f32 %v1426, 0.0
        %v1767 = vmax.f32 %v1431, 0.0
        %v1768 = vmax.f32 %v1434, 0.0
        %v1769 = vmax.f32 %v1439, 0.0
        %v1770 = vmax.f32 %v1442, 0.0
        %v1771 = vmax.f32 %v1447, 0.0
        %v1772 = vmax.f32 %v1450, 0.0
        %v1773 = vmax.f32 %v1455, 0.0
        %v1774 = vmax.f32 %v1458, 0.0
        %v1775 = vmax.f32 %v1463, 0.0
        %v1776 = vmax.f32 %v1466, 0.0
        %v1777 = vmax.f32 %v1471, 0.0
        %v1778 = vmax.f32 %v1474, 0.0
        %v1779 = vmax.f32 %v1479, 0.0
        %v1780 = vmax.f32 %v1482, 0.0
        %v1781 = vmax.f32 %v1487, 0.0
        %v1782 = vmax.f32 %v1490, 0.0
        %v1783 = vmax.f32 %v1495, 0.0
        %v1784 = vmax.f32 %v1498, 0.0
        %v1785 = vmax.f32 %v1503, 0.0
        %v1786 = vmax.f32 %v1506, 0.0
        %v1787 = vmax.f32 %v1511, 0.0
        %v1788 = vmax.f32 %v1514, 0.0
        %v1789 = vmax.f32 %v1519, 0.0
        %v1790 = vmax.f32 %v1522, 0.0
        %v1791 = vmax.f32 %v1527, 0.0
        %v1792 = vmax.f32 %v1530, 0.0
        %v1793 = vmax.f32 %v1535, 0.0
        %v1794 = vmax.f32 %v1538, 0.0
        %v1795 = vmax.f32 %v1543, 0.0
        %v1796 = vmax.f32 %v1546, 0.0
        %v1797 = vmax.f32 %v1551, 0.0
        %v1798 = vmax.f32 %v1554, 0.0
        %v1799 = vmax.f32 %v1559, 0.0
        %v1800 = vmax.f32 %v1562, 0.0
        %v1801 = vmax.f32 %v1567, 0.0
        %v1802 = vmax.f32 %v1570, 0.0
        %v1803 = vmax.f32 %v1575, 0.0
        %v1804 = vmax.f32 %v1578, 0.0
        %v1805 = vmax.f32 %v1583, 0.0
        %v1806 = vmax.f32 %v1586, 0.0
        %v1807 = vmax.f32 %v1591, 0.0
        %v1808 = vmax.f32 %v1594, 0.0
        %v1809 = vmax.f32 %v1599, 0.0
        %v1810 = vmax.f32 %v1602, 0.0
        %v1811 = vmax.f32 %v1607, 0.0
        %v1812 = vmax.f32 %v1610, 0.0
        %v1813 = vmax.f32 %v1615, 0.0
        %v1814 = vmax.f32 %v1618, 0.0
        %v1815 = vmax.f32 %v1623, 0.0
        %v1816 = vmax.f32 %v1626, 0.0
        %v1817 = vmax.f32 %v1631, 0.0
        %v1818 = vmax.f32 %v1634, 0.0
        %v1819 = vmax.f32 %v1639, 0.0
        %v1820 = vmax.f32 %v1642, 0.0
        %v1821 = vmax.f32 %v1647, 0.0
        %v1822 = vmax.f32 %v1650, 0.0
        %v1823 = vmax.f32 %v1655, 0.0
        %v1824 = vmax.f32 %v1658, 0.0
        %v1825 = vmax.f32 %v1663, 0.0
        %v1826 = vmax.f32 %v1666, 0.0
        %v1827 = vmax.f32 %v1671, 0.0
        %v1828 = vmax.f32 %v1674, 0.0
        %v1829 = vmax.f32 %v1679, 0.0
        %v1830 = vmax.f32 %v1682, 0.0
        %v1831 = vmax.f32 %v1687, 0.0
        %v1832 = vmax.f32 %v1690, 0.0
        %v1833 = vmax.f32 %v1695, 0.0
        %v1834 = vmax.f32 %v1698, 0.0
        %v1835 = vmax.f32 %v1703, 0.0
        %v1836 = vmax.f32 %v1706, 0.0
        %v1837 = vpack.c.bf16 %v1710, %v1709
        %v1838 = vpack.c.bf16 %v1712, %v1711
        %v1839 = vpack.c.bf16 %v1714, %v1713
        %v1840 = vpack.c.bf16 %v1716, %v1715
        %v1841 = vpack.c.bf16 %v1718, %v1717
        %v1842 = vpack.c.bf16 %v1720, %v1719
        %v1843 = vpack.c.bf16 %v1722, %v1721
        %v1844 = vpack.c.bf16 %v1724, %v1723
        %v1845 = vpack.c.bf16 %v1726, %v1725
        %v1846 = vpack.c.bf16 %v1728, %v1727
        %v1847 = vpack.c.bf16 %v1730, %v1729
        %v1848 = vpack.c.bf16 %v1732, %v1731
        %v1849 = vpack.c.bf16 %v1734, %v1733
        %v1850 = vpack.c.bf16 %v1736, %v1735
        %v1851 = vpack.c.bf16 %v1738, %v1737
        %v1852 = vpack.c.bf16 %v1740, %v1739
        %v1853 = vpack.c.bf16 %v1742, %v1741
        %v1854 = vpack.c.bf16 %v1744, %v1743
        %v1855 = vpack.c.bf16 %v1746, %v1745
        %v1856 = vpack.c.bf16 %v1748, %v1747
        %v1857 = vpack.c.bf16 %v1750, %v1749
        %v1858 = vpack.c.bf16 %v1752, %v1751
        %v1859 = vpack.c.bf16 %v1754, %v1753
        %v1860 = vpack.c.bf16 %v1756, %v1755
        %v1861 = vpack.c.bf16 %v1758, %v1757
        %v1862 = vpack.c.bf16 %v1760, %v1759
        %v1863 = vpack.c.bf16 %v1762, %v1761
        %v1864 = vpack.c.bf16 %v1764, %v1763
        %v1865 = vpack.c.bf16 %v1766, %v1765
        %v1866 = vpack.c.bf16 %v1768, %v1767
        %v1867 = vpack.c.bf16 %v1770, %v1769
        %v1868 = vpack.c.bf16 %v1772, %v1771
        %v1869 = vpack.c.bf16 %v1774, %v1773
        %v1870 = vpack.c.bf16 %v1776, %v1775
        %v1871 = vpack.c.bf16 %v1778, %v1777
        %v1872 = vpack.c.bf16 %v1780, %v1779
        %v1873 = vpack.c.bf16 %v1782, %v1781
        %v1874 = vpack.c.bf16 %v1784, %v1783
        %v1875 = vpack.c.bf16 %v1786, %v1785
        %v1876 = vpack.c.bf16 %v1788, %v1787
        %v1877 = vpack.c.bf16 %v1790, %v1789
        %v1878 = vpack.c.bf16 %v1792, %v1791
        %v1879 = vpack.c.bf16 %v1794, %v1793
        %v1880 = vpack.c.bf16 %v1796, %v1795
        %v1881 = vpack.c.bf16 %v1798, %v1797
        %v1882 = vpack.c.bf16 %v1800, %v1799
        %v1883 = vpack.c.bf16 %v1802, %v1801
        %v1884 = vpack.c.bf16 %v1804, %v1803
        %v1885 = vpack.c.bf16 %v1806, %v1805
        %v1886 = vpack.c.bf16 %v1808, %v1807
        %v1887 = vpack.c.bf16 %v1810, %v1809
        %v1888 = vpack.c.bf16 %v1812, %v1811
        %v1889 = vpack.c.bf16 %v1814, %v1813
        %v1890 = vpack.c.bf16 %v1816, %v1815
        %v1891 = vpack.c.bf16 %v1818, %v1817
        %v1892 = vpack.c.bf16 %v1820, %v1819
        %v1893 = vpack.c.bf16 %v1822, %v1821
        %v1894 = vpack.c.bf16 %v1824, %v1823
        %v1895 = vpack.c.bf16 %v1826, %v1825
        %v1896 = vpack.c.bf16 %v1828, %v1827
        %v1897 = vpack.c.bf16 %v1830, %v1829
        %v1898 = vpack.c.bf16 %v1832, %v1831
        %v1899 = vpack.c.bf16 %v1834, %v1833
        %v1900 = vpack.c.bf16 %v1836, %v1835
        %v1901 = vld [vmem:[%s4] sm:$0xf]
        %v1902 = vld [vmem:[%s4 + $0x4] sm:$0xf]
        %v1903 = vld [vmem:[%s4 + $0x8] sm:$0xf]
        %v1904 = vld [vmem:[%s4 + $0xc] sm:$0xf]
        %v1905 = vld [vmem:[%s4 + $0x10] sm:$0xf]
        %v1906 = vld [vmem:[%s4 + $0x14] sm:$0xf]
        %v1907 = vld [vmem:[%s4 + $0x18] sm:$0xf]
        %v1908 = vld [vmem:[%s4 + $0x1c] sm:$0xf]
        %v1909 = vld [vmem:[%s4 + $0x20] sm:$0xf]
        %v1910 = vld [vmem:[%s4 + $0x24] sm:$0xf]
        %v1911 = vld [vmem:[%s4 + $0x28] sm:$0xf]
        %v1912 = vld [vmem:[%s4 + $0x2c] sm:$0xf]
        %v1913 = vld [vmem:[%s4 + $0x30] sm:$0xf]
        %v1914 = vld [vmem:[%s4 + $0x34] sm:$0xf]
        %v1915 = vld [vmem:[%s4 + $0x38] sm:$0xf]
        %v1916 = vld [vmem:[%s4 + $0x3c] sm:$0xf]
        %v1917 = vld [vmem:[#allocation8] sm:$0x1]
        %v1919 = vlaneseq
        %v1920 = vshrl.u32 %v1919, 7
        %v1921 = vsub.s32 0, %v1920
        %v1922 = vrot.slane %v1917, %v1921
        %v1940 = vunpack.c.l.b16 %v1901
        %v1941 = vunpack.c.l.b16 %v1902
        %v1942 = vunpack.c.l.b16 %v1903
        %v1943 = vunpack.c.l.b16 %v1904
        %v1944 = vunpack.c.l.b16 %v1905
        %v1945 = vunpack.c.l.b16 %v1906
        %v1946 = vunpack.c.l.b16 %v1907
        %v1947 = vunpack.c.l.b16 %v1908
        %v1948 = vunpack.c.l.b16 %v1909
        %v1949 = vunpack.c.l.b16 %v1910
        %v1950 = vunpack.c.l.b16 %v1911
        %v1951 = vunpack.c.l.b16 %v1912
        %v1952 = vunpack.c.l.b16 %v1913
        %v1953 = vunpack.c.l.b16 %v1914
        %v1954 = vunpack.c.l.b16 %v1915
        %v1955 = vunpack.c.l.b16 %v1916
        %v1956 = vpack.c.b16 %v1941, %v1940
        %v1957 = vpack.c.b16 %v1943, %v1942
        %v1958 = vpack.c.b16 %v1945, %v1944
        %v1959 = vpack.c.b16 %v1947, %v1946
        %v1960 = vpack.c.b16 %v1949, %v1948
        %v1961 = vpack.c.b16 %v1951, %v1950
        %v1962 = vpack.c.b16 %v1953, %v1952
        %v1963 = vpack.c.b16 %v1955, %v1954
        %1972 = vmatprep.subr.bf16.mxu0 0
        %1973 = vmatpush1.bf16.msra.mxu0 %v1956
        %1974 = vmatprep.subr.bf16.mxu0 0
        %1975 = vmatpush1.bf16.msra.mxu0 %v1957
        %1976 = vmatprep.subr.bf16.mxu0 0
        %1977 = vmatpush1.bf16.msra.mxu0 %v1958
        %1978 = vmatprep.subr.bf16.mxu0 0
        %1979 = vmatpush1.bf16.msra.mxu0 %v1959
        %1980 = vmatprep.subr.bf16.mxu0 0
        %1981 = vmatpush1.bf16.msra.mxu0 %v1960
        %1982 = vmatprep.subr.bf16.mxu0 0
        %1983 = vmatpush1.bf16.msra.mxu0 %v1961
        %1984 = vmatprep.subr.bf16.mxu0 0
        %1985 = vmatpush1.bf16.msra.mxu0 %v1962
        %1986 = vmatprep.subr.bf16.mxu0 0
        %1987 = vmatpush1.bf16.msra.mxu0 %v1963
        %1988 = vmatprep.subr.bf16.mxu0 0
        %1989 = vmatpush1.bf16.msra.mxu0 0
        %1990 = vmatprep.subr.bf16.mxu0 0
        %1991 = vmatpush1.bf16.msra.mxu0 0
        %1992 = vmatprep.subr.bf16.mxu0 0
        %1993 = vmatpush1.bf16.msra.mxu0 0
        %1994 = vmatprep.subr.bf16.mxu0 0
        %1995 = vmatpush1.bf16.msra.mxu0 0
        %1996 = vmatprep.subr.bf16.mxu0 0
        %1997 = vmatpush1.bf16.msra.mxu0 0
        %1998 = vmatprep.subr.bf16.mxu0 0
        %1999 = vmatpush1.bf16.msra.mxu0 0
        %2000 = vmatprep.subr.bf16.mxu0 0
        %2001 = vmatpush1.bf16.msra.mxu0 0
        %2002 = vmatprep.subr.bf16.mxu0 0
        %2003 = vmatpush1.bf16.msra.mxu0 0
        %2004 = vmatprep.mubr.bf16.mxu0 0
        %2005 = vmatmul.mubr.bf16.gmra.mrb[0].mxu0 %v1837
        %v2006 = vpop.f32.mrb[0].mxu0
        %v2007 = vadd.f32 %v1922, %v2006
        %v2008 = vpop.f32.mrb[0].mxu0
        %v2009 = vpop.f32.mrb[0].mxu0
        %v2010 = vadd.f32 %v1922, %v2009
        %v2011 = vpop.f32.mrb[0].mxu0
        %2012 = vmatprep.mubr.bf16.mxu0 0
        %2013 = vmatmul.mubr.bf16.gmra.mrb[0].mxu0 %v1838
        %v2014 = vpop.f32.mrb[0].mxu0
        %v2015 = vadd.f32 %v1922, %v2014
        %v2016 = vpop.f32.mrb[0].mxu0
        %v2017 = vpop.f32.mrb[0].mxu0
        %v2018 = vadd.f32 %v1922, %v2017
        %v2019 = vpop.f32.mrb[0].mxu0
        %2020 = vmatprep.mubr.bf16.mxu0 0
        %2021 = vmatmul.mubr.bf16.gmra.mrb[0].mxu0 %v1839
        %v2022 = vpop.f32.mrb[0].mxu0
        %v2023 = vadd.f32 %v1922, %v2022
        %v2024 = vpop.f32.mrb[0].mxu0
        %v2025 = vpop.f32.mrb[0].mxu0
        %v2026 = vadd.f32 %v1922, %v2025
        %v2027 = vpop.f32.mrb[0].mxu0
        %2028 = vmatprep.mubr.bf16.mxu0 0
        %2029 = vmatmul.mubr.bf16.gmra.mrb[0].mxu0 %v1840
        %v2030 = vpop.f32.mrb[0].mxu0
        %v2031 = vadd.f32 %v1922, %v2030
        %v2032 = vpop.f32.mrb[0].mxu0
        %v2033 = vpop.f32.mrb[0].mxu0
        %v2034 = vadd.f32 %v1922, %v2033
        %v2035 = vpop.f32.mrb[0].mxu0
        %2036 = vmatprep.mubr.bf16.mxu0 0
        %2037 = vmatmul.mubr.bf16.gmra.mrb[0].mxu0 %v1841
        %v2038 = vpop.f32.mrb[0].mxu0
        %v2039 = vadd.f32 %v1922, %v2038
        %v2040 = vpop.f32.mrb[0].mxu0
        %v2041 = vpop.f32.mrb[0].mxu0
        %v2042 = vadd.f32 %v1922, %v2041
        %v2043 = vpop.f32.mrb[0].mxu0
        %2044 = vmatprep.mubr.bf16.mxu0 0
        %2045 = vmatmul.mubr.bf16.gmra.mrb[0].mxu0 %v1842
        %v2046 = vpop.f32.mrb[0].mxu0
        %v2047 = vadd.f32 %v1922, %v2046
        %v2048 = vpop.f32.mrb[0].mxu0
        %v2049 = vpop.f32.mrb[0].mxu0
        %v2050 = vadd.f32 %v1922, %v2049
        %v2051 = vpop.f32.mrb[0].mxu0
        %2052 = vmatprep.mubr.bf16.mxu0 0
        %2053 = vmatmul.mubr.bf16.gmra.mrb[0].mxu0 %v1843
        %v2054 = vpop.f32.mrb[0].mxu0
        %v2055 = vadd.f32 %v1922, %v2054
        %v2056 = vpop.f32.mrb[0].mxu0
        %v2057 = vpop.f32.mrb[0].mxu0
        %v2058 = vadd.f32 %v1922, %v2057
        %v2059 = vpop.f32.mrb[0].mxu0
        %2060 = vmatprep.mubr.bf16.mxu0 0
        %2061 = vmatmul.mubr.bf16.gmra.mrb[0].mxu0 %v1844
        %v2062 = vpop.f32.mrb[0].mxu0
        %v2063 = vadd.f32 %v1922, %v2062
        %v2064 = vpop.f32.mrb[0].mxu0
        %v2065 = vpop.f32.mrb[0].mxu0
        %v2066 = vadd.f32 %v1922, %v2065
        %v2067 = vpop.f32.mrb[0].mxu0
        %2068 = vmatprep.mubr.bf16.mxu0 0
        %2069 = vmatmul.mubr.bf16.gmra.mrb[0].mxu0 %v1845
        %v2070 = vpop.f32.mrb[0].mxu0
        %v2071 = vadd.f32 %v1922, %v2070
        %v2072 = vpop.f32.mrb[0].mxu0
        %v2073 = vpop.f32.mrb[0].mxu0
        %v2074 = vadd.f32 %v1922, %v2073
        %v2075 = vpop.f32.mrb[0].mxu0
        %2076 = vmatprep.mubr.bf16.mxu0 0
        %2077 = vmatmul.mubr.bf16.gmra.mrb[0].mxu0 %v1846
        %v2078 = vpop.f32.mrb[0].mxu0
        %v2079 = vadd.f32 %v1922, %v2078
        %v2080 = vpop.f32.mrb[0].mxu0
        %v2081 = vpop.f32.mrb[0].mxu0
        %v2082 = vadd.f32 %v1922, %v2081
        %v2083 = vpop.f32.mrb[0].mxu0
        %2084 = vmatprep.mubr.bf16.mxu0 0
        %2085 = vmatmul.mubr.bf16.gmra.mrb[0].mxu0 %v1847
        %v2086 = vpop.f32.mrb[0].mxu0
        %v2087 = vadd.f32 %v1922, %v2086
        %v2088 = vpop.f32.mrb[0].mxu0
        %v2089 = vpop.f32.mrb[0].mxu0
        %v2090 = vadd.f32 %v1922, %v2089
        %v2091 = vpop.f32.mrb[0].mxu0
        %2092 = vmatprep.mubr.bf16.mxu0 0
        %2093 = vmatmul.mubr.bf16.gmra.mrb[0].mxu0 %v1848
        %v2094 = vpop.f32.mrb[0].mxu0
        %v2095 = vadd.f32 %v1922, %v2094
        %v2096 = vpop.f32.mrb[0].mxu0
        %v2097 = vpop.f32.mrb[0].mxu0
        %v2098 = vadd.f32 %v1922, %v2097
        %v2099 = vpop.f32.mrb[0].mxu0
        %2100 = vmatprep.mubr.bf16.mxu0 0
        %2101 = vmatmul.mubr.bf16.gmra.mrb[0].mxu0 %v1849
        %v2102 = vpop.f32.mrb[0].mxu0
        %v2103 = vadd.f32 %v1922, %v2102
        %v2104 = vpop.f32.mrb[0].mxu0
        %v2105 = vpop.f32.mrb[0].mxu0
        %v2106 = vadd.f32 %v1922, %v2105
        %v2107 = vpop.f32.mrb[0].mxu0
        %2108 = vmatprep.mubr.bf16.mxu0 0
        %2109 = vmatmul.mubr.bf16.gmra.mrb[0].mxu0 %v1850
        %v2110 = vpop.f32.mrb[0].mxu0
        %v2111 = vadd.f32 %v1922, %v2110
        %v2112 = vpop.f32.mrb[0].mxu0
        %v2113 = vpop.f32.mrb[0].mxu0
        %v2114 = vadd.f32 %v1922, %v2113
        %v2115 = vpop.f32.mrb[0].mxu0
        %2116 = vmatprep.mubr.bf16.mxu0 0
        %2117 = vmatmul.mubr.bf16.gmra.mrb[0].mxu0 %v1851
        %v2118 = vpop.f32.mrb[0].mxu0
        %v2119 = vadd.f32 %v1922, %v2118
        %v2120 = vpop.f32.mrb[0].mxu0
        %v2121 = vpop.f32.mrb[0].mxu0
        %v2122 = vadd.f32 %v1922, %v2121
        %v2123 = vpop.f32.mrb[0].mxu0
        %2124 = vmatprep.mubr.bf16.mxu0 0
        %2125 = vmatmul.mubr.bf16.gmra.mrb[0].mxu0 %v1852
        %v2126 = vpop.f32.mrb[0].mxu0
        %v2127 = vadd.f32 %v1922, %v2126
        %v2128 = vpop.f32.mrb[0].mxu0
        %v2129 = vpop.f32.mrb[0].mxu0
        %v2130 = vadd.f32 %v1922, %v2129
        %v2131 = vpop.f32.mrb[0].mxu0
        %2132 = vmatprep.mubr.bf16.mxu0 0
        %2133 = vmatmul.mubr.bf16.gmra.mrb[0].mxu0 %v1853
        %v2134 = vpop.f32.mrb[0].mxu0
        %v2135 = vadd.f32 %v1922, %v2134
        %v2136 = vpop.f32.mrb[0].mxu0
        %v2137 = vpop.f32.mrb[0].mxu0
        %v2138 = vadd.f32 %v1922, %v2137
        %v2139 = vpop.f32.mrb[0].mxu0
        %2140 = vmatprep.mubr.bf16.mxu0 0
        %2141 = vmatmul.mubr.bf16.gmra.mrb[0].mxu0 %v1854
        %v2142 = vpop.f32.mrb[0].mxu0
        %v2143 = vadd.f32 %v1922, %v2142
        %v2144 = vpop.f32.mrb[0].mxu0
        %v2145 = vpop.f32.mrb[0].mxu0
        %v2146 = vadd.f32 %v1922, %v2145
        %v2147 = vpop.f32.mrb[0].mxu0
        %2148 = vmatprep.mubr.bf16.mxu0 0
        %2149 = vmatmul.mubr.bf16.gmra.mrb[0].mxu0 %v1855
        %v2150 = vpop.f32.mrb[0].mxu0
        %v2151 = vadd.f32 %v1922, %v2150
        %v2152 = vpop.f32.mrb[0].mxu0
        %v2153 = vpop.f32.mrb[0].mxu0
        %v2154 = vadd.f32 %v1922, %v2153
        %v2155 = vpop.f32.mrb[0].mxu0
        %2156 = vmatprep.mubr.bf16.mxu0 0
        %2157 = vmatmul.mubr.bf16.gmra.mrb[0].mxu0 %v1856
        %v2158 = vpop.f32.mrb[0].mxu0
        %v2159 = vadd.f32 %v1922, %v2158
        %v2160 = vpop.f32.mrb[0].mxu0
        %v2161 = vpop.f32.mrb[0].mxu0
        %v2162 = vadd.f32 %v1922, %v2161
        %v2163 = vpop.f32.mrb[0].mxu0
        %2164 = vmatprep.mubr.bf16.mxu0 0
        %2165 = vmatmul.mubr.bf16.gmra.mrb[0].mxu0 %v1857
        %v2166 = vpop.f32.mrb[0].mxu0
        %v2167 = vadd.f32 %v1922, %v2166
        %v2168 = vpop.f32.mrb[0].mxu0
        %v2169 = vpop.f32.mrb[0].mxu0
        %v2170 = vadd.f32 %v1922, %v2169
        %v2171 = vpop.f32.mrb[0].mxu0
        %2172 = vmatprep.mubr.bf16.mxu0 0
        %2173 = vmatmul.mubr.bf16.gmra.mrb[0].mxu0 %v1858
        %v2174 = vpop.f32.mrb[0].mxu0
        %v2175 = vadd.f32 %v1922, %v2174
        %v2176 = vpop.f32.mrb[0].mxu0
        %v2177 = vpop.f32.mrb[0].mxu0
        %v2178 = vadd.f32 %v1922, %v2177
        %v2179 = vpop.f32.mrb[0].mxu0
        %2180 = vmatprep.mubr.bf16.mxu0 0
        %2181 = vmatmul.mubr.bf16.gmra.mrb[0].mxu0 %v1859
        %v2182 = vpop.f32.mrb[0].mxu0
        %v2183 = vadd.f32 %v1922, %v2182
        %v2184 = vpop.f32.mrb[0].mxu0
        %v2185 = vpop.f32.mrb[0].mxu0
        %v2186 = vadd.f32 %v1922, %v2185
        %v2187 = vpop.f32.mrb[0].mxu0
        %2188 = vmatprep.mubr.bf16.mxu0 0
        %2189 = vmatmul.mubr.bf16.gmra.mrb[0].mxu0 %v1860
        %v2190 = vpop.f32.mrb[0].mxu0
        %v2191 = vadd.f32 %v1922, %v2190
        %v2192 = vpop.f32.mrb[0].mxu0
        %v2193 = vpop.f32.mrb[0].mxu0
        %v2194 = vadd.f32 %v1922, %v2193
        %v2195 = vpop.f32.mrb[0].mxu0
        %2196 = vmatprep.mubr.bf16.mxu0 0
        %2197 = vmatmul.mubr.bf16.gmra.mrb[0].mxu0 %v1861
        %v2198 = vpop.f32.mrb[0].mxu0
        %v2199 = vadd.f32 %v1922, %v2198
        %v2200 = vpop.f32.mrb[0].mxu0
        %v2201 = vpop.f32.mrb[0].mxu0
        %v2202 = vadd.f32 %v1922, %v2201
        %v2203 = vpop.f32.mrb[0].mxu0
        %2204 = vmatprep.mubr.bf16.mxu0 0
        %2205 = vmatmul.mubr.bf16.gmra.mrb[0].mxu0 %v1862
        %v2206 = vpop.f32.mrb[0].mxu0
        %v2207 = vadd.f32 %v1922, %v2206
        %v2208 = vpop.f32.mrb[0].mxu0
        %v2209 = vpop.f32.mrb[0].mxu0
        %v2210 = vadd.f32 %v1922, %v2209
        %v2211 = vpop.f32.mrb[0].mxu0
        %2212 = vmatprep.mubr.bf16.mxu0 0
        %2213 = vmatmul.mubr.bf16.gmra.mrb[0].mxu0 %v1863
        %v2214 = vpop.f32.mrb[0].mxu0
        %v2215 = vadd.f32 %v1922, %v2214
        %v2216 = vpop.f32.mrb[0].mxu0
        %v2217 = vpop.f32.mrb[0].mxu0
        %v2218 = vadd.f32 %v1922, %v2217
        %v2219 = vpop.f32.mrb[0].mxu0
        %2220 = vmatprep.mubr.bf16.mxu0 0
        %2221 = vmatmul.mubr.bf16.gmra.mrb[0].mxu0 %v1864
        %v2222 = vpop.f32.mrb[0].mxu0
        %v2223 = vadd.f32 %v1922, %v2222
        %v2224 = vpop.f32.mrb[0].mxu0
        %v2225 = vpop.f32.mrb[0].mxu0
        %v2226 = vadd.f32 %v1922, %v2225
        %v2227 = vpop.f32.mrb[0].mxu0
        %2228 = vmatprep.mubr.bf16.mxu0 0
        %2229 = vmatmul.mubr.bf16.gmra.mrb[0].mxu0 %v1865
        %v2230 = vpop.f32.mrb[0].mxu0
        %v2231 = vadd.f32 %v1922, %v2230
        %v2232 = vpop.f32.mrb[0].mxu0
        %v2233 = vpop.f32.mrb[0].mxu0
        %v2234 = vadd.f32 %v1922, %v2233
        %v2235 = vpop.f32.mrb[0].mxu0
        %2236 = vmatprep.mubr.bf16.mxu0 0
        %2237 = vmatmul.mubr.bf16.gmra.mrb[0].mxu0 %v1866
        %v2238 = vpop.f32.mrb[0].mxu0
        %v2239 = vadd.f32 %v1922, %v2238
        %v2240 = vpop.f32.mrb[0].mxu0
        %v2241 = vpop.f32.mrb[0].mxu0
        %v2242 = vadd.f32 %v1922, %v2241
        %v2243 = vpop.f32.mrb[0].mxu0
        %2244 = vmatprep.mubr.bf16.mxu0 0
        %2245 = vmatmul.mubr.bf16.gmra.mrb[0].mxu0 %v1867
        %v2246 = vpop.f32.mrb[0].mxu0
        %v2247 = vadd.f32 %v1922, %v2246
        %v2248 = vpop.f32.mrb[0].mxu0
        %v2249 = vpop.f32.mrb[0].mxu0
        %v2250 = vadd.f32 %v1922, %v2249
        %v2251 = vpop.f32.mrb[0].mxu0
        %2252 = vmatprep.mubr.bf16.mxu0 0
        %2253 = vmatmul.mubr.bf16.gmra.mrb[0].mxu0 %v1868
        %v2254 = vpop.f32.mrb[0].mxu0
        %v2255 = vadd.f32 %v1922, %v2254
        %v2256 = vpop.f32.mrb[0].mxu0
        %v2257 = vpop.f32.mrb[0].mxu0
        %v2258 = vadd.f32 %v1922, %v2257
        %v2259 = vpop.f32.mrb[0].mxu0
        %2260 = vmatprep.mubr.bf16.mxu0 0
        %2261 = vmatmul.mubr.bf16.gmra.mrb[0].mxu0 %v1869
        %v2262 = vpop.f32.mrb[0].mxu0
        %v2263 = vadd.f32 %v1922, %v2262
        %v2264 = vpop.f32.mrb[0].mxu0
        %v2265 = vpop.f32.mrb[0].mxu0
        %v2266 = vadd.f32 %v1922, %v2265
        %v2267 = vpop.f32.mrb[0].mxu0
        %2268 = vmatprep.mubr.bf16.mxu0 0
        %2269 = vmatmul.mubr.bf16.gmra.mrb[0].mxu0 %v1870
        %v2270 = vpop.f32.mrb[0].mxu0
        %v2271 = vadd.f32 %v1922, %v2270
        %v2272 = vpop.f32.mrb[0].mxu0
        %v2273 = vpop.f32.mrb[0].mxu0
        %v2274 = vadd.f32 %v1922, %v2273
        %v2275 = vpop.f32.mrb[0].mxu0
        %2276 = vmatprep.mubr.bf16.mxu0 0
        %2277 = vmatmul.mubr.bf16.gmra.mrb[0].mxu0 %v1871
        %v2278 = vpop.f32.mrb[0].mxu0
        %v2279 = vadd.f32 %v1922, %v2278
        %v2280 = vpop.f32.mrb[0].mxu0
        %v2281 = vpop.f32.mrb[0].mxu0
        %v2282 = vadd.f32 %v1922, %v2281
        %v2283 = vpop.f32.mrb[0].mxu0
        %2284 = vmatprep.mubr.bf16.mxu0 0
        %2285 = vmatmul.mubr.bf16.gmra.mrb[0].mxu0 %v1872
        %v2286 = vpop.f32.mrb[0].mxu0
        %v2287 = vadd.f32 %v1922, %v2286
        %v2288 = vpop.f32.mrb[0].mxu0
        %v2289 = vpop.f32.mrb[0].mxu0
        %v2290 = vadd.f32 %v1922, %v2289
        %v2291 = vpop.f32.mrb[0].mxu0
        %2292 = vmatprep.mubr.bf16.mxu0 0
        %2293 = vmatmul.mubr.bf16.gmra.mrb[0].mxu0 %v1873
        %v2294 = vpop.f32.mrb[0].mxu0
        %v2295 = vadd.f32 %v1922, %v2294
        %v2296 = vpop.f32.mrb[0].mxu0
        %v2297 = vpop.f32.mrb[0].mxu0
        %v2298 = vadd.f32 %v1922, %v2297
        %v2299 = vpop.f32.mrb[0].mxu0
        %2300 = vmatprep.mubr.bf16.mxu0 0
        %2301 = vmatmul.mubr.bf16.gmra.mrb[0].mxu0 %v1874
        %v2302 = vpop.f32.mrb[0].mxu0
        %v2303 = vadd.f32 %v1922, %v2302
        %v2304 = vpop.f32.mrb[0].mxu0
        %v2305 = vpop.f32.mrb[0].mxu0
        %v2306 = vadd.f32 %v1922, %v2305
        %v2307 = vpop.f32.mrb[0].mxu0
        %2308 = vmatprep.mubr.bf16.mxu0 0
        %2309 = vmatmul.mubr.bf16.gmra.mrb[0].mxu0 %v1875
        %v2310 = vpop.f32.mrb[0].mxu0
        %v2311 = vadd.f32 %v1922, %v2310
        %v2312 = vpop.f32.mrb[0].mxu0
        %v2313 = vpop.f32.mrb[0].mxu0
        %v2314 = vadd.f32 %v1922, %v2313
        %v2315 = vpop.f32.mrb[0].mxu0
        %2316 = vmatprep.mubr.bf16.mxu0 0
        %2317 = vmatmul.mubr.bf16.gmra.mrb[0].mxu0 %v1876
        %v2318 = vpop.f32.mrb[0].mxu0
        %v2319 = vadd.f32 %v1922, %v2318
        %v2320 = vpop.f32.mrb[0].mxu0
        %v2321 = vpop.f32.mrb[0].mxu0
        %v2322 = vadd.f32 %v1922, %v2321
        %v2323 = vpop.f32.mrb[0].mxu0
        %2324 = vmatprep.mubr.bf16.mxu0 0
        %2325 = vmatmul.mubr.bf16.gmra.mrb[0].mxu0 %v1877
        %v2326 = vpop.f32.mrb[0].mxu0
        %v2327 = vadd.f32 %v1922, %v2326
        %v2328 = vpop.f32.mrb[0].mxu0
        %v2329 = vpop.f32.mrb[0].mxu0
        %v2330 = vadd.f32 %v1922, %v2329
        %v2331 = vpop.f32.mrb[0].mxu0
        %2332 = vmatprep.mubr.bf16.mxu0 0
        %2333 = vmatmul.mubr.bf16.gmra.mrb[0].mxu0 %v1878
        %v2334 = vpop.f32.mrb[0].mxu0
        %v2335 = vadd.f32 %v1922, %v2334
        %v2336 = vpop.f32.mrb[0].mxu0
        %v2337 = vpop.f32.mrb[0].mxu0
        %v2338 = vadd.f32 %v1922, %v2337
        %v2339 = vpop.f32.mrb[0].mxu0
        %2340 = vmatprep.mubr.bf16.mxu0 0
        %2341 = vmatmul.mubr.bf16.gmra.mrb[0].mxu0 %v1879
        %v2342 = vpop.f32.mrb[0].mxu0
        %v2343 = vadd.f32 %v1922, %v2342
        %v2344 = vpop.f32.mrb[0].mxu0
        %v2345 = vpop.f32.mrb[0].mxu0
        %v2346 = vadd.f32 %v1922, %v2345
        %v2347 = vpop.f32.mrb[0].mxu0
        %2348 = vmatprep.mubr.bf16.mxu0 0
        %2349 = vmatmul.mubr.bf16.gmra.mrb[0].mxu0 %v1880
        %v2350 = vpop.f32.mrb[0].mxu0
        %v2351 = vadd.f32 %v1922, %v2350
        %v2352 = vpop.f32.mrb[0].mxu0
        %v2353 = vpop.f32.mrb[0].mxu0
        %v2354 = vadd.f32 %v1922, %v2353
        %v2355 = vpop.f32.mrb[0].mxu0
        %2356 = vmatprep.mubr.bf16.mxu0 0
        %2357 = vmatmul.mubr.bf16.gmra.mrb[0].mxu0 %v1881
        %v2358 = vpop.f32.mrb[0].mxu0
        %v2359 = vadd.f32 %v1922, %v2358
        %v2360 = vpop.f32.mrb[0].mxu0
        %v2361 = vpop.f32.mrb[0].mxu0
        %v2362 = vadd.f32 %v1922, %v2361
        %v2363 = vpop.f32.mrb[0].mxu0
        %2364 = vmatprep.mubr.bf16.mxu0 0
        %2365 = vmatmul.mubr.bf16.gmra.mrb[0].mxu0 %v1882
        %v2366 = vpop.f32.mrb[0].mxu0
        %v2367 = vadd.f32 %v1922, %v2366
        %v2368 = vpop.f32.mrb[0].mxu0
        %v2369 = vpop.f32.mrb[0].mxu0
        %v2370 = vadd.f32 %v1922, %v2369
        %v2371 = vpop.f32.mrb[0].mxu0
        %2372 = vmatprep.mubr.bf16.mxu0 0
        %2373 = vmatmul.mubr.bf16.gmra.mrb[0].mxu0 %v1883
        %v2374 = vpop.f32.mrb[0].mxu0
        %v2375 = vadd.f32 %v1922, %v2374
        %v2376 = vpop.f32.mrb[0].mxu0
        %v2377 = vpop.f32.mrb[0].mxu0
        %v2378 = vadd.f32 %v1922, %v2377
        %v2379 = vpop.f32.mrb[0].mxu0
        %2380 = vmatprep.mubr.bf16.mxu0 0
        %2381 = vmatmul.mubr.bf16.gmra.mrb[0].mxu0 %v1884
        %v2382 = vpop.f32.mrb[0].mxu0
        %v2383 = vadd.f32 %v1922, %v2382
        %v2384 = vpop.f32.mrb[0].mxu0
        %v2385 = vpop.f32.mrb[0].mxu0
        %v2386 = vadd.f32 %v1922, %v2385
        %v2387 = vpop.f32.mrb[0].mxu0
        %2388 = vmatprep.mubr.bf16.mxu0 0
        %2389 = vmatmul.mubr.bf16.gmra.mrb[0].mxu0 %v1885
        %v2390 = vpop.f32.mrb[0].mxu0
        %v2391 = vadd.f32 %v1922, %v2390
        %v2392 = vpop.f32.mrb[0].mxu0
        %v2393 = vpop.f32.mrb[0].mxu0
        %v2394 = vadd.f32 %v1922, %v2393
        %v2395 = vpop.f32.mrb[0].mxu0
        %2396 = vmatprep.mubr.bf16.mxu0 0
        %2397 = vmatmul.mubr.bf16.gmra.mrb[0].mxu0 %v1886
        %v2398 = vpop.f32.mrb[0].mxu0
        %v2399 = vadd.f32 %v1922, %v2398
        %v2400 = vpop.f32.mrb[0].mxu0
        %v2401 = vpop.f32.mrb[0].mxu0
        %v2402 = vadd.f32 %v1922, %v2401
        %v2403 = vpop.f32.mrb[0].mxu0
        %2404 = vmatprep.mubr.bf16.mxu0 0
        %2405 = vmatmul.mubr.bf16.gmra.mrb[0].mxu0 %v1887
        %v2406 = vpop.f32.mrb[0].mxu0
        %v2407 = vadd.f32 %v1922, %v2406
        %v2408 = vpop.f32.mrb[0].mxu0
        %v2409 = vpop.f32.mrb[0].mxu0
        %v2410 = vadd.f32 %v1922, %v2409
        %v2411 = vpop.f32.mrb[0].mxu0
        %2412 = vmatprep.mubr.bf16.mxu0 0
        %2413 = vmatmul.mubr.bf16.gmra.mrb[0].mxu0 %v1888
        %v2414 = vpop.f32.mrb[0].mxu0
        %v2415 = vadd.f32 %v1922, %v2414
        %v2416 = vpop.f32.mrb[0].mxu0
        %v2417 = vpop.f32.mrb[0].mxu0
        %v2418 = vadd.f32 %v1922, %v2417
        %v2419 = vpop.f32.mrb[0].mxu0
        %2420 = vmatprep.mubr.bf16.mxu0 0
        %2421 = vmatmul.mubr.bf16.gmra.mrb[0].mxu0 %v1889
        %v2422 = vpop.f32.mrb[0].mxu0
        %v2423 = vadd.f32 %v1922, %v2422
        %v2424 = vpop.f32.mrb[0].mxu0
        %v2425 = vpop.f32.mrb[0].mxu0
        %v2426 = vadd.f32 %v1922, %v2425
        %v2427 = vpop.f32.mrb[0].mxu0
        %2428 = vmatprep.mubr.bf16.mxu0 0
        %2429 = vmatmul.mubr.bf16.gmra.mrb[0].mxu0 %v1890
        %v2430 = vpop.f32.mrb[0].mxu0
        %v2431 = vadd.f32 %v1922, %v2430
        %v2432 = vpop.f32.mrb[0].mxu0
        %v2433 = vpop.f32.mrb[0].mxu0
        %v2434 = vadd.f32 %v1922, %v2433
        %v2435 = vpop.f32.mrb[0].mxu0
        %2436 = vmatprep.mubr.bf16.mxu0 0
        %2437 = vmatmul.mubr.bf16.gmra.mrb[0].mxu0 %v1891
        %v2438 = vpop.f32.mrb[0].mxu0
        %v2439 = vadd.f32 %v1922, %v2438
        %v2440 = vpop.f32.mrb[0].mxu0
        %v2441 = vpop.f32.mrb[0].mxu0
        %v2442 = vadd.f32 %v1922, %v2441
        %v2443 = vpop.f32.mrb[0].mxu0
        %2444 = vmatprep.mubr.bf16.mxu0 0
        %2445 = vmatmul.mubr.bf16.gmra.mrb[0].mxu0 %v1892
        %v2446 = vpop.f32.mrb[0].mxu0
        %v2447 = vadd.f32 %v1922, %v2446
        %v2448 = vpop.f32.mrb[0].mxu0
        %v2449 = vpop.f32.mrb[0].mxu0
        %v2450 = vadd.f32 %v1922, %v2449
        %v2451 = vpop.f32.mrb[0].mxu0
        %2452 = vmatprep.mubr.bf16.mxu0 0
        %2453 = vmatmul.mubr.bf16.gmra.mrb[0].mxu0 %v1893
        %v2454 = vpop.f32.mrb[0].mxu0
        %v2455 = vadd.f32 %v1922, %v2454
        %v2456 = vpop.f32.mrb[0].mxu0
        %v2457 = vpop.f32.mrb[0].mxu0
        %v2458 = vadd.f32 %v1922, %v2457
        %v2459 = vpop.f32.mrb[0].mxu0
        %2460 = vmatprep.mubr.bf16.mxu0 0
        %2461 = vmatmul.mubr.bf16.gmra.mrb[0].mxu0 %v1894
        %v2462 = vpop.f32.mrb[0].mxu0
        %v2463 = vadd.f32 %v1922, %v2462
        %v2464 = vpop.f32.mrb[0].mxu0
        %v2465 = vpop.f32.mrb[0].mxu0
        %v2466 = vadd.f32 %v1922, %v2465
        %v2467 = vpop.f32.mrb[0].mxu0
        %2468 = vmatprep.mubr.bf16.mxu0 0
        %2469 = vmatmul.mubr.bf16.gmra.mrb[0].mxu0 %v1895
        %v2470 = vpop.f32.mrb[0].mxu0
        %v2471 = vadd.f32 %v1922, %v2470
        %v2472 = vpop.f32.mrb[0].mxu0
        %v2473 = vpop.f32.mrb[0].mxu0
        %v2474 = vadd.f32 %v1922, %v2473
        %v2475 = vpop.f32.mrb[0].mxu0
        %2476 = vmatprep.mubr.bf16.mxu0 0
        %2477 = vmatmul.mubr.bf16.gmra.mrb[0].mxu0 %v1896
        %v2478 = vpop.f32.mrb[0].mxu0
        %v2479 = vadd.f32 %v1922, %v2478
        %v2480 = vpop.f32.mrb[0].mxu0
        %v2481 = vpop.f32.mrb[0].mxu0
        %v2482 = vadd.f32 %v1922, %v2481
        %v2483 = vpop.f32.mrb[0].mxu0
        %2484 = vmatprep.mubr.bf16.mxu0 0
        %2485 = vmatmul.mubr.bf16.gmra.mrb[0].mxu0 %v1897
        %v2486 = vpop.f32.mrb[0].mxu0
        %v2487 = vadd.f32 %v1922, %v2486
        %v2488 = vpop.f32.mrb[0].mxu0
        %v2489 = vpop.f32.mrb[0].mxu0
        %v2490 = vadd.f32 %v1922, %v2489
        %v2491 = vpop.f32.mrb[0].mxu0
        %2492 = vmatprep.mubr.bf16.mxu0 0
        %2493 = vmatmul.mubr.bf16.gmra.mrb[0].mxu0 %v1898
        %v2494 = vpop.f32.mrb[0].mxu0
        %v2495 = vadd.f32 %v1922, %v2494
        %v2496 = vpop.f32.mrb[0].mxu0
        %v2497 = vpop.f32.mrb[0].mxu0
        %v2498 = vadd.f32 %v1922, %v2497
        %v2499 = vpop.f32.mrb[0].mxu0
        %2500 = vmatprep.mubr.bf16.mxu0 0
        %2501 = vmatmul.mubr.bf16.gmra.mrb[0].mxu0 %v1899
        %v2502 = vpop.f32.mrb[0].mxu0
        %v2503 = vadd.f32 %v1922, %v2502
        %v2504 = vpop.f32.mrb[0].mxu0
        %v2505 = vpop.f32.mrb[0].mxu0
        %v2506 = vadd.f32 %v1922, %v2505
        %v2507 = vpop.f32.mrb[0].mxu0
        %2508 = vmatprep.mubr.bf16.mxu0 0
        %2509 = vmatmul.mubr.bf16.gmra.mrb[0].mxu0 %v1900
        %v2510 = vpop.f32.mrb[0].mxu0
        %v2511 = vadd.f32 %v1922, %v2510
        %v2512 = vpop.f32.mrb[0].mxu0
        %v2513 = vpop.f32.mrb[0].mxu0
        %v2514 = vadd.f32 %v1922, %v2513
        %v2515 = vpop.f32.mrb[0].mxu0
        %2516 = vdwg.mxu0
        %v2517 = vmax.f32 %v2007, 0.0
        %v2518 = vmax.f32 %v2010, 0.0
        %v2519 = vmax.f32 %v2015, 0.0
        %v2520 = vmax.f32 %v2018, 0.0
        %v2521 = vmax.f32 %v2023, 0.0
        %v2522 = vmax.f32 %v2026, 0.0
        %v2523 = vmax.f32 %v2031, 0.0
        %v2524 = vmax.f32 %v2034, 0.0
        %v2525 = vmax.f32 %v2039, 0.0
        %v2526 = vmax.f32 %v2042, 0.0
        %v2527 = vmax.f32 %v2047, 0.0
        %v2528 = vmax.f32 %v2050, 0.0
        %v2529 = vmax.f32 %v2055, 0.0
        %v2530 = vmax.f32 %v2058, 0.0
        %v2531 = vmax.f32 %v2063, 0.0
        %v2532 = vmax.f32 %v2066, 0.0
        %v2533 = vmax.f32 %v2071, 0.0
        %v2534 = vmax.f32 %v2074, 0.0
        %v2535 = vmax.f32 %v2079, 0.0
        %v2536 = vmax.f32 %v2082, 0.0
        %v2537 = vmax.f32 %v2087, 0.0
        %v2538 = vmax.f32 %v2090, 0.0
        %v2539 = vmax.f32 %v2095, 0.0
        %v2540 = vmax.f32 %v2098, 0.0
        %v2541 = vmax.f32 %v2103, 0.0
        %v2542 = vmax.f32 %v2106, 0.0
        %v2543 = vmax.f32 %v2111, 0.0
        %v2544 = vmax.f32 %v2114, 0.0
        %v2545 = vmax.f32 %v2119, 0.0
        %v2546 = vmax.f32 %v2122, 0.0
        %v2547 = vmax.f32 %v2127, 0.0
        %v2548 = vmax.f32 %v2130, 0.0
        %v2549 = vmax.f32 %v2135, 0.0
        %v2550 = vmax.f32 %v2138, 0.0
        %v2551 = vmax.f32 %v2143, 0.0
        %v2552 = vmax.f32 %v2146, 0.0
        %v2553 = vmax.f32 %v2151, 0.0
        %v2554 = vmax.f32 %v2154, 0.0
        %v2555 = vmax.f32 %v2159, 0.0
        %v2556 = vmax.f32 %v2162, 0.0
        %v2557 = vmax.f32 %v2167, 0.0
        %v2558 = vmax.f32 %v2170, 0.0
        %v2559 = vmax.f32 %v2175, 0.0
        %v2560 = vmax.f32 %v2178, 0.0
        %v2561 = vmax.f32 %v2183, 0.0
        %v2562 = vmax.f32 %v2186, 0.0
        %v2563 = vmax.f32 %v2191, 0.0
        %v2564 = vmax.f32 %v2194, 0.0
        %v2565 = vmax.f32 %v2199, 0.0
        %v2566 = vmax.f32 %v2202, 0.0
        %v2567 = vmax.f32 %v2207, 0.0
        %v2568 = vmax.f32 %v2210, 0.0
        %v2569 = vmax.f32 %v2215, 0.0
        %v2570 = vmax.f32 %v2218, 0.0
        %v2571 = vmax.f32 %v2223, 0.0
        %v2572 = vmax.f32 %v2226, 0.0
        %v2573 = vmax.f32 %v2231, 0.0
        %v2574 = vmax.f32 %v2234, 0.0
        %v2575 = vmax.f32 %v2239, 0.0
        %v2576 = vmax.f32 %v2242, 0.0
        %v2577 = vmax.f32 %v2247, 0.0
        %v2578 = vmax.f32 %v2250, 0.0
        %v2579 = vmax.f32 %v2255, 0.0
        %v2580 = vmax.f32 %v2258, 0.0
        %v2581 = vmax.f32 %v2263, 0.0
        %v2582 = vmax.f32 %v2266, 0.0
        %v2583 = vmax.f32 %v2271, 0.0
        %v2584 = vmax.f32 %v2274, 0.0
        %v2585 = vmax.f32 %v2279, 0.0
        %v2586 = vmax.f32 %v2282, 0.0
        %v2587 = vmax.f32 %v2287, 0.0
        %v2588 = vmax.f32 %v2290, 0.0
        %v2589 = vmax.f32 %v2295, 0.0
        %v2590 = vmax.f32 %v2298, 0.0
        %v2591 = vmax.f32 %v2303, 0.0
        %v2592 = vmax.f32 %v2306, 0.0
        %v2593 = vmax.f32 %v2311, 0.0
        %v2594 = vmax.f32 %v2314, 0.0
        %v2595 = vmax.f32 %v2319, 0.0
        %v2596 = vmax.f32 %v2322, 0.0
        %v2597 = vmax.f32 %v2327, 0.0
        %v2598 = vmax.f32 %v2330, 0.0
        %v2599 = vmax.f32 %v2335, 0.0
        %v2600 = vmax.f32 %v2338, 0.0
        %v2601 = vmax.f32 %v2343, 0.0
        %v2602 = vmax.f32 %v2346, 0.0
        %v2603 = vmax.f32 %v2351, 0.0
        %v2604 = vmax.f32 %v2354, 0.0
        %v2605 = vmax.f32 %v2359, 0.0
        %v2606 = vmax.f32 %v2362, 0.0
        %v2607 = vmax.f32 %v2367, 0.0
        %v2608 = vmax.f32 %v2370, 0.0
        %v2609 = vmax.f32 %v2375, 0.0
        %v2610 = vmax.f32 %v2378, 0.0
        %v2611 = vmax.f32 %v2383, 0.0
        %v2612 = vmax.f32 %v2386, 0.0
        %v2613 = vmax.f32 %v2391, 0.0
        %v2614 = vmax.f32 %v2394, 0.0
        %v2615 = vmax.f32 %v2399, 0.0
        %v2616 = vmax.f32 %v2402, 0.0
        %v2617 = vmax.f32 %v2407, 0.0
        %v2618 = vmax.f32 %v2410, 0.0
        %v2619 = vmax.f32 %v2415, 0.0
        %v2620 = vmax.f32 %v2418, 0.0
        %v2621 = vmax.f32 %v2423, 0.0
        %v2622 = vmax.f32 %v2426, 0.0
        %v2623 = vmax.f32 %v2431, 0.0
        %v2624 = vmax.f32 %v2434, 0.0
        %v2625 = vmax.f32 %v2439, 0.0
        %v2626 = vmax.f32 %v2442, 0.0
        %v2627 = vmax.f32 %v2447, 0.0
        %v2628 = vmax.f32 %v2450, 0.0
        %v2629 = vmax.f32 %v2455, 0.0
        %v2630 = vmax.f32 %v2458, 0.0
        %v2631 = vmax.f32 %v2463, 0.0
        %v2632 = vmax.f32 %v2466, 0.0
        %v2633 = vmax.f32 %v2471, 0.0
        %v2634 = vmax.f32 %v2474, 0.0
        %v2635 = vmax.f32 %v2479, 0.0
        %v2636 = vmax.f32 %v2482, 0.0
        %v2637 = vmax.f32 %v2487, 0.0
        %v2638 = vmax.f32 %v2490, 0.0
        %v2639 = vmax.f32 %v2495, 0.0
        %v2640 = vmax.f32 %v2498, 0.0
        %v2641 = vmax.f32 %v2503, 0.0
        %v2642 = vmax.f32 %v2506, 0.0
        %v2643 = vmax.f32 %v2511, 0.0
        %v2644 = vmax.f32 %v2514, 0.0
        %v2645 = vpack.c.bf16 %v2518, %v2517
        %v2646 = vpack.c.bf16 %v2520, %v2519
        %v2647 = vpack.c.bf16 %v2522, %v2521
        %v2648 = vpack.c.bf16 %v2524, %v2523
        %v2649 = vpack.c.bf16 %v2526, %v2525
        %v2650 = vpack.c.bf16 %v2528, %v2527
        %v2651 = vpack.c.bf16 %v2530, %v2529
        %v2652 = vpack.c.bf16 %v2532, %v2531
        %v2653 = vpack.c.bf16 %v2534, %v2533
        %v2654 = vpack.c.bf16 %v2536, %v2535
        %v2655 = vpack.c.bf16 %v2538, %v2537
        %v2656 = vpack.c.bf16 %v2540, %v2539
        %v2657 = vpack.c.bf16 %v2542, %v2541
        %v2658 = vpack.c.bf16 %v2544, %v2543
        %v2659 = vpack.c.bf16 %v2546, %v2545
        %v2660 = vpack.c.bf16 %v2548, %v2547
        %v2661 = vpack.c.bf16 %v2550, %v2549
        %v2662 = vpack.c.bf16 %v2552, %v2551
        %v2663 = vpack.c.bf16 %v2554, %v2553
        %v2664 = vpack.c.bf16 %v2556, %v2555
        %v2665 = vpack.c.bf16 %v2558, %v2557
        %v2666 = vpack.c.bf16 %v2560, %v2559
        %v2667 = vpack.c.bf16 %v2562, %v2561
        %v2668 = vpack.c.bf16 %v2564, %v2563
        %v2669 = vpack.c.bf16 %v2566, %v2565
        %v2670 = vpack.c.bf16 %v2568, %v2567
        %v2671 = vpack.c.bf16 %v2570, %v2569
        %v2672 = vpack.c.bf16 %v2572, %v2571
        %v2673 = vpack.c.bf16 %v2574, %v2573
        %v2674 = vpack.c.bf16 %v2576, %v2575
        %v2675 = vpack.c.bf16 %v2578, %v2577
        %v2676 = vpack.c.bf16 %v2580, %v2579
        %v2677 = vpack.c.bf16 %v2582, %v2581
        %v2678 = vpack.c.bf16 %v2584, %v2583
        %v2679 = vpack.c.bf16 %v2586, %v2585
        %v2680 = vpack.c.bf16 %v2588, %v2587
        %v2681 = vpack.c.bf16 %v2590, %v2589
        %v2682 = vpack.c.bf16 %v2592, %v2591
        %v2683 = vpack.c.bf16 %v2594, %v2593
        %v2684 = vpack.c.bf16 %v2596, %v2595
        %v2685 = vpack.c.bf16 %v2598, %v2597
        %v2686 = vpack.c.bf16 %v2600, %v2599
        %v2687 = vpack.c.bf16 %v2602, %v2601
        %v2688 = vpack.c.bf16 %v2604, %v2603
        %v2689 = vpack.c.bf16 %v2606, %v2605
        %v2690 = vpack.c.bf16 %v2608, %v2607
        %v2691 = vpack.c.bf16 %v2610, %v2609
        %v2692 = vpack.c.bf16 %v2612, %v2611
        %v2693 = vpack.c.bf16 %v2614, %v2613
        %v2694 = vpack.c.bf16 %v2616, %v2615
        %v2695 = vpack.c.bf16 %v2618, %v2617
        %v2696 = vpack.c.bf16 %v2620, %v2619
        %v2697 = vpack.c.bf16 %v2622, %v2621
        %v2698 = vpack.c.bf16 %v2624, %v2623
        %v2699 = vpack.c.bf16 %v2626, %v2625
        %v2700 = vpack.c.bf16 %v2628, %v2627
        %v2701 = vpack.c.bf16 %v2630, %v2629
        %v2702 = vpack.c.bf16 %v2632, %v2631
        %v2703 = vpack.c.bf16 %v2634, %v2633
        %v2704 = vpack.c.bf16 %v2636, %v2635
        %v2705 = vpack.c.bf16 %v2638, %v2637
        %v2706 = vpack.c.bf16 %v2640, %v2639
        %v2707 = vpack.c.bf16 %v2642, %v2641
        %v2708 = vpack.c.bf16 %v2644, %v2643
        %v2709 = vld [vmem:[%s6] sm:$0xf]
        %v2710 = vld [vmem:[%s6 + $0x4] sm:$0xf]
        %v2711 = vld [vmem:[%s6 + $0x8] sm:$0xf]
        %v2712 = vld [vmem:[%s6 + $0xc] sm:$0xf]
        %v2713 = vld [vmem:[%s6 + $0x10] sm:$0xf]
        %v2714 = vld [vmem:[%s6 + $0x14] sm:$0xf]
        %v2715 = vld [vmem:[%s6 + $0x18] sm:$0xf]
        %v2716 = vld [vmem:[%s6 + $0x1c] sm:$0xf]
        %v2717 = vld [vmem:[#allocation10] sm:$0x1]
        %v2719 = vlaneseq
        %v2720 = vshrl.u32 %v2719, 7
        %v2721 = vsub.s32 0, %v2720
        %v2722 = vrot.slane %v2717, %v2721
        %v2732 = vunpack.c.l.b16 %v2709
        %v2733 = vunpack.c.l.b16 %v2710
        %v2734 = vunpack.c.l.b16 %v2711
        %v2735 = vunpack.c.l.b16 %v2712
        %v2736 = vunpack.c.l.b16 %v2713
        %v2737 = vunpack.c.l.b16 %v2714
        %v2738 = vunpack.c.l.b16 %v2715
        %v2739 = vunpack.c.l.b16 %v2716
        %v2740 = vpack.c.b16 %v2733, %v2732
        %v2741 = vpack.c.b16 %v2735, %v2734
        %v2742 = vpack.c.b16 %v2737, %v2736
        %v2743 = vpack.c.b16 %v2739, %v2738
        %vm2748 = vcmask 523264
        %v2750 = vsel %vm2748, %v2645, 0
        %v2753 = vsel %vm2748, %v2646, 0
        %v2756 = vsel %vm2748, %v2647, 0
        %v2759 = vsel %vm2748, %v2648, 0
        %v2762 = vsel %vm2748, %v2649, 0
        %v2765 = vsel %vm2748, %v2650, 0
        %v2768 = vsel %vm2748, %v2651, 0
        %v2771 = vsel %vm2748, %v2652, 0
        %v2774 = vsel %vm2748, %v2653, 0
        %v2777 = vsel %vm2748, %v2654, 0
        %v2780 = vsel %vm2748, %v2655, 0
        %v2783 = vsel %vm2748, %v2656, 0
        %v2786 = vsel %vm2748, %v2657, 0
        %v2789 = vsel %vm2748, %v2658, 0
        %v2792 = vsel %vm2748, %v2659, 0
        %v2795 = vsel %vm2748, %v2660, 0
        %v2798 = vsel %vm2748, %v2661, 0
        %v2801 = vsel %vm2748, %v2662, 0
        %v2804 = vsel %vm2748, %v2663, 0
        %v2807 = vsel %vm2748, %v2664, 0
        %v2810 = vsel %vm2748, %v2665, 0
        %v2813 = vsel %vm2748, %v2666, 0
        %v2816 = vsel %vm2748, %v2667, 0
        %v2819 = vsel %vm2748, %v2668, 0
        %v2822 = vsel %vm2748, %v2669, 0
        %v2825 = vsel %vm2748, %v2670, 0
        %v2828 = vsel %vm2748, %v2671, 0
        %v2831 = vsel %vm2748, %v2672, 0
        %v2834 = vsel %vm2748, %v2673, 0
        %v2837 = vsel %vm2748, %v2674, 0
        %v2840 = vsel %vm2748, %v2675, 0
        %v2843 = vsel %vm2748, %v2676, 0
        %v2846 = vsel %vm2748, %v2677, 0
        %v2849 = vsel %vm2748, %v2678, 0
        %v2852 = vsel %vm2748, %v2679, 0
        %v2855 = vsel %vm2748, %v2680, 0
        %v2858 = vsel %vm2748, %v2681, 0
        %v2861 = vsel %vm2748, %v2682, 0
        %v2864 = vsel %vm2748, %v2683, 0
        %v2867 = vsel %vm2748, %v2684, 0
        %v2870 = vsel %vm2748, %v2685, 0
        %v2873 = vsel %vm2748, %v2686, 0
        %v2876 = vsel %vm2748, %v2687, 0
        %v2879 = vsel %vm2748, %v2688, 0
        %v2882 = vsel %vm2748, %v2689, 0
        %v2885 = vsel %vm2748, %v2690, 0
        %v2888 = vsel %vm2748, %v2691, 0
        %v2891 = vsel %vm2748, %v2692, 0
        %v2894 = vsel %vm2748, %v2693, 0
        %v2897 = vsel %vm2748, %v2694, 0
        %v2900 = vsel %vm2748, %v2695, 0
        %v2903 = vsel %vm2748, %v2696, 0
        %v2906 = vsel %vm2748, %v2697, 0
        %v2909 = vsel %vm2748, %v2698, 0
        %v2912 = vsel %vm2748, %v2699, 0
        %v2915 = vsel %vm2748, %v2700, 0
        %v2918 = vsel %vm2748, %v2701, 0
        %v2921 = vsel %vm2748, %v2702, 0
        %v2924 = vsel %vm2748, %v2703, 0
        %v2927 = vsel %vm2748, %v2704, 0
        %v2930 = vsel %vm2748, %v2705, 0
        %v2933 = vsel %vm2748, %v2706, 0
        %v2936 = vsel %vm2748, %v2707, 0
        %v2939 = vsel %vm2748, %v2708, 0
        %2941 = vmatprep.subr.bf16.mxu0 0
        %2942 = vmatpush1.bf16.msra.mxu0 %v2740
        %2943 = vmatprep.subr.bf16.mxu0 0
        %2944 = vmatpush1.bf16.msra.mxu0 %v2741
        %2945 = vmatprep.subr.bf16.mxu0 0
        %2946 = vmatpush1.bf16.msra.mxu0 %v2742
        %2947 = vmatprep.subr.bf16.mxu0 0
        %2948 = vmatpush1.bf16.msra.mxu0 %v2743
        %2949 = vmatprep.subr.bf16.mxu0 0
        %2950 = vmatpush1.bf16.msra.mxu0 0
        %2951 = vmatprep.subr.bf16.mxu0 0
        %2952 = vmatpush1.bf16.msra.mxu0 0
        %2953 = vmatprep.subr.bf16.mxu0 0
        %2954 = vmatpush1.bf16.msra.mxu0 0
        %2955 = vmatprep.subr.bf16.mxu0 0
        %2956 = vmatpush1.bf16.msra.mxu0 0
        %2957 = vmatprep.subr.bf16.mxu0 0
        %2958 = vmatpush1.bf16.msra.mxu0 0
        %2959 = vmatprep.subr.bf16.mxu0 0
        %2960 = vmatpush1.bf16.msra.mxu0 0
        %2961 = vmatprep.subr.bf16.mxu0 0
        %2962 = vmatpush1.bf16.msra.mxu0 0
        %2963 = vmatprep.subr.bf16.mxu0 0
        %2964 = vmatpush1.bf16.msra.mxu0 0
        %2965 = vmatprep.subr.bf16.mxu0 0
        %2966 = vmatpush1.bf16.msra.mxu0 0
        %2967 = vmatprep.subr.bf16.mxu0 0
        %2968 = vmatpush1.bf16.msra.mxu0 0
        %2969 = vmatprep.subr.bf16.mxu0 0
        %2970 = vmatpush1.bf16.msra.mxu0 0
        %2971 = vmatprep.subr.bf16.mxu0 0
        %2972 = vmatpush1.bf16.msra.mxu0 0
        %2973 = vmatprep.mubr.bf16.mxu0 0
        %2974 = vmatmul.mubr.bf16.gmra.mrb[0].mxu0 %v2750
        %v2975 = vpop.f32.mrb[0].mxu0
        %v2976 = vadd.f32 %v2722, %v2975
        %v2977 = vpop.f32.mrb[0].mxu0
        %v2978 = vpop.f32.mrb[0].mxu0
        %v2979 = vadd.f32 %v2722, %v2978
        %v2980 = vpop.f32.mrb[0].mxu0
        %2981 = vmatprep.mubr.bf16.mxu0 0
        %2982 = vmatmul.mubr.bf16.gmra.mrb[0].mxu0 %v2753
        %v2983 = vpop.f32.mrb[0].mxu0
        %v2984 = vadd.f32 %v2722, %v2983
        %v2985 = vpop.f32.mrb[0].mxu0
        %v2986 = vpop.f32.mrb[0].mxu0
        %v2987 = vadd.f32 %v2722, %v2986
        %v2988 = vpop.f32.mrb[0].mxu0
        %2989 = vmatprep.mubr.bf16.mxu0 0
        %2990 = vmatmul.mubr.bf16.gmra.mrb[0].mxu0 %v2756
        %v2991 = vpop.f32.mrb[0].mxu0
        %v2992 = vadd.f32 %v2722, %v2991
        %v2993 = vpop.f32.mrb[0].mxu0
        %v2994 = vpop.f32.mrb[0].mxu0
        %v2995 = vadd.f32 %v2722, %v2994
        %v2996 = vpop.f32.mrb[0].mxu0
        %2997 = vmatprep.mubr.bf16.mxu0 0
        %2998 = vmatmul.mubr.bf16.gmra.mrb[0].mxu0 %v2759
        %v2999 = vpop.f32.mrb[0].mxu0
        %v3000 = vadd.f32 %v2722, %v2999
        %v3001 = vpop.f32.mrb[0].mxu0
        %v3002 = vpop.f32.mrb[0].mxu0
        %v3003 = vadd.f32 %v2722, %v3002
        %v3004 = vpop.f32.mrb[0].mxu0
        %3005 = vmatprep.mubr.bf16.mxu0 0
        %3006 = vmatmul.mubr.bf16.gmra.mrb[0].mxu0 %v2762
        %v3007 = vpop.f32.mrb[0].mxu0
        %v3008 = vadd.f32 %v2722, %v3007
        %v3009 = vpop.f32.mrb[0].mxu0
        %v3010 = vpop.f32.mrb[0].mxu0
        %v3011 = vadd.f32 %v2722, %v3010
        %v3012 = vpop.f32.mrb[0].mxu0
        %3013 = vmatprep.mubr.bf16.mxu0 0
        %3014 = vmatmul.mubr.bf16.gmra.mrb[0].mxu0 %v2765
        %v3015 = vpop.f32.mrb[0].mxu0
        %v3016 = vadd.f32 %v2722, %v3015
        %v3017 = vpop.f32.mrb[0].mxu0
        %v3018 = vpop.f32.mrb[0].mxu0
        %v3019 = vadd.f32 %v2722, %v3018
        %v3020 = vpop.f32.mrb[0].mxu0
        %3021 = vmatprep.mubr.bf16.mxu0 0
        %3022 = vmatmul.mubr.bf16.gmra.mrb[0].mxu0 %v2768
        %v3023 = vpop.f32.mrb[0].mxu0
        %v3024 = vadd.f32 %v2722, %v3023
        %v3025 = vpop.f32.mrb[0].mxu0
        %v3026 = vpop.f32.mrb[0].mxu0
        %v3027 = vadd.f32 %v2722, %v3026
        %v3028 = vpop.f32.mrb[0].mxu0
        %3029 = vmatprep.mubr.bf16.mxu0 0
        %3030 = vmatmul.mubr.bf16.gmra.mrb[0].mxu0 %v2771
        %v3031 = vpop.f32.mrb[0].mxu0
        %v3032 = vadd.f32 %v2722, %v3031
        %v3033 = vpop.f32.mrb[0].mxu0
        %v3034 = vpop.f32.mrb[0].mxu0
        %v3035 = vadd.f32 %v2722, %v3034
        %v3036 = vpop.f32.mrb[0].mxu0
        %3037 = vmatprep.mubr.bf16.mxu0 0
        %3038 = vmatmul.mubr.bf16.gmra.mrb[0].mxu0 %v2774
        %v3039 = vpop.f32.mrb[0].mxu0
        %v3040 = vadd.f32 %v2722, %v3039
        %v3041 = vpop.f32.mrb[0].mxu0
        %v3042 = vpop.f32.mrb[0].mxu0
        %v3043 = vadd.f32 %v2722, %v3042
        %v3044 = vpop.f32.mrb[0].mxu0
        %3045 = vmatprep.mubr.bf16.mxu0 0
        %3046 = vmatmul.mubr.bf16.gmra.mrb[0].mxu0 %v2777
        %v3047 = vpop.f32.mrb[0].mxu0
        %v3048 = vadd.f32 %v2722, %v3047
        %v3049 = vpop.f32.mrb[0].mxu0
        %v3050 = vpop.f32.mrb[0].mxu0
        %v3051 = vadd.f32 %v2722, %v3050
        %v3052 = vpop.f32.mrb[0].mxu0
        %3053 = vmatprep.mubr.bf16.mxu0 0
        %3054 = vmatmul.mubr.bf16.gmra.mrb[0].mxu0 %v2780
        %v3055 = vpop.f32.mrb[0].mxu0
        %v3056 = vadd.f32 %v2722, %v3055
        %v3057 = vpop.f32.mrb[0].mxu0
        %v3058 = vpop.f32.mrb[0].mxu0
        %v3059 = vadd.f32 %v2722, %v3058
        %v3060 = vpop.f32.mrb[0].mxu0
        %3061 = vmatprep.mubr.bf16.mxu0 0
        %3062 = vmatmul.mubr.bf16.gmra.mrb[0].mxu0 %v2783
        %v3063 = vpop.f32.mrb[0].mxu0
        %v3064 = vadd.f32 %v2722, %v3063
        %v3065 = vpop.f32.mrb[0].mxu0
        %v3066 = vpop.f32.mrb[0].mxu0
        %v3067 = vadd.f32 %v2722, %v3066
        %v3068 = vpop.f32.mrb[0].mxu0
        %3069 = vmatprep.mubr.bf16.mxu0 0
        %3070 = vmatmul.mubr.bf16.gmra.mrb[0].mxu0 %v2786
        %v3071 = vpop.f32.mrb[0].mxu0
        %v3072 = vadd.f32 %v2722, %v3071
        %v3073 = vpop.f32.mrb[0].mxu0
        %v3074 = vpop.f32.mrb[0].mxu0
        %v3075 = vadd.f32 %v2722, %v3074
        %v3076 = vpop.f32.mrb[0].mxu0
        %3077 = vmatprep.mubr.bf16.mxu0 0
        %3078 = vmatmul.mubr.bf16.gmra.mrb[0].mxu0 %v2789
        %v3079 = vpop.f32.mrb[0].mxu0
        %v3080 = vadd.f32 %v2722, %v3079
        %v3081 = vpop.f32.mrb[0].mxu0
        %v3082 = vpop.f32.mrb[0].mxu0
        %v3083 = vadd.f32 %v2722, %v3082
        %v3084 = vpop.f32.mrb[0].mxu0
        %3085 = vmatprep.mubr.bf16.mxu0 0
        %3086 = vmatmul.mubr.bf16.gmra.mrb[0].mxu0 %v2792
        %v3087 = vpop.f32.mrb[0].mxu0
        %v3088 = vadd.f32 %v2722, %v3087
        %v3089 = vpop.f32.mrb[0].mxu0
        %v3090 = vpop.f32.mrb[0].mxu0
        %v3091 = vadd.f32 %v2722, %v3090
        %v3092 = vpop.f32.mrb[0].mxu0
        %3093 = vmatprep.mubr.bf16.mxu0 0
        %3094 = vmatmul.mubr.bf16.gmra.mrb[0].mxu0 %v2795
        %v3095 = vpop.f32.mrb[0].mxu0
        %v3096 = vadd.f32 %v2722, %v3095
        %v3097 = vpop.f32.mrb[0].mxu0
        %v3098 = vpop.f32.mrb[0].mxu0
        %v3099 = vadd.f32 %v2722, %v3098
        %v3100 = vpop.f32.mrb[0].mxu0
        %3101 = vmatprep.mubr.bf16.mxu0 0
        %3102 = vmatmul.mubr.bf16.gmra.mrb[0].mxu0 %v2798
        %v3103 = vpop.f32.mrb[0].mxu0
        %v3104 = vadd.f32 %v2722, %v3103
        %v3105 = vpop.f32.mrb[0].mxu0
        %v3106 = vpop.f32.mrb[0].mxu0
        %v3107 = vadd.f32 %v2722, %v3106
        %v3108 = vpop.f32.mrb[0].mxu0
        %3109 = vmatprep.mubr.bf16.mxu0 0
        %3110 = vmatmul.mubr.bf16.gmra.mrb[0].mxu0 %v2801
        %v3111 = vpop.f32.mrb[0].mxu0
        %v3112 = vadd.f32 %v2722, %v3111
        %v3113 = vpop.f32.mrb[0].mxu0
        %v3114 = vpop.f32.mrb[0].mxu0
        %v3115 = vadd.f32 %v2722, %v3114
        %v3116 = vpop.f32.mrb[0].mxu0
        %3117 = vmatprep.mubr.bf16.mxu0 0
        %3118 = vmatmul.mubr.bf16.gmra.mrb[0].mxu0 %v2804
        %v3119 = vpop.f32.mrb[0].mxu0
        %v3120 = vadd.f32 %v2722, %v3119
        %v3121 = vpop.f32.mrb[0].mxu0
        %v3122 = vpop.f32.mrb[0].mxu0
        %v3123 = vadd.f32 %v2722, %v3122
        %v3124 = vpop.f32.mrb[0].mxu0
        %3125 = vmatprep.mubr.bf16.mxu0 0
        %3126 = vmatmul.mubr.bf16.gmra.mrb[0].mxu0 %v2807
        %v3127 = vpop.f32.mrb[0].mxu0
        %v3128 = vadd.f32 %v2722, %v3127
        %v3129 = vpop.f32.mrb[0].mxu0
        %v3130 = vpop.f32.mrb[0].mxu0
        %v3131 = vadd.f32 %v2722, %v3130
        %v3132 = vpop.f32.mrb[0].mxu0
        %3133 = vmatprep.mubr.bf16.mxu0 0
        %3134 = vmatmul.mubr.bf16.gmra.mrb[0].mxu0 %v2810
        %v3135 = vpop.f32.mrb[0].mxu0
        %v3136 = vadd.f32 %v2722, %v3135
        %v3137 = vpop.f32.mrb[0].mxu0
        %v3138 = vpop.f32.mrb[0].mxu0
        %v3139 = vadd.f32 %v2722, %v3138
        %v3140 = vpop.f32.mrb[0].mxu0
        %3141 = vmatprep.mubr.bf16.mxu0 0
        %3142 = vmatmul.mubr.bf16.gmra.mrb[0].mxu0 %v2813
        %v3143 = vpop.f32.mrb[0].mxu0
        %v3144 = vadd.f32 %v2722, %v3143
        %v3145 = vpop.f32.mrb[0].mxu0
        %v3146 = vpop.f32.mrb[0].mxu0
        %v3147 = vadd.f32 %v2722, %v3146
        %v3148 = vpop.f32.mrb[0].mxu0
        %3149 = vmatprep.mubr.bf16.mxu0 0
        %3150 = vmatmul.mubr.bf16.gmra.mrb[0].mxu0 %v2816
        %v3151 = vpop.f32.mrb[0].mxu0
        %v3152 = vadd.f32 %v2722, %v3151
        %v3153 = vpop.f32.mrb[0].mxu0
        %v3154 = vpop.f32.mrb[0].mxu0
        %v3155 = vadd.f32 %v2722, %v3154
        %v3156 = vpop.f32.mrb[0].mxu0
        %3157 = vmatprep.mubr.bf16.mxu0 0
        %3158 = vmatmul.mubr.bf16.gmra.mrb[0].mxu0 %v2819
        %v3159 = vpop.f32.mrb[0].mxu0
        %v3160 = vadd.f32 %v2722, %v3159
        %v3161 = vpop.f32.mrb[0].mxu0
        %v3162 = vpop.f32.mrb[0].mxu0
        %v3163 = vadd.f32 %v2722, %v3162
        %v3164 = vpop.f32.mrb[0].mxu0
        %3165 = vmatprep.mubr.bf16.mxu0 0
        %3166 = vmatmul.mubr.bf16.gmra.mrb[0].mxu0 %v2822
        %v3167 = vpop.f32.mrb[0].mxu0
        %v3168 = vadd.f32 %v2722, %v3167
        %v3169 = vpop.f32.mrb[0].mxu0
        %v3170 = vpop.f32.mrb[0].mxu0
        %v3171 = vadd.f32 %v2722, %v3170
        %v3172 = vpop.f32.mrb[0].mxu0
        %3173 = vmatprep.mubr.bf16.mxu0 0
        %3174 = vmatmul.mubr.bf16.gmra.mrb[0].mxu0 %v2825
        %v3175 = vpop.f32.mrb[0].mxu0
        %v3176 = vadd.f32 %v2722, %v3175
        %v3177 = vpop.f32.mrb[0].mxu0
        %v3178 = vpop.f32.mrb[0].mxu0
        %v3179 = vadd.f32 %v2722, %v3178
        %v3180 = vpop.f32.mrb[0].mxu0
        %3181 = vmatprep.mubr.bf16.mxu0 0
        %3182 = vmatmul.mubr.bf16.gmra.mrb[0].mxu0 %v2828
        %v3183 = vpop.f32.mrb[0].mxu0
        %v3184 = vadd.f32 %v2722, %v3183
        %v3185 = vpop.f32.mrb[0].mxu0
        %v3186 = vpop.f32.mrb[0].mxu0
        %v3187 = vadd.f32 %v2722, %v3186
        %v3188 = vpop.f32.mrb[0].mxu0
        %3189 = vmatprep.mubr.bf16.mxu0 0
        %3190 = vmatmul.mubr.bf16.gmra.mrb[0].mxu0 %v2831
        %v3191 = vpop.f32.mrb[0].mxu0
        %v3192 = vadd.f32 %v2722, %v3191
        %v3193 = vpop.f32.mrb[0].mxu0
        %v3194 = vpop.f32.mrb[0].mxu0
        %v3195 = vadd.f32 %v2722, %v3194
        %v3196 = vpop.f32.mrb[0].mxu0
        %3197 = vmatprep.mubr.bf16.mxu0 0
        %3198 = vmatmul.mubr.bf16.gmra.mrb[0].mxu0 %v2834
        %v3199 = vpop.f32.mrb[0].mxu0
        %v3200 = vadd.f32 %v2722, %v3199
        %v3201 = vpop.f32.mrb[0].mxu0
        %v3202 = vpop.f32.mrb[0].mxu0
        %v3203 = vadd.f32 %v2722, %v3202
        %v3204 = vpop.f32.mrb[0].mxu0
        %3205 = vmatprep.mubr.bf16.mxu0 0
        %3206 = vmatmul.mubr.bf16.gmra.mrb[0].mxu0 %v2837
        %v3207 = vpop.f32.mrb[0].mxu0
        %v3208 = vadd.f32 %v2722, %v3207
        %v3209 = vpop.f32.mrb[0].mxu0
        %v3210 = vpop.f32.mrb[0].mxu0
        %v3211 = vadd.f32 %v2722, %v3210
        %v3212 = vpop.f32.mrb[0].mxu0
        %3213 = vmatprep.mubr.bf16.mxu0 0
        %3214 = vmatmul.mubr.bf16.gmra.mrb[0].mxu0 %v2840
        %v3215 = vpop.f32.mrb[0].mxu0
        %v3216 = vadd.f32 %v2722, %v3215
        %v3217 = vpop.f32.mrb[0].mxu0
        %v3218 = vpop.f32.mrb[0].mxu0
        %v3219 = vadd.f32 %v2722, %v3218
        %v3220 = vpop.f32.mrb[0].mxu0
        %3221 = vmatprep.mubr.bf16.mxu0 0
        %3222 = vmatmul.mubr.bf16.gmra.mrb[0].mxu0 %v2843
        %v3223 = vpop.f32.mrb[0].mxu0
        %v3224 = vadd.f32 %v2722, %v3223
        %v3225 = vpop.f32.mrb[0].mxu0
        %v3226 = vpop.f32.mrb[0].mxu0
        %v3227 = vadd.f32 %v2722, %v3226
        %v3228 = vpop.f32.mrb[0].mxu0
        %3229 = vmatprep.mubr.bf16.mxu0 0
        %3230 = vmatmul.mubr.bf16.gmra.mrb[0].mxu0 %v2846
        %v3231 = vpop.f32.mrb[0].mxu0
        %v3232 = vadd.f32 %v2722, %v3231
        %v3233 = vpop.f32.mrb[0].mxu0
        %v3234 = vpop.f32.mrb[0].mxu0
        %v3235 = vadd.f32 %v2722, %v3234
        %v3236 = vpop.f32.mrb[0].mxu0
        %3237 = vmatprep.mubr.bf16.mxu0 0
        %3238 = vmatmul.mubr.bf16.gmra.mrb[0].mxu0 %v2849
        %v3239 = vpop.f32.mrb[0].mxu0
        %v3240 = vadd.f32 %v2722, %v3239
        %v3241 = vpop.f32.mrb[0].mxu0
        %v3242 = vpop.f32.mrb[0].mxu0
        %v3243 = vadd.f32 %v2722, %v3242
        %v3244 = vpop.f32.mrb[0].mxu0
        %3245 = vmatprep.mubr.bf16.mxu0 0
        %3246 = vmatmul.mubr.bf16.gmra.mrb[0].mxu0 %v2852
        %v3247 = vpop.f32.mrb[0].mxu0
        %v3248 = vadd.f32 %v2722, %v3247
        %v3249 = vpop.f32.mrb[0].mxu0
        %v3250 = vpop.f32.mrb[0].mxu0
        %v3251 = vadd.f32 %v2722, %v3250
        %v3252 = vpop.f32.mrb[0].mxu0
        %3253 = vmatprep.mubr.bf16.mxu0 0
        %3254 = vmatmul.mubr.bf16.gmra.mrb[0].mxu0 %v2855
        %v3255 = vpop.f32.mrb[0].mxu0
        %v3256 = vadd.f32 %v2722, %v3255
        %v3257 = vpop.f32.mrb[0].mxu0
        %v3258 = vpop.f32.mrb[0].mxu0
        %v3259 = vadd.f32 %v2722, %v3258
        %v3260 = vpop.f32.mrb[0].mxu0
        %3261 = vmatprep.mubr.bf16.mxu0 0
        %3262 = vmatmul.mubr.bf16.gmra.mrb[0].mxu0 %v2858
        %v3263 = vpop.f32.mrb[0].mxu0
        %v3264 = vadd.f32 %v2722, %v3263
        %v3265 = vpop.f32.mrb[0].mxu0
        %v3266 = vpop.f32.mrb[0].mxu0
        %v3267 = vadd.f32 %v2722, %v3266
        %v3268 = vpop.f32.mrb[0].mxu0
        %3269 = vmatprep.mubr.bf16.mxu0 0
        %3270 = vmatmul.mubr.bf16.gmra.mrb[0].mxu0 %v2861
        %v3271 = vpop.f32.mrb[0].mxu0
        %v3272 = vadd.f32 %v2722, %v3271
        %v3273 = vpop.f32.mrb[0].mxu0
        %v3274 = vpop.f32.mrb[0].mxu0
        %v3275 = vadd.f32 %v2722, %v3274
        %v3276 = vpop.f32.mrb[0].mxu0
        %3277 = vmatprep.mubr.bf16.mxu0 0
        %3278 = vmatmul.mubr.bf16.gmra.mrb[0].mxu0 %v2864
        %v3279 = vpop.f32.mrb[0].mxu0
        %v3280 = vadd.f32 %v2722, %v3279
        %v3281 = vpop.f32.mrb[0].mxu0
        %v3282 = vpop.f32.mrb[0].mxu0
        %v3283 = vadd.f32 %v2722, %v3282
        %v3284 = vpop.f32.mrb[0].mxu0
        %3285 = vmatprep.mubr.bf16.mxu0 0
        %3286 = vmatmul.mubr.bf16.gmra.mrb[0].mxu0 %v2867
        %v3287 = vpop.f32.mrb[0].mxu0
        %v3288 = vadd.f32 %v2722, %v3287
        %v3289 = vpop.f32.mrb[0].mxu0
        %v3290 = vpop.f32.mrb[0].mxu0
        %v3291 = vadd.f32 %v2722, %v3290
        %v3292 = vpop.f32.mrb[0].mxu0
        %3293 = vmatprep.mubr.bf16.mxu0 0
        %3294 = vmatmul.mubr.bf16.gmra.mrb[0].mxu0 %v2870
        %v3295 = vpop.f32.mrb[0].mxu0
        %v3296 = vadd.f32 %v2722, %v3295
        %v3297 = vpop.f32.mrb[0].mxu0
        %v3298 = vpop.f32.mrb[0].mxu0
        %v3299 = vadd.f32 %v2722, %v3298
        %v3300 = vpop.f32.mrb[0].mxu0
        %3301 = vmatprep.mubr.bf16.mxu0 0
        %3302 = vmatmul.mubr.bf16.gmra.mrb[0].mxu0 %v2873
        %v3303 = vpop.f32.mrb[0].mxu0
        %v3304 = vadd.f32 %v2722, %v3303
        %v3305 = vpop.f32.mrb[0].mxu0
        %v3306 = vpop.f32.mrb[0].mxu0
        %v3307 = vadd.f32 %v2722, %v3306
        %v3308 = vpop.f32.mrb[0].mxu0
        %3309 = vmatprep.mubr.bf16.mxu0 0
        %3310 = vmatmul.mubr.bf16.gmra.mrb[0].mxu0 %v2876
        %v3311 = vpop.f32.mrb[0].mxu0
        %v3312 = vadd.f32 %v2722, %v3311
        %v3313 = vpop.f32.mrb[0].mxu0
        %v3314 = vpop.f32.mrb[0].mxu0
        %v3315 = vadd.f32 %v2722, %v3314
        %v3316 = vpop.f32.mrb[0].mxu0
        %3317 = vmatprep.mubr.bf16.mxu0 0
        %3318 = vmatmul.mubr.bf16.gmra.mrb[0].mxu0 %v2879
        %v3319 = vpop.f32.mrb[0].mxu0
        %v3320 = vadd.f32 %v2722, %v3319
        %v3321 = vpop.f32.mrb[0].mxu0
        %v3322 = vpop.f32.mrb[0].mxu0
        %v3323 = vadd.f32 %v2722, %v3322
        %v3324 = vpop.f32.mrb[0].mxu0
        %3325 = vmatprep.mubr.bf16.mxu0 0
        %3326 = vmatmul.mubr.bf16.gmra.mrb[0].mxu0 %v2882
        %v3327 = vpop.f32.mrb[0].mxu0
        %v3328 = vadd.f32 %v2722, %v3327
        %v3329 = vpop.f32.mrb[0].mxu0
        %v3330 = vpop.f32.mrb[0].mxu0
        %v3331 = vadd.f32 %v2722, %v3330
        %v3332 = vpop.f32.mrb[0].mxu0
        %3333 = vmatprep.mubr.bf16.mxu0 0
        %3334 = vmatmul.mubr.bf16.gmra.mrb[0].mxu0 %v2885
        %v3335 = vpop.f32.mrb[0].mxu0
        %v3336 = vadd.f32 %v2722, %v3335
        %v3337 = vpop.f32.mrb[0].mxu0
        %v3338 = vpop.f32.mrb[0].mxu0
        %v3339 = vadd.f32 %v2722, %v3338
        %v3340 = vpop.f32.mrb[0].mxu0
        %3341 = vmatprep.mubr.bf16.mxu0 0
        %3342 = vmatmul.mubr.bf16.gmra.mrb[0].mxu0 %v2888
        %v3343 = vpop.f32.mrb[0].mxu0
        %v3344 = vadd.f32 %v2722, %v3343
        %v3345 = vpop.f32.mrb[0].mxu0
        %v3346 = vpop.f32.mrb[0].mxu0
        %v3347 = vadd.f32 %v2722, %v3346
        %v3348 = vpop.f32.mrb[0].mxu0
        %3349 = vmatprep.mubr.bf16.mxu0 0
        %3350 = vmatmul.mubr.bf16.gmra.mrb[0].mxu0 %v2891
        %v3351 = vpop.f32.mrb[0].mxu0
        %v3352 = vadd.f32 %v2722, %v3351
        %v3353 = vpop.f32.mrb[0].mxu0
        %v3354 = vpop.f32.mrb[0].mxu0
        %v3355 = vadd.f32 %v2722, %v3354
        %v3356 = vpop.f32.mrb[0].mxu0
        %3357 = vmatprep.mubr.bf16.mxu0 0
        %3358 = vmatmul.mubr.bf16.gmra.mrb[0].mxu0 %v2894
        %v3359 = vpop.f32.mrb[0].mxu0
        %v3360 = vadd.f32 %v2722, %v3359
        %v3361 = vpop.f32.mrb[0].mxu0
        %v3362 = vpop.f32.mrb[0].mxu0
        %v3363 = vadd.f32 %v2722, %v3362
        %v3364 = vpop.f32.mrb[0].mxu0
        %3365 = vmatprep.mubr.bf16.mxu0 0
        %3366 = vmatmul.mubr.bf16.gmra.mrb[0].mxu0 %v2897
        %v3367 = vpop.f32.mrb[0].mxu0
        %v3368 = vadd.f32 %v2722, %v3367
        %v3369 = vpop.f32.mrb[0].mxu0
        %v3370 = vpop.f32.mrb[0].mxu0
        %v3371 = vadd.f32 %v2722, %v3370
        %v3372 = vpop.f32.mrb[0].mxu0
        %3373 = vmatprep.mubr.bf16.mxu0 0
        %3374 = vmatmul.mubr.bf16.gmra.mrb[0].mxu0 %v2900
        %v3375 = vpop.f32.mrb[0].mxu0
        %v3376 = vadd.f32 %v2722, %v3375
        %v3377 = vpop.f32.mrb[0].mxu0
        %v3378 = vpop.f32.mrb[0].mxu0
        %v3379 = vadd.f32 %v2722, %v3378
        %v3380 = vpop.f32.mrb[0].mxu0
        %3381 = vmatprep.mubr.bf16.mxu0 0
        %3382 = vmatmul.mubr.bf16.gmra.mrb[0].mxu0 %v2903
        %v3383 = vpop.f32.mrb[0].mxu0
        %v3384 = vadd.f32 %v2722, %v3383
        %v3385 = vpop.f32.mrb[0].mxu0
        %v3386 = vpop.f32.mrb[0].mxu0
        %v3387 = vadd.f32 %v2722, %v3386
        %v3388 = vpop.f32.mrb[0].mxu0
        %3389 = vmatprep.mubr.bf16.mxu0 0
        %3390 = vmatmul.mubr.bf16.gmra.mrb[0].mxu0 %v2906
        %v3391 = vpop.f32.mrb[0].mxu0
        %v3392 = vadd.f32 %v2722, %v3391
        %v3393 = vpop.f32.mrb[0].mxu0
        %v3394 = vpop.f32.mrb[0].mxu0
        %v3395 = vadd.f32 %v2722, %v3394
        %v3396 = vpop.f32.mrb[0].mxu0
        %3397 = vmatprep.mubr.bf16.mxu0 0
        %3398 = vmatmul.mubr.bf16.gmra.mrb[0].mxu0 %v2909
        %v3399 = vpop.f32.mrb[0].mxu0
        %v3400 = vadd.f32 %v2722, %v3399
        %v3401 = vpop.f32.mrb[0].mxu0
        %v3402 = vpop.f32.mrb[0].mxu0
        %v3403 = vadd.f32 %v2722, %v3402
        %v3404 = vpop.f32.mrb[0].mxu0
        %3405 = vmatprep.mubr.bf16.mxu0 0
        %3406 = vmatmul.mubr.bf16.gmra.mrb[0].mxu0 %v2912
        %v3407 = vpop.f32.mrb[0].mxu0
        %v3408 = vadd.f32 %v2722, %v3407
        %v3409 = vpop.f32.mrb[0].mxu0
        %v3410 = vpop.f32.mrb[0].mxu0
        %v3411 = vadd.f32 %v2722, %v3410
        %v3412 = vpop.f32.mrb[0].mxu0
        %3413 = vmatprep.mubr.bf16.mxu0 0
        %3414 = vmatmul.mubr.bf16.gmra.mrb[0].mxu0 %v2915
        %v3415 = vpop.f32.mrb[0].mxu0
        %v3416 = vadd.f32 %v2722, %v3415
        %v3417 = vpop.f32.mrb[0].mxu0
        %v3418 = vpop.f32.mrb[0].mxu0
        %v3419 = vadd.f32 %v2722, %v3418
        %v3420 = vpop.f32.mrb[0].mxu0
        %3421 = vmatprep.mubr.bf16.mxu0 0
        %3422 = vmatmul.mubr.bf16.gmra.mrb[0].mxu0 %v2918
        %v3423 = vpop.f32.mrb[0].mxu0
        %v3424 = vadd.f32 %v2722, %v3423
        %v3425 = vpop.f32.mrb[0].mxu0
        %v3426 = vpop.f32.mrb[0].mxu0
        %v3427 = vadd.f32 %v2722, %v3426
        %v3428 = vpop.f32.mrb[0].mxu0
        %3429 = vmatprep.mubr.bf16.mxu0 0
        %3430 = vmatmul.mubr.bf16.gmra.mrb[0].mxu0 %v2921
        %v3431 = vpop.f32.mrb[0].mxu0
        %v3432 = vadd.f32 %v2722, %v3431
        %v3433 = vpop.f32.mrb[0].mxu0
        %v3434 = vpop.f32.mrb[0].mxu0
        %v3435 = vadd.f32 %v2722, %v3434
        %v3436 = vpop.f32.mrb[0].mxu0
        %3437 = vmatprep.mubr.bf16.mxu0 0
        %3438 = vmatmul.mubr.bf16.gmra.mrb[0].mxu0 %v2924
        %v3439 = vpop.f32.mrb[0].mxu0
        %v3440 = vadd.f32 %v2722, %v3439
        %v3441 = vpop.f32.mrb[0].mxu0
        %v3442 = vpop.f32.mrb[0].mxu0
        %v3443 = vadd.f32 %v2722, %v3442
        %v3444 = vpop.f32.mrb[0].mxu0
        %3445 = vmatprep.mubr.bf16.mxu0 0
        %3446 = vmatmul.mubr.bf16.gmra.mrb[0].mxu0 %v2927
        %v3447 = vpop.f32.mrb[0].mxu0
        %v3448 = vadd.f32 %v2722, %v3447
        %v3449 = vpop.f32.mrb[0].mxu0
        %v3450 = vpop.f32.mrb[0].mxu0
        %v3451 = vadd.f32 %v2722, %v3450
        %v3452 = vpop.f32.mrb[0].mxu0
        %3453 = vmatprep.mubr.bf16.mxu0 0
        %3454 = vmatmul.mubr.bf16.gmra.mrb[0].mxu0 %v2930
        %v3455 = vpop.f32.mrb[0].mxu0
        %v3456 = vadd.f32 %v2722, %v3455
        %v3457 = vpop.f32.mrb[0].mxu0
        %v3458 = vpop.f32.mrb[0].mxu0
        %v3459 = vadd.f32 %v2722, %v3458
        %v3460 = vpop.f32.mrb[0].mxu0
        %3461 = vmatprep.mubr.bf16.mxu0 0
        %3462 = vmatmul.mubr.bf16.gmra.mrb[0].mxu0 %v2933
        %v3463 = vpop.f32.mrb[0].mxu0
        %v3464 = vadd.f32 %v2722, %v3463
        %v3465 = vpop.f32.mrb[0].mxu0
        %v3466 = vpop.f32.mrb[0].mxu0
        %v3467 = vadd.f32 %v2722, %v3466
        %v3468 = vpop.f32.mrb[0].mxu0
        %3469 = vmatprep.mubr.bf16.mxu0 0
        %3470 = vmatmul.mubr.bf16.gmra.mrb[0].mxu0 %v2936
        %v3471 = vpop.f32.mrb[0].mxu0
        %v3472 = vadd.f32 %v2722, %v3471
        %v3473 = vpop.f32.mrb[0].mxu0
        %v3474 = vpop.f32.mrb[0].mxu0
        %v3475 = vadd.f32 %v2722, %v3474
        %v3476 = vpop.f32.mrb[0].mxu0
        %3477 = vmatprep.mubr.bf16.mxu0 0
        %3478 = vmatmul.mubr.bf16.gmra.mrb[0].mxu0 %v2939
        %v3479 = vpop.f32.mrb[0].mxu0
        %v3480 = vadd.f32 %v2722, %v3479
        %v3481 = vpop.f32.mrb[0].mxu0
        %v3482 = vpop.f32.mrb[0].mxu0
        %v3483 = vadd.f32 %v2722, %v3482
        %v3484 = vpop.f32.mrb[0].mxu0
        %3485 = vdwg.mxu0
        %v3486 = vmul.f32 %v2976, 1.442695
        %v3487 = vpow.pop %v3486
        %v3488 = vmul.f32 %v2979, 1.442695
        %v3489 = vpow.pop %v3488
        %v3490 = vmul.f32 %v2984, 1.442695
        %v3491 = vpow.pop %v3490
        %v3492 = vmul.f32 %v2987, 1.442695
        %v3493 = vpow.pop %v3492
        %v3494 = vmul.f32 %v2992, 1.442695
        %v3495 = vpow.pop %v3494
        %v3496 = vmul.f32 %v2995, 1.442695
        %v3497 = vpow.pop %v3496
        %v3498 = vmul.f32 %v3000, 1.442695
        %v3499 = vpow.pop %v3498
        %v3500 = vmul.f32 %v3003, 1.442695
        %v3501 = vpow.pop %v3500
        %v3502 = vmul.f32 %v3008, 1.442695
        %v3503 = vpow.pop %v3502
        %v3504 = vmul.f32 %v3011, 1.442695
        %v3505 = vpow.pop %v3504
        %v3506 = vmul.f32 %v3016, 1.442695
        %v3507 = vpow.pop %v3506
        %v3508 = vmul.f32 %v3019, 1.442695
        %v3509 = vpow.pop %v3508
        %v3510 = vmul.f32 %v3024, 1.442695
        %v3511 = vpow.pop %v3510
        %v3512 = vmul.f32 %v3027, 1.442695
        %v3513 = vpow.pop %v3512
        %v3514 = vmul.f32 %v3032, 1.442695
        %v3515 = vpow.pop %v3514
        %v3516 = vmul.f32 %v3035, 1.442695
        %v3517 = vpow.pop %v3516
        %v3518 = vmul.f32 %v3040, 1.442695
        %v3519 = vpow.pop %v3518
        %v3520 = vmul.f32 %v3043, 1.442695
        %v3521 = vpow.pop %v3520
        %v3522 = vmul.f32 %v3048, 1.442695
        %v3523 = vpow.pop %v3522
        %v3524 = vmul.f32 %v3051, 1.442695
        %v3525 = vpow.pop %v3524
        %v3526 = vmul.f32 %v3056, 1.442695
        %v3527 = vpow.pop %v3526
        %v3528 = vmul.f32 %v3059, 1.442695
        %v3529 = vpow.pop %v3528
        %v3530 = vmul.f32 %v3064, 1.442695
        %v3531 = vpow.pop %v3530
        %v3532 = vmul.f32 %v3067, 1.442695
        %v3533 = vpow.pop %v3532
        %v3534 = vmul.f32 %v3072, 1.442695
        %v3535 = vpow.pop %v3534
        %v3536 = vmul.f32 %v3075, 1.442695
        %v3537 = vpow.pop %v3536
        %v3538 = vmul.f32 %v3080, 1.442695
        %v3539 = vpow.pop %v3538
        %v3540 = vmul.f32 %v3083, 1.442695
        %v3541 = vpow.pop %v3540
        %v3542 = vmul.f32 %v3088, 1.442695
        %v3543 = vpow.pop %v3542
        %v3544 = vmul.f32 %v3091, 1.442695
        %v3545 = vpow.pop %v3544
        %v3546 = vmul.f32 %v3096, 1.442695
        %v3547 = vpow.pop %v3546
        %v3548 = vmul.f32 %v3099, 1.442695
        %v3549 = vpow.pop %v3548
        %v3550 = vmul.f32 %v3104, 1.442695
        %v3551 = vpow.pop %v3550
        %v3552 = vmul.f32 %v3107, 1.442695
        %v3553 = vpow.pop %v3552
        %v3554 = vmul.f32 %v3112, 1.442695
        %v3555 = vpow.pop %v3554
        %v3556 = vmul.f32 %v3115, 1.442695
        %v3557 = vpow.pop %v3556
        %v3558 = vmul.f32 %v3120, 1.442695
        %v3559 = vpow.pop %v3558
        %v3560 = vmul.f32 %v3123, 1.442695
        %v3561 = vpow.pop %v3560
        %v3562 = vmul.f32 %v3128, 1.442695
        %v3563 = vpow.pop %v3562
        %v3564 = vmul.f32 %v3131, 1.442695
        %v3565 = vpow.pop %v3564
        %v3566 = vmul.f32 %v3136, 1.442695
        %v3567 = vpow.pop %v3566
        %v3568 = vmul.f32 %v3139, 1.442695
        %v3569 = vpow.pop %v3568
        %v3570 = vmul.f32 %v3144, 1.442695
        %v3571 = vpow.pop %v3570
        %v3572 = vmul.f32 %v3147, 1.442695
        %v3573 = vpow.pop %v3572
        %v3574 = vmul.f32 %v3152, 1.442695
        %v3575 = vpow.pop %v3574
        %v3576 = vmul.f32 %v3155, 1.442695
        %v3577 = vpow.pop %v3576
        %v3578 = vmul.f32 %v3160, 1.442695
        %v3579 = vpow.pop %v3578
        %v3580 = vmul.f32 %v3163, 1.442695
        %v3581 = vpow.pop %v3580
        %v3582 = vmul.f32 %v3168, 1.442695
        %v3583 = vpow.pop %v3582
        %v3584 = vmul.f32 %v3171, 1.442695
        %v3585 = vpow.pop %v3584
        %v3586 = vmul.f32 %v3176, 1.442695
        %v3587 = vpow.pop %v3586
        %v3588 = vmul.f32 %v3179, 1.442695
        %v3589 = vpow.pop %v3588
        %v3590 = vmul.f32 %v3184, 1.442695
        %v3591 = vpow.pop %v3590
        %v3592 = vmul.f32 %v3187, 1.442695
        %v3593 = vpow.pop %v3592
        %v3594 = vmul.f32 %v3192, 1.442695
        %v3595 = vpow.pop %v3594
        %v3596 = vmul.f32 %v3195, 1.442695
        %v3597 = vpow.pop %v3596
        %v3598 = vmul.f32 %v3200, 1.442695
        %v3599 = vpow.pop %v3598
        %v3600 = vmul.f32 %v3203, 1.442695
        %v3601 = vpow.pop %v3600
        %v3602 = vmul.f32 %v3208, 1.442695
        %v3603 = vpow.pop %v3602
        %v3604 = vmul.f32 %v3211, 1.442695
        %v3605 = vpow.pop %v3604
        %v3606 = vmul.f32 %v3216, 1.442695
        %v3607 = vpow.pop %v3606
        %v3608 = vmul.f32 %v3219, 1.442695
        %v3609 = vpow.pop %v3608
        %v3610 = vmul.f32 %v3224, 1.442695
        %v3611 = vpow.pop %v3610
        %v3612 = vmul.f32 %v3227, 1.442695
        %v3613 = vpow.pop %v3612
        %v3614 = vmul.f32 %v3232, 1.442695
        %v3615 = vpow.pop %v3614
        %v3616 = vmul.f32 %v3235, 1.442695
        %v3617 = vpow.pop %v3616
        %v3618 = vmul.f32 %v3240, 1.442695
        %v3619 = vpow.pop %v3618
        %v3620 = vmul.f32 %v3243, 1.442695
        %v3621 = vpow.pop %v3620
        %v3622 = vmul.f32 %v3248, 1.442695
        %v3623 = vpow.pop %v3622
        %v3624 = vmul.f32 %v3251, 1.442695
        %v3625 = vpow.pop %v3624
        %v3626 = vmul.f32 %v3256, 1.442695
        %v3627 = vpow.pop %v3626
        %v3628 = vmul.f32 %v3259, 1.442695
        %v3629 = vpow.pop %v3628
        %v3630 = vmul.f32 %v3264, 1.442695
        %v3631 = vpow.pop %v3630
        %v3632 = vmul.f32 %v3267, 1.442695
        %v3633 = vpow.pop %v3632
        %v3634 = vmul.f32 %v3272, 1.442695
        %v3635 = vpow.pop %v3634
        %v3636 = vmul.f32 %v3275, 1.442695
        %v3637 = vpow.pop %v3636
        %v3638 = vmul.f32 %v3280, 1.442695
        %v3639 = vpow.pop %v3638
        %v3640 = vmul.f32 %v3283, 1.442695
        %v3641 = vpow.pop %v3640
        %v3642 = vmul.f32 %v3288, 1.442695
        %v3643 = vpow.pop %v3642
        %v3644 = vmul.f32 %v3291, 1.442695
        %v3645 = vpow.pop %v3644
        %v3646 = vmul.f32 %v3296, 1.442695
        %v3647 = vpow.pop %v3646
        %v3648 = vmul.f32 %v3299, 1.442695
        %v3649 = vpow.pop %v3648
        %v3650 = vmul.f32 %v3304, 1.442695
        %v3651 = vpow.pop %v3650
        %v3652 = vmul.f32 %v3307, 1.442695
        %v3653 = vpow.pop %v3652
        %v3654 = vmul.f32 %v3312, 1.442695
        %v3655 = vpow.pop %v3654
        %v3656 = vmul.f32 %v3315, 1.442695
        %v3657 = vpow.pop %v3656
        %v3658 = vmul.f32 %v3320, 1.442695
        %v3659 = vpow.pop %v3658
        %v3660 = vmul.f32 %v3323, 1.442695
        %v3661 = vpow.pop %v3660
        %v3662 = vmul.f32 %v3328, 1.442695
        %v3663 = vpow.pop %v3662
        %v3664 = vmul.f32 %v3331, 1.442695
        %v3665 = vpow.pop %v3664
        %v3666 = vmul.f32 %v3336, 1.442695
        %v3667 = vpow.pop %v3666
        %v3668 = vmul.f32 %v3339, 1.442695
        %v3669 = vpow.pop %v3668
        %v3670 = vmul.f32 %v3344, 1.442695
        %v3671 = vpow.pop %v3670
        %v3672 = vmul.f32 %v3347, 1.442695
        %v3673 = vpow.pop %v3672
        %v3674 = vmul.f32 %v3352, 1.442695
        %v3675 = vpow.pop %v3674
        %v3676 = vmul.f32 %v3355, 1.442695
        %v3677 = vpow.pop %v3676
        %v3678 = vmul.f32 %v3360, 1.442695
        %v3679 = vpow.pop %v3678
        %v3680 = vmul.f32 %v3363, 1.442695
        %v3681 = vpow.pop %v3680
        %v3682 = vmul.f32 %v3368, 1.442695
        %v3683 = vpow.pop %v3682
        %v3684 = vmul.f32 %v3371, 1.442695
        %v3685 = vpow.pop %v3684
        %v3686 = vmul.f32 %v3376, 1.442695
        %v3687 = vpow.pop %v3686
        %v3688 = vmul.f32 %v3379, 1.442695
        %v3689 = vpow.pop %v3688
        %v3690 = vmul.f32 %v3384, 1.442695
        %v3691 = vpow.pop %v3690
        %v3692 = vmul.f32 %v3387, 1.442695
        %v3693 = vpow.pop %v3692
        %v3694 = vmul.f32 %v3392, 1.442695
        %v3695 = vpow.pop %v3694
        %v3696 = vmul.f32 %v3395, 1.442695
        %v3697 = vpow.pop %v3696
        %v3698 = vmul.f32 %v3400, 1.442695
        %v3699 = vpow.pop %v3698
        %v3700 = vmul.f32 %v3403, 1.442695
        %v3701 = vpow.pop %v3700
        %v3702 = vmul.f32 %v3408, 1.442695
        %v3703 = vpow.pop %v3702
        %v3704 = vmul.f32 %v3411, 1.442695
        %v3705 = vpow.pop %v3704
        %v3706 = vmul.f32 %v3416, 1.442695
        %v3707 = vpow.pop %v3706
        %v3708 = vmul.f32 %v3419, 1.442695
        %v3709 = vpow.pop %v3708
        %v3710 = vmul.f32 %v3424, 1.442695
        %v3711 = vpow.pop %v3710
        %v3712 = vmul.f32 %v3427, 1.442695
        %v3713 = vpow.pop %v3712
        %v3714 = vmul.f32 %v3432, 1.442695
        %v3715 = vpow.pop %v3714
        %v3716 = vmul.f32 %v3435, 1.442695
        %v3717 = vpow.pop %v3716
        %v3718 = vmul.f32 %v3440, 1.442695
        %v3719 = vpow.pop %v3718
        %v3720 = vmul.f32 %v3443, 1.442695
        %v3721 = vpow.pop %v3720
        %v3722 = vmul.f32 %v3448, 1.442695
        %v3723 = vpow.pop %v3722
        %v3724 = vmul.f32 %v3451, 1.442695
        %v3725 = vpow.pop %v3724
        %v3726 = vmul.f32 %v3456, 1.442695
        %v3727 = vpow.pop %v3726
        %v3728 = vmul.f32 %v3459, 1.442695
        %v3729 = vpow.pop %v3728
        %v3730 = vmul.f32 %v3464, 1.442695
        %v3731 = vpow.pop %v3730
        %v3732 = vmul.f32 %v3467, 1.442695
        %v3733 = vpow.pop %v3732
        %v3734 = vmul.f32 %v3472, 1.442695
        %v3735 = vpow.pop %v3734
        %v3736 = vmul.f32 %v3475, 1.442695
        %v3737 = vpow.pop %v3736
        %v3738 = vmul.f32 %v3480, 1.442695
        %v3739 = vpow.pop %v3738
        %v3740 = vmul.f32 %v3483, 1.442695
        %v3741 = vpow.pop %v3740
        %v3742 = vld [vmem:[%s641] sm:$0xff]
        %v3743 = vld [vmem:[%s641 + $0x8] sm:$0xff]
        %v3744 = vld [vmem:[%s641 + $0x10] sm:$0xff]
        %v3745 = vld [vmem:[%s641 + $0x18] sm:$0xff]
        %v3746 = vld [vmem:[%s641 + $0x20] sm:$0xff]
        %v3747 = vld [vmem:[%s641 + $0x28] sm:$0xff]
        %v3748 = vld [vmem:[%s641 + $0x30] sm:$0xff]
        %v3749 = vld [vmem:[%s641 + $0x38] sm:$0xff]
        %v3750 = vld [vmem:[%s641 + $0x40] sm:$0xff]
        %v3751 = vld [vmem:[%s641 + $0x48] sm:$0xff]
        %v3752 = vld [vmem:[%s641 + $0x50] sm:$0xff]
        %v3753 = vld [vmem:[%s641 + $0x58] sm:$0xff]
        %v3754 = vld [vmem:[%s641 + $0x60] sm:$0xff]
        %v3755 = vld [vmem:[%s641 + $0x68] sm:$0xff]
        %v3756 = vld [vmem:[%s641 + $0x70] sm:$0xff]
        %v3757 = vld [vmem:[%s641 + $0x78] sm:$0xff]
        %v3758 = vld [vmem:[%s641 + $0x80] sm:$0xff]
        %v3759 = vld [vmem:[%s641 + $0x88] sm:$0xff]
        %v3760 = vld [vmem:[%s641 + $0x90] sm:$0xff]
        %v3761 = vld [vmem:[%s641 + $0x98] sm:$0xff]
        %v3762 = vld [vmem:[%s641 + $0xa0] sm:$0xff]
        %v3763 = vld [vmem:[%s641 + $0xa8] sm:$0xff]
        %v3764 = vld [vmem:[%s641 + $0xb0] sm:$0xff]
        %v3765 = vld [vmem:[%s641 + $0xb8] sm:$0xff]
        %v3766 = vld [vmem:[%s641 + $0xc0] sm:$0xff]
        %v3767 = vld [vmem:[%s641 + $0xc8] sm:$0xff]
        %v3768 = vld [vmem:[%s641 + $0xd0] sm:$0xff]
        %v3769 = vld [vmem:[%s641 + $0xd8] sm:$0xff]
        %v3770 = vld [vmem:[%s641 + $0xe0] sm:$0xff]
        %v3771 = vld [vmem:[%s641 + $0xe8] sm:$0xff]
        %v3772 = vld [vmem:[%s641 + $0xf0] sm:$0xff]
        %v3773 = vld [vmem:[%s641 + $0xf8] sm:$0xff]
        %v3774 = vld [vmem:[%s641 + $0x100] sm:$0xff]
        %v3775 = vld [vmem:[%s641 + $0x108] sm:$0xff]
        %v3776 = vld [vmem:[%s641 + $0x110] sm:$0xff]
        %v3777 = vld [vmem:[%s641 + $0x118] sm:$0xff]
        %v3778 = vld [vmem:[%s641 + $0x120] sm:$0xff]
        %v3779 = vld [vmem:[%s641 + $0x128] sm:$0xff]
        %v3780 = vld [vmem:[%s641 + $0x130] sm:$0xff]
        %v3781 = vld [vmem:[%s641 + $0x138] sm:$0xff]
        %v3782 = vld [vmem:[%s641 + $0x140] sm:$0xff]
        %v3783 = vld [vmem:[%s641 + $0x148] sm:$0xff]
        %v3784 = vld [vmem:[%s641 + $0x150] sm:$0xff]
        %v3785 = vld [vmem:[%s641 + $0x158] sm:$0xff]
        %v3786 = vld [vmem:[%s641 + $0x160] sm:$0xff]
        %v3787 = vld [vmem:[%s641 + $0x168] sm:$0xff]
        %v3788 = vld [vmem:[%s641 + $0x170] sm:$0xff]
        %v3789 = vld [vmem:[%s641 + $0x178] sm:$0xff]
        %v3790 = vld [vmem:[%s641 + $0x180] sm:$0xff]
        %v3791 = vld [vmem:[%s641 + $0x188] sm:$0xff]
        %v3792 = vld [vmem:[%s641 + $0x190] sm:$0xff]
        %v3793 = vld [vmem:[%s641 + $0x198] sm:$0xff]
        %v3794 = vld [vmem:[%s641 + $0x1a0] sm:$0xff]
        %v3795 = vld [vmem:[%s641 + $0x1a8] sm:$0xff]
        %v3796 = vld [vmem:[%s641 + $0x1b0] sm:$0xff]
        %v3797 = vld [vmem:[%s641 + $0x1b8] sm:$0xff]
        %v3798 = vld [vmem:[%s641 + $0x1c0] sm:$0xff]
        %v3799 = vld [vmem:[%s641 + $0x1c8] sm:$0xff]
        %v3800 = vld [vmem:[%s641 + $0x1d0] sm:$0xff]
        %v3801 = vld [vmem:[%s641 + $0x1d8] sm:$0xff]
        %v3802 = vld [vmem:[%s641 + $0x1e0] sm:$0xff]
        %v3803 = vld [vmem:[%s641 + $0x1e8] sm:$0xff]
        %v3804 = vld [vmem:[%s641 + $0x1f0] sm:$0xff]
        %v3805 = vld [vmem:[%s641 + $0x1f8] sm:$0xff]
        %v3806 = vld [vmem:[%s641 + $0x200] sm:$0xff]
        %v3807 = vld [vmem:[%s641 + $0x208] sm:$0xff]
        %v3808 = vld [vmem:[%s641 + $0x210] sm:$0xff]
        %v3809 = vld [vmem:[%s641 + $0x218] sm:$0xff]
        %v3810 = vld [vmem:[%s641 + $0x220] sm:$0xff]
        %v3811 = vld [vmem:[%s641 + $0x228] sm:$0xff]
        %v3812 = vld [vmem:[%s641 + $0x230] sm:$0xff]
        %v3813 = vld [vmem:[%s641 + $0x238] sm:$0xff]
        %v3814 = vld [vmem:[%s641 + $0x240] sm:$0xff]
        %v3815 = vld [vmem:[%s641 + $0x248] sm:$0xff]
        %v3816 = vld [vmem:[%s641 + $0x250] sm:$0xff]
        %v3817 = vld [vmem:[%s641 + $0x258] sm:$0xff]
        %v3818 = vld [vmem:[%s641 + $0x260] sm:$0xff]
        %v3819 = vld [vmem:[%s641 + $0x268] sm:$0xff]
        %v3820 = vld [vmem:[%s641 + $0x270] sm:$0xff]
        %v3821 = vld [vmem:[%s641 + $0x278] sm:$0xff]
        %v3822 = vld [vmem:[%s641 + $0x280] sm:$0xff]
        %v3823 = vld [vmem:[%s641 + $0x288] sm:$0xff]
        %v3824 = vld [vmem:[%s641 + $0x290] sm:$0xff]
        %v3825 = vld [vmem:[%s641 + $0x298] sm:$0xff]
        %v3826 = vld [vmem:[%s641 + $0x2a0] sm:$0xff]
        %v3827 = vld [vmem:[%s641 + $0x2a8] sm:$0xff]
        %v3828 = vld [vmem:[%s641 + $0x2b0] sm:$0xff]
        %v3829 = vld [vmem:[%s641 + $0x2b8] sm:$0xff]
        %v3830 = vld [vmem:[%s641 + $0x2c0] sm:$0xff]
        %v3831 = vld [vmem:[%s641 + $0x2c8] sm:$0xff]
        %v3832 = vld [vmem:[%s641 + $0x2d0] sm:$0xff]
        %v3833 = vld [vmem:[%s641 + $0x2d8] sm:$0xff]
        %v3834 = vld [vmem:[%s641 + $0x2e0] sm:$0xff]
        %v3835 = vld [vmem:[%s641 + $0x2e8] sm:$0xff]
        %v3836 = vld [vmem:[%s641 + $0x2f0] sm:$0xff]
        %v3837 = vld [vmem:[%s641 + $0x2f8] sm:$0xff]
        %v3838 = vld [vmem:[%s641 + $0x300] sm:$0xff]
        %v3839 = vld [vmem:[%s641 + $0x308] sm:$0xff]
        %v3840 = vld [vmem:[%s641 + $0x310] sm:$0xff]
        %v3841 = vld [vmem:[%s641 + $0x318] sm:$0xff]
        %v3842 = vld [vmem:[%s641 + $0x320] sm:$0xff]
        %v3843 = vld [vmem:[%s641 + $0x328] sm:$0xff]
        %v3844 = vld [vmem:[%s641 + $0x330] sm:$0xff]
        %v3845 = vld [vmem:[%s641 + $0x338] sm:$0xff]
        %v3846 = vld [vmem:[%s641 + $0x340] sm:$0xff]
        %v3847 = vld [vmem:[%s641 + $0x348] sm:$0xff]
        %v3848 = vld [vmem:[%s641 + $0x350] sm:$0xff]
        %v3849 = vld [vmem:[%s641 + $0x358] sm:$0xff]
        %v3850 = vld [vmem:[%s641 + $0x360] sm:$0xff]
        %v3851 = vld [vmem:[%s641 + $0x368] sm:$0xff]
        %v3852 = vld [vmem:[%s641 + $0x370] sm:$0xff]
        %v3853 = vld [vmem:[%s641 + $0x378] sm:$0xff]
        %v3854 = vld [vmem:[%s641 + $0x380] sm:$0xff]
        %v3855 = vld [vmem:[%s641 + $0x388] sm:$0xff]
        %v3856 = vld [vmem:[%s641 + $0x390] sm:$0xff]
        %v3857 = vld [vmem:[%s641 + $0x398] sm:$0xff]
        %v3858 = vld [vmem:[%s641 + $0x3a0] sm:$0xff]
        %v3859 = vld [vmem:[%s641 + $0x3a8] sm:$0xff]
        %v3860 = vld [vmem:[%s641 + $0x3b0] sm:$0xff]
        %v3861 = vld [vmem:[%s641 + $0x3b8] sm:$0xff]
        %v3862 = vld [vmem:[%s641 + $0x3c0] sm:$0xff]
        %v3863 = vld [vmem:[%s641 + $0x3c8] sm:$0xff]
        %v3864 = vld [vmem:[%s641 + $0x3d0] sm:$0xff]
        %v3865 = vld [vmem:[%s641 + $0x3d8] sm:$0xff]
        %v3866 = vld [vmem:[%s641 + $0x3e0] sm:$0xff]
        %v3867 = vld [vmem:[%s641 + $0x3e8] sm:$0xff]
        %v3868 = vld [vmem:[%s641 + $0x3f0] sm:$0xff]
        %v3869 = vld [vmem:[%s641 + $0x3f8] sm:$0xff]
        %3998 = vrot.lane.b32.xlu0 %v3742, 16
        %v3999 = vpop.permute.xlu0 %3998
        %4000 = vrot.lane.b32.xlu0 %v3743, 16
        %v4001 = vpop.permute.xlu0 %4000
        %4002 = vrot.lane.b32.xlu0 %v3744, 16
        %v4003 = vpop.permute.xlu0 %4002
        %4004 = vrot.lane.b32.xlu0 %v3745, 16
        %v4005 = vpop.permute.xlu0 %4004
        %4006 = vrot.lane.b32.xlu0 %v3746, 16
        %v4007 = vpop.permute.xlu0 %4006
        %4008 = vrot.lane.b32.xlu0 %v3747, 16
        %v4009 = vpop.permute.xlu0 %4008
        %4010 = vrot.lane.b32.xlu0 %v3748, 16
        %v4011 = vpop.permute.xlu0 %4010
        %4012 = vrot.lane.b32.xlu0 %v3749, 16
        %v4013 = vpop.permute.xlu0 %4012
        %4014 = vrot.lane.b32.xlu0 %v3750, 16
        %v4015 = vpop.permute.xlu0 %4014
        %4016 = vrot.lane.b32.xlu0 %v3751, 16
        %v4017 = vpop.permute.xlu0 %4016
        %4018 = vrot.lane.b32.xlu0 %v3752, 16
        %v4019 = vpop.permute.xlu0 %4018
        %4020 = vrot.lane.b32.xlu0 %v3753, 16
        %v4021 = vpop.permute.xlu0 %4020
        %4022 = vrot.lane.b32.xlu0 %v3754, 16
        %v4023 = vpop.permute.xlu0 %4022
        %4024 = vrot.lane.b32.xlu0 %v3755, 16
        %v4025 = vpop.permute.xlu0 %4024
        %4026 = vrot.lane.b32.xlu0 %v3756, 16
        %v4027 = vpop.permute.xlu0 %4026
        %4028 = vrot.lane.b32.xlu0 %v3757, 16
        %v4029 = vpop.permute.xlu0 %4028
        %4030 = vrot.lane.b32.xlu0 %v3758, 16
        %v4031 = vpop.permute.xlu0 %4030
        %4032 = vrot.lane.b32.xlu0 %v3759, 16
        %v4033 = vpop.permute.xlu0 %4032
        %4034 = vrot.lane.b32.xlu0 %v3760, 16
        %v4035 = vpop.permute.xlu0 %4034
        %4036 = vrot.lane.b32.xlu0 %v3761, 16
        %v4037 = vpop.permute.xlu0 %4036
        %4038 = vrot.lane.b32.xlu0 %v3762, 16
        %v4039 = vpop.permute.xlu0 %4038
        %4040 = vrot.lane.b32.xlu0 %v3763, 16
        %v4041 = vpop.permute.xlu0 %4040
        %4042 = vrot.lane.b32.xlu0 %v3764, 16
        %v4043 = vpop.permute.xlu0 %4042
        %4044 = vrot.lane.b32.xlu0 %v3765, 16
        %v4045 = vpop.permute.xlu0 %4044
        %4046 = vrot.lane.b32.xlu0 %v3766, 16
        %v4047 = vpop.permute.xlu0 %4046
        %4048 = vrot.lane.b32.xlu0 %v3767, 16
        %v4049 = vpop.permute.xlu0 %4048
        %4050 = vrot.lane.b32.xlu0 %v3768, 16
        %v4051 = vpop.permute.xlu0 %4050
        %4052 = vrot.lane.b32.xlu0 %v3769, 16
        %v4053 = vpop.permute.xlu0 %4052
        %4054 = vrot.lane.b32.xlu0 %v3770, 16
        %v4055 = vpop.permute.xlu0 %4054
        %4056 = vrot.lane.b32.xlu0 %v3771, 16
        %v4057 = vpop.permute.xlu0 %4056
        %4058 = vrot.lane.b32.xlu0 %v3772, 16
        %v4059 = vpop.permute.xlu0 %4058
        %4060 = vrot.lane.b32.xlu0 %v3773, 16
        %v4061 = vpop.permute.xlu0 %4060
        %4062 = vrot.lane.b32.xlu0 %v3774, 16
        %v4063 = vpop.permute.xlu0 %4062
        %4064 = vrot.lane.b32.xlu0 %v3775, 16
        %v4065 = vpop.permute.xlu0 %4064
        %4066 = vrot.lane.b32.xlu0 %v3776, 16
        %v4067 = vpop.permute.xlu0 %4066
        %4068 = vrot.lane.b32.xlu0 %v3777, 16
        %v4069 = vpop.permute.xlu0 %4068
        %4070 = vrot.lane.b32.xlu0 %v3778, 16
        %v4071 = vpop.permute.xlu0 %4070
        %4072 = vrot.lane.b32.xlu0 %v3779, 16
        %v4073 = vpop.permute.xlu0 %4072
        %4074 = vrot.lane.b32.xlu0 %v3780, 16
        %v4075 = vpop.permute.xlu0 %4074
        %4076 = vrot.lane.b32.xlu0 %v3781, 16
        %v4077 = vpop.permute.xlu0 %4076
        %4078 = vrot.lane.b32.xlu0 %v3782, 16
        %v4079 = vpop.permute.xlu0 %4078
        %4080 = vrot.lane.b32.xlu0 %v3783, 16
        %v4081 = vpop.permute.xlu0 %4080
        %4082 = vrot.lane.b32.xlu0 %v3784, 16
        %v4083 = vpop.permute.xlu0 %4082
        %4084 = vrot.lane.b32.xlu0 %v3785, 16
        %v4085 = vpop.permute.xlu0 %4084
        %4086 = vrot.lane.b32.xlu0 %v3786, 16
        %v4087 = vpop.permute.xlu0 %4086
        %4088 = vrot.lane.b32.xlu0 %v3787, 16
        %v4089 = vpop.permute.xlu0 %4088
        %4090 = vrot.lane.b32.xlu0 %v3788, 16
        %v4091 = vpop.permute.xlu0 %4090
        %4092 = vrot.lane.b32.xlu0 %v3789, 16
        %v4093 = vpop.permute.xlu0 %4092
        %4094 = vrot.lane.b32.xlu0 %v3790, 16
        %v4095 = vpop.permute.xlu0 %4094
        %4096 = vrot.lane.b32.xlu0 %v3791, 16
        %v4097 = vpop.permute.xlu0 %4096
        %4098 = vrot.lane.b32.xlu0 %v3792, 16
        %v4099 = vpop.permute.xlu0 %4098
        %4100 = vrot.lane.b32.xlu0 %v3793, 16
        %v4101 = vpop.permute.xlu0 %4100
        %4102 = vrot.lane.b32.xlu0 %v3794, 16
        %v4103 = vpop.permute.xlu0 %4102
        %4104 = vrot.lane.b32.xlu0 %v3795, 16
        %v4105 = vpop.permute.xlu0 %4104
        %4106 = vrot.lane.b32.xlu0 %v3796, 16
        %v4107 = vpop.permute.xlu0 %4106
        %4108 = vrot.lane.b32.xlu0 %v3797, 16
        %v4109 = vpop.permute.xlu0 %4108
        %4110 = vrot.lane.b32.xlu0 %v3798, 16
        %v4111 = vpop.permute.xlu0 %4110
        %4112 = vrot.lane.b32.xlu0 %v3799, 16
        %v4113 = vpop.permute.xlu0 %4112
        %4114 = vrot.lane.b32.xlu0 %v3800, 16
        %v4115 = vpop.permute.xlu0 %4114
        %4116 = vrot.lane.b32.xlu0 %v3801, 16
        %v4117 = vpop.permute.xlu0 %4116
        %4118 = vrot.lane.b32.xlu0 %v3802, 16
        %v4119 = vpop.permute.xlu0 %4118
        %4120 = vrot.lane.b32.xlu0 %v3803, 16
        %v4121 = vpop.permute.xlu0 %4120
        %4122 = vrot.lane.b32.xlu0 %v3804, 16
        %v4123 = vpop.permute.xlu0 %4122
        %4124 = vrot.lane.b32.xlu0 %v3805, 16
        %v4125 = vpop.permute.xlu0 %4124
        %4126 = vrot.lane.b32.xlu0 %v3806, 16
        %v4127 = vpop.permute.xlu0 %4126
        %4128 = vrot.lane.b32.xlu0 %v3807, 16
        %v4129 = vpop.permute.xlu0 %4128
        %4130 = vrot.lane.b32.xlu0 %v3808, 16
        %v4131 = vpop.permute.xlu0 %4130
        %4132 = vrot.lane.b32.xlu0 %v3809, 16
        %v4133 = vpop.permute.xlu0 %4132
        %4134 = vrot.lane.b32.xlu0 %v3810, 16
        %v4135 = vpop.permute.xlu0 %4134
        %4136 = vrot.lane.b32.xlu0 %v3811, 16
        %v4137 = vpop.permute.xlu0 %4136
        %4138 = vrot.lane.b32.xlu0 %v3812, 16
        %v4139 = vpop.permute.xlu0 %4138
        %4140 = vrot.lane.b32.xlu0 %v3813, 16
        %v4141 = vpop.permute.xlu0 %4140
        %4142 = vrot.lane.b32.xlu0 %v3814, 16
        %v4143 = vpop.permute.xlu0 %4142
        %4144 = vrot.lane.b32.xlu0 %v3815, 16
        %v4145 = vpop.permute.xlu0 %4144
        %4146 = vrot.lane.b32.xlu0 %v3816, 16
        %v4147 = vpop.permute.xlu0 %4146
        %4148 = vrot.lane.b32.xlu0 %v3817, 16
        %v4149 = vpop.permute.xlu0 %4148
        %4150 = vrot.lane.b32.xlu0 %v3818, 16
        %v4151 = vpop.permute.xlu0 %4150
        %4152 = vrot.lane.b32.xlu0 %v3819, 16
        %v4153 = vpop.permute.xlu0 %4152
        %4154 = vrot.lane.b32.xlu0 %v3820, 16
        %v4155 = vpop.permute.xlu0 %4154
        %4156 = vrot.lane.b32.xlu0 %v3821, 16
        %v4157 = vpop.permute.xlu0 %4156
        %4158 = vrot.lane.b32.xlu0 %v3822, 16
        %v4159 = vpop.permute.xlu0 %4158
        %4160 = vrot.lane.b32.xlu0 %v3823, 16
        %v4161 = vpop.permute.xlu0 %4160
        %4162 = vrot.lane.b32.xlu0 %v3824, 16
        %v4163 = vpop.permute.xlu0 %4162
        %4164 = vrot.lane.b32.xlu0 %v3825, 16
        %v4165 = vpop.permute.xlu0 %4164
        %4166 = vrot.lane.b32.xlu0 %v3826, 16
        %v4167 = vpop.permute.xlu0 %4166
        %4168 = vrot.lane.b32.xlu0 %v3827, 16
        %v4169 = vpop.permute.xlu0 %4168
        %4170 = vrot.lane.b32.xlu0 %v3828, 16
        %v4171 = vpop.permute.xlu0 %4170
        %4172 = vrot.lane.b32.xlu0 %v3829, 16
        %v4173 = vpop.permute.xlu0 %4172
        %4174 = vrot.lane.b32.xlu0 %v3830, 16
        %v4175 = vpop.permute.xlu0 %4174
        %4176 = vrot.lane.b32.xlu0 %v3831, 16
        %v4177 = vpop.permute.xlu0 %4176
        %4178 = vrot.lane.b32.xlu0 %v3832, 16
        %v4179 = vpop.permute.xlu0 %4178
        %4180 = vrot.lane.b32.xlu0 %v3833, 16
        %v4181 = vpop.permute.xlu0 %4180
        %4182 = vrot.lane.b32.xlu0 %v3834, 16
        %v4183 = vpop.permute.xlu0 %4182
        %4184 = vrot.lane.b32.xlu0 %v3835, 16
        %v4185 = vpop.permute.xlu0 %4184
        %4186 = vrot.lane.b32.xlu0 %v3836, 16
        %v4187 = vpop.permute.xlu0 %4186
        %4188 = vrot.lane.b32.xlu0 %v3837, 16
        %v4189 = vpop.permute.xlu0 %4188
        %4190 = vrot.lane.b32.xlu0 %v3838, 16
        %v4191 = vpop.permute.xlu0 %4190
        %4192 = vrot.lane.b32.xlu0 %v3839, 16
        %v4193 = vpop.permute.xlu0 %4192
        %4194 = vrot.lane.b32.xlu0 %v3840, 16
        %v4195 = vpop.permute.xlu0 %4194
        %4196 = vrot.lane.b32.xlu0 %v3841, 16
        %v4197 = vpop.permute.xlu0 %4196
        %4198 = vrot.lane.b32.xlu0 %v3842, 16
        %v4199 = vpop.permute.xlu0 %4198
        %4200 = vrot.lane.b32.xlu0 %v3843, 16
        %v4201 = vpop.permute.xlu0 %4200
        %4202 = vrot.lane.b32.xlu0 %v3844, 16
        %v4203 = vpop.permute.xlu0 %4202
        %4204 = vrot.lane.b32.xlu0 %v3845, 16
        %v4205 = vpop.permute.xlu0 %4204
        %4206 = vrot.lane.b32.xlu0 %v3846, 16
        %v4207 = vpop.permute.xlu0 %4206
        %4208 = vrot.lane.b32.xlu0 %v3847, 16
        %v4209 = vpop.permute.xlu0 %4208
        %4210 = vrot.lane.b32.xlu0 %v3848, 16
        %v4211 = vpop.permute.xlu0 %4210
        %4212 = vrot.lane.b32.xlu0 %v3849, 16
        %v4213 = vpop.permute.xlu0 %4212
        %4214 = vrot.lane.b32.xlu0 %v3850, 16
        %v4215 = vpop.permute.xlu0 %4214
        %4216 = vrot.lane.b32.xlu0 %v3851, 16
        %v4217 = vpop.permute.xlu0 %4216
        %4218 = vrot.lane.b32.xlu0 %v3852, 16
        %v4219 = vpop.permute.xlu0 %4218
        %4220 = vrot.lane.b32.xlu0 %v3853, 16
        %v4221 = vpop.permute.xlu0 %4220
        %4222 = vrot.lane.b32.xlu0 %v3854, 16
        %v4223 = vpop.permute.xlu0 %4222
        %4224 = vrot.lane.b32.xlu0 %v3855, 16
        %v4225 = vpop.permute.xlu0 %4224
        %4226 = vrot.lane.b32.xlu0 %v3856, 16
        %v4227 = vpop.permute.xlu0 %4226
        %4228 = vrot.lane.b32.xlu0 %v3857, 16
        %v4229 = vpop.permute.xlu0 %4228
        %4230 = vrot.lane.b32.xlu0 %v3858, 16
        %v4231 = vpop.permute.xlu0 %4230
        %4232 = vrot.lane.b32.xlu0 %v3859, 16
        %v4233 = vpop.permute.xlu0 %4232
        %4234 = vrot.lane.b32.xlu0 %v3860, 16
        %v4235 = vpop.permute.xlu0 %4234
        %4236 = vrot.lane.b32.xlu0 %v3861, 16
        %v4237 = vpop.permute.xlu0 %4236
        %4238 = vrot.lane.b32.xlu0 %v3862, 16
        %v4239 = vpop.permute.xlu0 %4238
        %4240 = vrot.lane.b32.xlu0 %v3863, 16
        %v4241 = vpop.permute.xlu0 %4240
        %4242 = vrot.lane.b32.xlu0 %v3864, 16
        %v4243 = vpop.permute.xlu0 %4242
        %4244 = vrot.lane.b32.xlu0 %v3865, 16
        %v4245 = vpop.permute.xlu0 %4244
        %4246 = vrot.lane.b32.xlu0 %v3866, 16
        %v4247 = vpop.permute.xlu0 %4246
        %4248 = vrot.lane.b32.xlu0 %v3867, 16
        %v4249 = vpop.permute.xlu0 %4248
        %4250 = vrot.lane.b32.xlu0 %v3868, 16
        %v4251 = vpop.permute.xlu0 %4250
        %4252 = vrot.lane.b32.xlu0 %v3869, 16
        %v4253 = vpop.permute.xlu0 %4252
        %v4382 = vmul.f32 %v3487, %v3999
        %v4383 = vmul.f32 %v3489, %v4001
        %v4384 = vmul.f32 %v3491, %v4003
        %v4385 = vmul.f32 %v3493, %v4005
        %v4386 = vmul.f32 %v3495, %v4007
        %v4387 = vmul.f32 %v3497, %v4009
        %v4388 = vmul.f32 %v3499, %v4011
        %v4389 = vmul.f32 %v3501, %v4013
        %v4390 = vmul.f32 %v3503, %v4015
        %v4391 = vmul.f32 %v3505, %v4017
        %v4392 = vmul.f32 %v3507, %v4019
        %v4393 = vmul.f32 %v3509, %v4021
        %v4394 = vmul.f32 %v3511, %v4023
        %v4395 = vmul.f32 %v3513, %v4025
        %v4396 = vmul.f32 %v3515, %v4027
        %v4397 = vmul.f32 %v3517, %v4029
        %v4398 = vmul.f32 %v3519, %v4031
        %v4399 = vmul.f32 %v3521, %v4033
        %v4400 = vmul.f32 %v3523, %v4035
        %v4401 = vmul.f32 %v3525, %v4037
        %v4402 = vmul.f32 %v3527, %v4039
        %v4403 = vmul.f32 %v3529, %v4041
        %v4404 = vmul.f32 %v3531, %v4043
        %v4405 = vmul.f32 %v3533, %v4045
        %v4406 = vmul.f32 %v3535, %v4047
        %v4407 = vmul.f32 %v3537, %v4049
        %v4408 = vmul.f32 %v3539, %v4051
        %v4409 = vmul.f32 %v3541, %v4053
        %v4410 = vmul.f32 %v3543, %v4055
        %v4411 = vmul.f32 %v3545, %v4057
        %v4412 = vmul.f32 %v3547, %v4059
        %v4413 = vmul.f32 %v3549, %v4061
        %v4414 = vmul.f32 %v3551, %v4063
        %v4415 = vmul.f32 %v3553, %v4065
        %v4416 = vmul.f32 %v3555, %v4067
        %v4417 = vmul.f32 %v3557, %v4069
        %v4418 = vmul.f32 %v3559, %v4071
        %v4419 = vmul.f32 %v3561, %v4073
        %v4420 = vmul.f32 %v3563, %v4075
        %v4421 = vmul.f32 %v3565, %v4077
        %v4422 = vmul.f32 %v3567, %v4079
        %v4423 = vmul.f32 %v3569, %v4081
        %v4424 = vmul.f32 %v3571, %v4083
        %v4425 = vmul.f32 %v3573, %v4085
        %v4426 = vmul.f32 %v3575, %v4087
        %v4427 = vmul.f32 %v3577, %v4089
        %v4428 = vmul.f32 %v3579, %v4091
        %v4429 = vmul.f32 %v3581, %v4093
        %v4430 = vmul.f32 %v3583, %v4095
        %v4431 = vmul.f32 %v3585, %v4097
        %v4432 = vmul.f32 %v3587, %v4099
        %v4433 = vmul.f32 %v3589, %v4101
        %v4434 = vmul.f32 %v3591, %v4103
        %v4435 = vmul.f32 %v3593, %v4105
        %v4436 = vmul.f32 %v3595, %v4107
        %v4437 = vmul.f32 %v3597, %v4109
        %v4438 = vmul.f32 %v3599, %v4111
        %v4439 = vmul.f32 %v3601, %v4113
        %v4440 = vmul.f32 %v3603, %v4115
        %v4441 = vmul.f32 %v3605, %v4117
        %v4442 = vmul.f32 %v3607, %v4119
        %v4443 = vmul.f32 %v3609, %v4121
        %v4444 = vmul.f32 %v3611, %v4123
        %v4445 = vmul.f32 %v3613, %v4125
        %v4446 = vmul.f32 %v3615, %v4127
        %v4447 = vmul.f32 %v3617, %v4129
        %v4448 = vmul.f32 %v3619, %v4131
        %v4449 = vmul.f32 %v3621, %v4133
        %v4450 = vmul.f32 %v3623, %v4135
        %v4451 = vmul.f32 %v3625, %v4137
        %v4452 = vmul.f32 %v3627, %v4139
        %v4453 = vmul.f32 %v3629, %v4141
        %v4454 = vmul.f32 %v3631, %v4143
        %v4455 = vmul.f32 %v3633, %v4145
        %v4456 = vmul.f32 %v3635, %v4147
        %v4457 = vmul.f32 %v3637, %v4149
        %v4458 = vmul.f32 %v3639, %v4151
        %v4459 = vmul.f32 %v3641, %v4153
        %v4460 = vmul.f32 %v3643, %v4155
        %v4461 = vmul.f32 %v3645, %v4157
        %v4462 = vmul.f32 %v3647, %v4159
        %v4463 = vmul.f32 %v3649, %v4161
        %v4464 = vmul.f32 %v3651, %v4163
        %v4465 = vmul.f32 %v3653, %v4165
        %v4466 = vmul.f32 %v3655, %v4167
        %v4467 = vmul.f32 %v3657, %v4169
        %v4468 = vmul.f32 %v3659, %v4171
        %v4469 = vmul.f32 %v3661, %v4173
        %v4470 = vmul.f32 %v3663, %v4175
        %v4471 = vmul.f32 %v3665, %v4177
        %v4472 = vmul.f32 %v3667, %v4179
        %v4473 = vmul.f32 %v3669, %v4181
        %v4474 = vmul.f32 %v3671, %v4183
        %v4475 = vmul.f32 %v3673, %v4185
        %v4476 = vmul.f32 %v3675, %v4187
        %v4477 = vmul.f32 %v3677, %v4189
        %v4478 = vmul.f32 %v3679, %v4191
        %v4479 = vmul.f32 %v3681, %v4193
        %v4480 = vmul.f32 %v3683, %v4195
        %v4481 = vmul.f32 %v3685, %v4197
        %v4482 = vmul.f32 %v3687, %v4199
        %v4483 = vmul.f32 %v3689, %v4201
        %v4484 = vmul.f32 %v3691, %v4203
        %v4485 = vmul.f32 %v3693, %v4205
        %v4486 = vmul.f32 %v3695, %v4207
        %v4487 = vmul.f32 %v3697, %v4209
        %v4488 = vmul.f32 %v3699, %v4211
        %v4489 = vmul.f32 %v3701, %v4213
        %v4490 = vmul.f32 %v3703, %v4215
        %v4491 = vmul.f32 %v3705, %v4217
        %v4492 = vmul.f32 %v3707, %v4219
        %v4493 = vmul.f32 %v3709, %v4221
        %v4494 = vmul.f32 %v3711, %v4223
        %v4495 = vmul.f32 %v3713, %v4225
        %v4496 = vmul.f32 %v3715, %v4227
        %v4497 = vmul.f32 %v3717, %v4229
        %v4498 = vmul.f32 %v3719, %v4231
        %v4499 = vmul.f32 %v3721, %v4233
        %v4500 = vmul.f32 %v3723, %v4235
        %v4501 = vmul.f32 %v3725, %v4237
        %v4502 = vmul.f32 %v3727, %v4239
        %v4503 = vmul.f32 %v3729, %v4241
        %v4504 = vmul.f32 %v3731, %v4243
        %v4505 = vmul.f32 %v3733, %v4245
        %v4506 = vmul.f32 %v3735, %v4247
        %v4507 = vmul.f32 %v3737, %v4249
        %v4508 = vmul.f32 %v3739, %v4251
        %v4509 = vmul.f32 %v3741, %v4253
        %4638 = vrot.lane.b32.xlu0 %v4382, 112
        %v4639 = vpop.permute.xlu0 %4638
        %4640 = vrot.lane.b32.xlu0 %v4383, 112
        %v4641 = vpop.permute.xlu0 %4640
        %4642 = vrot.lane.b32.xlu0 %v4384, 112
        %v4643 = vpop.permute.xlu0 %4642
        %4644 = vrot.lane.b32.xlu0 %v4385, 112
        %v4645 = vpop.permute.xlu0 %4644
        %4646 = vrot.lane.b32.xlu0 %v4386, 112
        %v4647 = vpop.permute.xlu0 %4646
        %4648 = vrot.lane.b32.xlu0 %v4387, 112
        %v4649 = vpop.permute.xlu0 %4648
        %4650 = vrot.lane.b32.xlu0 %v4388, 112
        %v4651 = vpop.permute.xlu0 %4650
        %4652 = vrot.lane.b32.xlu0 %v4389, 112
        %v4653 = vpop.permute.xlu0 %4652
        %4654 = vrot.lane.b32.xlu0 %v4390, 112
        %v4655 = vpop.permute.xlu0 %4654
        %4656 = vrot.lane.b32.xlu0 %v4391, 112
        %v4657 = vpop.permute.xlu0 %4656
        %4658 = vrot.lane.b32.xlu0 %v4392, 112
        %v4659 = vpop.permute.xlu0 %4658
        %4660 = vrot.lane.b32.xlu0 %v4393, 112
        %v4661 = vpop.permute.xlu0 %4660
        %4662 = vrot.lane.b32.xlu0 %v4394, 112
        %v4663 = vpop.permute.xlu0 %4662
        %4664 = vrot.lane.b32.xlu0 %v4395, 112
        %v4665 = vpop.permute.xlu0 %4664
        %4666 = vrot.lane.b32.xlu0 %v4396, 112
        %v4667 = vpop.permute.xlu0 %4666
        %4668 = vrot.lane.b32.xlu0 %v4397, 112
        %v4669 = vpop.permute.xlu0 %4668
        %4670 = vrot.lane.b32.xlu0 %v4398, 112
        %v4671 = vpop.permute.xlu0 %4670
        %4672 = vrot.lane.b32.xlu0 %v4399, 112
        %v4673 = vpop.permute.xlu0 %4672
        %4674 = vrot.lane.b32.xlu0 %v4400, 112
        %v4675 = vpop.permute.xlu0 %4674
        %4676 = vrot.lane.b32.xlu0 %v4401, 112
        %v4677 = vpop.permute.xlu0 %4676
        %4678 = vrot.lane.b32.xlu0 %v4402, 112
        %v4679 = vpop.permute.xlu0 %4678
        %4680 = vrot.lane.b32.xlu0 %v4403, 112
        %v4681 = vpop.permute.xlu0 %4680
        %4682 = vrot.lane.b32.xlu0 %v4404, 112
        %v4683 = vpop.permute.xlu0 %4682
        %4684 = vrot.lane.b32.xlu0 %v4405, 112
        %v4685 = vpop.permute.xlu0 %4684
        %4686 = vrot.lane.b32.xlu0 %v4406, 112
        %v4687 = vpop.permute.xlu0 %4686
        %4688 = vrot.lane.b32.xlu0 %v4407, 112
        %v4689 = vpop.permute.xlu0 %4688
        %4690 = vrot.lane.b32.xlu0 %v4408, 112
        %v4691 = vpop.permute.xlu0 %4690
        %4692 = vrot.lane.b32.xlu0 %v4409, 112
        %v4693 = vpop.permute.xlu0 %4692
        %4694 = vrot.lane.b32.xlu0 %v4410, 112
        %v4695 = vpop.permute.xlu0 %4694
        %4696 = vrot.lane.b32.xlu0 %v4411, 112
        %v4697 = vpop.permute.xlu0 %4696
        %4698 = vrot.lane.b32.xlu0 %v4412, 112
        %v4699 = vpop.permute.xlu0 %4698
        %4700 = vrot.lane.b32.xlu0 %v4413, 112
        %v4701 = vpop.permute.xlu0 %4700
        %4702 = vrot.lane.b32.xlu0 %v4414, 112
        %v4703 = vpop.permute.xlu0 %4702
        %4704 = vrot.lane.b32.xlu0 %v4415, 112
        %v4705 = vpop.permute.xlu0 %4704
        %4706 = vrot.lane.b32.xlu0 %v4416, 112
        %v4707 = vpop.permute.xlu0 %4706
        %4708 = vrot.lane.b32.xlu0 %v4417, 112
        %v4709 = vpop.permute.xlu0 %4708
        %4710 = vrot.lane.b32.xlu0 %v4418, 112
        %v4711 = vpop.permute.xlu0 %4710
        %4712 = vrot.lane.b32.xlu0 %v4419, 112
        %v4713 = vpop.permute.xlu0 %4712
        %4714 = vrot.lane.b32.xlu0 %v4420, 112
        %v4715 = vpop.permute.xlu0 %4714
        %4716 = vrot.lane.b32.xlu0 %v4421, 112
        %v4717 = vpop.permute.xlu0 %4716
        %4718 = vrot.lane.b32.xlu0 %v4422, 112
        %v4719 = vpop.permute.xlu0 %4718
        %4720 = vrot.lane.b32.xlu0 %v4423, 112
        %v4721 = vpop.permute.xlu0 %4720
        %4722 = vrot.lane.b32.xlu0 %v4424, 112
        %v4723 = vpop.permute.xlu0 %4722
        %4724 = vrot.lane.b32.xlu0 %v4425, 112
        %v4725 = vpop.permute.xlu0 %4724
        %4726 = vrot.lane.b32.xlu0 %v4426, 112
        %v4727 = vpop.permute.xlu0 %4726
        %4728 = vrot.lane.b32.xlu0 %v4427, 112
        %v4729 = vpop.permute.xlu0 %4728
        %4730 = vrot.lane.b32.xlu0 %v4428, 112
        %v4731 = vpop.permute.xlu0 %4730
        %4732 = vrot.lane.b32.xlu0 %v4429, 112
        %v4733 = vpop.permute.xlu0 %4732
        %4734 = vrot.lane.b32.xlu0 %v4430, 112
        %v4735 = vpop.permute.xlu0 %4734
        %4736 = vrot.lane.b32.xlu0 %v4431, 112
        %v4737 = vpop.permute.xlu0 %4736
        %4738 = vrot.lane.b32.xlu0 %v4432, 112
        %v4739 = vpop.permute.xlu0 %4738
        %4740 = vrot.lane.b32.xlu0 %v4433, 112
        %v4741 = vpop.permute.xlu0 %4740
        %4742 = vrot.lane.b32.xlu0 %v4434, 112
        %v4743 = vpop.permute.xlu0 %4742
        %4744 = vrot.lane.b32.xlu0 %v4435, 112
        %v4745 = vpop.permute.xlu0 %4744
        %4746 = vrot.lane.b32.xlu0 %v4436, 112
        %v4747 = vpop.permute.xlu0 %4746
        %4748 = vrot.lane.b32.xlu0 %v4437, 112
        %v4749 = vpop.permute.xlu0 %4748
        %4750 = vrot.lane.b32.xlu0 %v4438, 112
        %v4751 = vpop.permute.xlu0 %4750
        %4752 = vrot.lane.b32.xlu0 %v4439, 112
        %v4753 = vpop.permute.xlu0 %4752
        %4754 = vrot.lane.b32.xlu0 %v4440, 112
        %v4755 = vpop.permute.xlu0 %4754
        %4756 = vrot.lane.b32.xlu0 %v4441, 112
        %v4757 = vpop.permute.xlu0 %4756
        %4758 = vrot.lane.b32.xlu0 %v4442, 112
        %v4759 = vpop.permute.xlu0 %4758
        %4760 = vrot.lane.b32.xlu0 %v4443, 112
        %v4761 = vpop.permute.xlu0 %4760
        %4762 = vrot.lane.b32.xlu0 %v4444, 112
        %v4763 = vpop.permute.xlu0 %4762
        %4764 = vrot.lane.b32.xlu0 %v4445, 112
        %v4765 = vpop.permute.xlu0 %4764
        %4766 = vrot.lane.b32.xlu0 %v4446, 112
        %v4767 = vpop.permute.xlu0 %4766
        %4768 = vrot.lane.b32.xlu0 %v4447, 112
        %v4769 = vpop.permute.xlu0 %4768
        %4770 = vrot.lane.b32.xlu0 %v4448, 112
        %v4771 = vpop.permute.xlu0 %4770
        %4772 = vrot.lane.b32.xlu0 %v4449, 112
        %v4773 = vpop.permute.xlu0 %4772
        %4774 = vrot.lane.b32.xlu0 %v4450, 112
        %v4775 = vpop.permute.xlu0 %4774
        %4776 = vrot.lane.b32.xlu0 %v4451, 112
        %v4777 = vpop.permute.xlu0 %4776
        %4778 = vrot.lane.b32.xlu0 %v4452, 112
        %v4779 = vpop.permute.xlu0 %4778
        %4780 = vrot.lane.b32.xlu0 %v4453, 112
        %v4781 = vpop.permute.xlu0 %4780
        %4782 = vrot.lane.b32.xlu0 %v4454, 112
        %v4783 = vpop.permute.xlu0 %4782
        %4784 = vrot.lane.b32.xlu0 %v4455, 112
        %v4785 = vpop.permute.xlu0 %4784
        %4786 = vrot.lane.b32.xlu0 %v4456, 112
        %v4787 = vpop.permute.xlu0 %4786
        %4788 = vrot.lane.b32.xlu0 %v4457, 112
        %v4789 = vpop.permute.xlu0 %4788
        %4790 = vrot.lane.b32.xlu0 %v4458, 112
        %v4791 = vpop.permute.xlu0 %4790
        %4792 = vrot.lane.b32.xlu0 %v4459, 112
        %v4793 = vpop.permute.xlu0 %4792
        %4794 = vrot.lane.b32.xlu0 %v4460, 112
        %v4795 = vpop.permute.xlu0 %4794
        %4796 = vrot.lane.b32.xlu0 %v4461, 112
        %v4797 = vpop.permute.xlu0 %4796
        %4798 = vrot.lane.b32.xlu0 %v4462, 112
        %v4799 = vpop.permute.xlu0 %4798
        %4800 = vrot.lane.b32.xlu0 %v4463, 112
        %v4801 = vpop.permute.xlu0 %4800
        %4802 = vrot.lane.b32.xlu0 %v4464, 112
        %v4803 = vpop.permute.xlu0 %4802
        %4804 = vrot.lane.b32.xlu0 %v4465, 112
        %v4805 = vpop.permute.xlu0 %4804
        %4806 = vrot.lane.b32.xlu0 %v4466, 112
        %v4807 = vpop.permute.xlu0 %4806
        %4808 = vrot.lane.b32.xlu0 %v4467, 112
        %v4809 = vpop.permute.xlu0 %4808
        %4810 = vrot.lane.b32.xlu0 %v4468, 112
        %v4811 = vpop.permute.xlu0 %4810
        %4812 = vrot.lane.b32.xlu0 %v4469, 112
        %v4813 = vpop.permute.xlu0 %4812
        %4814 = vrot.lane.b32.xlu0 %v4470, 112
        %v4815 = vpop.permute.xlu0 %4814
        %4816 = vrot.lane.b32.xlu0 %v4471, 112
        %v4817 = vpop.permute.xlu0 %4816
        %4818 = vrot.lane.b32.xlu0 %v4472, 112
        %v4819 = vpop.permute.xlu0 %4818
        %4820 = vrot.lane.b32.xlu0 %v4473, 112
        %v4821 = vpop.permute.xlu0 %4820
        %4822 = vrot.lane.b32.xlu0 %v4474, 112
        %v4823 = vpop.permute.xlu0 %4822
        %4824 = vrot.lane.b32.xlu0 %v4475, 112
        %v4825 = vpop.permute.xlu0 %4824
        %4826 = vrot.lane.b32.xlu0 %v4476, 112
        %v4827 = vpop.permute.xlu0 %4826
        %4828 = vrot.lane.b32.xlu0 %v4477, 112
        %v4829 = vpop.permute.xlu0 %4828
        %4830 = vrot.lane.b32.xlu0 %v4478, 112
        %v4831 = vpop.permute.xlu0 %4830
        %4832 = vrot.lane.b32.xlu0 %v4479, 112
        %v4833 = vpop.permute.xlu0 %4832
        %4834 = vrot.lane.b32.xlu0 %v4480, 112
        %v4835 = vpop.permute.xlu0 %4834
        %4836 = vrot.lane.b32.xlu0 %v4481, 112
        %v4837 = vpop.permute.xlu0 %4836
        %4838 = vrot.lane.b32.xlu0 %v4482, 112
        %v4839 = vpop.permute.xlu0 %4838
        %4840 = vrot.lane.b32.xlu0 %v4483, 112
        %v4841 = vpop.permute.xlu0 %4840
        %4842 = vrot.lane.b32.xlu0 %v4484, 112
        %v4843 = vpop.permute.xlu0 %4842
        %4844 = vrot.lane.b32.xlu0 %v4485, 112
        %v4845 = vpop.permute.xlu0 %4844
        %4846 = vrot.lane.b32.xlu0 %v4486, 112
        %v4847 = vpop.permute.xlu0 %4846
        %4848 = vrot.lane.b32.xlu0 %v4487, 112
        %v4849 = vpop.permute.xlu0 %4848
        %4850 = vrot.lane.b32.xlu0 %v4488, 112
        %v4851 = vpop.permute.xlu0 %4850
        %4852 = vrot.lane.b32.xlu0 %v4489, 112
        %v4853 = vpop.permute.xlu0 %4852
        %4854 = vrot.lane.b32.xlu0 %v4490, 112
        %v4855 = vpop.permute.xlu0 %4854
        %4856 = vrot.lane.b32.xlu0 %v4491, 112
        %v4857 = vpop.permute.xlu0 %4856
        %4858 = vrot.lane.b32.xlu0 %v4492, 112
        %v4859 = vpop.permute.xlu0 %4858
        %4860 = vrot.lane.b32.xlu0 %v4493, 112
        %v4861 = vpop.permute.xlu0 %4860
        %4862 = vrot.lane.b32.xlu0 %v4494, 112
        %v4863 = vpop.permute.xlu0 %4862
        %4864 = vrot.lane.b32.xlu0 %v4495, 112
        %v4865 = vpop.permute.xlu0 %4864
        %4866 = vrot.lane.b32.xlu0 %v4496, 112
        %v4867 = vpop.permute.xlu0 %4866
        %4868 = vrot.lane.b32.xlu0 %v4497, 112
        %v4869 = vpop.permute.xlu0 %4868
        %4870 = vrot.lane.b32.xlu0 %v4498, 112
        %v4871 = vpop.permute.xlu0 %4870
        %4872 = vrot.lane.b32.xlu0 %v4499, 112
        %v4873 = vpop.permute.xlu0 %4872
        %4874 = vrot.lane.b32.xlu0 %v4500, 112
        %v4875 = vpop.permute.xlu0 %4874
        %4876 = vrot.lane.b32.xlu0 %v4501, 112
        %v4877 = vpop.permute.xlu0 %4876
        %4878 = vrot.lane.b32.xlu0 %v4502, 112
        %v4879 = vpop.permute.xlu0 %4878
        %4880 = vrot.lane.b32.xlu0 %v4503, 112
        %v4881 = vpop.permute.xlu0 %4880
        %4882 = vrot.lane.b32.xlu0 %v4504, 112
        %v4883 = vpop.permute.xlu0 %4882
        %4884 = vrot.lane.b32.xlu0 %v4505, 112
        %v4885 = vpop.permute.xlu0 %4884
        %4886 = vrot.lane.b32.xlu0 %v4506, 112
        %v4887 = vpop.permute.xlu0 %4886
        %4888 = vrot.lane.b32.xlu0 %v4507, 112
        %v4889 = vpop.permute.xlu0 %4888
        %4890 = vrot.lane.b32.xlu0 %v4508, 112
        %v4891 = vpop.permute.xlu0 %4890
        %4892 = vrot.lane.b32.xlu0 %v4509, 112
        %v4893 = vpop.permute.xlu0 %4892
        %v5022 = vadd.f32 %v2976, %v4639
        %v5023 = vadd.f32 %v2979, %v4641
        %v5024 = vadd.f32 %v2984, %v4643
        %v5025 = vadd.f32 %v2987, %v4645
        %v5026 = vadd.f32 %v2992, %v4647
        %v5027 = vadd.f32 %v2995, %v4649
        %v5028 = vadd.f32 %v3000, %v4651
        %v5029 = vadd.f32 %v3003, %v4653
        %v5030 = vadd.f32 %v3008, %v4655
        %v5031 = vadd.f32 %v3011, %v4657
        %v5032 = vadd.f32 %v3016, %v4659
        %v5033 = vadd.f32 %v3019, %v4661
        %v5034 = vadd.f32 %v3024, %v4663
        %v5035 = vadd.f32 %v3027, %v4665
        %v5036 = vadd.f32 %v3032, %v4667
        %v5037 = vadd.f32 %v3035, %v4669
        %v5038 = vadd.f32 %v3040, %v4671
        %v5039 = vadd.f32 %v3043, %v4673
        %v5040 = vadd.f32 %v3048, %v4675
        %v5041 = vadd.f32 %v3051, %v4677
        %v5042 = vadd.f32 %v3056, %v4679
        %v5043 = vadd.f32 %v3059, %v4681
        %v5044 = vadd.f32 %v3064, %v4683
        %v5045 = vadd.f32 %v3067, %v4685
        %v5046 = vadd.f32 %v3072, %v4687
        %v5047 = vadd.f32 %v3075, %v4689
        %v5048 = vadd.f32 %v3080, %v4691
        %v5049 = vadd.f32 %v3083, %v4693
        %v5050 = vadd.f32 %v3088, %v4695
        %v5051 = vadd.f32 %v3091, %v4697
        %v5052 = vadd.f32 %v3096, %v4699
        %v5053 = vadd.f32 %v3099, %v4701
        %v5054 = vadd.f32 %v3104, %v4703
        %v5055 = vadd.f32 %v3107, %v4705
        %v5056 = vadd.f32 %v3112, %v4707
        %v5057 = vadd.f32 %v3115, %v4709
        %v5058 = vadd.f32 %v3120, %v4711
        %v5059 = vadd.f32 %v3123, %v4713
        %v5060 = vadd.f32 %v3128, %v4715
        %v5061 = vadd.f32 %v3131, %v4717
        %v5062 = vadd.f32 %v3136, %v4719
        %v5063 = vadd.f32 %v3139, %v4721
        %v5064 = vadd.f32 %v3144, %v4723
        %v5065 = vadd.f32 %v3147, %v4725
        %v5066 = vadd.f32 %v3152, %v4727
        %v5067 = vadd.f32 %v3155, %v4729
        %v5068 = vadd.f32 %v3160, %v4731
        %v5069 = vadd.f32 %v3163, %v4733
        %v5070 = vadd.f32 %v3168, %v4735
        %v5071 = vadd.f32 %v3171, %v4737
        %v5072 = vadd.f32 %v3176, %v4739
        %v5073 = vadd.f32 %v3179, %v4741
        %v5074 = vadd.f32 %v3184, %v4743
        %v5075 = vadd.f32 %v3187, %v4745
        %v5076 = vadd.f32 %v3192, %v4747
        %v5077 = vadd.f32 %v3195, %v4749
        %v5078 = vadd.f32 %v3200, %v4751
        %v5079 = vadd.f32 %v3203, %v4753
        %v5080 = vadd.f32 %v3208, %v4755
        %v5081 = vadd.f32 %v3211, %v4757
        %v5082 = vadd.f32 %v3216, %v4759
        %v5083 = vadd.f32 %v3219, %v4761
        %v5084 = vadd.f32 %v3224, %v4763
        %v5085 = vadd.f32 %v3227, %v4765
        %v5086 = vadd.f32 %v3232, %v4767
        %v5087 = vadd.f32 %v3235, %v4769
        %v5088 = vadd.f32 %v3240, %v4771
        %v5089 = vadd.f32 %v3243, %v4773
        %v5090 = vadd.f32 %v3248, %v4775
        %v5091 = vadd.f32 %v3251, %v4777
        %v5092 = vadd.f32 %v3256, %v4779
        %v5093 = vadd.f32 %v3259, %v4781
        %v5094 = vadd.f32 %v3264, %v4783
        %v5095 = vadd.f32 %v3267, %v4785
        %v5096 = vadd.f32 %v3272, %v4787
        %v5097 = vadd.f32 %v3275, %v4789
        %v5098 = vadd.f32 %v3280, %v4791
        %v5099 = vadd.f32 %v3283, %v4793
        %v5100 = vadd.f32 %v3288, %v4795
        %v5101 = vadd.f32 %v3291, %v4797
        %v5102 = vadd.f32 %v3296, %v4799
        %v5103 = vadd.f32 %v3299, %v4801
        %v5104 = vadd.f32 %v3304, %v4803
        %v5105 = vadd.f32 %v3307, %v4805
        %v5106 = vadd.f32 %v3312, %v4807
        %v5107 = vadd.f32 %v3315, %v4809
        %v5108 = vadd.f32 %v3320, %v4811
        %v5109 = vadd.f32 %v3323, %v4813
        %v5110 = vadd.f32 %v3328, %v4815
        %v5111 = vadd.f32 %v3331, %v4817
        %v5112 = vadd.f32 %v3336, %v4819
        %v5113 = vadd.f32 %v3339, %v4821
        %v5114 = vadd.f32 %v3344, %v4823
        %v5115 = vadd.f32 %v3347, %v4825
        %v5116 = vadd.f32 %v3352, %v4827
        %v5117 = vadd.f32 %v3355, %v4829
        %v5118 = vadd.f32 %v3360, %v4831
        %v5119 = vadd.f32 %v3363, %v4833
        %v5120 = vadd.f32 %v3368, %v4835
        %v5121 = vadd.f32 %v3371, %v4837
        %v5122 = vadd.f32 %v3376, %v4839
        %v5123 = vadd.f32 %v3379, %v4841
        %v5124 = vadd.f32 %v3384, %v4843
        %v5125 = vadd.f32 %v3387, %v4845
        %v5126 = vadd.f32 %v3392, %v4847
        %v5127 = vadd.f32 %v3395, %v4849
        %v5128 = vadd.f32 %v3400, %v4851
        %v5129 = vadd.f32 %v3403, %v4853
        %v5130 = vadd.f32 %v3408, %v4855
        %v5131 = vadd.f32 %v3411, %v4857
        %v5132 = vadd.f32 %v3416, %v4859
        %v5133 = vadd.f32 %v3419, %v4861
        %v5134 = vadd.f32 %v3424, %v4863
        %v5135 = vadd.f32 %v3427, %v4865
        %v5136 = vadd.f32 %v3432, %v4867
        %v5137 = vadd.f32 %v3435, %v4869
        %v5138 = vadd.f32 %v3440, %v4871
        %v5139 = vadd.f32 %v3443, %v4873
        %v5140 = vadd.f32 %v3448, %v4875
        %v5141 = vadd.f32 %v3451, %v4877
        %v5142 = vadd.f32 %v3456, %v4879
        %v5143 = vadd.f32 %v3459, %v4881
        %v5144 = vadd.f32 %v3464, %v4883
        %v5145 = vadd.f32 %v3467, %v4885
        %v5146 = vadd.f32 %v3472, %v4887
        %v5147 = vadd.f32 %v3475, %v4889
        %v5148 = vadd.f32 %v3480, %v4891
        %v5149 = vadd.f32 %v3483, %v4893
        %v5150 = vpack.c.bf16 %v5023, %v5022
        %v5151 = vpack.c.bf16 %v5025, %v5024
        %v5152 = vpack.c.bf16 %v5027, %v5026
        %v5153 = vpack.c.bf16 %v5029, %v5028
        %v5154 = vpack.c.bf16 %v5031, %v5030
        %v5155 = vpack.c.bf16 %v5033, %v5032
        %v5156 = vpack.c.bf16 %v5035, %v5034
        %v5157 = vpack.c.bf16 %v5037, %v5036
        %v5158 = vpack.c.bf16 %v5039, %v5038
        %v5159 = vpack.c.bf16 %v5041, %v5040
        %v5160 = vpack.c.bf16 %v5043, %v5042
        %v5161 = vpack.c.bf16 %v5045, %v5044
        %v5162 = vpack.c.bf16 %v5047, %v5046
        %v5163 = vpack.c.bf16 %v5049, %v5048
        %v5164 = vpack.c.bf16 %v5051, %v5050
        %v5165 = vpack.c.bf16 %v5053, %v5052
        %v5166 = vpack.c.bf16 %v5055, %v5054
        %v5167 = vpack.c.bf16 %v5057, %v5056
        %v5168 = vpack.c.bf16 %v5059, %v5058
        %v5169 = vpack.c.bf16 %v5061, %v5060
        %v5170 = vpack.c.bf16 %v5063, %v5062
        %v5171 = vpack.c.bf16 %v5065, %v5064
        %v5172 = vpack.c.bf16 %v5067, %v5066
        %v5173 = vpack.c.bf16 %v5069, %v5068
        %v5174 = vpack.c.bf16 %v5071, %v5070
        %v5175 = vpack.c.bf16 %v5073, %v5072
        %v5176 = vpack.c.bf16 %v5075, %v5074
        %v5177 = vpack.c.bf16 %v5077, %v5076
        %v5178 = vpack.c.bf16 %v5079, %v5078
        %v5179 = vpack.c.bf16 %v5081, %v5080
        %v5180 = vpack.c.bf16 %v5083, %v5082
        %v5181 = vpack.c.bf16 %v5085, %v5084
        %v5182 = vpack.c.bf16 %v5087, %v5086
        %v5183 = vpack.c.bf16 %v5089, %v5088
        %v5184 = vpack.c.bf16 %v5091, %v5090
        %v5185 = vpack.c.bf16 %v5093, %v5092
        %v5186 = vpack.c.bf16 %v5095, %v5094
        %v5187 = vpack.c.bf16 %v5097, %v5096
        %v5188 = vpack.c.bf16 %v5099, %v5098
        %v5189 = vpack.c.bf16 %v5101, %v5100
        %v5190 = vpack.c.bf16 %v5103, %v5102
        %v5191 = vpack.c.bf16 %v5105, %v5104
        %v5192 = vpack.c.bf16 %v5107, %v5106
        %v5193 = vpack.c.bf16 %v5109, %v5108
        %v5194 = vpack.c.bf16 %v5111, %v5110
        %v5195 = vpack.c.bf16 %v5113, %v5112
        %v5196 = vpack.c.bf16 %v5115, %v5114
        %v5197 = vpack.c.bf16 %v5117, %v5116
        %v5198 = vpack.c.bf16 %v5119, %v5118
        %v5199 = vpack.c.bf16 %v5121, %v5120
        %v5200 = vpack.c.bf16 %v5123, %v5122
        %v5201 = vpack.c.bf16 %v5125, %v5124
        %v5202 = vpack.c.bf16 %v5127, %v5126
        %v5203 = vpack.c.bf16 %v5129, %v5128
        %v5204 = vpack.c.bf16 %v5131, %v5130
        %v5205 = vpack.c.bf16 %v5133, %v5132
        %v5206 = vpack.c.bf16 %v5135, %v5134
        %v5207 = vpack.c.bf16 %v5137, %v5136
        %v5208 = vpack.c.bf16 %v5139, %v5138
        %v5209 = vpack.c.bf16 %v5141, %v5140
        %v5210 = vpack.c.bf16 %v5143, %v5142
        %v5211 = vpack.c.bf16 %v5145, %v5144
        %v5212 = vpack.c.bf16 %v5147, %v5146
        %v5213 = vpack.c.bf16 %v5149, %v5148
        %v5214 = vld [vmem:[#allocation11] sm:$0xf]
        %v5215 = vld [vmem:[#allocation11 + $0x4] sm:$0xf]
        %v5216 = vld [vmem:[#allocation13] sm:$0x1]
        %v5218 = vlaneseq
        %v5219 = vshrl.u32 %v5218, 7
        %v5220 = vsub.s32 0, %v5219
        %v5221 = vrot.slane %v5216, %v5220
        %v5225 = vunpack.c.l.b16 %v5214
        %v5226 = vunpack.c.l.b16 %v5215
        %v5227 = vpack.c.b16 %v5226, %v5225
        %vm5229 = vcmask 130048
        %v5231 = vsel %vm5229, %v5150, 0
        %v5234 = vsel %vm5229, %v5151, 0
        %v5237 = vsel %vm5229, %v5152, 0
        %v5240 = vsel %vm5229, %v5153, 0
        %v5243 = vsel %vm5229, %v5154, 0
        %v5246 = vsel %vm5229, %v5155, 0
        %v5249 = vsel %vm5229, %v5156, 0
        %v5252 = vsel %vm5229, %v5157, 0
        %v5255 = vsel %vm5229, %v5158, 0
        %v5258 = vsel %vm5229, %v5159, 0
        %v5261 = vsel %vm5229, %v5160, 0
        %v5264 = vsel %vm5229, %v5161, 0
        %v5267 = vsel %vm5229, %v5162, 0
        %v5270 = vsel %vm5229, %v5163, 0
        %v5273 = vsel %vm5229, %v5164, 0
        %v5276 = vsel %vm5229, %v5165, 0
        %v5279 = vsel %vm5229, %v5166, 0
        %v5282 = vsel %vm5229, %v5167, 0
        %v5285 = vsel %vm5229, %v5168, 0
        %v5288 = vsel %vm5229, %v5169, 0
        %v5291 = vsel %vm5229, %v5170, 0
        %v5294 = vsel %vm5229, %v5171, 0
        %v5297 = vsel %vm5229, %v5172, 0
        %v5300 = vsel %vm5229, %v5173, 0
        %v5303 = vsel %vm5229, %v5174, 0
        %v5306 = vsel %vm5229, %v5175, 0
        %v5309 = vsel %vm5229, %v5176, 0
        %v5312 = vsel %vm5229, %v5177, 0
        %v5315 = vsel %vm5229, %v5178, 0
        %v5318 = vsel %vm5229, %v5179, 0
        %v5321 = vsel %vm5229, %v5180, 0
        %v5324 = vsel %vm5229, %v5181, 0
        %v5327 = vsel %vm5229, %v5182, 0
        %v5330 = vsel %vm5229, %v5183, 0
        %v5333 = vsel %vm5229, %v5184, 0
        %v5336 = vsel %vm5229, %v5185, 0
        %v5339 = vsel %vm5229, %v5186, 0
        %v5342 = vsel %vm5229, %v5187, 0
        %v5345 = vsel %vm5229, %v5188, 0
        %v5348 = vsel %vm5229, %v5189, 0
        %v5351 = vsel %vm5229, %v5190, 0
        %v5354 = vsel %vm5229, %v5191, 0
        %v5357 = vsel %vm5229, %v5192, 0
        %v5360 = vsel %vm5229, %v5193, 0
        %v5363 = vsel %vm5229, %v5194, 0
        %v5366 = vsel %vm5229, %v5195, 0
        %v5369 = vsel %vm5229, %v5196, 0
        %v5372 = vsel %vm5229, %v5197, 0
        %v5375 = vsel %vm5229, %v5198, 0
        %v5378 = vsel %vm5229, %v5199, 0
        %v5381 = vsel %vm5229, %v5200, 0
        %v5384 = vsel %vm5229, %v5201, 0
        %v5387 = vsel %vm5229, %v5202, 0
        %v5390 = vsel %vm5229, %v5203, 0
        %v5393 = vsel %vm5229, %v5204, 0
        %v5396 = vsel %vm5229, %v5205, 0
        %v5399 = vsel %vm5229, %v5206, 0
        %v5402 = vsel %vm5229, %v5207, 0
        %v5405 = vsel %vm5229, %v5208, 0
        %v5408 = vsel %vm5229, %v5209, 0
        %v5411 = vsel %vm5229, %v5210, 0
        %v5414 = vsel %vm5229, %v5211, 0
        %v5417 = vsel %vm5229, %v5212, 0
        %v5420 = vsel %vm5229, %v5213, 0
        %5422 = vmatprep.subr.bf16.mxu0 0
        %5423 = vmatpush1.bf16.msra.mxu0 %v5227
        %5424 = vmatprep.subr.bf16.mxu0 0
        %5425 = vmatpush1.bf16.msra.mxu0 0
        %5426 = vmatprep.subr.bf16.mxu0 0
        %5427 = vmatpush1.bf16.msra.mxu0 0
        %5428 = vmatprep.subr.bf16.mxu0 0
        %5429 = vmatpush1.bf16.msra.mxu0 0
        %5430 = vmatprep.subr.bf16.mxu0 0
        %5431 = vmatpush1.bf16.msra.mxu0 0
        %5432 = vmatprep.subr.bf16.mxu0 0
        %5433 = vmatpush1.bf16.msra.mxu0 0
        %5434 = vmatprep.subr.bf16.mxu0 0
        %5435 = vmatpush1.bf16.msra.mxu0 0
        %5436 = vmatprep.subr.bf16.mxu0 0
        %5437 = vmatpush1.bf16.msra.mxu0 0
        %5438 = vmatprep.subr.bf16.mxu0 0
        %5439 = vmatpush1.bf16.msra.mxu0 0
        %5440 = vmatprep.subr.bf16.mxu0 0
        %5441 = vmatpush1.bf16.msra.mxu0 0
        %5442 = vmatprep.subr.bf16.mxu0 0
        %5443 = vmatpush1.bf16.msra.mxu0 0
        %5444 = vmatprep.subr.bf16.mxu0 0
        %5445 = vmatpush1.bf16.msra.mxu0 0
        %5446 = vmatprep.subr.bf16.mxu0 0
        %5447 = vmatpush1.bf16.msra.mxu0 0
        %5448 = vmatprep.subr.bf16.mxu0 0
        %5449 = vmatpush1.bf16.msra.mxu0 0
        %5450 = vmatprep.subr.bf16.mxu0 0
        %5451 = vmatpush1.bf16.msra.mxu0 0
        %5452 = vmatprep.subr.bf16.mxu0 0
        %5453 = vmatpush1.bf16.msra.mxu0 0
        %5454 = vmatprep.mubr.bf16.mxu0 0
        %5455 = vmatmul.mubr.bf16.gmra.mrb[0].mxu0 %v5231
        %v5456 = vpop.f32.mrb[0].mxu0
        %v5457 = vadd.f32 %v5221, %v5456
        %v5458 = vpop.f32.mrb[0].mxu0
        %v5459 = vpop.f32.mrb[0].mxu0
        %v5460 = vadd.f32 %v5221, %v5459
        %v5461 = vpop.f32.mrb[0].mxu0
        %5462 = vmatprep.mubr.bf16.mxu0 0
        %5463 = vmatmul.mubr.bf16.gmra.mrb[0].mxu0 %v5234
        %v5464 = vpop.f32.mrb[0].mxu0
        %v5465 = vadd.f32 %v5221, %v5464
        %v5466 = vpop.f32.mrb[0].mxu0
        %v5467 = vpop.f32.mrb[0].mxu0
        %v5468 = vadd.f32 %v5221, %v5467
        %v5469 = vpop.f32.mrb[0].mxu0
        %5470 = vmatprep.mubr.bf16.mxu0 0
        %5471 = vmatmul.mubr.bf16.gmra.mrb[0].mxu0 %v5237
        %v5472 = vpop.f32.mrb[0].mxu0
        %v5473 = vadd.f32 %v5221, %v5472
        %v5474 = vpop.f32.mrb[0].mxu0
        %v5475 = vpop.f32.mrb[0].mxu0
        %v5476 = vadd.f32 %v5221, %v5475
        %v5477 = vpop.f32.mrb[0].mxu0
        %5478 = vmatprep.mubr.bf16.mxu0 0
        %5479 = vmatmul.mubr.bf16.gmra.mrb[0].mxu0 %v5240
        %v5480 = vpop.f32.mrb[0].mxu0
        %v5481 = vadd.f32 %v5221, %v5480
        %v5482 = vpop.f32.mrb[0].mxu0
        %v5483 = vpop.f32.mrb[0].mxu0
        %v5484 = vadd.f32 %v5221, %v5483
        %v5485 = vpop.f32.mrb[0].mxu0
        %5486 = vmatprep.mubr.bf16.mxu0 0
        %5487 = vmatmul.mubr.bf16.gmra.mrb[0].mxu0 %v5243
        %v5488 = vpop.f32.mrb[0].mxu0
        %v5489 = vadd.f32 %v5221, %v5488
        %v5490 = vpop.f32.mrb[0].mxu0
        %v5491 = vpop.f32.mrb[0].mxu0
        %v5492 = vadd.f32 %v5221, %v5491
        %v5493 = vpop.f32.mrb[0].mxu0
        %5494 = vmatprep.mubr.bf16.mxu0 0
        %5495 = vmatmul.mubr.bf16.gmra.mrb[0].mxu0 %v5246
        %v5496 = vpop.f32.mrb[0].mxu0
        %v5497 = vadd.f32 %v5221, %v5496
        %v5498 = vpop.f32.mrb[0].mxu0
        %v5499 = vpop.f32.mrb[0].mxu0
        %v5500 = vadd.f32 %v5221, %v5499
        %v5501 = vpop.f32.mrb[0].mxu0
        %5502 = vmatprep.mubr.bf16.mxu0 0
        %5503 = vmatmul.mubr.bf16.gmra.mrb[0].mxu0 %v5249
        %v5504 = vpop.f32.mrb[0].mxu0
        %v5505 = vadd.f32 %v5221, %v5504
        %v5506 = vpop.f32.mrb[0].mxu0
        %v5507 = vpop.f32.mrb[0].mxu0
        %v5508 = vadd.f32 %v5221, %v5507
        %v5509 = vpop.f32.mrb[0].mxu0
        %5510 = vmatprep.mubr.bf16.mxu0 0
        %5511 = vmatmul.mubr.bf16.gmra.mrb[0].mxu0 %v5252
        %v5512 = vpop.f32.mrb[0].mxu0
        %v5513 = vadd.f32 %v5221, %v5512
        %v5514 = vpop.f32.mrb[0].mxu0
        %v5515 = vpop.f32.mrb[0].mxu0
        %v5516 = vadd.f32 %v5221, %v5515
        %v5517 = vpop.f32.mrb[0].mxu0
        %5518 = vmatprep.mubr.bf16.mxu0 0
        %5519 = vmatmul.mubr.bf16.gmra.mrb[0].mxu0 %v5255
        %v5520 = vpop.f32.mrb[0].mxu0
        %v5521 = vadd.f32 %v5221, %v5520
        %v5522 = vpop.f32.mrb[0].mxu0
        %v5523 = vpop.f32.mrb[0].mxu0
        %v5524 = vadd.f32 %v5221, %v5523
        %v5525 = vpop.f32.mrb[0].mxu0
        %5526 = vmatprep.mubr.bf16.mxu0 0
        %5527 = vmatmul.mubr.bf16.gmra.mrb[0].mxu0 %v5258
        %v5528 = vpop.f32.mrb[0].mxu0
        %v5529 = vadd.f32 %v5221, %v5528
        %v5530 = vpop.f32.mrb[0].mxu0
        %v5531 = vpop.f32.mrb[0].mxu0
        %v5532 = vadd.f32 %v5221, %v5531
        %v5533 = vpop.f32.mrb[0].mxu0
        %5534 = vmatprep.mubr.bf16.mxu0 0
        %5535 = vmatmul.mubr.bf16.gmra.mrb[0].mxu0 %v5261
        %v5536 = vpop.f32.mrb[0].mxu0
        %v5537 = vadd.f32 %v5221, %v5536
        %v5538 = vpop.f32.mrb[0].mxu0
        %v5539 = vpop.f32.mrb[0].mxu0
        %v5540 = vadd.f32 %v5221, %v5539
        %v5541 = vpop.f32.mrb[0].mxu0
        %5542 = vmatprep.mubr.bf16.mxu0 0
        %5543 = vmatmul.mubr.bf16.gmra.mrb[0].mxu0 %v5264
        %v5544 = vpop.f32.mrb[0].mxu0
        %v5545 = vadd.f32 %v5221, %v5544
        %v5546 = vpop.f32.mrb[0].mxu0
        %v5547 = vpop.f32.mrb[0].mxu0
        %v5548 = vadd.f32 %v5221, %v5547
        %v5549 = vpop.f32.mrb[0].mxu0
        %5550 = vmatprep.mubr.bf16.mxu0 0
        %5551 = vmatmul.mubr.bf16.gmra.mrb[0].mxu0 %v5267
        %v5552 = vpop.f32.mrb[0].mxu0
        %v5553 = vadd.f32 %v5221, %v5552
        %v5554 = vpop.f32.mrb[0].mxu0
        %v5555 = vpop.f32.mrb[0].mxu0
        %v5556 = vadd.f32 %v5221, %v5555
        %v5557 = vpop.f32.mrb[0].mxu0
        %5558 = vmatprep.mubr.bf16.mxu0 0
        %5559 = vmatmul.mubr.bf16.gmra.mrb[0].mxu0 %v5270
        %v5560 = vpop.f32.mrb[0].mxu0
        %v5561 = vadd.f32 %v5221, %v5560
        %v5562 = vpop.f32.mrb[0].mxu0
        %v5563 = vpop.f32.mrb[0].mxu0
        %v5564 = vadd.f32 %v5221, %v5563
        %v5565 = vpop.f32.mrb[0].mxu0
        %5566 = vmatprep.mubr.bf16.mxu0 0
        %5567 = vmatmul.mubr.bf16.gmra.mrb[0].mxu0 %v5273
        %v5568 = vpop.f32.mrb[0].mxu0
        %v5569 = vadd.f32 %v5221, %v5568
        %v5570 = vpop.f32.mrb[0].mxu0
        %v5571 = vpop.f32.mrb[0].mxu0
        %v5572 = vadd.f32 %v5221, %v5571
        %v5573 = vpop.f32.mrb[0].mxu0
        %5574 = vmatprep.mubr.bf16.mxu0 0
        %5575 = vmatmul.mubr.bf16.gmra.mrb[0].mxu0 %v5276
        %v5576 = vpop.f32.mrb[0].mxu0
        %v5577 = vadd.f32 %v5221, %v5576
        %v5578 = vpop.f32.mrb[0].mxu0
        %v5579 = vpop.f32.mrb[0].mxu0
        %v5580 = vadd.f32 %v5221, %v5579
        %v5581 = vpop.f32.mrb[0].mxu0
        %5582 = vmatprep.mubr.bf16.mxu0 0
        %5583 = vmatmul.mubr.bf16.gmra.mrb[0].mxu0 %v5279
        %v5584 = vpop.f32.mrb[0].mxu0
        %v5585 = vadd.f32 %v5221, %v5584
        %v5586 = vpop.f32.mrb[0].mxu0
        %v5587 = vpop.f32.mrb[0].mxu0
        %v5588 = vadd.f32 %v5221, %v5587
        %v5589 = vpop.f32.mrb[0].mxu0
        %5590 = vmatprep.mubr.bf16.mxu0 0
        %5591 = vmatmul.mubr.bf16.gmra.mrb[0].mxu0 %v5282
        %v5592 = vpop.f32.mrb[0].mxu0
        %v5593 = vadd.f32 %v5221, %v5592
        %v5594 = vpop.f32.mrb[0].mxu0
        %v5595 = vpop.f32.mrb[0].mxu0
        %v5596 = vadd.f32 %v5221, %v5595
        %v5597 = vpop.f32.mrb[0].mxu0
        %5598 = vmatprep.mubr.bf16.mxu0 0
        %5599 = vmatmul.mubr.bf16.gmra.mrb[0].mxu0 %v5285
        %v5600 = vpop.f32.mrb[0].mxu0
        %v5601 = vadd.f32 %v5221, %v5600
        %v5602 = vpop.f32.mrb[0].mxu0
        %v5603 = vpop.f32.mrb[0].mxu0
        %v5604 = vadd.f32 %v5221, %v5603
        %v5605 = vpop.f32.mrb[0].mxu0
        %5606 = vmatprep.mubr.bf16.mxu0 0
        %5607 = vmatmul.mubr.bf16.gmra.mrb[0].mxu0 %v5288
        %v5608 = vpop.f32.mrb[0].mxu0
        %v5609 = vadd.f32 %v5221, %v5608
        %v5610 = vpop.f32.mrb[0].mxu0
        %v5611 = vpop.f32.mrb[0].mxu0
        %v5612 = vadd.f32 %v5221, %v5611
        %v5613 = vpop.f32.mrb[0].mxu0
        %5614 = vmatprep.mubr.bf16.mxu0 0
        %5615 = vmatmul.mubr.bf16.gmra.mrb[0].mxu0 %v5291
        %v5616 = vpop.f32.mrb[0].mxu0
        %v5617 = vadd.f32 %v5221, %v5616
        %v5618 = vpop.f32.mrb[0].mxu0
        %v5619 = vpop.f32.mrb[0].mxu0
        %v5620 = vadd.f32 %v5221, %v5619
        %v5621 = vpop.f32.mrb[0].mxu0
        %5622 = vmatprep.mubr.bf16.mxu0 0
        %5623 = vmatmul.mubr.bf16.gmra.mrb[0].mxu0 %v5294
        %v5624 = vpop.f32.mrb[0].mxu0
        %v5625 = vadd.f32 %v5221, %v5624
        %v5626 = vpop.f32.mrb[0].mxu0
        %v5627 = vpop.f32.mrb[0].mxu0
        %v5628 = vadd.f32 %v5221, %v5627
        %v5629 = vpop.f32.mrb[0].mxu0
        %5630 = vmatprep.mubr.bf16.mxu0 0
        %5631 = vmatmul.mubr.bf16.gmra.mrb[0].mxu0 %v5297
        %v5632 = vpop.f32.mrb[0].mxu0
        %v5633 = vadd.f32 %v5221, %v5632
        %v5634 = vpop.f32.mrb[0].mxu0
        %v5635 = vpop.f32.mrb[0].mxu0
        %v5636 = vadd.f32 %v5221, %v5635
        %v5637 = vpop.f32.mrb[0].mxu0
        %5638 = vmatprep.mubr.bf16.mxu0 0
        %5639 = vmatmul.mubr.bf16.gmra.mrb[0].mxu0 %v5300
        %v5640 = vpop.f32.mrb[0].mxu0
        %v5641 = vadd.f32 %v5221, %v5640
        %v5642 = vpop.f32.mrb[0].mxu0
        %v5643 = vpop.f32.mrb[0].mxu0
        %v5644 = vadd.f32 %v5221, %v5643
        %v5645 = vpop.f32.mrb[0].mxu0
        %5646 = vmatprep.mubr.bf16.mxu0 0
        %5647 = vmatmul.mubr.bf16.gmra.mrb[0].mxu0 %v5303
        %v5648 = vpop.f32.mrb[0].mxu0
        %v5649 = vadd.f32 %v5221, %v5648
        %v5650 = vpop.f32.mrb[0].mxu0
        %v5651 = vpop.f32.mrb[0].mxu0
        %v5652 = vadd.f32 %v5221, %v5651
        %v5653 = vpop.f32.mrb[0].mxu0
        %5654 = vmatprep.mubr.bf16.mxu0 0
        %5655 = vmatmul.mubr.bf16.gmra.mrb[0].mxu0 %v5306
        %v5656 = vpop.f32.mrb[0].mxu0
        %v5657 = vadd.f32 %v5221, %v5656
        %v5658 = vpop.f32.mrb[0].mxu0
        %v5659 = vpop.f32.mrb[0].mxu0
        %v5660 = vadd.f32 %v5221, %v5659
        %v5661 = vpop.f32.mrb[0].mxu0
        %5662 = vmatprep.mubr.bf16.mxu0 0
        %5663 = vmatmul.mubr.bf16.gmra.mrb[0].mxu0 %v5309
        %v5664 = vpop.f32.mrb[0].mxu0
        %v5665 = vadd.f32 %v5221, %v5664
        %v5666 = vpop.f32.mrb[0].mxu0
        %v5667 = vpop.f32.mrb[0].mxu0
        %v5668 = vadd.f32 %v5221, %v5667
        %v5669 = vpop.f32.mrb[0].mxu0
        %5670 = vmatprep.mubr.bf16.mxu0 0
        %5671 = vmatmul.mubr.bf16.gmra.mrb[0].mxu0 %v5312
        %v5672 = vpop.f32.mrb[0].mxu0
        %v5673 = vadd.f32 %v5221, %v5672
        %v5674 = vpop.f32.mrb[0].mxu0
        %v5675 = vpop.f32.mrb[0].mxu0
        %v5676 = vadd.f32 %v5221, %v5675
        %v5677 = vpop.f32.mrb[0].mxu0
        %5678 = vmatprep.mubr.bf16.mxu0 0
        %5679 = vmatmul.mubr.bf16.gmra.mrb[0].mxu0 %v5315
        %v5680 = vpop.f32.mrb[0].mxu0
        %v5681 = vadd.f32 %v5221, %v5680
        %v5682 = vpop.f32.mrb[0].mxu0
        %v5683 = vpop.f32.mrb[0].mxu0
        %v5684 = vadd.f32 %v5221, %v5683
        %v5685 = vpop.f32.mrb[0].mxu0
        %5686 = vmatprep.mubr.bf16.mxu0 0
        %5687 = vmatmul.mubr.bf16.gmra.mrb[0].mxu0 %v5318
        %v5688 = vpop.f32.mrb[0].mxu0
        %v5689 = vadd.f32 %v5221, %v5688
        %v5690 = vpop.f32.mrb[0].mxu0
        %v5691 = vpop.f32.mrb[0].mxu0
        %v5692 = vadd.f32 %v5221, %v5691
        %v5693 = vpop.f32.mrb[0].mxu0
        %5694 = vmatprep.mubr.bf16.mxu0 0
        %5695 = vmatmul.mubr.bf16.gmra.mrb[0].mxu0 %v5321
        %v5696 = vpop.f32.mrb[0].mxu0
        %v5697 = vadd.f32 %v5221, %v5696
        %v5698 = vpop.f32.mrb[0].mxu0
        %v5699 = vpop.f32.mrb[0].mxu0
        %v5700 = vadd.f32 %v5221, %v5699
        %v5701 = vpop.f32.mrb[0].mxu0
        %5702 = vmatprep.mubr.bf16.mxu0 0
        %5703 = vmatmul.mubr.bf16.gmra.mrb[0].mxu0 %v5324
        %v5704 = vpop.f32.mrb[0].mxu0
        %v5705 = vadd.f32 %v5221, %v5704
        %v5706 = vpop.f32.mrb[0].mxu0
        %v5707 = vpop.f32.mrb[0].mxu0
        %v5708 = vadd.f32 %v5221, %v5707
        %v5709 = vpop.f32.mrb[0].mxu0
        %5710 = vmatprep.mubr.bf16.mxu0 0
        %5711 = vmatmul.mubr.bf16.gmra.mrb[0].mxu0 %v5327
        %v5712 = vpop.f32.mrb[0].mxu0
        %v5713 = vadd.f32 %v5221, %v5712
        %v5714 = vpop.f32.mrb[0].mxu0
        %v5715 = vpop.f32.mrb[0].mxu0
        %v5716 = vadd.f32 %v5221, %v5715
        %v5717 = vpop.f32.mrb[0].mxu0
        %5718 = vmatprep.mubr.bf16.mxu0 0
        %5719 = vmatmul.mubr.bf16.gmra.mrb[0].mxu0 %v5330
        %v5720 = vpop.f32.mrb[0].mxu0
        %v5721 = vadd.f32 %v5221, %v5720
        %v5722 = vpop.f32.mrb[0].mxu0
        %v5723 = vpop.f32.mrb[0].mxu0
        %v5724 = vadd.f32 %v5221, %v5723
        %v5725 = vpop.f32.mrb[0].mxu0
        %5726 = vmatprep.mubr.bf16.mxu0 0
        %5727 = vmatmul.mubr.bf16.gmra.mrb[0].mxu0 %v5333
        %v5728 = vpop.f32.mrb[0].mxu0
        %v5729 = vadd.f32 %v5221, %v5728
        %v5730 = vpop.f32.mrb[0].mxu0
        %v5731 = vpop.f32.mrb[0].mxu0
        %v5732 = vadd.f32 %v5221, %v5731
        %v5733 = vpop.f32.mrb[0].mxu0
        %5734 = vmatprep.mubr.bf16.mxu0 0
        %5735 = vmatmul.mubr.bf16.gmra.mrb[0].mxu0 %v5336
        %v5736 = vpop.f32.mrb[0].mxu0
        %v5737 = vadd.f32 %v5221, %v5736
        %v5738 = vpop.f32.mrb[0].mxu0
        %v5739 = vpop.f32.mrb[0].mxu0
        %v5740 = vadd.f32 %v5221, %v5739
        %v5741 = vpop.f32.mrb[0].mxu0
        %5742 = vmatprep.mubr.bf16.mxu0 0
        %5743 = vmatmul.mubr.bf16.gmra.mrb[0].mxu0 %v5339
        %v5744 = vpop.f32.mrb[0].mxu0
        %v5745 = vadd.f32 %v5221, %v5744
        %v5746 = vpop.f32.mrb[0].mxu0
        %v5747 = vpop.f32.mrb[0].mxu0
        %v5748 = vadd.f32 %v5221, %v5747
        %v5749 = vpop.f32.mrb[0].mxu0
        %5750 = vmatprep.mubr.bf16.mxu0 0
        %5751 = vmatmul.mubr.bf16.gmra.mrb[0].mxu0 %v5342
        %v5752 = vpop.f32.mrb[0].mxu0
        %v5753 = vadd.f32 %v5221, %v5752
        %v5754 = vpop.f32.mrb[0].mxu0
        %v5755 = vpop.f32.mrb[0].mxu0
        %v5756 = vadd.f32 %v5221, %v5755
        %v5757 = vpop.f32.mrb[0].mxu0
        %5758 = vmatprep.mubr.bf16.mxu0 0
        %5759 = vmatmul.mubr.bf16.gmra.mrb[0].mxu0 %v5345
        %v5760 = vpop.f32.mrb[0].mxu0
        %v5761 = vadd.f32 %v5221, %v5760
        %v5762 = vpop.f32.mrb[0].mxu0
        %v5763 = vpop.f32.mrb[0].mxu0
        %v5764 = vadd.f32 %v5221, %v5763
        %v5765 = vpop.f32.mrb[0].mxu0
        %5766 = vmatprep.mubr.bf16.mxu0 0
        %5767 = vmatmul.mubr.bf16.gmra.mrb[0].mxu0 %v5348
        %v5768 = vpop.f32.mrb[0].mxu0
        %v5769 = vadd.f32 %v5221, %v5768
        %v5770 = vpop.f32.mrb[0].mxu0
        %v5771 = vpop.f32.mrb[0].mxu0
        %v5772 = vadd.f32 %v5221, %v5771
        %v5773 = vpop.f32.mrb[0].mxu0
        %5774 = vmatprep.mubr.bf16.mxu0 0
        %5775 = vmatmul.mubr.bf16.gmra.mrb[0].mxu0 %v5351
        %v5776 = vpop.f32.mrb[0].mxu0
        %v5777 = vadd.f32 %v5221, %v5776
        %v5778 = vpop.f32.mrb[0].mxu0
        %v5779 = vpop.f32.mrb[0].mxu0
        %v5780 = vadd.f32 %v5221, %v5779
        %v5781 = vpop.f32.mrb[0].mxu0
        %5782 = vmatprep.mubr.bf16.mxu0 0
        %5783 = vmatmul.mubr.bf16.gmra.mrb[0].mxu0 %v5354
        %v5784 = vpop.f32.mrb[0].mxu0
        %v5785 = vadd.f32 %v5221, %v5784
        %v5786 = vpop.f32.mrb[0].mxu0
        %v5787 = vpop.f32.mrb[0].mxu0
        %v5788 = vadd.f32 %v5221, %v5787
        %v5789 = vpop.f32.mrb[0].mxu0
        %5790 = vmatprep.mubr.bf16.mxu0 0
        %5791 = vmatmul.mubr.bf16.gmra.mrb[0].mxu0 %v5357
        %v5792 = vpop.f32.mrb[0].mxu0
        %v5793 = vadd.f32 %v5221, %v5792
        %v5794 = vpop.f32.mrb[0].mxu0
        %v5795 = vpop.f32.mrb[0].mxu0
        %v5796 = vadd.f32 %v5221, %v5795
        %v5797 = vpop.f32.mrb[0].mxu0
        %5798 = vmatprep.mubr.bf16.mxu0 0
        %5799 = vmatmul.mubr.bf16.gmra.mrb[0].mxu0 %v5360
        %v5800 = vpop.f32.mrb[0].mxu0
        %v5801 = vadd.f32 %v5221, %v5800
        %v5802 = vpop.f32.mrb[0].mxu0
        %v5803 = vpop.f32.mrb[0].mxu0
        %v5804 = vadd.f32 %v5221, %v5803
        %v5805 = vpop.f32.mrb[0].mxu0
        %5806 = vmatprep.mubr.bf16.mxu0 0
        %5807 = vmatmul.mubr.bf16.gmra.mrb[0].mxu0 %v5363
        %v5808 = vpop.f32.mrb[0].mxu0
        %v5809 = vadd.f32 %v5221, %v5808
        %v5810 = vpop.f32.mrb[0].mxu0
        %v5811 = vpop.f32.mrb[0].mxu0
        %v5812 = vadd.f32 %v5221, %v5811
        %v5813 = vpop.f32.mrb[0].mxu0
        %5814 = vmatprep.mubr.bf16.mxu0 0
        %5815 = vmatmul.mubr.bf16.gmra.mrb[0].mxu0 %v5366
        %v5816 = vpop.f32.mrb[0].mxu0
        %v5817 = vadd.f32 %v5221, %v5816
        %v5818 = vpop.f32.mrb[0].mxu0
        %v5819 = vpop.f32.mrb[0].mxu0
        %v5820 = vadd.f32 %v5221, %v5819
        %v5821 = vpop.f32.mrb[0].mxu0
        %5822 = vmatprep.mubr.bf16.mxu0 0
        %5823 = vmatmul.mubr.bf16.gmra.mrb[0].mxu0 %v5369
        %v5824 = vpop.f32.mrb[0].mxu0
        %v5825 = vadd.f32 %v5221, %v5824
        %v5826 = vpop.f32.mrb[0].mxu0
        %v5827 = vpop.f32.mrb[0].mxu0
        %v5828 = vadd.f32 %v5221, %v5827
        %v5829 = vpop.f32.mrb[0].mxu0
        %5830 = vmatprep.mubr.bf16.mxu0 0
        %5831 = vmatmul.mubr.bf16.gmra.mrb[0].mxu0 %v5372
        %v5832 = vpop.f32.mrb[0].mxu0
        %v5833 = vadd.f32 %v5221, %v5832
        %v5834 = vpop.f32.mrb[0].mxu0
        %v5835 = vpop.f32.mrb[0].mxu0
        %v5836 = vadd.f32 %v5221, %v5835
        %v5837 = vpop.f32.mrb[0].mxu0
        %5838 = vmatprep.mubr.bf16.mxu0 0
        %5839 = vmatmul.mubr.bf16.gmra.mrb[0].mxu0 %v5375
        %v5840 = vpop.f32.mrb[0].mxu0
        %v5841 = vadd.f32 %v5221, %v5840
        %v5842 = vpop.f32.mrb[0].mxu0
        %v5843 = vpop.f32.mrb[0].mxu0
        %v5844 = vadd.f32 %v5221, %v5843
        %v5845 = vpop.f32.mrb[0].mxu0
        %5846 = vmatprep.mubr.bf16.mxu0 0
        %5847 = vmatmul.mubr.bf16.gmra.mrb[0].mxu0 %v5378
        %v5848 = vpop.f32.mrb[0].mxu0
        %v5849 = vadd.f32 %v5221, %v5848
        %v5850 = vpop.f32.mrb[0].mxu0
        %v5851 = vpop.f32.mrb[0].mxu0
        %v5852 = vadd.f32 %v5221, %v5851
        %v5853 = vpop.f32.mrb[0].mxu0
        %5854 = vmatprep.mubr.bf16.mxu0 0
        %5855 = vmatmul.mubr.bf16.gmra.mrb[0].mxu0 %v5381
        %v5856 = vpop.f32.mrb[0].mxu0
        %v5857 = vadd.f32 %v5221, %v5856
        %v5858 = vpop.f32.mrb[0].mxu0
        %v5859 = vpop.f32.mrb[0].mxu0
        %v5860 = vadd.f32 %v5221, %v5859
        %v5861 = vpop.f32.mrb[0].mxu0
        %5862 = vmatprep.mubr.bf16.mxu0 0
        %5863 = vmatmul.mubr.bf16.gmra.mrb[0].mxu0 %v5384
        %v5864 = vpop.f32.mrb[0].mxu0
        %v5865 = vadd.f32 %v5221, %v5864
        %v5866 = vpop.f32.mrb[0].mxu0
        %v5867 = vpop.f32.mrb[0].mxu0
        %v5868 = vadd.f32 %v5221, %v5867
        %v5869 = vpop.f32.mrb[0].mxu0
        %5870 = vmatprep.mubr.bf16.mxu0 0
        %5871 = vmatmul.mubr.bf16.gmra.mrb[0].mxu0 %v5387
        %v5872 = vpop.f32.mrb[0].mxu0
        %v5873 = vadd.f32 %v5221, %v5872
        %v5874 = vpop.f32.mrb[0].mxu0
        %v5875 = vpop.f32.mrb[0].mxu0
        %v5876 = vadd.f32 %v5221, %v5875
        %v5877 = vpop.f32.mrb[0].mxu0
        %5878 = vmatprep.mubr.bf16.mxu0 0
        %5879 = vmatmul.mubr.bf16.gmra.mrb[0].mxu0 %v5390
        %v5880 = vpop.f32.mrb[0].mxu0
        %v5881 = vadd.f32 %v5221, %v5880
        %v5882 = vpop.f32.mrb[0].mxu0
        %v5883 = vpop.f32.mrb[0].mxu0
        %v5884 = vadd.f32 %v5221, %v5883
        %v5885 = vpop.f32.mrb[0].mxu0
        %5886 = vmatprep.mubr.bf16.mxu0 0
        %5887 = vmatmul.mubr.bf16.gmra.mrb[0].mxu0 %v5393
        %v5888 = vpop.f32.mrb[0].mxu0
        %v5889 = vadd.f32 %v5221, %v5888
        %v5890 = vpop.f32.mrb[0].mxu0
        %v5891 = vpop.f32.mrb[0].mxu0
        %v5892 = vadd.f32 %v5221, %v5891
        %v5893 = vpop.f32.mrb[0].mxu0
        %5894 = vmatprep.mubr.bf16.mxu0 0
        %5895 = vmatmul.mubr.bf16.gmra.mrb[0].mxu0 %v5396
        %v5896 = vpop.f32.mrb[0].mxu0
        %v5897 = vadd.f32 %v5221, %v5896
        %v5898 = vpop.f32.mrb[0].mxu0
        %v5899 = vpop.f32.mrb[0].mxu0
        %v5900 = vadd.f32 %v5221, %v5899
        %v5901 = vpop.f32.mrb[0].mxu0
        %5902 = vmatprep.mubr.bf16.mxu0 0
        %5903 = vmatmul.mubr.bf16.gmra.mrb[0].mxu0 %v5399
        %v5904 = vpop.f32.mrb[0].mxu0
        %v5905 = vadd.f32 %v5221, %v5904
        %v5906 = vpop.f32.mrb[0].mxu0
        %v5907 = vpop.f32.mrb[0].mxu0
        %v5908 = vadd.f32 %v5221, %v5907
        %v5909 = vpop.f32.mrb[0].mxu0
        %5910 = vmatprep.mubr.bf16.mxu0 0
        %5911 = vmatmul.mubr.bf16.gmra.mrb[0].mxu0 %v5402
        %v5912 = vpop.f32.mrb[0].mxu0
        %v5913 = vadd.f32 %v5221, %v5912
        %v5914 = vpop.f32.mrb[0].mxu0
        %v5915 = vpop.f32.mrb[0].mxu0
        %v5916 = vadd.f32 %v5221, %v5915
        %v5917 = vpop.f32.mrb[0].mxu0
        %5918 = vmatprep.mubr.bf16.mxu0 0
        %5919 = vmatmul.mubr.bf16.gmra.mrb[0].mxu0 %v5405
        %v5920 = vpop.f32.mrb[0].mxu0
        %v5921 = vadd.f32 %v5221, %v5920
        %v5922 = vpop.f32.mrb[0].mxu0
        %v5923 = vpop.f32.mrb[0].mxu0
        %v5924 = vadd.f32 %v5221, %v5923
        %v5925 = vpop.f32.mrb[0].mxu0
        %5926 = vmatprep.mubr.bf16.mxu0 0
        %5927 = vmatmul.mubr.bf16.gmra.mrb[0].mxu0 %v5408
        %v5928 = vpop.f32.mrb[0].mxu0
        %v5929 = vadd.f32 %v5221, %v5928
        %v5930 = vpop.f32.mrb[0].mxu0
        %v5931 = vpop.f32.mrb[0].mxu0
        %v5932 = vadd.f32 %v5221, %v5931
        %v5933 = vpop.f32.mrb[0].mxu0
        %5934 = vmatprep.mubr.bf16.mxu0 0
        %5935 = vmatmul.mubr.bf16.gmra.mrb[0].mxu0 %v5411
        %v5936 = vpop.f32.mrb[0].mxu0
        %v5937 = vadd.f32 %v5221, %v5936
        %v5938 = vpop.f32.mrb[0].mxu0
        %v5939 = vpop.f32.mrb[0].mxu0
        %v5940 = vadd.f32 %v5221, %v5939
        %v5941 = vpop.f32.mrb[0].mxu0
        %5942 = vmatprep.mubr.bf16.mxu0 0
        %5943 = vmatmul.mubr.bf16.gmra.mrb[0].mxu0 %v5414
        %v5944 = vpop.f32.mrb[0].mxu0
        %v5945 = vadd.f32 %v5221, %v5944
        %v5946 = vpop.f32.mrb[0].mxu0
        %v5947 = vpop.f32.mrb[0].mxu0
        %v5948 = vadd.f32 %v5221, %v5947
        %v5949 = vpop.f32.mrb[0].mxu0
        %5950 = vmatprep.mubr.bf16.mxu0 0
        %5951 = vmatmul.mubr.bf16.gmra.mrb[0].mxu0 %v5417
        %v5952 = vpop.f32.mrb[0].mxu0
        %v5953 = vadd.f32 %v5221, %v5952
        %v5954 = vpop.f32.mrb[0].mxu0
        %v5955 = vpop.f32.mrb[0].mxu0
        %v5956 = vadd.f32 %v5221, %v5955
        %v5957 = vpop.f32.mrb[0].mxu0
        %5958 = vmatprep.mubr.bf16.mxu0 0
        %5959 = vmatmul.mubr.bf16.gmra.mrb[0].mxu0 %v5420
        %v5960 = vpop.f32.mrb[0].mxu0
        %v5961 = vadd.f32 %v5221, %v5960
        %v5962 = vpop.f32.mrb[0].mxu0
        %v5963 = vpop.f32.mrb[0].mxu0
        %v5964 = vadd.f32 %v5221, %v5963
        %v5965 = vpop.f32.mrb[0].mxu0
        %5966 = vdwg.mxu0
        %v5967 = vmax.f32 %v5457, 0.0
        %v5968 = vmax.f32 %v5460, 0.0
        %v5969 = vmax.f32 %v5465, 0.0
        %v5970 = vmax.f32 %v5468, 0.0
        %v5971 = vmax.f32 %v5473, 0.0
        %v5972 = vmax.f32 %v5476, 0.0
        %v5973 = vmax.f32 %v5481, 0.0
        %v5974 = vmax.f32 %v5484, 0.0
        %v5975 = vmax.f32 %v5489, 0.0
        %v5976 = vmax.f32 %v5492, 0.0
        %v5977 = vmax.f32 %v5497, 0.0
        %v5978 = vmax.f32 %v5500, 0.0
        %v5979 = vmax.f32 %v5505, 0.0
        %v5980 = vmax.f32 %v5508, 0.0
        %v5981 = vmax.f32 %v5513, 0.0
        %v5982 = vmax.f32 %v5516, 0.0
        %v5983 = vmax.f32 %v5521, 0.0
        %v5984 = vmax.f32 %v5524, 0.0
        %v5985 = vmax.f32 %v5529, 0.0
        %v5986 = vmax.f32 %v5532, 0.0
        %v5987 = vmax.f32 %v5537, 0.0
        %v5988 = vmax.f32 %v5540, 0.0
        %v5989 = vmax.f32 %v5545, 0.0
        %v5990 = vmax.f32 %v5548, 0.0
        %v5991 = vmax.f32 %v5553, 0.0
        %v5992 = vmax.f32 %v5556, 0.0
        %v5993 = vmax.f32 %v5561, 0.0
        %v5994 = vmax.f32 %v5564, 0.0
        %v5995 = vmax.f32 %v5569, 0.0
        %v5996 = vmax.f32 %v5572, 0.0
        %v5997 = vmax.f32 %v5577, 0.0
        %v5998 = vmax.f32 %v5580, 0.0
        %v5999 = vmax.f32 %v5585, 0.0
        %v6000 = vmax.f32 %v5588, 0.0
        %v6001 = vmax.f32 %v5593, 0.0
        %v6002 = vmax.f32 %v5596, 0.0
        %v6003 = vmax.f32 %v5601, 0.0
        %v6004 = vmax.f32 %v5604, 0.0
        %v6005 = vmax.f32 %v5609, 0.0
        %v6006 = vmax.f32 %v5612, 0.0
        %v6007 = vmax.f32 %v5617, 0.0
        %v6008 = vmax.f32 %v5620, 0.0
        %v6009 = vmax.f32 %v5625, 0.0
        %v6010 = vmax.f32 %v5628, 0.0
        %v6011 = vmax.f32 %v5633, 0.0
        %v6012 = vmax.f32 %v5636, 0.0
        %v6013 = vmax.f32 %v5641, 0.0
        %v6014 = vmax.f32 %v5644, 0.0
        %v6015 = vmax.f32 %v5649, 0.0
        %v6016 = vmax.f32 %v5652, 0.0
        %v6017 = vmax.f32 %v5657, 0.0
        %v6018 = vmax.f32 %v5660, 0.0
        %v6019 = vmax.f32 %v5665, 0.0
        %v6020 = vmax.f32 %v5668, 0.0
        %v6021 = vmax.f32 %v5673, 0.0
        %v6022 = vmax.f32 %v5676, 0.0
        %v6023 = vmax.f32 %v5681, 0.0
        %v6024 = vmax.f32 %v5684, 0.0
        %v6025 = vmax.f32 %v5689, 0.0
        %v6026 = vmax.f32 %v5692, 0.0
        %v6027 = vmax.f32 %v5697, 0.0
        %v6028 = vmax.f32 %v5700, 0.0
        %v6029 = vmax.f32 %v5705, 0.0
        %v6030 = vmax.f32 %v5708, 0.0
        %v6031 = vmax.f32 %v5713, 0.0
        %v6032 = vmax.f32 %v5716, 0.0
        %v6033 = vmax.f32 %v5721, 0.0
        %v6034 = vmax.f32 %v5724, 0.0
        %v6035 = vmax.f32 %v5729, 0.0
        %v6036 = vmax.f32 %v5732, 0.0
        %v6037 = vmax.f32 %v5737, 0.0
        %v6038 = vmax.f32 %v5740, 0.0
        %v6039 = vmax.f32 %v5745, 0.0
        %v6040 = vmax.f32 %v5748, 0.0
        %v6041 = vmax.f32 %v5753, 0.0
        %v6042 = vmax.f32 %v5756, 0.0
        %v6043 = vmax.f32 %v5761, 0.0
        %v6044 = vmax.f32 %v5764, 0.0
        %v6045 = vmax.f32 %v5769, 0.0
        %v6046 = vmax.f32 %v5772, 0.0
        %v6047 = vmax.f32 %v5777, 0.0
        %v6048 = vmax.f32 %v5780, 0.0
        %v6049 = vmax.f32 %v5785, 0.0
        %v6050 = vmax.f32 %v5788, 0.0
        %v6051 = vmax.f32 %v5793, 0.0
        %v6052 = vmax.f32 %v5796, 0.0
        %v6053 = vmax.f32 %v5801, 0.0
        %v6054 = vmax.f32 %v5804, 0.0
        %v6055 = vmax.f32 %v5809, 0.0
        %v6056 = vmax.f32 %v5812, 0.0
        %v6057 = vmax.f32 %v5817, 0.0
        %v6058 = vmax.f32 %v5820, 0.0
        %v6059 = vmax.f32 %v5825, 0.0
        %v6060 = vmax.f32 %v5828, 0.0
        %v6061 = vmax.f32 %v5833, 0.0
        %v6062 = vmax.f32 %v5836, 0.0
        %v6063 = vmax.f32 %v5841, 0.0
        %v6064 = vmax.f32 %v5844, 0.0
        %v6065 = vmax.f32 %v5849, 0.0
        %v6066 = vmax.f32 %v5852, 0.0
        %v6067 = vmax.f32 %v5857, 0.0
        %v6068 = vmax.f32 %v5860, 0.0
        %v6069 = vmax.f32 %v5865, 0.0
        %v6070 = vmax.f32 %v5868, 0.0
        %v6071 = vmax.f32 %v5873, 0.0
        %v6072 = vmax.f32 %v5876, 0.0
        %v6073 = vmax.f32 %v5881, 0.0
        %v6074 = vmax.f32 %v5884, 0.0
        %v6075 = vmax.f32 %v5889, 0.0
        %v6076 = vmax.f32 %v5892, 0.0
        %v6077 = vmax.f32 %v5897, 0.0
        %v6078 = vmax.f32 %v5900, 0.0
        %v6079 = vmax.f32 %v5905, 0.0
        %v6080 = vmax.f32 %v5908, 0.0
        %v6081 = vmax.f32 %v5913, 0.0
        %v6082 = vmax.f32 %v5916, 0.0
        %v6083 = vmax.f32 %v5921, 0.0
        %v6084 = vmax.f32 %v5924, 0.0
        %v6085 = vmax.f32 %v5929, 0.0
        %v6086 = vmax.f32 %v5932, 0.0
        %v6087 = vmax.f32 %v5937, 0.0
        %v6088 = vmax.f32 %v5940, 0.0
        %v6089 = vmax.f32 %v5945, 0.0
        %v6090 = vmax.f32 %v5948, 0.0
        %v6091 = vmax.f32 %v5953, 0.0
        %v6092 = vmax.f32 %v5956, 0.0
        %v6093 = vmax.f32 %v5961, 0.0
        %v6094 = vmax.f32 %v5964, 0.0
        %v6095 = vpack.c.bf16 %v5968, %v5967
        %v6096 = vpack.c.bf16 %v5970, %v5969
        %v6097 = vpack.c.bf16 %v5972, %v5971
        %v6098 = vpack.c.bf16 %v5974, %v5973
        %v6099 = vpack.c.bf16 %v5976, %v5975
        %v6100 = vpack.c.bf16 %v5978, %v5977
        %v6101 = vpack.c.bf16 %v5980, %v5979
        %v6102 = vpack.c.bf16 %v5982, %v5981
        %v6103 = vpack.c.bf16 %v5984, %v5983
        %v6104 = vpack.c.bf16 %v5986, %v5985
        %v6105 = vpack.c.bf16 %v5988, %v5987
        %v6106 = vpack.c.bf16 %v5990, %v5989
        %v6107 = vpack.c.bf16 %v5992, %v5991
        %v6108 = vpack.c.bf16 %v5994, %v5993
        %v6109 = vpack.c.bf16 %v5996, %v5995
        %v6110 = vpack.c.bf16 %v5998, %v5997
        %v6111 = vpack.c.bf16 %v6000, %v5999
        %v6112 = vpack.c.bf16 %v6002, %v6001
        %v6113 = vpack.c.bf16 %v6004, %v6003
        %v6114 = vpack.c.bf16 %v6006, %v6005
        %v6115 = vpack.c.bf16 %v6008, %v6007
        %v6116 = vpack.c.bf16 %v6010, %v6009
        %v6117 = vpack.c.bf16 %v6012, %v6011
        %v6118 = vpack.c.bf16 %v6014, %v6013
        %v6119 = vpack.c.bf16 %v6016, %v6015
        %v6120 = vpack.c.bf16 %v6018, %v6017
        %v6121 = vpack.c.bf16 %v6020, %v6019
        %v6122 = vpack.c.bf16 %v6022, %v6021
        %v6123 = vpack.c.bf16 %v6024, %v6023
        %v6124 = vpack.c.bf16 %v6026, %v6025
        %v6125 = vpack.c.bf16 %v6028, %v6027
        %v6126 = vpack.c.bf16 %v6030, %v6029
        %v6127 = vpack.c.bf16 %v6032, %v6031
        %v6128 = vpack.c.bf16 %v6034, %v6033
        %v6129 = vpack.c.bf16 %v6036, %v6035
        %v6130 = vpack.c.bf16 %v6038, %v6037
        %v6131 = vpack.c.bf16 %v6040, %v6039
        %v6132 = vpack.c.bf16 %v6042, %v6041
        %v6133 = vpack.c.bf16 %v6044, %v6043
        %v6134 = vpack.c.bf16 %v6046, %v6045
        %v6135 = vpack.c.bf16 %v6048, %v6047
        %v6136 = vpack.c.bf16 %v6050, %v6049
        %v6137 = vpack.c.bf16 %v6052, %v6051
        %v6138 = vpack.c.bf16 %v6054, %v6053
        %v6139 = vpack.c.bf16 %v6056, %v6055
        %v6140 = vpack.c.bf16 %v6058, %v6057
        %v6141 = vpack.c.bf16 %v6060, %v6059
        %v6142 = vpack.c.bf16 %v6062, %v6061
        %v6143 = vpack.c.bf16 %v6064, %v6063
        %v6144 = vpack.c.bf16 %v6066, %v6065
        %v6145 = vpack.c.bf16 %v6068, %v6067
        %v6146 = vpack.c.bf16 %v6070, %v6069
        %v6147 = vpack.c.bf16 %v6072, %v6071
        %v6148 = vpack.c.bf16 %v6074, %v6073
        %v6149 = vpack.c.bf16 %v6076, %v6075
        %v6150 = vpack.c.bf16 %v6078, %v6077
        %v6151 = vpack.c.bf16 %v6080, %v6079
        %v6152 = vpack.c.bf16 %v6082, %v6081
        %v6153 = vpack.c.bf16 %v6084, %v6083
        %v6154 = vpack.c.bf16 %v6086, %v6085
        %v6155 = vpack.c.bf16 %v6088, %v6087
        %v6156 = vpack.c.bf16 %v6090, %v6089
        %v6157 = vpack.c.bf16 %v6092, %v6091
        %v6158 = vpack.c.bf16 %v6094, %v6093
        %v6159 = vld [vmem:[#allocation14] sm:$0xf]
        %v6160 = vld [vmem:[#allocation14 + $0x4] sm:$0xf]
        %v6161 = vld [vmem:[#allocation14 + $0x8] sm:$0xf]
        %v6162 = vld [vmem:[#allocation14 + $0xc] sm:$0xf]
        %v6163 = vld [vmem:[#allocation14 + $0x10] sm:$0xf]
        %v6164 = vld [vmem:[#allocation14 + $0x14] sm:$0xf]
        %v6165 = vld [vmem:[#allocation14 + $0x18] sm:$0xf]
        %v6166 = vld [vmem:[#allocation14 + $0x1c] sm:$0xf]
        %v6167 = vld [vmem:[#allocation16] sm:$0x1]
        %v6169 = vlaneseq
        %v6170 = vshrl.u32 %v6169, 7
        %v6171 = vsub.s32 0, %v6170
        %v6172 = vrot.slane %v6167, %v6171
        %v6182 = vunpack.c.l.b16 %v6159
        %v6183 = vunpack.c.l.b16 %v6160
        %v6184 = vunpack.c.l.b16 %v6161
        %v6185 = vunpack.c.l.b16 %v6162
        %v6186 = vunpack.c.l.b16 %v6163
        %v6187 = vunpack.c.l.b16 %v6164
        %v6188 = vunpack.c.l.b16 %v6165
        %v6189 = vunpack.c.l.b16 %v6166
        %v6190 = vpack.c.b16 %v6183, %v6182
        %v6191 = vpack.c.b16 %v6185, %v6184
        %v6192 = vpack.c.b16 %v6187, %v6186
        %v6193 = vpack.c.b16 %v6189, %v6188
        %v6199 = vsel %vm2748, %v6095, 0
        %v6202 = vsel %vm2748, %v6096, 0
        %v6205 = vsel %vm2748, %v6097, 0
        %v6208 = vsel %vm2748, %v6098, 0
        %v6211 = vsel %vm2748, %v6099, 0
        %v6214 = vsel %vm2748, %v6100, 0
        %v6217 = vsel %vm2748, %v6101, 0
        %v6220 = vsel %vm2748, %v6102, 0
        %v6223 = vsel %vm2748, %v6103, 0
        %v6226 = vsel %vm2748, %v6104, 0
        %v6229 = vsel %vm2748, %v6105, 0
        %v6232 = vsel %vm2748, %v6106, 0
        %v6235 = vsel %vm2748, %v6107, 0
        %v6238 = vsel %vm2748, %v6108, 0
        %v6241 = vsel %vm2748, %v6109, 0
        %v6244 = vsel %vm2748, %v6110, 0
        %v6247 = vsel %vm2748, %v6111, 0
        %v6250 = vsel %vm2748, %v6112, 0
        %v6253 = vsel %vm2748, %v6113, 0
        %v6256 = vsel %vm2748, %v6114, 0
        %v6259 = vsel %vm2748, %v6115, 0
        %v6262 = vsel %vm2748, %v6116, 0
        %v6265 = vsel %vm2748, %v6117, 0
        %v6268 = vsel %vm2748, %v6118, 0
        %v6271 = vsel %vm2748, %v6119, 0
        %v6274 = vsel %vm2748, %v6120, 0
        %v6277 = vsel %vm2748, %v6121, 0
        %v6280 = vsel %vm2748, %v6122, 0
        %v6283 = vsel %vm2748, %v6123, 0
        %v6286 = vsel %vm2748, %v6124, 0
        %v6289 = vsel %vm2748, %v6125, 0
        %v6292 = vsel %vm2748, %v6126, 0
        %v6295 = vsel %vm2748, %v6127, 0
        %v6298 = vsel %vm2748, %v6128, 0
        %v6301 = vsel %vm2748, %v6129, 0
        %v6304 = vsel %vm2748, %v6130, 0
        %v6307 = vsel %vm2748, %v6131, 0
        %v6310 = vsel %vm2748, %v6132, 0
        %v6313 = vsel %vm2748, %v6133, 0
        %v6316 = vsel %vm2748, %v6134, 0
        %v6319 = vsel %vm2748, %v6135, 0
        %v6322 = vsel %vm2748, %v6136, 0
        %v6325 = vsel %vm2748, %v6137, 0
        %v6328 = vsel %vm2748, %v6138, 0
        %v6331 = vsel %vm2748, %v6139, 0
        %v6334 = vsel %vm2748, %v6140, 0
        %v6337 = vsel %vm2748, %v6141, 0
        %v6340 = vsel %vm2748, %v6142, 0
        %v6343 = vsel %vm2748, %v6143, 0
        %v6346 = vsel %vm2748, %v6144, 0
        %v6349 = vsel %vm2748, %v6145, 0
        %v6352 = vsel %vm2748, %v6146, 0
        %v6355 = vsel %vm2748, %v6147, 0
        %v6358 = vsel %vm2748, %v6148, 0
        %v6361 = vsel %vm2748, %v6149, 0
        %v6364 = vsel %vm2748, %v6150, 0
        %v6367 = vsel %vm2748, %v6151, 0
        %v6370 = vsel %vm2748, %v6152, 0
        %v6373 = vsel %vm2748, %v6153, 0
        %v6376 = vsel %vm2748, %v6154, 0
        %v6379 = vsel %vm2748, %v6155, 0
        %v6382 = vsel %vm2748, %v6156, 0
        %v6385 = vsel %vm2748, %v6157, 0
        %v6388 = vsel %vm2748, %v6158, 0
        %6390 = vmatprep.subr.bf16.mxu0 0
        %6391 = vmatpush1.bf16.msra.mxu0 %v6190
        %6392 = vmatprep.subr.bf16.mxu0 0
        %6393 = vmatpush1.bf16.msra.mxu0 %v6191
        %6394 = vmatprep.subr.bf16.mxu0 0
        %6395 = vmatpush1.bf16.msra.mxu0 %v6192
        %6396 = vmatprep.subr.bf16.mxu0 0
        %6397 = vmatpush1.bf16.msra.mxu0 %v6193
        %6398 = vmatprep.subr.bf16.mxu0 0
        %6399 = vmatpush1.bf16.msra.mxu0 0
        %6400 = vmatprep.subr.bf16.mxu0 0
        %6401 = vmatpush1.bf16.msra.mxu0 0
        %6402 = vmatprep.subr.bf16.mxu0 0
        %6403 = vmatpush1.bf16.msra.mxu0 0
        %6404 = vmatprep.subr.bf16.mxu0 0
        %6405 = vmatpush1.bf16.msra.mxu0 0
        %6406 = vmatprep.subr.bf16.mxu0 0
        %6407 = vmatpush1.bf16.msra.mxu0 0
        %6408 = vmatprep.subr.bf16.mxu0 0
        %6409 = vmatpush1.bf16.msra.mxu0 0
        %6410 = vmatprep.subr.bf16.mxu0 0
        %6411 = vmatpush1.bf16.msra.mxu0 0
        %6412 = vmatprep.subr.bf16.mxu0 0
        %6413 = vmatpush1.bf16.msra.mxu0 0
        %6414 = vmatprep.subr.bf16.mxu0 0
        %6415 = vmatpush1.bf16.msra.mxu0 0
        %6416 = vmatprep.subr.bf16.mxu0 0
        %6417 = vmatpush1.bf16.msra.mxu0 0
        %6418 = vmatprep.subr.bf16.mxu0 0
        %6419 = vmatpush1.bf16.msra.mxu0 0
        %6420 = vmatprep.subr.bf16.mxu0 0
        %6421 = vmatpush1.bf16.msra.mxu0 0
        %6422 = vmatprep.mubr.bf16.mxu0 0
        %6423 = vmatmul.mubr.bf16.gmra.mrb[0].mxu0 %v6199
        %v6424 = vpop.f32.mrb[0].mxu0
        %v6425 = vadd.f32 %v6172, %v6424
        %v6426 = vpop.f32.mrb[0].mxu0
        %v6427 = vpop.f32.mrb[0].mxu0
        %v6428 = vadd.f32 %v6172, %v6427
        %v6429 = vpop.f32.mrb[0].mxu0
        %6430 = vmatprep.mubr.bf16.mxu0 0
        %6431 = vmatmul.mubr.bf16.gmra.mrb[0].mxu0 %v6202
        %v6432 = vpop.f32.mrb[0].mxu0
        %v6433 = vadd.f32 %v6172, %v6432
        %v6434 = vpop.f32.mrb[0].mxu0
        %v6435 = vpop.f32.mrb[0].mxu0
        %v6436 = vadd.f32 %v6172, %v6435
        %v6437 = vpop.f32.mrb[0].mxu0
        %6438 = vmatprep.mubr.bf16.mxu0 0
        %6439 = vmatmul.mubr.bf16.gmra.mrb[0].mxu0 %v6205
        %v6440 = vpop.f32.mrb[0].mxu0
        %v6441 = vadd.f32 %v6172, %v6440
        %v6442 = vpop.f32.mrb[0].mxu0
        %v6443 = vpop.f32.mrb[0].mxu0
        %v6444 = vadd.f32 %v6172, %v6443
        %v6445 = vpop.f32.mrb[0].mxu0
        %6446 = vmatprep.mubr.bf16.mxu0 0
        %6447 = vmatmul.mubr.bf16.gmra.mrb[0].mxu0 %v6208
        %v6448 = vpop.f32.mrb[0].mxu0
        %v6449 = vadd.f32 %v6172, %v6448
        %v6450 = vpop.f32.mrb[0].mxu0
        %v6451 = vpop.f32.mrb[0].mxu0
        %v6452 = vadd.f32 %v6172, %v6451
        %v6453 = vpop.f32.mrb[0].mxu0
        %6454 = vmatprep.mubr.bf16.mxu0 0
        %6455 = vmatmul.mubr.bf16.gmra.mrb[0].mxu0 %v6211
        %v6456 = vpop.f32.mrb[0].mxu0
        %v6457 = vadd.f32 %v6172, %v6456
        %v6458 = vpop.f32.mrb[0].mxu0
        %v6459 = vpop.f32.mrb[0].mxu0
        %v6460 = vadd.f32 %v6172, %v6459
        %v6461 = vpop.f32.mrb[0].mxu0
        %6462 = vmatprep.mubr.bf16.mxu0 0
        %6463 = vmatmul.mubr.bf16.gmra.mrb[0].mxu0 %v6214
        %v6464 = vpop.f32.mrb[0].mxu0
        %v6465 = vadd.f32 %v6172, %v6464
        %v6466 = vpop.f32.mrb[0].mxu0
        %v6467 = vpop.f32.mrb[0].mxu0
        %v6468 = vadd.f32 %v6172, %v6467
        %v6469 = vpop.f32.mrb[0].mxu0
        %6470 = vmatprep.mubr.bf16.mxu0 0
        %6471 = vmatmul.mubr.bf16.gmra.mrb[0].mxu0 %v6217
        %v6472 = vpop.f32.mrb[0].mxu0
        %v6473 = vadd.f32 %v6172, %v6472
        %v6474 = vpop.f32.mrb[0].mxu0
        %v6475 = vpop.f32.mrb[0].mxu0
        %v6476 = vadd.f32 %v6172, %v6475
        %v6477 = vpop.f32.mrb[0].mxu0
        %6478 = vmatprep.mubr.bf16.mxu0 0
        %6479 = vmatmul.mubr.bf16.gmra.mrb[0].mxu0 %v6220
        %v6480 = vpop.f32.mrb[0].mxu0
        %v6481 = vadd.f32 %v6172, %v6480
        %v6482 = vpop.f32.mrb[0].mxu0
        %v6483 = vpop.f32.mrb[0].mxu0
        %v6484 = vadd.f32 %v6172, %v6483
        %v6485 = vpop.f32.mrb[0].mxu0
        %6486 = vmatprep.mubr.bf16.mxu0 0
        %6487 = vmatmul.mubr.bf16.gmra.mrb[0].mxu0 %v6223
        %v6488 = vpop.f32.mrb[0].mxu0
        %v6489 = vadd.f32 %v6172, %v6488
        %v6490 = vpop.f32.mrb[0].mxu0
        %v6491 = vpop.f32.mrb[0].mxu0
        %v6492 = vadd.f32 %v6172, %v6491
        %v6493 = vpop.f32.mrb[0].mxu0
        %6494 = vmatprep.mubr.bf16.mxu0 0
        %6495 = vmatmul.mubr.bf16.gmra.mrb[0].mxu0 %v6226
        %v6496 = vpop.f32.mrb[0].mxu0
        %v6497 = vadd.f32 %v6172, %v6496
        %v6498 = vpop.f32.mrb[0].mxu0
        %v6499 = vpop.f32.mrb[0].mxu0
        %v6500 = vadd.f32 %v6172, %v6499
        %v6501 = vpop.f32.mrb[0].mxu0
        %6502 = vmatprep.mubr.bf16.mxu0 0
        %6503 = vmatmul.mubr.bf16.gmra.mrb[0].mxu0 %v6229
        %v6504 = vpop.f32.mrb[0].mxu0
        %v6505 = vadd.f32 %v6172, %v6504
        %v6506 = vpop.f32.mrb[0].mxu0
        %v6507 = vpop.f32.mrb[0].mxu0
        %v6508 = vadd.f32 %v6172, %v6507
        %v6509 = vpop.f32.mrb[0].mxu0
        %6510 = vmatprep.mubr.bf16.mxu0 0
        %6511 = vmatmul.mubr.bf16.gmra.mrb[0].mxu0 %v6232
        %v6512 = vpop.f32.mrb[0].mxu0
        %v6513 = vadd.f32 %v6172, %v6512
        %v6514 = vpop.f32.mrb[0].mxu0
        %v6515 = vpop.f32.mrb[0].mxu0
        %v6516 = vadd.f32 %v6172, %v6515
        %v6517 = vpop.f32.mrb[0].mxu0
        %6518 = vmatprep.mubr.bf16.mxu0 0
        %6519 = vmatmul.mubr.bf16.gmra.mrb[0].mxu0 %v6235
        %v6520 = vpop.f32.mrb[0].mxu0
        %v6521 = vadd.f32 %v6172, %v6520
        %v6522 = vpop.f32.mrb[0].mxu0
        %v6523 = vpop.f32.mrb[0].mxu0
        %v6524 = vadd.f32 %v6172, %v6523
        %v6525 = vpop.f32.mrb[0].mxu0
        %6526 = vmatprep.mubr.bf16.mxu0 0
        %6527 = vmatmul.mubr.bf16.gmra.mrb[0].mxu0 %v6238
        %v6528 = vpop.f32.mrb[0].mxu0
        %v6529 = vadd.f32 %v6172, %v6528
        %v6530 = vpop.f32.mrb[0].mxu0
        %v6531 = vpop.f32.mrb[0].mxu0
        %v6532 = vadd.f32 %v6172, %v6531
        %v6533 = vpop.f32.mrb[0].mxu0
        %6534 = vmatprep.mubr.bf16.mxu0 0
        %6535 = vmatmul.mubr.bf16.gmra.mrb[0].mxu0 %v6241
        %v6536 = vpop.f32.mrb[0].mxu0
        %v6537 = vadd.f32 %v6172, %v6536
        %v6538 = vpop.f32.mrb[0].mxu0
        %v6539 = vpop.f32.mrb[0].mxu0
        %v6540 = vadd.f32 %v6172, %v6539
        %v6541 = vpop.f32.mrb[0].mxu0
        %6542 = vmatprep.mubr.bf16.mxu0 0
        %6543 = vmatmul.mubr.bf16.gmra.mrb[0].mxu0 %v6244
        %v6544 = vpop.f32.mrb[0].mxu0
        %v6545 = vadd.f32 %v6172, %v6544
        %v6546 = vpop.f32.mrb[0].mxu0
        %v6547 = vpop.f32.mrb[0].mxu0
        %v6548 = vadd.f32 %v6172, %v6547
        %v6549 = vpop.f32.mrb[0].mxu0
        %6550 = vmatprep.mubr.bf16.mxu0 0
        %6551 = vmatmul.mubr.bf16.gmra.mrb[0].mxu0 %v6247
        %v6552 = vpop.f32.mrb[0].mxu0
        %v6553 = vadd.f32 %v6172, %v6552
        %v6554 = vpop.f32.mrb[0].mxu0
        %v6555 = vpop.f32.mrb[0].mxu0
        %v6556 = vadd.f32 %v6172, %v6555
        %v6557 = vpop.f32.mrb[0].mxu0
        %6558 = vmatprep.mubr.bf16.mxu0 0
        %6559 = vmatmul.mubr.bf16.gmra.mrb[0].mxu0 %v6250
        %v6560 = vpop.f32.mrb[0].mxu0
        %v6561 = vadd.f32 %v6172, %v6560
        %v6562 = vpop.f32.mrb[0].mxu0
        %v6563 = vpop.f32.mrb[0].mxu0
        %v6564 = vadd.f32 %v6172, %v6563
        %v6565 = vpop.f32.mrb[0].mxu0
        %6566 = vmatprep.mubr.bf16.mxu0 0
        %6567 = vmatmul.mubr.bf16.gmra.mrb[0].mxu0 %v6253
        %v6568 = vpop.f32.mrb[0].mxu0
        %v6569 = vadd.f32 %v6172, %v6568
        %v6570 = vpop.f32.mrb[0].mxu0
        %v6571 = vpop.f32.mrb[0].mxu0
        %v6572 = vadd.f32 %v6172, %v6571
        %v6573 = vpop.f32.mrb[0].mxu0
        %6574 = vmatprep.mubr.bf16.mxu0 0
        %6575 = vmatmul.mubr.bf16.gmra.mrb[0].mxu0 %v6256
        %v6576 = vpop.f32.mrb[0].mxu0
        %v6577 = vadd.f32 %v6172, %v6576
        %v6578 = vpop.f32.mrb[0].mxu0
        %v6579 = vpop.f32.mrb[0].mxu0
        %v6580 = vadd.f32 %v6172, %v6579
        %v6581 = vpop.f32.mrb[0].mxu0
        %6582 = vmatprep.mubr.bf16.mxu0 0
        %6583 = vmatmul.mubr.bf16.gmra.mrb[0].mxu0 %v6259
        %v6584 = vpop.f32.mrb[0].mxu0
        %v6585 = vadd.f32 %v6172, %v6584
        %v6586 = vpop.f32.mrb[0].mxu0
        %v6587 = vpop.f32.mrb[0].mxu0
        %v6588 = vadd.f32 %v6172, %v6587
        %v6589 = vpop.f32.mrb[0].mxu0
        %6590 = vmatprep.mubr.bf16.mxu0 0
        %6591 = vmatmul.mubr.bf16.gmra.mrb[0].mxu0 %v6262
        %v6592 = vpop.f32.mrb[0].mxu0
        %v6593 = vadd.f32 %v6172, %v6592
        %v6594 = vpop.f32.mrb[0].mxu0
        %v6595 = vpop.f32.mrb[0].mxu0
        %v6596 = vadd.f32 %v6172, %v6595
        %v6597 = vpop.f32.mrb[0].mxu0
        %6598 = vmatprep.mubr.bf16.mxu0 0
        %6599 = vmatmul.mubr.bf16.gmra.mrb[0].mxu0 %v6265
        %v6600 = vpop.f32.mrb[0].mxu0
        %v6601 = vadd.f32 %v6172, %v6600
        %v6602 = vpop.f32.mrb[0].mxu0
        %v6603 = vpop.f32.mrb[0].mxu0
        %v6604 = vadd.f32 %v6172, %v6603
        %v6605 = vpop.f32.mrb[0].mxu0
        %6606 = vmatprep.mubr.bf16.mxu0 0
        %6607 = vmatmul.mubr.bf16.gmra.mrb[0].mxu0 %v6268
        %v6608 = vpop.f32.mrb[0].mxu0
        %v6609 = vadd.f32 %v6172, %v6608
        %v6610 = vpop.f32.mrb[0].mxu0
        %v6611 = vpop.f32.mrb[0].mxu0
        %v6612 = vadd.f32 %v6172, %v6611
        %v6613 = vpop.f32.mrb[0].mxu0
        %6614 = vmatprep.mubr.bf16.mxu0 0
        %6615 = vmatmul.mubr.bf16.gmra.mrb[0].mxu0 %v6271
        %v6616 = vpop.f32.mrb[0].mxu0
        %v6617 = vadd.f32 %v6172, %v6616
        %v6618 = vpop.f32.mrb[0].mxu0
        %v6619 = vpop.f32.mrb[0].mxu0
        %v6620 = vadd.f32 %v6172, %v6619
        %v6621 = vpop.f32.mrb[0].mxu0
        %6622 = vmatprep.mubr.bf16.mxu0 0
        %6623 = vmatmul.mubr.bf16.gmra.mrb[0].mxu0 %v6274
        %v6624 = vpop.f32.mrb[0].mxu0
        %v6625 = vadd.f32 %v6172, %v6624
        %v6626 = vpop.f32.mrb[0].mxu0
        %v6627 = vpop.f32.mrb[0].mxu0
        %v6628 = vadd.f32 %v6172, %v6627
        %v6629 = vpop.f32.mrb[0].mxu0
        %6630 = vmatprep.mubr.bf16.mxu0 0
        %6631 = vmatmul.mubr.bf16.gmra.mrb[0].mxu0 %v6277
        %v6632 = vpop.f32.mrb[0].mxu0
        %v6633 = vadd.f32 %v6172, %v6632
        %v6634 = vpop.f32.mrb[0].mxu0
        %v6635 = vpop.f32.mrb[0].mxu0
        %v6636 = vadd.f32 %v6172, %v6635
        %v6637 = vpop.f32.mrb[0].mxu0
        %6638 = vmatprep.mubr.bf16.mxu0 0
        %6639 = vmatmul.mubr.bf16.gmra.mrb[0].mxu0 %v6280
        %v6640 = vpop.f32.mrb[0].mxu0
        %v6641 = vadd.f32 %v6172, %v6640
        %v6642 = vpop.f32.mrb[0].mxu0
        %v6643 = vpop.f32.mrb[0].mxu0
        %v6644 = vadd.f32 %v6172, %v6643
        %v6645 = vpop.f32.mrb[0].mxu0
        %6646 = vmatprep.mubr.bf16.mxu0 0
        %6647 = vmatmul.mubr.bf16.gmra.mrb[0].mxu0 %v6283
        %v6648 = vpop.f32.mrb[0].mxu0
        %v6649 = vadd.f32 %v6172, %v6648
        %v6650 = vpop.f32.mrb[0].mxu0
        %v6651 = vpop.f32.mrb[0].mxu0
        %v6652 = vadd.f32 %v6172, %v6651
        %v6653 = vpop.f32.mrb[0].mxu0
        %6654 = vmatprep.mubr.bf16.mxu0 0
        %6655 = vmatmul.mubr.bf16.gmra.mrb[0].mxu0 %v6286
        %v6656 = vpop.f32.mrb[0].mxu0
        %v6657 = vadd.f32 %v6172, %v6656
        %v6658 = vpop.f32.mrb[0].mxu0
        %v6659 = vpop.f32.mrb[0].mxu0
        %v6660 = vadd.f32 %v6172, %v6659
        %v6661 = vpop.f32.mrb[0].mxu0
        %6662 = vmatprep.mubr.bf16.mxu0 0
        %6663 = vmatmul.mubr.bf16.gmra.mrb[0].mxu0 %v6289
        %v6664 = vpop.f32.mrb[0].mxu0
        %v6665 = vadd.f32 %v6172, %v6664
        %v6666 = vpop.f32.mrb[0].mxu0
        %v6667 = vpop.f32.mrb[0].mxu0
        %v6668 = vadd.f32 %v6172, %v6667
        %v6669 = vpop.f32.mrb[0].mxu0
        %6670 = vmatprep.mubr.bf16.mxu0 0
        %6671 = vmatmul.mubr.bf16.gmra.mrb[0].mxu0 %v6292
        %v6672 = vpop.f32.mrb[0].mxu0
        %v6673 = vadd.f32 %v6172, %v6672
        %v6674 = vpop.f32.mrb[0].mxu0
        %v6675 = vpop.f32.mrb[0].mxu0
        %v6676 = vadd.f32 %v6172, %v6675
        %v6677 = vpop.f32.mrb[0].mxu0
        %6678 = vmatprep.mubr.bf16.mxu0 0
        %6679 = vmatmul.mubr.bf16.gmra.mrb[0].mxu0 %v6295
        %v6680 = vpop.f32.mrb[0].mxu0
        %v6681 = vadd.f32 %v6172, %v6680
        %v6682 = vpop.f32.mrb[0].mxu0
        %v6683 = vpop.f32.mrb[0].mxu0
        %v6684 = vadd.f32 %v6172, %v6683
        %v6685 = vpop.f32.mrb[0].mxu0
        %6686 = vmatprep.mubr.bf16.mxu0 0
        %6687 = vmatmul.mubr.bf16.gmra.mrb[0].mxu0 %v6298
        %v6688 = vpop.f32.mrb[0].mxu0
        %v6689 = vadd.f32 %v6172, %v6688
        %v6690 = vpop.f32.mrb[0].mxu0
        %v6691 = vpop.f32.mrb[0].mxu0
        %v6692 = vadd.f32 %v6172, %v6691
        %v6693 = vpop.f32.mrb[0].mxu0
        %6694 = vmatprep.mubr.bf16.mxu0 0
        %6695 = vmatmul.mubr.bf16.gmra.mrb[0].mxu0 %v6301
        %v6696 = vpop.f32.mrb[0].mxu0
        %v6697 = vadd.f32 %v6172, %v6696
        %v6698 = vpop.f32.mrb[0].mxu0
        %v6699 = vpop.f32.mrb[0].mxu0
        %v6700 = vadd.f32 %v6172, %v6699
        %v6701 = vpop.f32.mrb[0].mxu0
        %6702 = vmatprep.mubr.bf16.mxu0 0
        %6703 = vmatmul.mubr.bf16.gmra.mrb[0].mxu0 %v6304
        %v6704 = vpop.f32.mrb[0].mxu0
        %v6705 = vadd.f32 %v6172, %v6704
        %v6706 = vpop.f32.mrb[0].mxu0
        %v6707 = vpop.f32.mrb[0].mxu0
        %v6708 = vadd.f32 %v6172, %v6707
        %v6709 = vpop.f32.mrb[0].mxu0
        %6710 = vmatprep.mubr.bf16.mxu0 0
        %6711 = vmatmul.mubr.bf16.gmra.mrb[0].mxu0 %v6307
        %v6712 = vpop.f32.mrb[0].mxu0
        %v6713 = vadd.f32 %v6172, %v6712
        %v6714 = vpop.f32.mrb[0].mxu0
        %v6715 = vpop.f32.mrb[0].mxu0
        %v6716 = vadd.f32 %v6172, %v6715
        %v6717 = vpop.f32.mrb[0].mxu0
        %6718 = vmatprep.mubr.bf16.mxu0 0
        %6719 = vmatmul.mubr.bf16.gmra.mrb[0].mxu0 %v6310
        %v6720 = vpop.f32.mrb[0].mxu0
        %v6721 = vadd.f32 %v6172, %v6720
        %v6722 = vpop.f32.mrb[0].mxu0
        %v6723 = vpop.f32.mrb[0].mxu0
        %v6724 = vadd.f32 %v6172, %v6723
        %v6725 = vpop.f32.mrb[0].mxu0
        %6726 = vmatprep.mubr.bf16.mxu0 0
        %6727 = vmatmul.mubr.bf16.gmra.mrb[0].mxu0 %v6313
        %v6728 = vpop.f32.mrb[0].mxu0
        %v6729 = vadd.f32 %v6172, %v6728
        %v6730 = vpop.f32.mrb[0].mxu0
        %v6731 = vpop.f32.mrb[0].mxu0
        %v6732 = vadd.f32 %v6172, %v6731
        %v6733 = vpop.f32.mrb[0].mxu0
        %6734 = vmatprep.mubr.bf16.mxu0 0
        %6735 = vmatmul.mubr.bf16.gmra.mrb[0].mxu0 %v6316
        %v6736 = vpop.f32.mrb[0].mxu0
        %v6737 = vadd.f32 %v6172, %v6736
        %v6738 = vpop.f32.mrb[0].mxu0
        %v6739 = vpop.f32.mrb[0].mxu0
        %v6740 = vadd.f32 %v6172, %v6739
        %v6741 = vpop.f32.mrb[0].mxu0
        %6742 = vmatprep.mubr.bf16.mxu0 0
        %6743 = vmatmul.mubr.bf16.gmra.mrb[0].mxu0 %v6319
        %v6744 = vpop.f32.mrb[0].mxu0
        %v6745 = vadd.f32 %v6172, %v6744
        %v6746 = vpop.f32.mrb[0].mxu0
        %v6747 = vpop.f32.mrb[0].mxu0
        %v6748 = vadd.f32 %v6172, %v6747
        %v6749 = vpop.f32.mrb[0].mxu0
        %6750 = vmatprep.mubr.bf16.mxu0 0
        %6751 = vmatmul.mubr.bf16.gmra.mrb[0].mxu0 %v6322
        %v6752 = vpop.f32.mrb[0].mxu0
        %v6753 = vadd.f32 %v6172, %v6752
        %v6754 = vpop.f32.mrb[0].mxu0
        %v6755 = vpop.f32.mrb[0].mxu0
        %v6756 = vadd.f32 %v6172, %v6755
        %v6757 = vpop.f32.mrb[0].mxu0
        %6758 = vmatprep.mubr.bf16.mxu0 0
        %6759 = vmatmul.mubr.bf16.gmra.mrb[0].mxu0 %v6325
        %v6760 = vpop.f32.mrb[0].mxu0
        %v6761 = vadd.f32 %v6172, %v6760
        %v6762 = vpop.f32.mrb[0].mxu0
        %v6763 = vpop.f32.mrb[0].mxu0
        %v6764 = vadd.f32 %v6172, %v6763
        %v6765 = vpop.f32.mrb[0].mxu0
        %6766 = vmatprep.mubr.bf16.mxu0 0
        %6767 = vmatmul.mubr.bf16.gmra.mrb[0].mxu0 %v6328
        %v6768 = vpop.f32.mrb[0].mxu0
        %v6769 = vadd.f32 %v6172, %v6768
        %v6770 = vpop.f32.mrb[0].mxu0
        %v6771 = vpop.f32.mrb[0].mxu0
        %v6772 = vadd.f32 %v6172, %v6771
        %v6773 = vpop.f32.mrb[0].mxu0
        %6774 = vmatprep.mubr.bf16.mxu0 0
        %6775 = vmatmul.mubr.bf16.gmra.mrb[0].mxu0 %v6331
        %v6776 = vpop.f32.mrb[0].mxu0
        %v6777 = vadd.f32 %v6172, %v6776
        %v6778 = vpop.f32.mrb[0].mxu0
        %v6779 = vpop.f32.mrb[0].mxu0
        %v6780 = vadd.f32 %v6172, %v6779
        %v6781 = vpop.f32.mrb[0].mxu0
        %6782 = vmatprep.mubr.bf16.mxu0 0
        %6783 = vmatmul.mubr.bf16.gmra.mrb[0].mxu0 %v6334
        %v6784 = vpop.f32.mrb[0].mxu0
        %v6785 = vadd.f32 %v6172, %v6784
        %v6786 = vpop.f32.mrb[0].mxu0
        %v6787 = vpop.f32.mrb[0].mxu0
        %v6788 = vadd.f32 %v6172, %v6787
        %v6789 = vpop.f32.mrb[0].mxu0
        %6790 = vmatprep.mubr.bf16.mxu0 0
        %6791 = vmatmul.mubr.bf16.gmra.mrb[0].mxu0 %v6337
        %v6792 = vpop.f32.mrb[0].mxu0
        %v6793 = vadd.f32 %v6172, %v6792
        %v6794 = vpop.f32.mrb[0].mxu0
        %v6795 = vpop.f32.mrb[0].mxu0
        %v6796 = vadd.f32 %v6172, %v6795
        %v6797 = vpop.f32.mrb[0].mxu0
        %6798 = vmatprep.mubr.bf16.mxu0 0
        %6799 = vmatmul.mubr.bf16.gmra.mrb[0].mxu0 %v6340
        %v6800 = vpop.f32.mrb[0].mxu0
        %v6801 = vadd.f32 %v6172, %v6800
        %v6802 = vpop.f32.mrb[0].mxu0
        %v6803 = vpop.f32.mrb[0].mxu0
        %v6804 = vadd.f32 %v6172, %v6803
        %v6805 = vpop.f32.mrb[0].mxu0
        %6806 = vmatprep.mubr.bf16.mxu0 0
        %6807 = vmatmul.mubr.bf16.gmra.mrb[0].mxu0 %v6343
        %v6808 = vpop.f32.mrb[0].mxu0
        %v6809 = vadd.f32 %v6172, %v6808
        %v6810 = vpop.f32.mrb[0].mxu0
        %v6811 = vpop.f32.mrb[0].mxu0
        %v6812 = vadd.f32 %v6172, %v6811
        %v6813 = vpop.f32.mrb[0].mxu0
        %6814 = vmatprep.mubr.bf16.mxu0 0
        %6815 = vmatmul.mubr.bf16.gmra.mrb[0].mxu0 %v6346
        %v6816 = vpop.f32.mrb[0].mxu0
        %v6817 = vadd.f32 %v6172, %v6816
        %v6818 = vpop.f32.mrb[0].mxu0
        %v6819 = vpop.f32.mrb[0].mxu0
        %v6820 = vadd.f32 %v6172, %v6819
        %v6821 = vpop.f32.mrb[0].mxu0
        %6822 = vmatprep.mubr.bf16.mxu0 0
        %6823 = vmatmul.mubr.bf16.gmra.mrb[0].mxu0 %v6349
        %v6824 = vpop.f32.mrb[0].mxu0
        %v6825 = vadd.f32 %v6172, %v6824
        %v6826 = vpop.f32.mrb[0].mxu0
        %v6827 = vpop.f32.mrb[0].mxu0
        %v6828 = vadd.f32 %v6172, %v6827
        %v6829 = vpop.f32.mrb[0].mxu0
        %6830 = vmatprep.mubr.bf16.mxu0 0
        %6831 = vmatmul.mubr.bf16.gmra.mrb[0].mxu0 %v6352
        %v6832 = vpop.f32.mrb[0].mxu0
        %v6833 = vadd.f32 %v6172, %v6832
        %v6834 = vpop.f32.mrb[0].mxu0
        %v6835 = vpop.f32.mrb[0].mxu0
        %v6836 = vadd.f32 %v6172, %v6835
        %v6837 = vpop.f32.mrb[0].mxu0
        %6838 = vmatprep.mubr.bf16.mxu0 0
        %6839 = vmatmul.mubr.bf16.gmra.mrb[0].mxu0 %v6355
        %v6840 = vpop.f32.mrb[0].mxu0
        %v6841 = vadd.f32 %v6172, %v6840
        %v6842 = vpop.f32.mrb[0].mxu0
        %v6843 = vpop.f32.mrb[0].mxu0
        %v6844 = vadd.f32 %v6172, %v6843
        %v6845 = vpop.f32.mrb[0].mxu0
        %6846 = vmatprep.mubr.bf16.mxu0 0
        %6847 = vmatmul.mubr.bf16.gmra.mrb[0].mxu0 %v6358
        %v6848 = vpop.f32.mrb[0].mxu0
        %v6849 = vadd.f32 %v6172, %v6848
        %v6850 = vpop.f32.mrb[0].mxu0
        %v6851 = vpop.f32.mrb[0].mxu0
        %v6852 = vadd.f32 %v6172, %v6851
        %v6853 = vpop.f32.mrb[0].mxu0
        %6854 = vmatprep.mubr.bf16.mxu0 0
        %6855 = vmatmul.mubr.bf16.gmra.mrb[0].mxu0 %v6361
        %v6856 = vpop.f32.mrb[0].mxu0
        %v6857 = vadd.f32 %v6172, %v6856
        %v6858 = vpop.f32.mrb[0].mxu0
        %v6859 = vpop.f32.mrb[0].mxu0
        %v6860 = vadd.f32 %v6172, %v6859
        %v6861 = vpop.f32.mrb[0].mxu0
        %6862 = vmatprep.mubr.bf16.mxu0 0
        %6863 = vmatmul.mubr.bf16.gmra.mrb[0].mxu0 %v6364
        %v6864 = vpop.f32.mrb[0].mxu0
        %v6865 = vadd.f32 %v6172, %v6864
        %v6866 = vpop.f32.mrb[0].mxu0
        %v6867 = vpop.f32.mrb[0].mxu0
        %v6868 = vadd.f32 %v6172, %v6867
        %v6869 = vpop.f32.mrb[0].mxu0
        %6870 = vmatprep.mubr.bf16.mxu0 0
        %6871 = vmatmul.mubr.bf16.gmra.mrb[0].mxu0 %v6367
        %v6872 = vpop.f32.mrb[0].mxu0
        %v6873 = vadd.f32 %v6172, %v6872
        %v6874 = vpop.f32.mrb[0].mxu0
        %v6875 = vpop.f32.mrb[0].mxu0
        %v6876 = vadd.f32 %v6172, %v6875
        %v6877 = vpop.f32.mrb[0].mxu0
        %6878 = vmatprep.mubr.bf16.mxu0 0
        %6879 = vmatmul.mubr.bf16.gmra.mrb[0].mxu0 %v6370
        %v6880 = vpop.f32.mrb[0].mxu0
        %v6881 = vadd.f32 %v6172, %v6880
        %v6882 = vpop.f32.mrb[0].mxu0
        %v6883 = vpop.f32.mrb[0].mxu0
        %v6884 = vadd.f32 %v6172, %v6883
        %v6885 = vpop.f32.mrb[0].mxu0
        %6886 = vmatprep.mubr.bf16.mxu0 0
        %6887 = vmatmul.mubr.bf16.gmra.mrb[0].mxu0 %v6373
        %v6888 = vpop.f32.mrb[0].mxu0
        %v6889 = vadd.f32 %v6172, %v6888
        %v6890 = vpop.f32.mrb[0].mxu0
        %v6891 = vpop.f32.mrb[0].mxu0
        %v6892 = vadd.f32 %v6172, %v6891
        %v6893 = vpop.f32.mrb[0].mxu0
        %6894 = vmatprep.mubr.bf16.mxu0 0
        %6895 = vmatmul.mubr.bf16.gmra.mrb[0].mxu0 %v6376
        %v6896 = vpop.f32.mrb[0].mxu0
        %v6897 = vadd.f32 %v6172, %v6896
        %v6898 = vpop.f32.mrb[0].mxu0
        %v6899 = vpop.f32.mrb[0].mxu0
        %v6900 = vadd.f32 %v6172, %v6899
        %v6901 = vpop.f32.mrb[0].mxu0
        %6902 = vmatprep.mubr.bf16.mxu0 0
        %6903 = vmatmul.mubr.bf16.gmra.mrb[0].mxu0 %v6379
        %v6904 = vpop.f32.mrb[0].mxu0
        %v6905 = vadd.f32 %v6172, %v6904
        %v6906 = vpop.f32.mrb[0].mxu0
        %v6907 = vpop.f32.mrb[0].mxu0
        %v6908 = vadd.f32 %v6172, %v6907
        %v6909 = vpop.f32.mrb[0].mxu0
        %6910 = vmatprep.mubr.bf16.mxu0 0
        %6911 = vmatmul.mubr.bf16.gmra.mrb[0].mxu0 %v6382
        %v6912 = vpop.f32.mrb[0].mxu0
        %v6913 = vadd.f32 %v6172, %v6912
        %v6914 = vpop.f32.mrb[0].mxu0
        %v6915 = vpop.f32.mrb[0].mxu0
        %v6916 = vadd.f32 %v6172, %v6915
        %v6917 = vpop.f32.mrb[0].mxu0
        %6918 = vmatprep.mubr.bf16.mxu0 0
        %6919 = vmatmul.mubr.bf16.gmra.mrb[0].mxu0 %v6385
        %v6920 = vpop.f32.mrb[0].mxu0
        %v6921 = vadd.f32 %v6172, %v6920
        %v6922 = vpop.f32.mrb[0].mxu0
        %v6923 = vpop.f32.mrb[0].mxu0
        %v6924 = vadd.f32 %v6172, %v6923
        %v6925 = vpop.f32.mrb[0].mxu0
        %6926 = vmatprep.mubr.bf16.mxu0 0
        %6927 = vmatmul.mubr.bf16.gmra.mrb[0].mxu0 %v6388
        %v6928 = vpop.f32.mrb[0].mxu0
        %v6929 = vadd.f32 %v6172, %v6928
        %v6930 = vpop.f32.mrb[0].mxu0
        %v6931 = vpop.f32.mrb[0].mxu0
        %v6932 = vadd.f32 %v6172, %v6931
        %v6933 = vpop.f32.mrb[0].mxu0
        %6934 = vdwg.mxu0
        %v6935 = vmax.f32 %v6425, 0.0
        %v6936 = vmax.f32 %v6428, 0.0
        %v6937 = vmax.f32 %v6433, 0.0
        %v6938 = vmax.f32 %v6436, 0.0
        %v6939 = vmax.f32 %v6441, 0.0
        %v6940 = vmax.f32 %v6444, 0.0
        %v6941 = vmax.f32 %v6449, 0.0
        %v6942 = vmax.f32 %v6452, 0.0
        %v6943 = vmax.f32 %v6457, 0.0
        %v6944 = vmax.f32 %v6460, 0.0
        %v6945 = vmax.f32 %v6465, 0.0
        %v6946 = vmax.f32 %v6468, 0.0
        %v6947 = vmax.f32 %v6473, 0.0
        %v6948 = vmax.f32 %v6476, 0.0
        %v6949 = vmax.f32 %v6481, 0.0
        %v6950 = vmax.f32 %v6484, 0.0
        %v6951 = vmax.f32 %v6489, 0.0
        %v6952 = vmax.f32 %v6492, 0.0
        %v6953 = vmax.f32 %v6497, 0.0
        %v6954 = vmax.f32 %v6500, 0.0
        %v6955 = vmax.f32 %v6505, 0.0
        %v6956 = vmax.f32 %v6508, 0.0
        %v6957 = vmax.f32 %v6513, 0.0
        %v6958 = vmax.f32 %v6516, 0.0
        %v6959 = vmax.f32 %v6521, 0.0
        %v6960 = vmax.f32 %v6524, 0.0
        %v6961 = vmax.f32 %v6529, 0.0
        %v6962 = vmax.f32 %v6532, 0.0
        %v6963 = vmax.f32 %v6537, 0.0
        %v6964 = vmax.f32 %v6540, 0.0
        %v6965 = vmax.f32 %v6545, 0.0
        %v6966 = vmax.f32 %v6548, 0.0
        %v6967 = vmax.f32 %v6553, 0.0
        %v6968 = vmax.f32 %v6556, 0.0
        %v6969 = vmax.f32 %v6561, 0.0
        %v6970 = vmax.f32 %v6564, 0.0
        %v6971 = vmax.f32 %v6569, 0.0
        %v6972 = vmax.f32 %v6572, 0.0
        %v6973 = vmax.f32 %v6577, 0.0
        %v6974 = vmax.f32 %v6580, 0.0
        %v6975 = vmax.f32 %v6585, 0.0
        %v6976 = vmax.f32 %v6588, 0.0
        %v6977 = vmax.f32 %v6593, 0.0
        %v6978 = vmax.f32 %v6596, 0.0
        %v6979 = vmax.f32 %v6601, 0.0
        %v6980 = vmax.f32 %v6604, 0.0
        %v6981 = vmax.f32 %v6609, 0.0
        %v6982 = vmax.f32 %v6612, 0.0
        %v6983 = vmax.f32 %v6617, 0.0
        %v6984 = vmax.f32 %v6620, 0.0
        %v6985 = vmax.f32 %v6625, 0.0
        %v6986 = vmax.f32 %v6628, 0.0
        %v6987 = vmax.f32 %v6633, 0.0
        %v6988 = vmax.f32 %v6636, 0.0
        %v6989 = vmax.f32 %v6641, 0.0
        %v6990 = vmax.f32 %v6644, 0.0
        %v6991 = vmax.f32 %v6649, 0.0
        %v6992 = vmax.f32 %v6652, 0.0
        %v6993 = vmax.f32 %v6657, 0.0
        %v6994 = vmax.f32 %v6660, 0.0
        %v6995 = vmax.f32 %v6665, 0.0
        %v6996 = vmax.f32 %v6668, 0.0
        %v6997 = vmax.f32 %v6673, 0.0
        %v6998 = vmax.f32 %v6676, 0.0
        %v6999 = vmax.f32 %v6681, 0.0
        %v7000 = vmax.f32 %v6684, 0.0
        %v7001 = vmax.f32 %v6689, 0.0
        %v7002 = vmax.f32 %v6692, 0.0
        %v7003 = vmax.f32 %v6697, 0.0
        %v7004 = vmax.f32 %v6700, 0.0
        %v7005 = vmax.f32 %v6705, 0.0
        %v7006 = vmax.f32 %v6708, 0.0
        %v7007 = vmax.f32 %v6713, 0.0
        %v7008 = vmax.f32 %v6716, 0.0
        %v7009 = vmax.f32 %v6721, 0.0
        %v7010 = vmax.f32 %v6724, 0.0
        %v7011 = vmax.f32 %v6729, 0.0
        %v7012 = vmax.f32 %v6732, 0.0
        %v7013 = vmax.f32 %v6737, 0.0
        %v7014 = vmax.f32 %v6740, 0.0
        %v7015 = vmax.f32 %v6745, 0.0
        %v7016 = vmax.f32 %v6748, 0.0
        %v7017 = vmax.f32 %v6753, 0.0
        %v7018 = vmax.f32 %v6756, 0.0
        %v7019 = vmax.f32 %v6761, 0.0
        %v7020 = vmax.f32 %v6764, 0.0
        %v7021 = vmax.f32 %v6769, 0.0
        %v7022 = vmax.f32 %v6772, 0.0
        %v7023 = vmax.f32 %v6777, 0.0
        %v7024 = vmax.f32 %v6780, 0.0
        %v7025 = vmax.f32 %v6785, 0.0
        %v7026 = vmax.f32 %v6788, 0.0
        %v7027 = vmax.f32 %v6793, 0.0
        %v7028 = vmax.f32 %v6796, 0.0
        %v7029 = vmax.f32 %v6801, 0.0
        %v7030 = vmax.f32 %v6804, 0.0
        %v7031 = vmax.f32 %v6809, 0.0
        %v7032 = vmax.f32 %v6812, 0.0
        %v7033 = vmax.f32 %v6817, 0.0
        %v7034 = vmax.f32 %v6820, 0.0
        %v7035 = vmax.f32 %v6825, 0.0
        %v7036 = vmax.f32 %v6828, 0.0
        %v7037 = vmax.f32 %v6833, 0.0
        %v7038 = vmax.f32 %v6836, 0.0
        %v7039 = vmax.f32 %v6841, 0.0
        %v7040 = vmax.f32 %v6844, 0.0
        %v7041 = vmax.f32 %v6849, 0.0
        %v7042 = vmax.f32 %v6852, 0.0
        %v7043 = vmax.f32 %v6857, 0.0
        %v7044 = vmax.f32 %v6860, 0.0
        %v7045 = vmax.f32 %v6865, 0.0
        %v7046 = vmax.f32 %v6868, 0.0
        %v7047 = vmax.f32 %v6873, 0.0
        %v7048 = vmax.f32 %v6876, 0.0
        %v7049 = vmax.f32 %v6881, 0.0
        %v7050 = vmax.f32 %v6884, 0.0
        %v7051 = vmax.f32 %v6889, 0.0
        %v7052 = vmax.f32 %v6892, 0.0
        %v7053 = vmax.f32 %v6897, 0.0
        %v7054 = vmax.f32 %v6900, 0.0
        %v7055 = vmax.f32 %v6905, 0.0
        %v7056 = vmax.f32 %v6908, 0.0
        %v7057 = vmax.f32 %v6913, 0.0
        %v7058 = vmax.f32 %v6916, 0.0
        %v7059 = vmax.f32 %v6921, 0.0
        %v7060 = vmax.f32 %v6924, 0.0
        %v7061 = vmax.f32 %v6929, 0.0
        %v7062 = vmax.f32 %v6932, 0.0
        %v7063 = vpack.c.bf16 %v6936, %v6935
        %v7064 = vpack.c.bf16 %v6938, %v6937
        %v7065 = vpack.c.bf16 %v6940, %v6939
        %v7066 = vpack.c.bf16 %v6942, %v6941
        %v7067 = vpack.c.bf16 %v6944, %v6943
        %v7068 = vpack.c.bf16 %v6946, %v6945
        %v7069 = vpack.c.bf16 %v6948, %v6947
        %v7070 = vpack.c.bf16 %v6950, %v6949
        %v7071 = vpack.c.bf16 %v6952, %v6951
        %v7072 = vpack.c.bf16 %v6954, %v6953
        %v7073 = vpack.c.bf16 %v6956, %v6955
        %v7074 = vpack.c.bf16 %v6958, %v6957
        %v7075 = vpack.c.bf16 %v6960, %v6959
        %v7076 = vpack.c.bf16 %v6962, %v6961
        %v7077 = vpack.c.bf16 %v6964, %v6963
        %v7078 = vpack.c.bf16 %v6966, %v6965
        %v7079 = vpack.c.bf16 %v6968, %v6967
        %v7080 = vpack.c.bf16 %v6970, %v6969
        %v7081 = vpack.c.bf16 %v6972, %v6971
        %v7082 = vpack.c.bf16 %v6974, %v6973
        %v7083 = vpack.c.bf16 %v6976, %v6975
        %v7084 = vpack.c.bf16 %v6978, %v6977
        %v7085 = vpack.c.bf16 %v6980, %v6979
        %v7086 = vpack.c.bf16 %v6982, %v6981
        %v7087 = vpack.c.bf16 %v6984, %v6983
        %v7088 = vpack.c.bf16 %v6986, %v6985
        %v7089 = vpack.c.bf16 %v6988, %v6987
        %v7090 = vpack.c.bf16 %v6990, %v6989
        %v7091 = vpack.c.bf16 %v6992, %v6991
        %v7092 = vpack.c.bf16 %v6994, %v6993
        %v7093 = vpack.c.bf16 %v6996, %v6995
        %v7094 = vpack.c.bf16 %v6998, %v6997
        %v7095 = vpack.c.bf16 %v7000, %v6999
        %v7096 = vpack.c.bf16 %v7002, %v7001
        %v7097 = vpack.c.bf16 %v7004, %v7003
        %v7098 = vpack.c.bf16 %v7006, %v7005
        %v7099 = vpack.c.bf16 %v7008, %v7007
        %v7100 = vpack.c.bf16 %v7010, %v7009
        %v7101 = vpack.c.bf16 %v7012, %v7011
        %v7102 = vpack.c.bf16 %v7014, %v7013
        %v7103 = vpack.c.bf16 %v7016, %v7015
        %v7104 = vpack.c.bf16 %v7018, %v7017
        %v7105 = vpack.c.bf16 %v7020, %v7019
        %v7106 = vpack.c.bf16 %v7022, %v7021
        %v7107 = vpack.c.bf16 %v7024, %v7023
        %v7108 = vpack.c.bf16 %v7026, %v7025
        %v7109 = vpack.c.bf16 %v7028, %v7027
        %v7110 = vpack.c.bf16 %v7030, %v7029
        %v7111 = vpack.c.bf16 %v7032, %v7031
        %v7112 = vpack.c.bf16 %v7034, %v7033
        %v7113 = vpack.c.bf16 %v7036, %v7035
        %v7114 = vpack.c.bf16 %v7038, %v7037
        %v7115 = vpack.c.bf16 %v7040, %v7039
        %v7116 = vpack.c.bf16 %v7042, %v7041
        %v7117 = vpack.c.bf16 %v7044, %v7043
        %v7118 = vpack.c.bf16 %v7046, %v7045
        %v7119 = vpack.c.bf16 %v7048, %v7047
        %v7120 = vpack.c.bf16 %v7050, %v7049
        %v7121 = vpack.c.bf16 %v7052, %v7051
        %v7122 = vpack.c.bf16 %v7054, %v7053
        %v7123 = vpack.c.bf16 %v7056, %v7055
        %v7124 = vpack.c.bf16 %v7058, %v7057
        %v7125 = vpack.c.bf16 %v7060, %v7059
        %v7126 = vpack.c.bf16 %v7062, %v7061
        %v7127 = vld [vmem:[#allocation17] sm:$0xff]
        %v7128 = vld [vmem:[#allocation17 + $0x8] sm:$0xff]
        %v7129 = vld [vmem:[#allocation17 + $0x10] sm:$0xff]
        %v7130 = vld [vmem:[#allocation17 + $0x18] sm:$0xff]
        %v7131 = vld [vmem:[#allocation17 + $0x20] sm:$0xff]
        %v7132 = vld [vmem:[#allocation17 + $0x28] sm:$0xff]
        %v7133 = vld [vmem:[#allocation17 + $0x30] sm:$0xff]
        %v7134 = vld [vmem:[#allocation17 + $0x38] sm:$0xff]
        %v7135 = vld [vmem:[#allocation17 + $0x40] sm:$0xff]
        %v7136 = vld [vmem:[#allocation17 + $0x48] sm:$0xff]
        %v7137 = vld [vmem:[#allocation17 + $0x50] sm:$0xff]
        %v7138 = vld [vmem:[#allocation17 + $0x58] sm:$0xff]
        %v7139 = vld [vmem:[#allocation17 + $0x60] sm:$0xff]
        %v7140 = vld [vmem:[#allocation17 + $0x68] sm:$0xff]
        %v7141 = vld [vmem:[#allocation17 + $0x70] sm:$0xff]
        %v7142 = vld [vmem:[#allocation17 + $0x78] sm:$0xff]
        %v7143 = vld [vmem:[#allocation19] sm:$0x3]
        %v7145 = vlaneseq
        %v7146 = vshrl.u32 %v7145, 7
        %v7147 = vsub.s32 0, %v7146
        %v7148 = vrot.slane %v7143, %v7147
        %v7149 = vlaneseq
        %v7150 = vshrl.u32 %v7149, 7
        %v7151 = vsub.s32 1, %v7150
        %v7152 = vrot.slane %v7143, %v7151
        %v7171 = vunpack.c.l.b16 %v7127
        %v7172 = vunpack.c.h.b16 %v7127
        %v7173 = vunpack.c.l.b16 %v7128
        %v7174 = vunpack.c.h.b16 %v7128
        %v7175 = vunpack.c.l.b16 %v7129
        %v7176 = vunpack.c.h.b16 %v7129
        %v7177 = vunpack.c.l.b16 %v7130
        %v7178 = vunpack.c.h.b16 %v7130
        %v7179 = vunpack.c.l.b16 %v7131
        %v7180 = vunpack.c.h.b16 %v7131
        %v7181 = vunpack.c.l.b16 %v7132
        %v7182 = vunpack.c.h.b16 %v7132
        %v7183 = vunpack.c.l.b16 %v7133
        %v7184 = vunpack.c.h.b16 %v7133
        %v7185 = vunpack.c.l.b16 %v7134
        %v7186 = vunpack.c.h.b16 %v7134
        %v7187 = vunpack.c.l.b16 %v7135
        %v7188 = vunpack.c.h.b16 %v7135
        %v7189 = vunpack.c.l.b16 %v7136
        %v7190 = vunpack.c.h.b16 %v7136
        %v7191 = vunpack.c.l.b16 %v7137
        %v7192 = vunpack.c.h.b16 %v7137
        %v7193 = vunpack.c.l.b16 %v7138
        %v7194 = vunpack.c.h.b16 %v7138
        %v7195 = vunpack.c.l.b16 %v7139
        %v7196 = vunpack.c.h.b16 %v7139
        %v7197 = vunpack.c.l.b16 %v7140
        %v7198 = vunpack.c.h.b16 %v7140
        %v7199 = vunpack.c.l.b16 %v7141
        %v7200 = vunpack.c.h.b16 %v7141
        %v7201 = vunpack.c.l.b16 %v7142
        %v7202 = vunpack.c.h.b16 %v7142
        %v7203 = vpack.c.b16 %v7173, %v7171
        %v7204 = vpack.c.b16 %v7174, %v7172
        %v7205 = vpack.c.b16 %v7177, %v7175
        %v7206 = vpack.c.b16 %v7178, %v7176
        %v7207 = vpack.c.b16 %v7181, %v7179
        %v7208 = vpack.c.b16 %v7182, %v7180
        %v7209 = vpack.c.b16 %v7185, %v7183
        %v7210 = vpack.c.b16 %v7186, %v7184
        %v7211 = vpack.c.b16 %v7189, %v7187
        %v7212 = vpack.c.b16 %v7190, %v7188
        %v7213 = vpack.c.b16 %v7193, %v7191
        %v7214 = vpack.c.b16 %v7194, %v7192
        %v7215 = vpack.c.b16 %v7197, %v7195
        %v7216 = vpack.c.b16 %v7198, %v7196
        %v7217 = vpack.c.b16 %v7201, %v7199
        %v7218 = vpack.c.b16 %v7202, %v7200
        %7235 = vmatprep.subr.bf16.mxu0 %v7204
        %7236 = vmatpush1.bf16.msra.mxu0 %v7203
        %7237 = vmatprep.subr.bf16.mxu0 %v7206
        %7238 = vmatpush1.bf16.msra.mxu0 %v7205
        %7239 = vmatprep.subr.bf16.mxu0 %v7208
        %7240 = vmatpush1.bf16.msra.mxu0 %v7207
        %7241 = vmatprep.subr.bf16.mxu0 %v7210
        %7242 = vmatpush1.bf16.msra.mxu0 %v7209
        %7243 = vmatprep.subr.bf16.mxu0 %v7212
        %7244 = vmatpush1.bf16.msra.mxu0 %v7211
        %7245 = vmatprep.subr.bf16.mxu0 %v7214
        %7246 = vmatpush1.bf16.msra.mxu0 %v7213
        %7247 = vmatprep.subr.bf16.mxu0 %v7216
        %7248 = vmatpush1.bf16.msra.mxu0 %v7215
        %7249 = vmatprep.subr.bf16.mxu0 %v7218
        %7250 = vmatpush1.bf16.msra.mxu0 %v7217
        %7251 = vmatprep.subr.bf16.mxu0 0
        %7252 = vmatpush1.bf16.msra.mxu0 0
        %7253 = vmatprep.subr.bf16.mxu0 0
        %7254 = vmatpush1.bf16.msra.mxu0 0
        %7255 = vmatprep.subr.bf16.mxu0 0
        %7256 = vmatpush1.bf16.msra.mxu0 0
        %7257 = vmatprep.subr.bf16.mxu0 0
        %7258 = vmatpush1.bf16.msra.mxu0 0
        %7259 = vmatprep.subr.bf16.mxu0 0
        %7260 = vmatpush1.bf16.msra.mxu0 0
        %7261 = vmatprep.subr.bf16.mxu0 0
        %7262 = vmatpush1.bf16.msra.mxu0 0
        %7263 = vmatprep.subr.bf16.mxu0 0
        %7264 = vmatpush1.bf16.msra.mxu0 0
        %7265 = vmatprep.subr.bf16.mxu0 0
        %7266 = vmatpush1.bf16.msra.mxu0 0
        %7267 = vmatprep.mubr.bf16.mxu0 0
        %7268 = vmatmul.mubr.bf16.gmra.mrb[0].mxu0 %v7063
        %v7269 = vpop.f32.mrb[0].mxu0
        %v7270 = vadd.f32 %v7148, %v7269
        %v7271 = vpop.f32.mrb[0].mxu0
        %v7272 = vadd.f32 %v7152, %v7271
        %v7273 = vpop.f32.mrb[0].mxu0
        %v7274 = vadd.f32 %v7148, %v7273
        %v7275 = vpop.f32.mrb[0].mxu0
        %v7276 = vadd.f32 %v7152, %v7275
        %7277 = vmatprep.mubr.bf16.mxu0 0
        %7278 = vmatmul.mubr.bf16.gmra.mrb[0].mxu0 %v7064
        %v7279 = vpop.f32.mrb[0].mxu0
        %v7280 = vadd.f32 %v7148, %v7279
        %v7281 = vpop.f32.mrb[0].mxu0
        %v7282 = vadd.f32 %v7152, %v7281
        %v7283 = vpop.f32.mrb[0].mxu0
        %v7284 = vadd.f32 %v7148, %v7283
        %v7285 = vpop.f32.mrb[0].mxu0
        %v7286 = vadd.f32 %v7152, %v7285
        %7287 = vmatprep.mubr.bf16.mxu0 0
        %7288 = vmatmul.mubr.bf16.gmra.mrb[0].mxu0 %v7065
        %v7289 = vpop.f32.mrb[0].mxu0
        %v7290 = vadd.f32 %v7148, %v7289
        %v7291 = vpop.f32.mrb[0].mxu0
        %v7292 = vadd.f32 %v7152, %v7291
        %v7293 = vpop.f32.mrb[0].mxu0
        %v7294 = vadd.f32 %v7148, %v7293
        %v7295 = vpop.f32.mrb[0].mxu0
        %v7296 = vadd.f32 %v7152, %v7295
        %7297 = vmatprep.mubr.bf16.mxu0 0
        %7298 = vmatmul.mubr.bf16.gmra.mrb[0].mxu0 %v7066
        %v7299 = vpop.f32.mrb[0].mxu0
        %v7300 = vadd.f32 %v7148, %v7299
        %v7301 = vpop.f32.mrb[0].mxu0
        %v7302 = vadd.f32 %v7152, %v7301
        %v7303 = vpop.f32.mrb[0].mxu0
        %v7304 = vadd.f32 %v7148, %v7303
        %v7305 = vpop.f32.mrb[0].mxu0
        %v7306 = vadd.f32 %v7152, %v7305
        %7307 = vmatprep.mubr.bf16.mxu0 0
        %7308 = vmatmul.mubr.bf16.gmra.mrb[0].mxu0 %v7067
        %v7309 = vpop.f32.mrb[0].mxu0
        %v7310 = vadd.f32 %v7148, %v7309
        %v7311 = vpop.f32.mrb[0].mxu0
        %v7312 = vadd.f32 %v7152, %v7311
        %v7313 = vpop.f32.mrb[0].mxu0
        %v7314 = vadd.f32 %v7148, %v7313
        %v7315 = vpop.f32.mrb[0].mxu0
        %v7316 = vadd.f32 %v7152, %v7315
        %7317 = vmatprep.mubr.bf16.mxu0 0
        %7318 = vmatmul.mubr.bf16.gmra.mrb[0].mxu0 %v7068
        %v7319 = vpop.f32.mrb[0].mxu0
        %v7320 = vadd.f32 %v7148, %v7319
        %v7321 = vpop.f32.mrb[0].mxu0
        %v7322 = vadd.f32 %v7152, %v7321
        %v7323 = vpop.f32.mrb[0].mxu0
        %v7324 = vadd.f32 %v7148, %v7323
        %v7325 = vpop.f32.mrb[0].mxu0
        %v7326 = vadd.f32 %v7152, %v7325
        %7327 = vmatprep.mubr.bf16.mxu0 0
        %7328 = vmatmul.mubr.bf16.gmra.mrb[0].mxu0 %v7069
        %v7329 = vpop.f32.mrb[0].mxu0
        %v7330 = vadd.f32 %v7148, %v7329
        %v7331 = vpop.f32.mrb[0].mxu0
        %v7332 = vadd.f32 %v7152, %v7331
        %v7333 = vpop.f32.mrb[0].mxu0
        %v7334 = vadd.f32 %v7148, %v7333
        %v7335 = vpop.f32.mrb[0].mxu0
        %v7336 = vadd.f32 %v7152, %v7335
        %7337 = vmatprep.mubr.bf16.mxu0 0
        %7338 = vmatmul.mubr.bf16.gmra.mrb[0].mxu0 %v7070
        %v7339 = vpop.f32.mrb[0].mxu0
        %v7340 = vadd.f32 %v7148, %v7339
        %v7341 = vpop.f32.mrb[0].mxu0
        %v7342 = vadd.f32 %v7152, %v7341
        %v7343 = vpop.f32.mrb[0].mxu0
        %v7344 = vadd.f32 %v7148, %v7343
        %v7345 = vpop.f32.mrb[0].mxu0
        %v7346 = vadd.f32 %v7152, %v7345
        %7347 = vmatprep.mubr.bf16.mxu0 0
        %7348 = vmatmul.mubr.bf16.gmra.mrb[0].mxu0 %v7071
        %v7349 = vpop.f32.mrb[0].mxu0
        %v7350 = vadd.f32 %v7148, %v7349
        %v7351 = vpop.f32.mrb[0].mxu0
        %v7352 = vadd.f32 %v7152, %v7351
        %v7353 = vpop.f32.mrb[0].mxu0
        %v7354 = vadd.f32 %v7148, %v7353
        %v7355 = vpop.f32.mrb[0].mxu0
        %v7356 = vadd.f32 %v7152, %v7355
        %7357 = vmatprep.mubr.bf16.mxu0 0
        %7358 = vmatmul.mubr.bf16.gmra.mrb[0].mxu0 %v7072
        %v7359 = vpop.f32.mrb[0].mxu0
        %v7360 = vadd.f32 %v7148, %v7359
        %v7361 = vpop.f32.mrb[0].mxu0
        %v7362 = vadd.f32 %v7152, %v7361
        %v7363 = vpop.f32.mrb[0].mxu0
        %v7364 = vadd.f32 %v7148, %v7363
        %v7365 = vpop.f32.mrb[0].mxu0
        %v7366 = vadd.f32 %v7152, %v7365
        %7367 = vmatprep.mubr.bf16.mxu0 0
        %7368 = vmatmul.mubr.bf16.gmra.mrb[0].mxu0 %v7073
        %v7369 = vpop.f32.mrb[0].mxu0
        %v7370 = vadd.f32 %v7148, %v7369
        %v7371 = vpop.f32.mrb[0].mxu0
        %v7372 = vadd.f32 %v7152, %v7371
        %v7373 = vpop.f32.mrb[0].mxu0
        %v7374 = vadd.f32 %v7148, %v7373
        %v7375 = vpop.f32.mrb[0].mxu0
        %v7376 = vadd.f32 %v7152, %v7375
        %7377 = vmatprep.mubr.bf16.mxu0 0
        %7378 = vmatmul.mubr.bf16.gmra.mrb[0].mxu0 %v7074
        %v7379 = vpop.f32.mrb[0].mxu0
        %v7380 = vadd.f32 %v7148, %v7379
        %v7381 = vpop.f32.mrb[0].mxu0
        %v7382 = vadd.f32 %v7152, %v7381
        %v7383 = vpop.f32.mrb[0].mxu0
        %v7384 = vadd.f32 %v7148, %v7383
        %v7385 = vpop.f32.mrb[0].mxu0
        %v7386 = vadd.f32 %v7152, %v7385
        %7387 = vmatprep.mubr.bf16.mxu0 0
        %7388 = vmatmul.mubr.bf16.gmra.mrb[0].mxu0 %v7075
        %v7389 = vpop.f32.mrb[0].mxu0
        %v7390 = vadd.f32 %v7148, %v7389
        %v7391 = vpop.f32.mrb[0].mxu0
        %v7392 = vadd.f32 %v7152, %v7391
        %v7393 = vpop.f32.mrb[0].mxu0
        %v7394 = vadd.f32 %v7148, %v7393
        %v7395 = vpop.f32.mrb[0].mxu0
        %v7396 = vadd.f32 %v7152, %v7395
        %7397 = vmatprep.mubr.bf16.mxu0 0
        %7398 = vmatmul.mubr.bf16.gmra.mrb[0].mxu0 %v7076
        %v7399 = vpop.f32.mrb[0].mxu0
        %v7400 = vadd.f32 %v7148, %v7399
        %v7401 = vpop.f32.mrb[0].mxu0
        %v7402 = vadd.f32 %v7152, %v7401
        %v7403 = vpop.f32.mrb[0].mxu0
        %v7404 = vadd.f32 %v7148, %v7403
        %v7405 = vpop.f32.mrb[0].mxu0
        %v7406 = vadd.f32 %v7152, %v7405
        %7407 = vmatprep.mubr.bf16.mxu0 0
        %7408 = vmatmul.mubr.bf16.gmra.mrb[0].mxu0 %v7077
        %v7409 = vpop.f32.mrb[0].mxu0
        %v7410 = vadd.f32 %v7148, %v7409
        %v7411 = vpop.f32.mrb[0].mxu0
        %v7412 = vadd.f32 %v7152, %v7411
        %v7413 = vpop.f32.mrb[0].mxu0
        %v7414 = vadd.f32 %v7148, %v7413
        %v7415 = vpop.f32.mrb[0].mxu0
        %v7416 = vadd.f32 %v7152, %v7415
        %7417 = vmatprep.mubr.bf16.mxu0 0
        %7418 = vmatmul.mubr.bf16.gmra.mrb[0].mxu0 %v7078
        %v7419 = vpop.f32.mrb[0].mxu0
        %v7420 = vadd.f32 %v7148, %v7419
        %v7421 = vpop.f32.mrb[0].mxu0
        %v7422 = vadd.f32 %v7152, %v7421
        %v7423 = vpop.f32.mrb[0].mxu0
        %v7424 = vadd.f32 %v7148, %v7423
        %v7425 = vpop.f32.mrb[0].mxu0
        %v7426 = vadd.f32 %v7152, %v7425
        %7427 = vmatprep.mubr.bf16.mxu0 0
        %7428 = vmatmul.mubr.bf16.gmra.mrb[0].mxu0 %v7079
        %v7429 = vpop.f32.mrb[0].mxu0
        %v7430 = vadd.f32 %v7148, %v7429
        %v7431 = vpop.f32.mrb[0].mxu0
        %v7432 = vadd.f32 %v7152, %v7431
        %v7433 = vpop.f32.mrb[0].mxu0
        %v7434 = vadd.f32 %v7148, %v7433
        %v7435 = vpop.f32.mrb[0].mxu0
        %v7436 = vadd.f32 %v7152, %v7435
        %7437 = vmatprep.mubr.bf16.mxu0 0
        %7438 = vmatmul.mubr.bf16.gmra.mrb[0].mxu0 %v7080
        %v7439 = vpop.f32.mrb[0].mxu0
        %v7440 = vadd.f32 %v7148, %v7439
        %v7441 = vpop.f32.mrb[0].mxu0
        %v7442 = vadd.f32 %v7152, %v7441
        %v7443 = vpop.f32.mrb[0].mxu0
        %v7444 = vadd.f32 %v7148, %v7443
        %v7445 = vpop.f32.mrb[0].mxu0
        %v7446 = vadd.f32 %v7152, %v7445
        %7447 = vmatprep.mubr.bf16.mxu0 0
        %7448 = vmatmul.mubr.bf16.gmra.mrb[0].mxu0 %v7081
        %v7449 = vpop.f32.mrb[0].mxu0
        %v7450 = vadd.f32 %v7148, %v7449
        %v7451 = vpop.f32.mrb[0].mxu0
        %v7452 = vadd.f32 %v7152, %v7451
        %v7453 = vpop.f32.mrb[0].mxu0
        %v7454 = vadd.f32 %v7148, %v7453
        %v7455 = vpop.f32.mrb[0].mxu0
        %v7456 = vadd.f32 %v7152, %v7455
        %7457 = vmatprep.mubr.bf16.mxu0 0
        %7458 = vmatmul.mubr.bf16.gmra.mrb[0].mxu0 %v7082
        %v7459 = vpop.f32.mrb[0].mxu0
        %v7460 = vadd.f32 %v7148, %v7459
        %v7461 = vpop.f32.mrb[0].mxu0
        %v7462 = vadd.f32 %v7152, %v7461
        %v7463 = vpop.f32.mrb[0].mxu0
        %v7464 = vadd.f32 %v7148, %v7463
        %v7465 = vpop.f32.mrb[0].mxu0
        %v7466 = vadd.f32 %v7152, %v7465
        %7467 = vmatprep.mubr.bf16.mxu0 0
        %7468 = vmatmul.mubr.bf16.gmra.mrb[0].mxu0 %v7083
        %v7469 = vpop.f32.mrb[0].mxu0
        %v7470 = vadd.f32 %v7148, %v7469
        %v7471 = vpop.f32.mrb[0].mxu0
        %v7472 = vadd.f32 %v7152, %v7471
        %v7473 = vpop.f32.mrb[0].mxu0
        %v7474 = vadd.f32 %v7148, %v7473
        %v7475 = vpop.f32.mrb[0].mxu0
        %v7476 = vadd.f32 %v7152, %v7475
        %7477 = vmatprep.mubr.bf16.mxu0 0
        %7478 = vmatmul.mubr.bf16.gmra.mrb[0].mxu0 %v7084
        %v7479 = vpop.f32.mrb[0].mxu0
        %v7480 = vadd.f32 %v7148, %v7479
        %v7481 = vpop.f32.mrb[0].mxu0
        %v7482 = vadd.f32 %v7152, %v7481
        %v7483 = vpop.f32.mrb[0].mxu0
        %v7484 = vadd.f32 %v7148, %v7483
        %v7485 = vpop.f32.mrb[0].mxu0
        %v7486 = vadd.f32 %v7152, %v7485
        %7487 = vmatprep.mubr.bf16.mxu0 0
        %7488 = vmatmul.mubr.bf16.gmra.mrb[0].mxu0 %v7085
        %v7489 = vpop.f32.mrb[0].mxu0
        %v7490 = vadd.f32 %v7148, %v7489
        %v7491 = vpop.f32.mrb[0].mxu0
        %v7492 = vadd.f32 %v7152, %v7491
        %v7493 = vpop.f32.mrb[0].mxu0
        %v7494 = vadd.f32 %v7148, %v7493
        %v7495 = vpop.f32.mrb[0].mxu0
        %v7496 = vadd.f32 %v7152, %v7495
        %7497 = vmatprep.mubr.bf16.mxu0 0
        %7498 = vmatmul.mubr.bf16.gmra.mrb[0].mxu0 %v7086
        %v7499 = vpop.f32.mrb[0].mxu0
        %v7500 = vadd.f32 %v7148, %v7499
        %v7501 = vpop.f32.mrb[0].mxu0
        %v7502 = vadd.f32 %v7152, %v7501
        %v7503 = vpop.f32.mrb[0].mxu0
        %v7504 = vadd.f32 %v7148, %v7503
        %v7505 = vpop.f32.mrb[0].mxu0
        %v7506 = vadd.f32 %v7152, %v7505
        %7507 = vmatprep.mubr.bf16.mxu0 0
        %7508 = vmatmul.mubr.bf16.gmra.mrb[0].mxu0 %v7087
        %v7509 = vpop.f32.mrb[0].mxu0
        %v7510 = vadd.f32 %v7148, %v7509
        %v7511 = vpop.f32.mrb[0].mxu0
        %v7512 = vadd.f32 %v7152, %v7511
        %v7513 = vpop.f32.mrb[0].mxu0
        %v7514 = vadd.f32 %v7148, %v7513
        %v7515 = vpop.f32.mrb[0].mxu0
        %v7516 = vadd.f32 %v7152, %v7515
        %7517 = vmatprep.mubr.bf16.mxu0 0
        %7518 = vmatmul.mubr.bf16.gmra.mrb[0].mxu0 %v7088
        %v7519 = vpop.f32.mrb[0].mxu0
        %v7520 = vadd.f32 %v7148, %v7519
        %v7521 = vpop.f32.mrb[0].mxu0
        %v7522 = vadd.f32 %v7152, %v7521
        %v7523 = vpop.f32.mrb[0].mxu0
        %v7524 = vadd.f32 %v7148, %v7523
        %v7525 = vpop.f32.mrb[0].mxu0
        %v7526 = vadd.f32 %v7152, %v7525
        %7527 = vmatprep.mubr.bf16.mxu0 0
        %7528 = vmatmul.mubr.bf16.gmra.mrb[0].mxu0 %v7089
        %v7529 = vpop.f32.mrb[0].mxu0
        %v7530 = vadd.f32 %v7148, %v7529
        %v7531 = vpop.f32.mrb[0].mxu0
        %v7532 = vadd.f32 %v7152, %v7531
        %v7533 = vpop.f32.mrb[0].mxu0
        %v7534 = vadd.f32 %v7148, %v7533
        %v7535 = vpop.f32.mrb[0].mxu0
        %v7536 = vadd.f32 %v7152, %v7535
        %7537 = vmatprep.mubr.bf16.mxu0 0
        %7538 = vmatmul.mubr.bf16.gmra.mrb[0].mxu0 %v7090
        %v7539 = vpop.f32.mrb[0].mxu0
        %v7540 = vadd.f32 %v7148, %v7539
        %v7541 = vpop.f32.mrb[0].mxu0
        %v7542 = vadd.f32 %v7152, %v7541
        %v7543 = vpop.f32.mrb[0].mxu0
        %v7544 = vadd.f32 %v7148, %v7543
        %v7545 = vpop.f32.mrb[0].mxu0
        %v7546 = vadd.f32 %v7152, %v7545
        %7547 = vmatprep.mubr.bf16.mxu0 0
        %7548 = vmatmul.mubr.bf16.gmra.mrb[0].mxu0 %v7091
        %v7549 = vpop.f32.mrb[0].mxu0
        %v7550 = vadd.f32 %v7148, %v7549
        %v7551 = vpop.f32.mrb[0].mxu0
        %v7552 = vadd.f32 %v7152, %v7551
        %v7553 = vpop.f32.mrb[0].mxu0
        %v7554 = vadd.f32 %v7148, %v7553
        %v7555 = vpop.f32.mrb[0].mxu0
        %v7556 = vadd.f32 %v7152, %v7555
        %7557 = vmatprep.mubr.bf16.mxu0 0
        %7558 = vmatmul.mubr.bf16.gmra.mrb[0].mxu0 %v7092
        %v7559 = vpop.f32.mrb[0].mxu0
        %v7560 = vadd.f32 %v7148, %v7559
        %v7561 = vpop.f32.mrb[0].mxu0
        %v7562 = vadd.f32 %v7152, %v7561
        %v7563 = vpop.f32.mrb[0].mxu0
        %v7564 = vadd.f32 %v7148, %v7563
        %v7565 = vpop.f32.mrb[0].mxu0
        %v7566 = vadd.f32 %v7152, %v7565
        %7567 = vmatprep.mubr.bf16.mxu0 0
        %7568 = vmatmul.mubr.bf16.gmra.mrb[0].mxu0 %v7093
        %v7569 = vpop.f32.mrb[0].mxu0
        %v7570 = vadd.f32 %v7148, %v7569
        %v7571 = vpop.f32.mrb[0].mxu0
        %v7572 = vadd.f32 %v7152, %v7571
        %v7573 = vpop.f32.mrb[0].mxu0
        %v7574 = vadd.f32 %v7148, %v7573
        %v7575 = vpop.f32.mrb[0].mxu0
        %v7576 = vadd.f32 %v7152, %v7575
        %7577 = vmatprep.mubr.bf16.mxu0 0
        %7578 = vmatmul.mubr.bf16.gmra.mrb[0].mxu0 %v7094
        %v7579 = vpop.f32.mrb[0].mxu0
        %v7580 = vadd.f32 %v7148, %v7579
        %v7581 = vpop.f32.mrb[0].mxu0
        %v7582 = vadd.f32 %v7152, %v7581
        %v7583 = vpop.f32.mrb[0].mxu0
        %v7584 = vadd.f32 %v7148, %v7583
        %v7585 = vpop.f32.mrb[0].mxu0
        %v7586 = vadd.f32 %v7152, %v7585
        %7587 = vmatprep.mubr.bf16.mxu0 0
        %7588 = vmatmul.mubr.bf16.gmra.mrb[0].mxu0 %v7095
        %v7589 = vpop.f32.mrb[0].mxu0
        %v7590 = vadd.f32 %v7148, %v7589
        %v7591 = vpop.f32.mrb[0].mxu0
        %v7592 = vadd.f32 %v7152, %v7591
        %v7593 = vpop.f32.mrb[0].mxu0
        %v7594 = vadd.f32 %v7148, %v7593
        %v7595 = vpop.f32.mrb[0].mxu0
        %v7596 = vadd.f32 %v7152, %v7595
        %7597 = vmatprep.mubr.bf16.mxu0 0
        %7598 = vmatmul.mubr.bf16.gmra.mrb[0].mxu0 %v7096
        %v7599 = vpop.f32.mrb[0].mxu0
        %v7600 = vadd.f32 %v7148, %v7599
        %v7601 = vpop.f32.mrb[0].mxu0
        %v7602 = vadd.f32 %v7152, %v7601
        %v7603 = vpop.f32.mrb[0].mxu0
        %v7604 = vadd.f32 %v7148, %v7603
        %v7605 = vpop.f32.mrb[0].mxu0
        %v7606 = vadd.f32 %v7152, %v7605
        %7607 = vmatprep.mubr.bf16.mxu0 0
        %7608 = vmatmul.mubr.bf16.gmra.mrb[0].mxu0 %v7097
        %v7609 = vpop.f32.mrb[0].mxu0
        %v7610 = vadd.f32 %v7148, %v7609
        %v7611 = vpop.f32.mrb[0].mxu0
        %v7612 = vadd.f32 %v7152, %v7611
        %v7613 = vpop.f32.mrb[0].mxu0
        %v7614 = vadd.f32 %v7148, %v7613
        %v7615 = vpop.f32.mrb[0].mxu0
        %v7616 = vadd.f32 %v7152, %v7615
        %7617 = vmatprep.mubr.bf16.mxu0 0
        %7618 = vmatmul.mubr.bf16.gmra.mrb[0].mxu0 %v7098
        %v7619 = vpop.f32.mrb[0].mxu0
        %v7620 = vadd.f32 %v7148, %v7619
        %v7621 = vpop.f32.mrb[0].mxu0
        %v7622 = vadd.f32 %v7152, %v7621
        %v7623 = vpop.f32.mrb[0].mxu0
        %v7624 = vadd.f32 %v7148, %v7623
        %v7625 = vpop.f32.mrb[0].mxu0
        %v7626 = vadd.f32 %v7152, %v7625
        %7627 = vmatprep.mubr.bf16.mxu0 0
        %7628 = vmatmul.mubr.bf16.gmra.mrb[0].mxu0 %v7099
        %v7629 = vpop.f32.mrb[0].mxu0
        %v7630 = vadd.f32 %v7148, %v7629
        %v7631 = vpop.f32.mrb[0].mxu0
        %v7632 = vadd.f32 %v7152, %v7631
        %v7633 = vpop.f32.mrb[0].mxu0
        %v7634 = vadd.f32 %v7148, %v7633
        %v7635 = vpop.f32.mrb[0].mxu0
        %v7636 = vadd.f32 %v7152, %v7635
        %7637 = vmatprep.mubr.bf16.mxu0 0
        %7638 = vmatmul.mubr.bf16.gmra.mrb[0].mxu0 %v7100
        %v7639 = vpop.f32.mrb[0].mxu0
        %v7640 = vadd.f32 %v7148, %v7639
        %v7641 = vpop.f32.mrb[0].mxu0
        %v7642 = vadd.f32 %v7152, %v7641
        %v7643 = vpop.f32.mrb[0].mxu0
        %v7644 = vadd.f32 %v7148, %v7643
        %v7645 = vpop.f32.mrb[0].mxu0
        %v7646 = vadd.f32 %v7152, %v7645
        %7647 = vmatprep.mubr.bf16.mxu0 0
        %7648 = vmatmul.mubr.bf16.gmra.mrb[0].mxu0 %v7101
        %v7649 = vpop.f32.mrb[0].mxu0
        %v7650 = vadd.f32 %v7148, %v7649
        %v7651 = vpop.f32.mrb[0].mxu0
        %v7652 = vadd.f32 %v7152, %v7651
        %v7653 = vpop.f32.mrb[0].mxu0
        %v7654 = vadd.f32 %v7148, %v7653
        %v7655 = vpop.f32.mrb[0].mxu0
        %v7656 = vadd.f32 %v7152, %v7655
        %7657 = vmatprep.mubr.bf16.mxu0 0
        %7658 = vmatmul.mubr.bf16.gmra.mrb[0].mxu0 %v7102
        %v7659 = vpop.f32.mrb[0].mxu0
        %v7660 = vadd.f32 %v7148, %v7659
        %v7661 = vpop.f32.mrb[0].mxu0
        %v7662 = vadd.f32 %v7152, %v7661
        %v7663 = vpop.f32.mrb[0].mxu0
        %v7664 = vadd.f32 %v7148, %v7663
        %v7665 = vpop.f32.mrb[0].mxu0
        %v7666 = vadd.f32 %v7152, %v7665
        %7667 = vmatprep.mubr.bf16.mxu0 0
        %7668 = vmatmul.mubr.bf16.gmra.mrb[0].mxu0 %v7103
        %v7669 = vpop.f32.mrb[0].mxu0
        %v7670 = vadd.f32 %v7148, %v7669
        %v7671 = vpop.f32.mrb[0].mxu0
        %v7672 = vadd.f32 %v7152, %v7671
        %v7673 = vpop.f32.mrb[0].mxu0
        %v7674 = vadd.f32 %v7148, %v7673
        %v7675 = vpop.f32.mrb[0].mxu0
        %v7676 = vadd.f32 %v7152, %v7675
        %7677 = vmatprep.mubr.bf16.mxu0 0
        %7678 = vmatmul.mubr.bf16.gmra.mrb[0].mxu0 %v7104
        %v7679 = vpop.f32.mrb[0].mxu0
        %v7680 = vadd.f32 %v7148, %v7679
        %v7681 = vpop.f32.mrb[0].mxu0
        %v7682 = vadd.f32 %v7152, %v7681
        %v7683 = vpop.f32.mrb[0].mxu0
        %v7684 = vadd.f32 %v7148, %v7683
        %v7685 = vpop.f32.mrb[0].mxu0
        %v7686 = vadd.f32 %v7152, %v7685
        %7687 = vmatprep.mubr.bf16.mxu0 0
        %7688 = vmatmul.mubr.bf16.gmra.mrb[0].mxu0 %v7105
        %v7689 = vpop.f32.mrb[0].mxu0
        %v7690 = vadd.f32 %v7148, %v7689
        %v7691 = vpop.f32.mrb[0].mxu0
        %v7692 = vadd.f32 %v7152, %v7691
        %v7693 = vpop.f32.mrb[0].mxu0
        %v7694 = vadd.f32 %v7148, %v7693
        %v7695 = vpop.f32.mrb[0].mxu0
        %v7696 = vadd.f32 %v7152, %v7695
        %7697 = vmatprep.mubr.bf16.mxu0 0
        %7698 = vmatmul.mubr.bf16.gmra.mrb[0].mxu0 %v7106
        %v7699 = vpop.f32.mrb[0].mxu0
        %v7700 = vadd.f32 %v7148, %v7699
        %v7701 = vpop.f32.mrb[0].mxu0
        %v7702 = vadd.f32 %v7152, %v7701
        %v7703 = vpop.f32.mrb[0].mxu0
        %v7704 = vadd.f32 %v7148, %v7703
        %v7705 = vpop.f32.mrb[0].mxu0
        %v7706 = vadd.f32 %v7152, %v7705
        %7707 = vmatprep.mubr.bf16.mxu0 0
        %7708 = vmatmul.mubr.bf16.gmra.mrb[0].mxu0 %v7107
        %v7709 = vpop.f32.mrb[0].mxu0
        %v7710 = vadd.f32 %v7148, %v7709
        %v7711 = vpop.f32.mrb[0].mxu0
        %v7712 = vadd.f32 %v7152, %v7711
        %v7713 = vpop.f32.mrb[0].mxu0
        %v7714 = vadd.f32 %v7148, %v7713
        %v7715 = vpop.f32.mrb[0].mxu0
        %v7716 = vadd.f32 %v7152, %v7715
        %7717 = vmatprep.mubr.bf16.mxu0 0
        %7718 = vmatmul.mubr.bf16.gmra.mrb[0].mxu0 %v7108
        %v7719 = vpop.f32.mrb[0].mxu0
        %v7720 = vadd.f32 %v7148, %v7719
        %v7721 = vpop.f32.mrb[0].mxu0
        %v7722 = vadd.f32 %v7152, %v7721
        %v7723 = vpop.f32.mrb[0].mxu0
        %v7724 = vadd.f32 %v7148, %v7723
        %v7725 = vpop.f32.mrb[0].mxu0
        %v7726 = vadd.f32 %v7152, %v7725
        %7727 = vmatprep.mubr.bf16.mxu0 0
        %7728 = vmatmul.mubr.bf16.gmra.mrb[0].mxu0 %v7109
        %v7729 = vpop.f32.mrb[0].mxu0
        %v7730 = vadd.f32 %v7148, %v7729
        %v7731 = vpop.f32.mrb[0].mxu0
        %v7732 = vadd.f32 %v7152, %v7731
        %v7733 = vpop.f32.mrb[0].mxu0
        %v7734 = vadd.f32 %v7148, %v7733
        %v7735 = vpop.f32.mrb[0].mxu0
        %v7736 = vadd.f32 %v7152, %v7735
        %7737 = vmatprep.mubr.bf16.mxu0 0
        %7738 = vmatmul.mubr.bf16.gmra.mrb[0].mxu0 %v7110
        %v7739 = vpop.f32.mrb[0].mxu0
        %v7740 = vadd.f32 %v7148, %v7739
        %v7741 = vpop.f32.mrb[0].mxu0
        %v7742 = vadd.f32 %v7152, %v7741
        %v7743 = vpop.f32.mrb[0].mxu0
        %v7744 = vadd.f32 %v7148, %v7743
        %v7745 = vpop.f32.mrb[0].mxu0
        %v7746 = vadd.f32 %v7152, %v7745
        %7747 = vmatprep.mubr.bf16.mxu0 0
        %7748 = vmatmul.mubr.bf16.gmra.mrb[0].mxu0 %v7111
        %v7749 = vpop.f32.mrb[0].mxu0
        %v7750 = vadd.f32 %v7148, %v7749
        %v7751 = vpop.f32.mrb[0].mxu0
        %v7752 = vadd.f32 %v7152, %v7751
        %v7753 = vpop.f32.mrb[0].mxu0
        %v7754 = vadd.f32 %v7148, %v7753
        %v7755 = vpop.f32.mrb[0].mxu0
        %v7756 = vadd.f32 %v7152, %v7755
        %7757 = vmatprep.mubr.bf16.mxu0 0
        %7758 = vmatmul.mubr.bf16.gmra.mrb[0].mxu0 %v7112
        %v7759 = vpop.f32.mrb[0].mxu0
        %v7760 = vadd.f32 %v7148, %v7759
        %v7761 = vpop.f32.mrb[0].mxu0
        %v7762 = vadd.f32 %v7152, %v7761
        %v7763 = vpop.f32.mrb[0].mxu0
        %v7764 = vadd.f32 %v7148, %v7763
        %v7765 = vpop.f32.mrb[0].mxu0
        %v7766 = vadd.f32 %v7152, %v7765
        %7767 = vmatprep.mubr.bf16.mxu0 0
        %7768 = vmatmul.mubr.bf16.gmra.mrb[0].mxu0 %v7113
        %v7769 = vpop.f32.mrb[0].mxu0
        %v7770 = vadd.f32 %v7148, %v7769
        %v7771 = vpop.f32.mrb[0].mxu0
        %v7772 = vadd.f32 %v7152, %v7771
        %v7773 = vpop.f32.mrb[0].mxu0
        %v7774 = vadd.f32 %v7148, %v7773
        %v7775 = vpop.f32.mrb[0].mxu0
        %v7776 = vadd.f32 %v7152, %v7775
        %7777 = vmatprep.mubr.bf16.mxu0 0
        %7778 = vmatmul.mubr.bf16.gmra.mrb[0].mxu0 %v7114
        %v7779 = vpop.f32.mrb[0].mxu0
        %v7780 = vadd.f32 %v7148, %v7779
        %v7781 = vpop.f32.mrb[0].mxu0
        %v7782 = vadd.f32 %v7152, %v7781
        %v7783 = vpop.f32.mrb[0].mxu0
        %v7784 = vadd.f32 %v7148, %v7783
        %v7785 = vpop.f32.mrb[0].mxu0
        %v7786 = vadd.f32 %v7152, %v7785
        %7787 = vmatprep.mubr.bf16.mxu0 0
        %7788 = vmatmul.mubr.bf16.gmra.mrb[0].mxu0 %v7115
        %v7789 = vpop.f32.mrb[0].mxu0
        %v7790 = vadd.f32 %v7148, %v7789
        %v7791 = vpop.f32.mrb[0].mxu0
        %v7792 = vadd.f32 %v7152, %v7791
        %v7793 = vpop.f32.mrb[0].mxu0
        %v7794 = vadd.f32 %v7148, %v7793
        %v7795 = vpop.f32.mrb[0].mxu0
        %v7796 = vadd.f32 %v7152, %v7795
        %7797 = vmatprep.mubr.bf16.mxu0 0
        %7798 = vmatmul.mubr.bf16.gmra.mrb[0].mxu0 %v7116
        %v7799 = vpop.f32.mrb[0].mxu0
        %v7800 = vadd.f32 %v7148, %v7799
        %v7801 = vpop.f32.mrb[0].mxu0
        %v7802 = vadd.f32 %v7152, %v7801
        %v7803 = vpop.f32.mrb[0].mxu0
        %v7804 = vadd.f32 %v7148, %v7803
        %v7805 = vpop.f32.mrb[0].mxu0
        %v7806 = vadd.f32 %v7152, %v7805
        %7807 = vmatprep.mubr.bf16.mxu0 0
        %7808 = vmatmul.mubr.bf16.gmra.mrb[0].mxu0 %v7117
        %v7809 = vpop.f32.mrb[0].mxu0
        %v7810 = vadd.f32 %v7148, %v7809
        %v7811 = vpop.f32.mrb[0].mxu0
        %v7812 = vadd.f32 %v7152, %v7811
        %v7813 = vpop.f32.mrb[0].mxu0
        %v7814 = vadd.f32 %v7148, %v7813
        %v7815 = vpop.f32.mrb[0].mxu0
        %v7816 = vadd.f32 %v7152, %v7815
        %7817 = vmatprep.mubr.bf16.mxu0 0
        %7818 = vmatmul.mubr.bf16.gmra.mrb[0].mxu0 %v7118
        %v7819 = vpop.f32.mrb[0].mxu0
        %v7820 = vadd.f32 %v7148, %v7819
        %v7821 = vpop.f32.mrb[0].mxu0
        %v7822 = vadd.f32 %v7152, %v7821
        %v7823 = vpop.f32.mrb[0].mxu0
        %v7824 = vadd.f32 %v7148, %v7823
        %v7825 = vpop.f32.mrb[0].mxu0
        %v7826 = vadd.f32 %v7152, %v7825
        %7827 = vmatprep.mubr.bf16.mxu0 0
        %7828 = vmatmul.mubr.bf16.gmra.mrb[0].mxu0 %v7119
        %v7829 = vpop.f32.mrb[0].mxu0
        %v7830 = vadd.f32 %v7148, %v7829
        %v7831 = vpop.f32.mrb[0].mxu0
        %v7832 = vadd.f32 %v7152, %v7831
        %v7833 = vpop.f32.mrb[0].mxu0
        %v7834 = vadd.f32 %v7148, %v7833
        %v7835 = vpop.f32.mrb[0].mxu0
        %v7836 = vadd.f32 %v7152, %v7835
        %7837 = vmatprep.mubr.bf16.mxu0 0
        %7838 = vmatmul.mubr.bf16.gmra.mrb[0].mxu0 %v7120
        %v7839 = vpop.f32.mrb[0].mxu0
        %v7840 = vadd.f32 %v7148, %v7839
        %v7841 = vpop.f32.mrb[0].mxu0
        %v7842 = vadd.f32 %v7152, %v7841
        %v7843 = vpop.f32.mrb[0].mxu0
        %v7844 = vadd.f32 %v7148, %v7843
        %v7845 = vpop.f32.mrb[0].mxu0
        %v7846 = vadd.f32 %v7152, %v7845
        %7847 = vmatprep.mubr.bf16.mxu0 0
        %7848 = vmatmul.mubr.bf16.gmra.mrb[0].mxu0 %v7121
        %v7849 = vpop.f32.mrb[0].mxu0
        %v7850 = vadd.f32 %v7148, %v7849
        %v7851 = vpop.f32.mrb[0].mxu0
        %v7852 = vadd.f32 %v7152, %v7851
        %v7853 = vpop.f32.mrb[0].mxu0
        %v7854 = vadd.f32 %v7148, %v7853
        %v7855 = vpop.f32.mrb[0].mxu0
        %v7856 = vadd.f32 %v7152, %v7855
        %7857 = vmatprep.mubr.bf16.mxu0 0
        %7858 = vmatmul.mubr.bf16.gmra.mrb[0].mxu0 %v7122
        %v7859 = vpop.f32.mrb[0].mxu0
        %v7860 = vadd.f32 %v7148, %v7859
        %v7861 = vpop.f32.mrb[0].mxu0
        %v7862 = vadd.f32 %v7152, %v7861
        %v7863 = vpop.f32.mrb[0].mxu0
        %v7864 = vadd.f32 %v7148, %v7863
        %v7865 = vpop.f32.mrb[0].mxu0
        %v7866 = vadd.f32 %v7152, %v7865
        %7867 = vmatprep.mubr.bf16.mxu0 0
        %7868 = vmatmul.mubr.bf16.gmra.mrb[0].mxu0 %v7123
        %v7869 = vpop.f32.mrb[0].mxu0
        %v7870 = vadd.f32 %v7148, %v7869
        %v7871 = vpop.f32.mrb[0].mxu0
        %v7872 = vadd.f32 %v7152, %v7871
        %v7873 = vpop.f32.mrb[0].mxu0
        %v7874 = vadd.f32 %v7148, %v7873
        %v7875 = vpop.f32.mrb[0].mxu0
        %v7876 = vadd.f32 %v7152, %v7875
        %7877 = vmatprep.mubr.bf16.mxu0 0
        %7878 = vmatmul.mubr.bf16.gmra.mrb[0].mxu0 %v7124
        %v7879 = vpop.f32.mrb[0].mxu0
        %v7880 = vadd.f32 %v7148, %v7879
        %v7881 = vpop.f32.mrb[0].mxu0
        %v7882 = vadd.f32 %v7152, %v7881
        %v7883 = vpop.f32.mrb[0].mxu0
        %v7884 = vadd.f32 %v7148, %v7883
        %v7885 = vpop.f32.mrb[0].mxu0
        %v7886 = vadd.f32 %v7152, %v7885
        %7887 = vmatprep.mubr.bf16.mxu0 0
        %7888 = vmatmul.mubr.bf16.gmra.mrb[0].mxu0 %v7125
        %v7889 = vpop.f32.mrb[0].mxu0
        %v7890 = vadd.f32 %v7148, %v7889
        %v7891 = vpop.f32.mrb[0].mxu0
        %v7892 = vadd.f32 %v7152, %v7891
        %v7893 = vpop.f32.mrb[0].mxu0
        %v7894 = vadd.f32 %v7148, %v7893
        %v7895 = vpop.f32.mrb[0].mxu0
        %v7896 = vadd.f32 %v7152, %v7895
        %7897 = vmatprep.mubr.bf16.mxu0 0
        %7898 = vmatmul.mubr.bf16.gmra.mrb[0].mxu0 %v7126
        %v7899 = vpop.f32.mrb[0].mxu0
        %v7900 = vadd.f32 %v7148, %v7899
        %v7901 = vpop.f32.mrb[0].mxu0
        %v7902 = vadd.f32 %v7152, %v7901
        %v7903 = vpop.f32.mrb[0].mxu0
        %v7904 = vadd.f32 %v7148, %v7903
        %v7905 = vpop.f32.mrb[0].mxu0
        %v7906 = vadd.f32 %v7152, %v7905
        %7907 = vdwg.mxu0
        %7908 = vst [vmem:[%s635] sm:$0xff] %v7270
        %7909 = vst [vmem:[%s635 + $0x8] sm:$0xff] %v7272
        %7910 = vst [vmem:[%s635 + $0x10] sm:$0xff] %v7274
        %7911 = vst [vmem:[%s635 + $0x18] sm:$0xff] %v7276
        %7912 = vst [vmem:[%s635 + $0x20] sm:$0xff] %v7280
        %7913 = vst [vmem:[%s635 + $0x28] sm:$0xff] %v7282
        %7914 = vst [vmem:[%s635 + $0x30] sm:$0xff] %v7284
        %7915 = vst [vmem:[%s635 + $0x38] sm:$0xff] %v7286
        %7916 = vst [vmem:[%s635 + $0x40] sm:$0xff] %v7290
        %7917 = vst [vmem:[%s635 + $0x48] sm:$0xff] %v7292
        %7918 = vst [vmem:[%s635 + $0x50] sm:$0xff] %v7294
        %7919 = vst [vmem:[%s635 + $0x58] sm:$0xff] %v7296
        %7920 = vst [vmem:[%s635 + $0x60] sm:$0xff] %v7300
        %7921 = vst [vmem:[%s635 + $0x68] sm:$0xff] %v7302
        %7922 = vst [vmem:[%s635 + $0x70] sm:$0xff] %v7304
        %7923 = vst [vmem:[%s635 + $0x78] sm:$0xff] %v7306
        %7924 = vst [vmem:[%s635 + $0x80] sm:$0xff] %v7310
        %7925 = vst [vmem:[%s635 + $0x88] sm:$0xff] %v7312
        %7926 = vst [vmem:[%s635 + $0x90] sm:$0xff] %v7314
        %7927 = vst [vmem:[%s635 + $0x98] sm:$0xff] %v7316
        %7928 = vst [vmem:[%s635 + $0xa0] sm:$0xff] %v7320
        %7929 = vst [vmem:[%s635 + $0xa8] sm:$0xff] %v7322
        %7930 = vst [vmem:[%s635 + $0xb0] sm:$0xff] %v7324
        %7931 = vst [vmem:[%s635 + $0xb8] sm:$0xff] %v7326
        %7932 = vst [vmem:[%s635 + $0xc0] sm:$0xff] %v7330
        %7933 = vst [vmem:[%s635 + $0xc8] sm:$0xff] %v7332
        %7934 = vst [vmem:[%s635 + $0xd0] sm:$0xff] %v7334
        %7935 = vst [vmem:[%s635 + $0xd8] sm:$0xff] %v7336
        %7936 = vst [vmem:[%s635 + $0xe0] sm:$0xff] %v7340
        %7937 = vst [vmem:[%s635 + $0xe8] sm:$0xff] %v7342
        %7938 = vst [vmem:[%s635 + $0xf0] sm:$0xff] %v7344
        %7939 = vst [vmem:[%s635 + $0xf8] sm:$0xff] %v7346
        %7940 = vst [vmem:[%s635 + $0x100] sm:$0xff] %v7350
        %7941 = vst [vmem:[%s635 + $0x108] sm:$0xff] %v7352
        %7942 = vst [vmem:[%s635 + $0x110] sm:$0xff] %v7354
        %7943 = vst [vmem:[%s635 + $0x118] sm:$0xff] %v7356
        %7944 = vst [vmem:[%s635 + $0x120] sm:$0xff] %v7360
        %7945 = vst [vmem:[%s635 + $0x128] sm:$0xff] %v7362
        %7946 = vst [vmem:[%s635 + $0x130] sm:$0xff] %v7364
        %7947 = vst [vmem:[%s635 + $0x138] sm:$0xff] %v7366
        %7948 = vst [vmem:[%s635 + $0x140] sm:$0xff] %v7370
        %7949 = vst [vmem:[%s635 + $0x148] sm:$0xff] %v7372
        %7950 = vst [vmem:[%s635 + $0x150] sm:$0xff] %v7374
        %7951 = vst [vmem:[%s635 + $0x158] sm:$0xff] %v7376
        %7952 = vst [vmem:[%s635 + $0x160] sm:$0xff] %v7380
        %7953 = vst [vmem:[%s635 + $0x168] sm:$0xff] %v7382
        %7954 = vst [vmem:[%s635 + $0x170] sm:$0xff] %v7384
        %7955 = vst [vmem:[%s635 + $0x178] sm:$0xff] %v7386
        %7956 = vst [vmem:[%s635 + $0x180] sm:$0xff] %v7390
        %7957 = vst [vmem:[%s635 + $0x188] sm:$0xff] %v7392
        %7958 = vst [vmem:[%s635 + $0x190] sm:$0xff] %v7394
        %7959 = vst [vmem:[%s635 + $0x198] sm:$0xff] %v7396
        %7960 = vst [vmem:[%s635 + $0x1a0] sm:$0xff] %v7400
        %7961 = vst [vmem:[%s635 + $0x1a8] sm:$0xff] %v7402
        %7962 = vst [vmem:[%s635 + $0x1b0] sm:$0xff] %v7404
        %7963 = vst [vmem:[%s635 + $0x1b8] sm:$0xff] %v7406
        %7964 = vst [vmem:[%s635 + $0x1c0] sm:$0xff] %v7410
        %7965 = vst [vmem:[%s635 + $0x1c8] sm:$0xff] %v7412
        %7966 = vst [vmem:[%s635 + $0x1d0] sm:$0xff] %v7414
        %7967 = vst [vmem:[%s635 + $0x1d8] sm:$0xff] %v7416
        %7968 = vst [vmem:[%s635 + $0x1e0] sm:$0xff] %v7420
        %7969 = vst [vmem:[%s635 + $0x1e8] sm:$0xff] %v7422
        %7970 = vst [vmem:[%s635 + $0x1f0] sm:$0xff] %v7424
        %7971 = vst [vmem:[%s635 + $0x1f8] sm:$0xff] %v7426
        %7972 = vst [vmem:[%s635 + $0x200] sm:$0xff] %v7430
        %7973 = vst [vmem:[%s635 + $0x208] sm:$0xff] %v7432
        %7974 = vst [vmem:[%s635 + $0x210] sm:$0xff] %v7434
        %7975 = vst [vmem:[%s635 + $0x218] sm:$0xff] %v7436
        %7976 = vst [vmem:[%s635 + $0x220] sm:$0xff] %v7440
        %7977 = vst [vmem:[%s635 + $0x228] sm:$0xff] %v7442
        %7978 = vst [vmem:[%s635 + $0x230] sm:$0xff] %v7444
        %7979 = vst [vmem:[%s635 + $0x238] sm:$0xff] %v7446
        %7980 = vst [vmem:[%s635 + $0x240] sm:$0xff] %v7450
        %7981 = vst [vmem:[%s635 + $0x248] sm:$0xff] %v7452
        %7982 = vst [vmem:[%s635 + $0x250] sm:$0xff] %v7454
        %7983 = vst [vmem:[%s635 + $0x258] sm:$0xff] %v7456
        %7984 = vst [vmem:[%s635 + $0x260] sm:$0xff] %v7460
        %7985 = vst [vmem:[%s635 + $0x268] sm:$0xff] %v7462
        %7986 = vst [vmem:[%s635 + $0x270] sm:$0xff] %v7464
        %7987 = vst [vmem:[%s635 + $0x278] sm:$0xff] %v7466
        %7988 = vst [vmem:[%s635 + $0x280] sm:$0xff] %v7470
        %7989 = vst [vmem:[%s635 + $0x288] sm:$0xff] %v7472
        %7990 = vst [vmem:[%s635 + $0x290] sm:$0xff] %v7474
        %7991 = vst [vmem:[%s635 + $0x298] sm:$0xff] %v7476
        %7992 = vst [vmem:[%s635 + $0x2a0] sm:$0xff] %v7480
        %7993 = vst [vmem:[%s635 + $0x2a8] sm:$0xff] %v7482
        %7994 = vst [vmem:[%s635 + $0x2b0] sm:$0xff] %v7484
        %7995 = vst [vmem:[%s635 + $0x2b8] sm:$0xff] %v7486
        %7996 = vst [vmem:[%s635 + $0x2c0] sm:$0xff] %v7490
        %7997 = vst [vmem:[%s635 + $0x2c8] sm:$0xff] %v7492
        %7998 = vst [vmem:[%s635 + $0x2d0] sm:$0xff] %v7494
        %7999 = vst [vmem:[%s635 + $0x2d8] sm:$0xff] %v7496
        %8000 = vst [vmem:[%s635 + $0x2e0] sm:$0xff] %v7500
        %8001 = vst [vmem:[%s635 + $0x2e8] sm:$0xff] %v7502
        %8002 = vst [vmem:[%s635 + $0x2f0] sm:$0xff] %v7504
        %8003 = vst [vmem:[%s635 + $0x2f8] sm:$0xff] %v7506
        %8004 = vst [vmem:[%s635 + $0x300] sm:$0xff] %v7510
        %8005 = vst [vmem:[%s635 + $0x308] sm:$0xff] %v7512
        %8006 = vst [vmem:[%s635 + $0x310] sm:$0xff] %v7514
        %8007 = vst [vmem:[%s635 + $0x318] sm:$0xff] %v7516
        %8008 = vst [vmem:[%s635 + $0x320] sm:$0xff] %v7520
        %8009 = vst [vmem:[%s635 + $0x328] sm:$0xff] %v7522
        %8010 = vst [vmem:[%s635 + $0x330] sm:$0xff] %v7524
        %8011 = vst [vmem:[%s635 + $0x338] sm:$0xff] %v7526
        %8012 = vst [vmem:[%s635 + $0x340] sm:$0xff] %v7530
        %8013 = vst [vmem:[%s635 + $0x348] sm:$0xff] %v7532
        %8014 = vst [vmem:[%s635 + $0x350] sm:$0xff] %v7534
        %8015 = vst [vmem:[%s635 + $0x358] sm:$0xff] %v7536
        %8016 = vst [vmem:[%s635 + $0x360] sm:$0xff] %v7540
        %8017 = vst [vmem:[%s635 + $0x368] sm:$0xff] %v7542
        %8018 = vst [vmem:[%s635 + $0x370] sm:$0xff] %v7544
        %8019 = vst [vmem:[%s635 + $0x378] sm:$0xff] %v7546
        %8020 = vst [vmem:[%s635 + $0x380] sm:$0xff] %v7550
        %8021 = vst [vmem:[%s635 + $0x388] sm:$0xff] %v7552
        %8022 = vst [vmem:[%s635 + $0x390] sm:$0xff] %v7554
        %8023 = vst [vmem:[%s635 + $0x398] sm:$0xff] %v7556
        %8024 = vst [vmem:[%s635 + $0x3a0] sm:$0xff] %v7560
        %8025 = vst [vmem:[%s635 + $0x3a8] sm:$0xff] %v7562
        %8026 = vst [vmem:[%s635 + $0x3b0] sm:$0xff] %v7564
        %8027 = vst [vmem:[%s635 + $0x3b8] sm:$0xff] %v7566
        %8028 = vst [vmem:[%s635 + $0x3c0] sm:$0xff] %v7570
        %8029 = vst [vmem:[%s635 + $0x3c8] sm:$0xff] %v7572
        %8030 = vst [vmem:[%s635 + $0x3d0] sm:$0xff] %v7574
        %8031 = vst [vmem:[%s635 + $0x3d8] sm:$0xff] %v7576
        %8032 = vst [vmem:[%s635 + $0x3e0] sm:$0xff] %v7580
        %8033 = vst [vmem:[%s635 + $0x3e8] sm:$0xff] %v7582
        %8034 = vst [vmem:[%s635 + $0x3f0] sm:$0xff] %v7584
        %8035 = vst [vmem:[%s635 + $0x3f8] sm:$0xff] %v7586
        %8036 = vst [vmem:[%s635 + $0x400] sm:$0xff] %v7590
        %8037 = vst [vmem:[%s635 + $0x408] sm:$0xff] %v7592
        %8038 = vst [vmem:[%s635 + $0x410] sm:$0xff] %v7594
        %8039 = vst [vmem:[%s635 + $0x418] sm:$0xff] %v7596
        %8040 = vst [vmem:[%s635 + $0x420] sm:$0xff] %v7600
        %8041 = vst [vmem:[%s635 + $0x428] sm:$0xff] %v7602
        %8042 = vst [vmem:[%s635 + $0x430] sm:$0xff] %v7604
        %8043 = vst [vmem:[%s635 + $0x438] sm:$0xff] %v7606
        %8044 = vst [vmem:[%s635 + $0x440] sm:$0xff] %v7610
        %8045 = vst [vmem:[%s635 + $0x448] sm:$0xff] %v7612
        %8046 = vst [vmem:[%s635 + $0x450] sm:$0xff] %v7614
        %8047 = vst [vmem:[%s635 + $0x458] sm:$0xff] %v7616
        %8048 = vst [vmem:[%s635 + $0x460] sm:$0xff] %v7620
        %8049 = vst [vmem:[%s635 + $0x468] sm:$0xff] %v7622
        %8050 = vst [vmem:[%s635 + $0x470] sm:$0xff] %v7624
        %8051 = vst [vmem:[%s635 + $0x478] sm:$0xff] %v7626
        %8052 = vst [vmem:[%s635 + $0x480] sm:$0xff] %v7630
        %8053 = vst [vmem:[%s635 + $0x488] sm:$0xff] %v7632
        %8054 = vst [vmem:[%s635 + $0x490] sm:$0xff] %v7634
        %8055 = vst [vmem:[%s635 + $0x498] sm:$0xff] %v7636
        %8056 = vst [vmem:[%s635 + $0x4a0] sm:$0xff] %v7640
        %8057 = vst [vmem:[%s635 + $0x4a8] sm:$0xff] %v7642
        %8058 = vst [vmem:[%s635 + $0x4b0] sm:$0xff] %v7644
        %8059 = vst [vmem:[%s635 + $0x4b8] sm:$0xff] %v7646
        %8060 = vst [vmem:[%s635 + $0x4c0] sm:$0xff] %v7650
        %8061 = vst [vmem:[%s635 + $0x4c8] sm:$0xff] %v7652
        %8062 = vst [vmem:[%s635 + $0x4d0] sm:$0xff] %v7654
        %8063 = vst [vmem:[%s635 + $0x4d8] sm:$0xff] %v7656
        %8064 = vst [vmem:[%s635 + $0x4e0] sm:$0xff] %v7660
        %8065 = vst [vmem:[%s635 + $0x4e8] sm:$0xff] %v7662
        %8066 = vst [vmem:[%s635 + $0x4f0] sm:$0xff] %v7664
        %8067 = vst [vmem:[%s635 + $0x4f8] sm:$0xff] %v7666
        %8068 = vst [vmem:[%s635 + $0x500] sm:$0xff] %v7670
        %8069 = vst [vmem:[%s635 + $0x508] sm:$0xff] %v7672
        %8070 = vst [vmem:[%s635 + $0x510] sm:$0xff] %v7674
        %8071 = vst [vmem:[%s635 + $0x518] sm:$0xff] %v7676
        %8072 = vst [vmem:[%s635 + $0x520] sm:$0xff] %v7680
        %8073 = vst [vmem:[%s635 + $0x528] sm:$0xff] %v7682
        %8074 = vst [vmem:[%s635 + $0x530] sm:$0xff] %v7684
        %8075 = vst [vmem:[%s635 + $0x538] sm:$0xff] %v7686
        %8076 = vst [vmem:[%s635 + $0x540] sm:$0xff] %v7690
        %8077 = vst [vmem:[%s635 + $0x548] sm:$0xff] %v7692
        %8078 = vst [vmem:[%s635 + $0x550] sm:$0xff] %v7694
        %8079 = vst [vmem:[%s635 + $0x558] sm:$0xff] %v7696
        %8080 = vst [vmem:[%s635 + $0x560] sm:$0xff] %v7700
        %8081 = vst [vmem:[%s635 + $0x568] sm:$0xff] %v7702
        %8082 = vst [vmem:[%s635 + $0x570] sm:$0xff] %v7704
        %8083 = vst [vmem:[%s635 + $0x578] sm:$0xff] %v7706
        %8084 = vst [vmem:[%s635 + $0x580] sm:$0xff] %v7710
        %8085 = vst [vmem:[%s635 + $0x588] sm:$0xff] %v7712
        %8086 = vst [vmem:[%s635 + $0x590] sm:$0xff] %v7714
        %8087 = vst [vmem:[%s635 + $0x598] sm:$0xff] %v7716
        %8088 = vst [vmem:[%s635 + $0x5a0] sm:$0xff] %v7720
        %8089 = vst [vmem:[%s635 + $0x5a8] sm:$0xff] %v7722
        %8090 = vst [vmem:[%s635 + $0x5b0] sm:$0xff] %v7724
        %8091 = vst [vmem:[%s635 + $0x5b8] sm:$0xff] %v7726
        %8092 = vst [vmem:[%s635 + $0x5c0] sm:$0xff] %v7730
        %8093 = vst [vmem:[%s635 + $0x5c8] sm:$0xff] %v7732
        %8094 = vst [vmem:[%s635 + $0x5d0] sm:$0xff] %v7734
        %8095 = vst [vmem:[%s635 + $0x5d8] sm:$0xff] %v7736
        %8096 = vst [vmem:[%s635 + $0x5e0] sm:$0xff] %v7740
        %8097 = vst [vmem:[%s635 + $0x5e8] sm:$0xff] %v7742
        %8098 = vst [vmem:[%s635 + $0x5f0] sm:$0xff] %v7744
        %8099 = vst [vmem:[%s635 + $0x5f8] sm:$0xff] %v7746
        %8100 = vst [vmem:[%s635 + $0x600] sm:$0xff] %v7750
        %8101 = vst [vmem:[%s635 + $0x608] sm:$0xff] %v7752
        %8102 = vst [vmem:[%s635 + $0x610] sm:$0xff] %v7754
        %8103 = vst [vmem:[%s635 + $0x618] sm:$0xff] %v7756
        %8104 = vst [vmem:[%s635 + $0x620] sm:$0xff] %v7760
        %8105 = vst [vmem:[%s635 + $0x628] sm:$0xff] %v7762
        %8106 = vst [vmem:[%s635 + $0x630] sm:$0xff] %v7764
        %8107 = vst [vmem:[%s635 + $0x638] sm:$0xff] %v7766
        %8108 = vst [vmem:[%s635 + $0x640] sm:$0xff] %v7770
        %8109 = vst [vmem:[%s635 + $0x648] sm:$0xff] %v7772
        %8110 = vst [vmem:[%s635 + $0x650] sm:$0xff] %v7774
        %8111 = vst [vmem:[%s635 + $0x658] sm:$0xff] %v7776
        %8112 = vst [vmem:[%s635 + $0x660] sm:$0xff] %v7780
        %8113 = vst [vmem:[%s635 + $0x668] sm:$0xff] %v7782
        %8114 = vst [vmem:[%s635 + $0x670] sm:$0xff] %v7784
        %8115 = vst [vmem:[%s635 + $0x678] sm:$0xff] %v7786
        %8116 = vst [vmem:[%s635 + $0x680] sm:$0xff] %v7790
        %8117 = vst [vmem:[%s635 + $0x688] sm:$0xff] %v7792
        %8118 = vst [vmem:[%s635 + $0x690] sm:$0xff] %v7794
        %8119 = vst [vmem:[%s635 + $0x698] sm:$0xff] %v7796
        %8120 = vst [vmem:[%s635 + $0x6a0] sm:$0xff] %v7800
        %8121 = vst [vmem:[%s635 + $0x6a8] sm:$0xff] %v7802
        %8122 = vst [vmem:[%s635 + $0x6b0] sm:$0xff] %v7804
        %8123 = vst [vmem:[%s635 + $0x6b8] sm:$0xff] %v7806
        %8124 = vst [vmem:[%s635 + $0x6c0] sm:$0xff] %v7810
        %8125 = vst [vmem:[%s635 + $0x6c8] sm:$0xff] %v7812
        %8126 = vst [vmem:[%s635 + $0x6d0] sm:$0xff] %v7814
        %8127 = vst [vmem:[%s635 + $0x6d8] sm:$0xff] %v7816
        %8128 = vst [vmem:[%s635 + $0x6e0] sm:$0xff] %v7820
        %8129 = vst [vmem:[%s635 + $0x6e8] sm:$0xff] %v7822
        %8130 = vst [vmem:[%s635 + $0x6f0] sm:$0xff] %v7824
        %8131 = vst [vmem:[%s635 + $0x6f8] sm:$0xff] %v7826
        %8132 = vst [vmem:[%s635 + $0x700] sm:$0xff] %v7830
        %8133 = vst [vmem:[%s635 + $0x708] sm:$0xff] %v7832
        %8134 = vst [vmem:[%s635 + $0x710] sm:$0xff] %v7834
        %8135 = vst [vmem:[%s635 + $0x718] sm:$0xff] %v7836
        %8136 = vst [vmem:[%s635 + $0x720] sm:$0xff] %v7840
        %8137 = vst [vmem:[%s635 + $0x728] sm:$0xff] %v7842
        %8138 = vst [vmem:[%s635 + $0x730] sm:$0xff] %v7844
        %8139 = vst [vmem:[%s635 + $0x738] sm:$0xff] %v7846
        %8140 = vst [vmem:[%s635 + $0x740] sm:$0xff] %v7850
        %8141 = vst [vmem:[%s635 + $0x748] sm:$0xff] %v7852
        %8142 = vst [vmem:[%s635 + $0x750] sm:$0xff] %v7854
        %8143 = vst [vmem:[%s635 + $0x758] sm:$0xff] %v7856
        %8144 = vst [vmem:[%s635 + $0x760] sm:$0xff] %v7860
        %8145 = vst [vmem:[%s635 + $0x768] sm:$0xff] %v7862
        %8146 = vst [vmem:[%s635 + $0x770] sm:$0xff] %v7864
        %8147 = vst [vmem:[%s635 + $0x778] sm:$0xff] %v7866
        %8148 = vst [vmem:[%s635 + $0x780] sm:$0xff] %v7870
        %8149 = vst [vmem:[%s635 + $0x788] sm:$0xff] %v7872
        %8150 = vst [vmem:[%s635 + $0x790] sm:$0xff] %v7874
        %8151 = vst [vmem:[%s635 + $0x798] sm:$0xff] %v7876
        %8152 = vst [vmem:[%s635 + $0x7a0] sm:$0xff] %v7880
        %8153 = vst [vmem:[%s635 + $0x7a8] sm:$0xff] %v7882
        %8154 = vst [vmem:[%s635 + $0x7b0] sm:$0xff] %v7884
        %8155 = vst [vmem:[%s635 + $0x7b8] sm:$0xff] %v7886
        %8156 = vst [vmem:[%s635 + $0x7c0] sm:$0xff] %v7890
        %8157 = vst [vmem:[%s635 + $0x7c8] sm:$0xff] %v7892
        %8158 = vst [vmem:[%s635 + $0x7d0] sm:$0xff] %v7894
        %8159 = vst [vmem:[%s635 + $0x7d8] sm:$0xff] %v7896
        %8160 = vst [vmem:[%s635 + $0x7e0] sm:$0xff] %v7900
        %8161 = vst [vmem:[%s635 + $0x7e8] sm:$0xff] %v7902
        %8162 = vst [vmem:[%s635 + $0x7f0] sm:$0xff] %v7904
        %8163 = vst [vmem:[%s635 + $0x7f8] sm:$0xff] %v7906
        %s8164 = sand.u32 %s348, 1
        %s8165 = scalar_lea.sflag [#allocation4], %s8164
        %s8166 = sand.u32 %s348, 1
        %s8167 = smul.addr %s8166, 2048
        %s8168 = scalar_lea.vmem [#allocation20], %s8167
        // Predicated region
        $region121: #{tpu_custom_call.1} parent=75 // pred_check
          %p8169 = pneg %p358
        $region122: #{tpu_custom_call.1} parent=75 // pred_check_branch
          %8171 = sbr.rel (%p8169) target = $region124
        $region123: #{tpu_custom_call.1} parent=75 // pred_region
          %s8172 = smul.u32 128, %s36
          %s8174 = ssub.s32 32768, 32768
          %8175 = vsyncadd %s8165, %s8174
          %s8176 = smul.addr %s8172, 2
          %s8177 = smul.addr %s8176, 128
          %s8178 = scalar_lea.hbm %s14, %s8177
          %s8179 = sshll.u32 %s8168, 4
          %s8180 = int_to_ptr.vmem [resolvable:$true] %s8179
          %8185 = dma.vmem_to_hbm [thread:$0]  %s8180, 32768, %s8178, %s8165, 256, 256, 16
        $region124: #{tpu_custom_call.1} parent=75 // pred_fallthru
          _
      $region76: #{tpu_custom_call.1} parent=5 // pred_fallthru
        _
      %p8186 = scmp.le.s32.totalorder 2, %s31
      // Predicated region
      $region125: #{tpu_custom_call.1} parent=5 // pred_check
        %p8187 = pneg %p8186
      $region126: #{tpu_custom_call.1} parent=5 // pred_check_branch
        %8189 = sbr.rel (%p8187) target = $region128
      $region127: #{tpu_custom_call.1} parent=5 // pred_region
        %s8190 = ssub.s32 %s31, 2
        // Predicated region
        $region129: #{tpu_custom_call.1} parent=127 // pred_check
          %p8191 = pneg %p364
        $region130: #{tpu_custom_call.1} parent=127 // pred_check_branch
          %8193 = sbr.rel (%p8191) target = $region132
        $region131: #{tpu_custom_call.1} parent=127 // pred_region
          %s8194 = sand.u32 %s349, 1
          %s8195 = scalar_lea.sflag [#allocation4], %s8194
          %s8196 = sand.u32 %s349, 1
          %s8197 = smul.addr %s8196, 2048
          %s8198 = scalar_lea.vmem [#allocation20], %s8197
          %8199 = dma.done %s8195, 32768
        $region132: #{tpu_custom_call.1} parent=127 // pred_fallthru
          _
      $region128: #{tpu_custom_call.1} parent=5 // pred_fallthru
        _
    $region6: #{tpu_custom_call.1} parent=1 // loop_footer
      %s35 = sadd.s32 1, %s31
    $region7: #{tpu_custom_call.1} parent=1 // loop_footer_branch
      %30 = sbr.rel target = $region3
    $region8: #{tpu_custom_call.1} parent=1 // loop_exit
      _
    %8200 = vsyncpa [#allocation3], 1
    %s8201 = scalar_lea.sflag [#allocation3], 1
    %8202 = vsyncpa %s8201, 1
    %8203 = vsyncpa [#allocation6], 1
    %8204 = vsyncpa [#allocation9], 1
    %8205 = vsyncpa [#allocation12], 1
    %8206 = vsyncpa [#allocation15], 1
    %8207 = vsyncpa [#allocation18], 1
    %8208 = vsyncpa [#allocation4], 1
    %s8209 = scalar_lea.sflag [#allocation4], 1
    %8210 = vsyncpa %s8209, 1

</llo_original>
